<compile_context>
chip_gen: v7x
topology: tpu7x:2x2x1
jax: 0.10.0
libtpu: 0.0.40
codegen_flags: <defaults>
</compile_context>

<pallas_src>
import functools

import jax
import jax.numpy as jnp
from jax.experimental import pallas as pl
from jax.experimental.pallas import tpu as pltpu

BN_EPS = 1e-5


def _vmem_limit_bytes():
    """Generation-aware VMEM budget (v7x has only 64 MiB/TC); safe fallback."""
    try:
        info = pltpu.get_tpu_info()
        cap = getattr(info, "vmem_capacity_bytes", 128 * 1024 * 1024)
        return int(min(64 * 1024 * 1024, (cap * 3) // 4))
    except Exception:
        return 32 * 1024 * 1024


_VMEM_LIMIT = _vmem_limit_bytes()


def _pick_image_block(n, max_nb=8):
    """Largest divisor of n that is <= max_nb (images per grid step)."""
    nb = 1
    for d in range(1, min(n, max_nb) + 1):
        if n % d == 0:
            nb = d
    return nb


# ------------------------------ Pallas kernels ------------------------------

def _conv3x3_s1_stats_kernel(xs_ref, w_ref, conv_ref, sum_ref, ssq_ref,
                             *, nb, wo, hw):
    """stride-1 3x3 conv as 9 shifted matmuls + per-step channel sum / sumsq.

    xs_ref  : (3, nb, (Ho+2)*Wo, Cin) bf16  column-shifted, row-flattened input
    w_ref   : (9, Cin, Cout)          bf16  per-tap weights
    conv_ref: (nb, Ho*Wo, Cout)       bf16  raw conv output
    sum_ref : (1, 1, Cout)            f32   per-step partial sum
    ssq_ref : (1, 1, Cout)            f32   per-step partial sum of squares
    """
    cout = w_ref.shape[2]
    s = jnp.zeros((1, cout), jnp.float32)
    q = jnp.zeros((1, cout), jnp.float32)
    for b in range(nb):
        acc = jnp.zeros((hw, cout), jnp.float32)
        for k in range(9):
            dh, dw = k // 3, k % 3
            # static slice of the resident VMEM block: rows [dh*Wo, dh*Wo+HW)
            slab = xs_ref[dw, b, dh * wo: dh * wo + hw, :]
            acc += jnp.dot(slab, w_ref[k], preferred_element_type=jnp.float32)
        conv_ref[b] = acc.astype(conv_ref.dtype)
        s += jnp.sum(acc, axis=0, keepdims=True)
        q += jnp.sum(acc * acc, axis=0, keepdims=True)
    sum_ref[0] = s
    ssq_ref[0] = q


def _im2col_gemm_stats_kernel(p_ref, w_ref, conv_ref, sum_ref, ssq_ref, *, nb):
    """conv-as-GEMM on nb images' pre-built patches + per-step channel stats.

    p_ref   : (nb, Ho*Wo, 9*Cin) bf16
    w_ref   : (9*Cin, Cout)      bf16
    conv_ref: (nb, Ho*Wo, Cout)  bf16
    """
    cout = w_ref.shape[1]
    s = jnp.zeros((1, cout), jnp.float32)
    q = jnp.zeros((1, cout), jnp.float32)
    for b in range(nb):
        acc = jnp.dot(p_ref[b], w_ref[...], preferred_element_type=jnp.float32)
        conv_ref[b] = acc.astype(conv_ref.dtype)
        s += jnp.sum(acc, axis=0, keepdims=True)
        q += jnp.sum(acc * acc, axis=0, keepdims=True)
    sum_ref[0] = s
    ssq_ref[0] = q


def _bn_relu_kernel(c_ref, scale_ref, shift_ref, o_ref):
    """y = relu(conv * scale + shift); conv is bf16, math in f32."""
    y = c_ref[...].astype(jnp.float32) * scale_ref[...] + shift_ref[...]
    o_ref[...] = jnp.maximum(y, 0.0).astype(o_ref.dtype)


def _bn_add_relu_kernel(c_ref, scale_ref, shift_ref, sc_ref, o_ref):
    """y = relu(conv * scale + shift + shortcut)."""
    y = (c_ref[...].astype(jnp.float32) * scale_ref[...] + shift_ref[...]
         + sc_ref[...].astype(jnp.float32))
    o_ref[...] = jnp.maximum(y, 0.0).astype(o_ref.dtype)


# ------------------------------ kernel wrappers ------------------------------

def _conv3x3_s1_stats(x_nhwc, w, nb):
    """3x3 / stride 1 / pad 1 conv + BN batch-stat partials (no HBM im2col)."""
    N, H, W, Cin = x_nhwc.shape
    Cout = w.shape[0]
    Ho, Wo, HW = H, W, H * W
    HpW = (H + 2) * W

    xp = jnp.pad(x_nhwc.astype(jnp.bfloat16), ((0, 0), (1, 1), (1, 1), (0, 0)))
    # xs[dw, n, h*Wo + wo, c] = xpad[n, h, wo + dw, c]
    xs = jnp.stack(
        [xp[:, :, dw:dw + Wo, :].reshape(N, HpW, Cin) for dw in range(3)], axis=0)
    wk = jnp.transpose(w, (2, 3, 1, 0)).reshape(9, Cin, Cout).astype(jnp.bfloat16)

    grid_n = N // nb
    kernel = functools.partial(_conv3x3_s1_stats_kernel, nb=nb, wo=Wo, hw=HW)
    flops = 2 * N * HW * 9 * Cin * Cout
    bytes_acc = int(xs.size * 2 + wk.size * 2 + N * HW * Cout * 2
                    + 2 * grid_n * Cout * 4)

    conv, psum, pssq = pl.pallas_call(
        kernel,
        out_shape=(jax.ShapeDtypeStruct((N, HW, Cout), jnp.bfloat16),
                   jax.ShapeDtypeStruct((grid_n, 1, Cout), jnp.float32),
                   jax.ShapeDtypeStruct((grid_n, 1, Cout), jnp.float32)),
        grid=(grid_n,),
        in_specs=[pl.BlockSpec((3, nb, HpW, Cin), lambda i: (0, i, 0, 0)),
                  pl.BlockSpec((9, Cin, Cout), lambda i: (0, 0, 0))],
        out_specs=(pl.BlockSpec((nb, HW, Cout), lambda i: (i, 0, 0)),
                   pl.BlockSpec((1, 1, Cout), lambda i: (i, 0, 0)),
                   pl.BlockSpec((1, 1, Cout), lambda i: (i, 0, 0))),
        compiler_params=pltpu.CompilerParams(
            dimension_semantics=("parallel",),
            vmem_limit_bytes=_VMEM_LIMIT),
        cost_estimate=pl.CostEstimate(flops=flops, transcendentals=0,
                                      bytes_accessed=bytes_acc),
    )(xs, wk)
    return conv, psum, pssq, (Ho, Wo)


def _conv3x3_im2col_stats(x_nhwc, w, stride):
    """3x3 / pad 1 conv for stride >= 2 via a compact im2col GEMM (real K)."""
    N, H, W, Cin = x_nhwc.shape
    Cout = w.shape[0]
    Ho = (H - 1) // stride + 1
    Wo = (W - 1) // stride + 1
    HW = Ho * Wo
    K = 9 * Cin

    xp = jnp.pad(x_nhwc.astype(jnp.bfloat16), ((0, 0), (1, 1), (1, 1), (0, 0)))
    cols = []
    for dh in range(3):
        for dw in range(3):
            cols.append(xp[:, dh:dh + (Ho - 1) * stride + 1:stride,
                            dw:dw + (Wo - 1) * stride + 1:stride, :])
    patches = jnp.stack(cols, axis=3).reshape(N, HW, K)        # bf16, no padding
    wk = jnp.transpose(w, (2, 3, 1, 0)).reshape(K, Cout).astype(jnp.bfloat16)

    nb = _pick_image_block(N)
    grid_n = N // nb
    kernel = functools.partial(_im2col_gemm_stats_kernel, nb=nb)
    flops = 2 * N * HW * K * Cout
    bytes_acc = int(patches.size * 2 + wk.size * 2 + N * HW * Cout * 2
                    + 2 * grid_n * Cout * 4)

    conv, psum, pssq = pl.pallas_call(
        kernel,
        out_shape=(jax.ShapeDtypeStruct((N, HW, Cout), jnp.bfloat16),
                   jax.ShapeDtypeStruct((grid_n, 1, Cout), jnp.float32),
                   jax.ShapeDtypeStruct((grid_n, 1, Cout), jnp.float32)),
        grid=(grid_n,),
        in_specs=[pl.BlockSpec((nb, HW, K), lambda i: (i, 0, 0)),
                  pl.BlockSpec((K, Cout), lambda i: (0, 0))],
        out_specs=(pl.BlockSpec((nb, HW, Cout), lambda i: (i, 0, 0)),
                   pl.BlockSpec((1, 1, Cout), lambda i: (i, 0, 0)),
                   pl.BlockSpec((1, 1, Cout), lambda i: (i, 0, 0))),
        compiler_params=pltpu.CompilerParams(
            dimension_semantics=("parallel",),
            vmem_limit_bytes=_VMEM_LIMIT),
        cost_estimate=pl.CostEstimate(flops=flops, transcendentals=0,
                                      bytes_accessed=bytes_acc),
    )(patches, wk)
    return conv, psum, pssq, (Ho, Wo)


def _bn_apply(conv, scale, shift, shortcut, nb, out_dtype):
    """BN apply (+ optional residual) + ReLU, gridded over image blocks."""
    N, HW, C = conv.shape
    blk = pl.BlockSpec((nb, HW, C), lambda i: (i, 0, 0))
    vec = pl.BlockSpec((1, 1, C), lambda i: (0, 0, 0))
    if shortcut is None:
        kernel = _bn_relu_kernel
        args = (conv, scale, shift)
        in_specs = [blk, vec, vec]
        extra_bytes = 0
        flops = 3 * N * HW * C
    else:
        kernel = _bn_add_relu_kernel
        args = (conv, scale, shift, shortcut)
        in_specs = [blk, vec, vec, blk]
        extra_bytes = shortcut.size * shortcut.dtype.itemsize
        flops = 4 * N * HW * C
    bytes_acc = int(conv.size * conv.dtype.itemsize
                    + N * HW * C * jnp.dtype(out_dtype).itemsize
                    + extra_bytes + 2 * C * 4)
    return pl.pallas_call(
        kernel,
        out_shape=jax.ShapeDtypeStruct((N, HW, C), out_dtype),
        grid=(N // nb,),
        in_specs=in_specs,
        out_specs=blk,
        compiler_params=pltpu.CompilerParams(
            dimension_semantics=("parallel",),
            vmem_limit_bytes=_VMEM_LIMIT),
        cost_estimate=pl.CostEstimate(flops=flops, transcendentals=0,
                                      bytes_accessed=bytes_acc),
    )(*args)


def _bn_fold(psum, pssq, gamma, beta, m_real):
    """Reduce per-step partials, fold batch stats + gamma/beta into scale/shift."""
    csum = jnp.sum(psum, axis=0, keepdims=False).reshape(1, 1, -1)
    cssq = jnp.sum(pssq, axis=0, keepdims=False).reshape(1, 1, -1)
    mean = csum / m_real
    var = jnp.maximum(cssq / m_real - mean * mean, 0.0)     # biased variance
    scale = gamma.reshape(1, 1, -1) * jax.lax.rsqrt(var + BN_EPS)
    shift = beta.reshape(1, 1, -1) - mean * scale
    return scale, shift


# --------------------------------- JAX glue ---------------------------------

def init_basic_block(key, in_planes, planes):
    k1, k2, k3, k4, k5, k6 = jax.random.split(key, 6)
    w1 = jax.random.normal(k1, (planes, in_planes, 3, 3), jnp.float32) * 0.1
    w2 = jax.random.normal(k2, (planes, planes, 3, 3), jnp.float32) * 0.1
    g1 = 1.0 + 0.1 * jax.random.normal(k3, (planes,), jnp.float32)
    b1 = 0.1 * jax.random.normal(k4, (planes,), jnp.float32)
    g2 = 1.0 + 0.1 * jax.random.normal(k5, (planes,), jnp.float32)
    b2 = 0.1 * jax.random.normal(k6, (planes,), jnp.float32)
    return (w1, g1, b1, w2, g2, b2)


def basic_block_forward(x_nchw, params, stride=1, option="A"):
    w1, g1, b1, w2, g2, b2 = params
    N, in_planes, H, W = x_nchw.shape
    planes = w1.shape[0]

    x_nhwc = jnp.transpose(x_nchw, (0, 2, 3, 1))
    nb = _pick_image_block(N)

    # ---------------- conv1 -> bn1 -> relu ----------------
    if stride == 1:
        conv1, s1, q1, (Ho, Wo) = _conv3x3_s1_stats(x_nhwc, w1, nb)
    else:
        conv1, s1, q1, (Ho, Wo) = _conv3x3_im2col_stats(x_nhwc, w1, stride)
    M = N * Ho * Wo
    scale1, shift1 = _bn_fold(s1, q1, g1, b1, float(M))
    out1 = _bn_apply(conv1, scale1, shift1, None, nb, jnp.bfloat16)  # (N,HW,planes)
    out1_nhwc = out1.reshape(N, Ho, Wo, planes)

    # ---------------- conv2 (stride 1) -> bn2 ----------------
    conv2, s2, q2, _ = _conv3x3_s1_stats(out1_nhwc, w2, nb)
    scale2, shift2 = _bn_fold(s2, q2, g2, b2, float(M))

    # ---------------- shortcut (identity or option 'A') ----------------
    if stride != 1 or in_planes != planes:
        if option != "A":
            raise NotImplementedError("only option 'A' shortcut implemented")
        sc = x_nhwc[:, ::2, ::2, :]
        pad = planes // 4
        sc = jnp.pad(sc, ((0, 0), (0, 0), (0, 0), (pad, pad)))
    else:
        sc = x_nhwc
    sc = sc.reshape(N, Ho * Wo, planes).astype(jnp.bfloat16)

    # ---------------- bn2-apply + residual + relu ----------------
    out2 = _bn_apply(conv2, scale2, shift2, sc, nb, jnp.float32)     # (N,HW,planes)
    out_nhwc = out2.reshape(N, Ho, Wo, planes)
    return jnp.transpose(out_nhwc, (0, 3, 1, 2))                     # back to NCHW


# ------------------------- pure-JAX reference (check) ------------------------

def _reference_forward(x, params, stride=1):
    w1, g1, b1, w2, g2, b2 = params
    planes = w1.shape[0]
    in_planes = x.shape[1]

    def conv(v, w, s):
        return jax.lax.conv_general_dilated(
            v, w, window_strides=(s, s), padding=((1, 1), (1, 1)),
            dimension_numbers=("NCHW", "OIHW", "NCHW"))

    def bn(v, g, b):
        mean = jnp.mean(v, axis=(0, 2, 3), keepdims=True)
        var = jnp.mean(jnp.square(v - mean), axis=(0, 2, 3), keepdims=True)
        vh = (v - mean) * jax.lax.rsqrt(var + BN_EPS)
        return vh * g.reshape(1, -1, 1, 1) + b.reshape(1, -1, 1, 1)

    out = jax.nn.relu(bn(conv(x, w1, stride), g1, b1))
    out = bn(conv(out, w2, 1), g2, b2)
    if stride != 1 or in_planes != planes:
        xs = x[:, :, ::2, ::2]
        pad = planes // 4
        xs = jnp.pad(xs, ((0, 0), (pad, pad), (0, 0), (0, 0)))
    else:
        xs = x
    return jax.nn.relu(out + xs)


# ----------------------------------- main ------------------------------------

if __name__ == "__main__":
    key = jax.random.PRNGKey(0)
    kx, kp1, kp2 = jax.random.split(key, 3)

    x = jax.random.normal(kx, (2, 4, 16, 16), jnp.float32)   # NCHW

    # Config 1: stride=1, in_planes == planes -> identity shortcut
    params1 = init_basic_block(kp1, in_planes=4, planes=4)
    y1 = basic_block_forward(x, params1, stride=1)
    jax.block_until_ready(y1)
    assert y1.shape == (2, 4, 16, 16)
    assert bool(jnp.all(y1 >= 0.0))
    assert bool(jnp.all(jnp.isfinite(y1)))
    r1 = _reference_forward(x, params1, stride=1)
    assert bool(jnp.allclose(y1, r1, rtol=5e-2, atol=5e-2))

    # Config 2: stride=2, planes=8 -> option 'A' downsample/zero-pad shortcut
    params2 = init_basic_block(kp2, in_planes=4, planes=8)
    y2 = basic_block_forward(x, params2, stride=2)
    jax.block_until_ready(y2)
    assert y2.shape == (2, 8, 8, 8)
    assert bool(jnp.all(y2 >= 0.0))
    assert bool(jnp.all(jnp.isfinite(y2)))
    r2 = _reference_forward(x, params2, stride=2)
    assert bool(jnp.allclose(y2, r2, rtol=5e-2, atol=5e-2))

    print("KERNEL_OK")
</pallas_src>

<mosaic_0001>
module attributes {stable_mosaic.version = 11 : i64} {
  func.func @_conv3x3_s1_stats_kernel(%arg0: i32, %arg1: memref<3x2x288x4xbf16, #tpu.memory_space<vmem>>, %arg2: memref<9x4x4xbf16, #tpu.memory_space<vmem>>, %arg3: memref<2x256x4xbf16, #tpu.memory_space<vmem>>, %arg4: memref<1x1x4xf32, #tpu.memory_space<vmem>>, %arg5: memref<1x1x4xf32, #tpu.memory_space<vmem>>) attributes {dimension_semantics = [#tpu.dimension_semantics<parallel>], iteration_bounds = array<i64: 1>, scalar_prefetch = 0 : i64, scratch_operands = 0 : i64, tpu.core_type = #tpu.core_type<tc>, window_params = [{transform_indices = @transform_0, window_bounds = array<i64: 3, 2, 288, 4>}, {pipeline_mode = #tpu.pipeline_mode<synchronous>, transform_indices = @transform_1, window_bounds = array<i64: 9, 4, 4>}, {transform_indices = @transform_2, window_bounds = array<i64: 2, 256, 4>}, {transform_indices = @transform_3, window_bounds = array<i64: 1, 1, 4>}, {transform_indices = @transform_4, window_bounds = array<i64: 1, 1, 4>}]} {
    %cst = arith.constant 0.000000e+00 : f32
    %0 = vector.broadcast %cst : f32 to vector<1x4xf32>
    %cst_0 = arith.constant 0.000000e+00 : f32
    %1 = vector.broadcast %cst_0 : f32 to vector<1x4xf32>
    %cst_1 = arith.constant 0.000000e+00 : f32
    %2 = vector.broadcast %cst_1 : f32 to vector<256x4xf32>
    %c0 = arith.constant 0 : index
    %c0_2 = arith.constant 0 : index
    %c0_3 = arith.constant 0 : index
    %c0_4 = arith.constant 0 : index
    %3 = vector.load %arg1[%c0, %c0_2, %c0_3, %c0_4] : memref<3x2x288x4xbf16, #tpu.memory_space<vmem>>, vector<1x1x256x4xbf16>
    %4 = vector.shape_cast %3 : vector<1x1x256x4xbf16> to vector<256x4xbf16>
    %c0_5 = arith.constant 0 : index
    %c0_6 = arith.constant 0 : index
    %c0_7 = arith.constant 0 : index
    %5 = vector.load %arg2[%c0_5, %c0_6, %c0_7] : memref<9x4x4xbf16, #tpu.memory_space<vmem>>, vector<1x4x4xbf16>
    %6 = vector.shape_cast %5 : vector<1x4x4xbf16> to vector<4x4xbf16>
    %cst_8 = arith.constant dense<0.000000e+00> : vector<256x4xf32>
    %7 = tpu.matmul %4, %6, %cst_8 {dimension_numbers = #tpu.dot_dimension_numbers<[1], [0], [0], [1], [0, 0, 1, 1], [], []>} : vector<256x4xbf16>, vector<4x4xbf16>, vector<256x4xf32> -> vector<256x4xf32>
    %8 = arith.addf %2, %7 : vector<256x4xf32>
    %c1 = arith.constant 1 : index
    %c0_9 = arith.constant 0 : index
    %c0_10 = arith.constant 0 : index
    %c0_11 = arith.constant 0 : index
    %9 = vector.load %arg1[%c1, %c0_9, %c0_10, %c0_11] : memref<3x2x288x4xbf16, #tpu.memory_space<vmem>>, vector<1x1x256x4xbf16>
    %10 = vector.shape_cast %9 : vector<1x1x256x4xbf16> to vector<256x4xbf16>
    %c1_12 = arith.constant 1 : index
    %c0_13 = arith.constant 0 : index
    %c0_14 = arith.constant 0 : index
    %11 = vector.load %arg2[%c1_12, %c0_13, %c0_14] : memref<9x4x4xbf16, #tpu.memory_space<vmem>>, vector<1x4x4xbf16>
    %12 = vector.shape_cast %11 : vector<1x4x4xbf16> to vector<4x4xbf16>
    %cst_15 = arith.constant dense<0.000000e+00> : vector<256x4xf32>
    %13 = tpu.matmul %10, %12, %cst_15 {dimension_numbers = #tpu.dot_dimension_numbers<[1], [0], [0], [1], [0, 0, 1, 1], [], []>} : vector<256x4xbf16>, vector<4x4xbf16>, vector<256x4xf32> -> vector<256x4xf32>
    %14 = arith.addf %8, %13 : vector<256x4xf32>
    %c2 = arith.constant 2 : index
    %c0_16 = arith.constant 0 : index
    %c0_17 = arith.constant 0 : index
    %c0_18 = arith.constant 0 : index
    %15 = vector.load %arg1[%c2, %c0_16, %c0_17, %c0_18] : memref<3x2x288x4xbf16, #tpu.memory_space<vmem>>, vector<1x1x256x4xbf16>
    %16 = vector.shape_cast %15 : vector<1x1x256x4xbf16> to vector<256x4xbf16>
    %c2_19 = arith.constant 2 : index
    %c0_20 = arith.constant 0 : index
    %c0_21 = arith.constant 0 : index
    %17 = vector.load %arg2[%c2_19, %c0_20, %c0_21] : memref<9x4x4xbf16, #tpu.memory_space<vmem>>, vector<1x4x4xbf16>
    %18 = vector.shape_cast %17 : vector<1x4x4xbf16> to vector<4x4xbf16>
    %cst_22 = arith.constant dense<0.000000e+00> : vector<256x4xf32>
    %19 = tpu.matmul %16, %18, %cst_22 {dimension_numbers = #tpu.dot_dimension_numbers<[1], [0], [0], [1], [0, 0, 1, 1], [], []>} : vector<256x4xbf16>, vector<4x4xbf16>, vector<256x4xf32> -> vector<256x4xf32>
    %20 = arith.addf %14, %19 : vector<256x4xf32>
    %c0_23 = arith.constant 0 : index
    %c0_24 = arith.constant 0 : index
    %c16 = arith.constant 16 : index
    %c0_25 = arith.constant 0 : index
    %21 = vector.load %arg1[%c0_23, %c0_24, %c16, %c0_25] : memref<3x2x288x4xbf16, #tpu.memory_space<vmem>>, vector<1x1x256x4xbf16>
    %22 = vector.shape_cast %21 : vector<1x1x256x4xbf16> to vector<256x4xbf16>
    %c3 = arith.constant 3 : index
    %c0_26 = arith.constant 0 : index
    %c0_27 = arith.constant 0 : index
    %23 = vector.load %arg2[%c3, %c0_26, %c0_27] : memref<9x4x4xbf16, #tpu.memory_space<vmem>>, vector<1x4x4xbf16>
    %24 = vector.shape_cast %23 : vector<1x4x4xbf16> to vector<4x4xbf16>
    %cst_28 = arith.constant dense<0.000000e+00> : vector<256x4xf32>
    %25 = tpu.matmul %22, %24, %cst_28 {dimension_numbers = #tpu.dot_dimension_numbers<[1], [0], [0], [1], [0, 0, 1, 1], [], []>} : vector<256x4xbf16>, vector<4x4xbf16>, vector<256x4xf32> -> vector<256x4xf32>
    %26 = arith.addf %20, %25 : vector<256x4xf32>
    %c1_29 = arith.constant 1 : index
    %c0_30 = arith.constant 0 : index
    %c16_31 = arith.constant 16 : index
    %c0_32 = arith.constant 0 : index
    %27 = vector.load %arg1[%c1_29, %c0_30, %c16_31, %c0_32] : memref<3x2x288x4xbf16, #tpu.memory_space<vmem>>, vector<1x1x256x4xbf16>
    %28 = vector.shape_cast %27 : vector<1x1x256x4xbf16> to vector<256x4xbf16>
    %c4 = arith.constant 4 : index
    %c0_33 = arith.constant 0 : index
    %c0_34 = arith.constant 0 : index
    %29 = vector.load %arg2[%c4, %c0_33, %c0_34] : memref<9x4x4xbf16, #tpu.memory_space<vmem>>, vector<1x4x4xbf16>
    %30 = vector.shape_cast %29 : vector<1x4x4xbf16> to vector<4x4xbf16>
    %cst_35 = arith.constant dense<0.000000e+00> : vector<256x4xf32>
    %31 = tpu.matmul %28, %30, %cst_35 {dimension_numbers = #tpu.dot_dimension_numbers<[1], [0], [0], [1], [0, 0, 1, 1], [], []>} : vector<256x4xbf16>, vector<4x4xbf16>, vector<256x4xf32> -> vector<256x4xf32>
    %32 = arith.addf %26, %31 : vector<256x4xf32>
    %c2_36 = arith.constant 2 : index
    %c0_37 = arith.constant 0 : index
    %c16_38 = arith.constant 16 : index
    %c0_39 = arith.constant 0 : index
    %33 = vector.load %arg1[%c2_36, %c0_37, %c16_38, %c0_39] : memref<3x2x288x4xbf16, #tpu.memory_space<vmem>>, vector<1x1x256x4xbf16>
    %34 = vector.shape_cast %33 : vector<1x1x256x4xbf16> to vector<256x4xbf16>
    %c5 = arith.constant 5 : index
    %c0_40 = arith.constant 0 : index
    %c0_41 = arith.constant 0 : index
    %35 = vector.load %arg2[%c5, %c0_40, %c0_41] : memref<9x4x4xbf16, #tpu.memory_space<vmem>>, vector<1x4x4xbf16>
    %36 = vector.shape_cast %35 : vector<1x4x4xbf16> to vector<4x4xbf16>
    %cst_42 = arith.constant dense<0.000000e+00> : vector<256x4xf32>
    %37 = tpu.matmul %34, %36, %cst_42 {dimension_numbers = #tpu.dot_dimension_numbers<[1], [0], [0], [1], [0, 0, 1, 1], [], []>} : vector<256x4xbf16>, vector<4x4xbf16>, vector<256x4xf32> -> vector<256x4xf32>
    %38 = arith.addf %32, %37 : vector<256x4xf32>
    %c0_43 = arith.constant 0 : index
    %c0_44 = arith.constant 0 : index
    %c32 = arith.constant 32 : index
    %c0_45 = arith.constant 0 : index
    %39 = vector.load %arg1[%c0_43, %c0_44, %c32, %c0_45] : memref<3x2x288x4xbf16, #tpu.memory_space<vmem>>, vector<1x1x256x4xbf16>
    %40 = vector.shape_cast %39 : vector<1x1x256x4xbf16> to vector<256x4xbf16>
    %c6 = arith.constant 6 : index
    %c0_46 = arith.constant 0 : index
    %c0_47 = arith.constant 0 : index
    %41 = vector.load %arg2[%c6, %c0_46, %c0_47] : memref<9x4x4xbf16, #tpu.memory_space<vmem>>, vector<1x4x4xbf16>
    %42 = vector.shape_cast %41 : vector<1x4x4xbf16> to vector<4x4xbf16>
    %cst_48 = arith.constant dense<0.000000e+00> : vector<256x4xf32>
    %43 = tpu.matmul %40, %42, %cst_48 {dimension_numbers = #tpu.dot_dimension_numbers<[1], [0], [0], [1], [0, 0, 1, 1], [], []>} : vector<256x4xbf16>, vector<4x4xbf16>, vector<256x4xf32> -> vector<256x4xf32>
    %44 = arith.addf %38, %43 : vector<256x4xf32>
    %c1_49 = arith.constant 1 : index
    %c0_50 = arith.constant 0 : index
    %c32_51 = arith.constant 32 : index
    %c0_52 = arith.constant 0 : index
    %45 = vector.load %arg1[%c1_49, %c0_50, %c32_51, %c0_52] : memref<3x2x288x4xbf16, #tpu.memory_space<vmem>>, vector<1x1x256x4xbf16>
    %46 = vector.shape_cast %45 : vector<1x1x256x4xbf16> to vector<256x4xbf16>
    %c7 = arith.constant 7 : index
    %c0_53 = arith.constant 0 : index
    %c0_54 = arith.constant 0 : index
    %47 = vector.load %arg2[%c7, %c0_53, %c0_54] : memref<9x4x4xbf16, #tpu.memory_space<vmem>>, vector<1x4x4xbf16>
    %48 = vector.shape_cast %47 : vector<1x4x4xbf16> to vector<4x4xbf16>
    %cst_55 = arith.constant dense<0.000000e+00> : vector<256x4xf32>
    %49 = tpu.matmul %46, %48, %cst_55 {dimension_numbers = #tpu.dot_dimension_numbers<[1], [0], [0], [1], [0, 0, 1, 1], [], []>} : vector<256x4xbf16>, vector<4x4xbf16>, vector<256x4xf32> -> vector<256x4xf32>
    %50 = arith.addf %44, %49 : vector<256x4xf32>
    %c2_56 = arith.constant 2 : index
    %c0_57 = arith.constant 0 : index
    %c32_58 = arith.constant 32 : index
    %c0_59 = arith.constant 0 : index
    %51 = vector.load %arg1[%c2_56, %c0_57, %c32_58, %c0_59] : memref<3x2x288x4xbf16, #tpu.memory_space<vmem>>, vector<1x1x256x4xbf16>
    %52 = vector.shape_cast %51 : vector<1x1x256x4xbf16> to vector<256x4xbf16>
    %c8 = arith.constant 8 : index
    %c0_60 = arith.constant 0 : index
    %c0_61 = arith.constant 0 : index
    %53 = vector.load %arg2[%c8, %c0_60, %c0_61] : memref<9x4x4xbf16, #tpu.memory_space<vmem>>, vector<1x4x4xbf16>
    %54 = vector.shape_cast %53 : vector<1x4x4xbf16> to vector<4x4xbf16>
    %cst_62 = arith.constant dense<0.000000e+00> : vector<256x4xf32>
    %55 = tpu.matmul %52, %54, %cst_62 {dimension_numbers = #tpu.dot_dimension_numbers<[1], [0], [0], [1], [0, 0, 1, 1], [], []>} : vector<256x4xbf16>, vector<4x4xbf16>, vector<256x4xf32> -> vector<256x4xf32>
    %56 = arith.addf %50, %55 : vector<256x4xf32>
    %57 = arith.truncf %56 : vector<256x4xf32> to vector<256x4xbf16>
    %c0_63 = arith.constant 0 : index
    %c0_64 = arith.constant 0 : index
    %c0_65 = arith.constant 0 : index
    %58 = vector.load %arg3[%c0_63, %c0_64, %c0_65] : memref<2x256x4xbf16, #tpu.memory_space<vmem>>, vector<1x256x4xbf16>
    %59 = vector.shape_cast %58 : vector<1x256x4xbf16> to vector<256x4xbf16>
    %60 = vector.shape_cast %57 : vector<256x4xbf16> to vector<1x256x4xbf16>
    tpu.vector_store %arg3[%c0_63, %c0_64, %c0_65], %60 {strides = array<i32>} : memref<2x256x4xbf16, #tpu.memory_space<vmem>>, vector<1x256x4xbf16>,
    %cst_66 = arith.constant dense<0.000000e+00> : vector<4xf32>
    %61 = vector.multi_reduction <add>, %56, %cst_66 [0] : vector<256x4xf32> to vector<4xf32>
    %62 = vector.shape_cast %61 : vector<4xf32> to vector<1x4xf32>
    %63 = arith.addf %0, %62 : vector<1x4xf32>
    %64 = arith.mulf %56, %56 : vector<256x4xf32>
    %cst_67 = arith.constant dense<0.000000e+00> : vector<4xf32>
    %65 = vector.multi_reduction <add>, %64, %cst_67 [0] : vector<256x4xf32> to vector<4xf32>
    %66 = vector.shape_cast %65 : vector<4xf32> to vector<1x4xf32>
    %67 = arith.addf %1, %66 : vector<1x4xf32>
    %cst_68 = arith.constant 0.000000e+00 : f32
    %68 = vector.broadcast %cst_68 : f32 to vector<256x4xf32>
    %c0_69 = arith.constant 0 : index
    %c1_70 = arith.constant 1 : index
    %c0_71 = arith.constant 0 : index
    %c0_72 = arith.constant 0 : index
    %69 = vector.load %arg1[%c0_69, %c1_70, %c0_71, %c0_72] : memref<3x2x288x4xbf16, #tpu.memory_space<vmem>>, vector<1x1x256x4xbf16>
    %70 = vector.shape_cast %69 : vector<1x1x256x4xbf16> to vector<256x4xbf16>
    %c0_73 = arith.constant 0 : index
    %c0_74 = arith.constant 0 : index
    %c0_75 = arith.constant 0 : index
    %71 = vector.load %arg2[%c0_73, %c0_74, %c0_75] : memref<9x4x4xbf16, #tpu.memory_space<vmem>>, vector<1x4x4xbf16>
    %72 = vector.shape_cast %71 : vector<1x4x4xbf16> to vector<4x4xbf16>
    %cst_76 = arith.constant dense<0.000000e+00> : vector<256x4xf32>
    %73 = tpu.matmul %70, %72, %cst_76 {dimension_numbers = #tpu.dot_dimension_numbers<[1], [0], [0], [1], [0, 0, 1, 1], [], []>} : vector<256x4xbf16>, vector<4x4xbf16>, vector<256x4xf32> -> vector<256x4xf32>
    %74 = arith.addf %68, %73 : vector<256x4xf32>
    %c1_77 = arith.constant 1 : index
    %c1_78 = arith.constant 1 : index
    %c0_79 = arith.constant 0 : index
    %c0_80 = arith.constant 0 : index
    %75 = vector.load %arg1[%c1_77, %c1_78, %c0_79, %c0_80] : memref<3x2x288x4xbf16, #tpu.memory_space<vmem>>, vector<1x1x256x4xbf16>
    %76 = vector.shape_cast %75 : vector<1x1x256x4xbf16> to vector<256x4xbf16>
    %c1_81 = arith.constant 1 : index
    %c0_82 = arith.constant 0 : index
    %c0_83 = arith.constant 0 : index
    %77 = vector.load %arg2[%c1_81, %c0_82, %c0_83] : memref<9x4x4xbf16, #tpu.memory_space<vmem>>, vector<1x4x4xbf16>
    %78 = vector.shape_cast %77 : vector<1x4x4xbf16> to vector<4x4xbf16>
    %cst_84 = arith.constant dense<0.000000e+00> : vector<256x4xf32>
    %79 = tpu.matmul %76, %78, %cst_84 {dimension_numbers = #tpu.dot_dimension_numbers<[1], [0], [0], [1], [0, 0, 1, 1], [], []>} : vector<256x4xbf16>, vector<4x4xbf16>, vector<256x4xf32> -> vector<256x4xf32>
    %80 = arith.addf %74, %79 : vector<256x4xf32>
    %c2_85 = arith.constant 2 : index
    %c1_86 = arith.constant 1 : index
    %c0_87 = arith.constant 0 : index
    %c0_88 = arith.constant 0 : index
    %81 = vector.load %arg1[%c2_85, %c1_86, %c0_87, %c0_88] : memref<3x2x288x4xbf16, #tpu.memory_space<vmem>>, vector<1x1x256x4xbf16>
    %82 = vector.shape_cast %81 : vector<1x1x256x4xbf16> to vector<256x4xbf16>
    %c2_89 = arith.constant 2 : index
    %c0_90 = arith.constant 0 : index
    %c0_91 = arith.constant 0 : index
    %83 = vector.load %arg2[%c2_89, %c0_90, %c0_91] : memref<9x4x4xbf16, #tpu.memory_space<vmem>>, vector<1x4x4xbf16>
    %84 = vector.shape_cast %83 : vector<1x4x4xbf16> to vector<4x4xbf16>
    %cst_92 = arith.constant dense<0.000000e+00> : vector<256x4xf32>
    %85 = tpu.matmul %82, %84, %cst_92 {dimension_numbers = #tpu.dot_dimension_numbers<[1], [0], [0], [1], [0, 0, 1, 1], [], []>} : vector<256x4xbf16>, vector<4x4xbf16>, vector<256x4xf32> -> vector<256x4xf32>
    %86 = arith.addf %80, %85 : vector<256x4xf32>
    %c0_93 = arith.constant 0 : index
    %c1_94 = arith.constant 1 : index
    %c16_95 = arith.constant 16 : index
    %c0_96 = arith.constant 0 : index
    %87 = vector.load %arg1[%c0_93, %c1_94, %c16_95, %c0_96] : memref<3x2x288x4xbf16, #tpu.memory_space<vmem>>, vector<1x1x256x4xbf16>
    %88 = vector.shape_cast %87 : vector<1x1x256x4xbf16> to vector<256x4xbf16>
    %c3_97 = arith.constant 3 : index
    %c0_98 = arith.constant 0 : index
    %c0_99 = arith.constant 0 : index
    %89 = vector.load %arg2[%c3_97, %c0_98, %c0_99] : memref<9x4x4xbf16, #tpu.memory_space<vmem>>, vector<1x4x4xbf16>
    %90 = vector.shape_cast %89 : vector<1x4x4xbf16> to vector<4x4xbf16>
    %cst_100 = arith.constant dense<0.000000e+00> : vector<256x4xf32>
    %91 = tpu.matmul %88, %90, %cst_100 {dimension_numbers = #tpu.dot_dimension_numbers<[1], [0], [0], [1], [0, 0, 1, 1], [], []>} : vector<256x4xbf16>, vector<4x4xbf16>, vector<256x4xf32> -> vector<256x4xf32>
    %92 = arith.addf %86, %91 : vector<256x4xf32>
    %c1_101 = arith.constant 1 : index
    %c1_102 = arith.constant 1 : index
    %c16_103 = arith.constant 16 : index
    %c0_104 = arith.constant 0 : index
    %93 = vector.load %arg1[%c1_101, %c1_102, %c16_103, %c0_104] : memref<3x2x288x4xbf16, #tpu.memory_space<vmem>>, vector<1x1x256x4xbf16>
    %94 = vector.shape_cast %93 : vector<1x1x256x4xbf16> to vector<256x4xbf16>
    %c4_105 = arith.constant 4 : index
    %c0_106 = arith.constant 0 : index
    %c0_107 = arith.constant 0 : index
    %95 = vector.load %arg2[%c4_105, %c0_106, %c0_107] : memref<9x4x4xbf16, #tpu.memory_space<vmem>>, vector<1x4x4xbf16>
    %96 = vector.shape_cast %95 : vector<1x4x4xbf16> to vector<4x4xbf16>
    %cst_108 = arith.constant dense<0.000000e+00> : vector<256x4xf32>
    %97 = tpu.matmul %94, %96, %cst_108 {dimension_numbers = #tpu.dot_dimension_numbers<[1], [0], [0], [1], [0, 0, 1, 1], [], []>} : vector<256x4xbf16>, vector<4x4xbf16>, vector<256x4xf32> -> vector<256x4xf32>
    %98 = arith.addf %92, %97 : vector<256x4xf32>
    %c2_109 = arith.constant 2 : index
    %c1_110 = arith.constant 1 : index
    %c16_111 = arith.constant 16 : index
    %c0_112 = arith.constant 0 : index
    %99 = vector.load %arg1[%c2_109, %c1_110, %c16_111, %c0_112] : memref<3x2x288x4xbf16, #tpu.memory_space<vmem>>, vector<1x1x256x4xbf16>
    %100 = vector.shape_cast %99 : vector<1x1x256x4xbf16> to vector<256x4xbf16>
    %c5_113 = arith.constant 5 : index
    %c0_114 = arith.constant 0 : index
    %c0_115 = arith.constant 0 : index
    %101 = vector.load %arg2[%c5_113, %c0_114, %c0_115] : memref<9x4x4xbf16, #tpu.memory_space<vmem>>, vector<1x4x4xbf16>
    %102 = vector.shape_cast %101 : vector<1x4x4xbf16> to vector<4x4xbf16>
    %cst_116 = arith.constant dense<0.000000e+00> : vector<256x4xf32>
    %103 = tpu.matmul %100, %102, %cst_116 {dimension_numbers = #tpu.dot_dimension_numbers<[1], [0], [0], [1], [0, 0, 1, 1], [], []>} : vector<256x4xbf16>, vector<4x4xbf16>, vector<256x4xf32> -> vector<256x4xf32>
    %104 = arith.addf %98, %103 : vector<256x4xf32>
    %c0_117 = arith.constant 0 : index
    %c1_118 = arith.constant 1 : index
    %c32_119 = arith.constant 32 : index
    %c0_120 = arith.constant 0 : index
    %105 = vector.load %arg1[%c0_117, %c1_118, %c32_119, %c0_120] : memref<3x2x288x4xbf16, #tpu.memory_space<vmem>>, vector<1x1x256x4xbf16>
    %106 = vector.shape_cast %105 : vector<1x1x256x4xbf16> to vector<256x4xbf16>
    %c6_121 = arith.constant 6 : index
    %c0_122 = arith.constant 0 : index
    %c0_123 = arith.constant 0 : index
    %107 = vector.load %arg2[%c6_121, %c0_122, %c0_123] : memref<9x4x4xbf16, #tpu.memory_space<vmem>>, vector<1x4x4xbf16>
    %108 = vector.shape_cast %107 : vector<1x4x4xbf16> to vector<4x4xbf16>
    %cst_124 = arith.constant dense<0.000000e+00> : vector<256x4xf32>
    %109 = tpu.matmul %106, %108, %cst_124 {dimension_numbers = #tpu.dot_dimension_numbers<[1], [0], [0], [1], [0, 0, 1, 1], [], []>} : vector<256x4xbf16>, vector<4x4xbf16>, vector<256x4xf32> -> vector<256x4xf32>
    %110 = arith.addf %104, %109 : vector<256x4xf32>
    %c1_125 = arith.constant 1 : index
    %c1_126 = arith.constant 1 : index
    %c32_127 = arith.constant 32 : index
    %c0_128 = arith.constant 0 : index
    %111 = vector.load %arg1[%c1_125, %c1_126, %c32_127, %c0_128] : memref<3x2x288x4xbf16, #tpu.memory_space<vmem>>, vector<1x1x256x4xbf16>
    %112 = vector.shape_cast %111 : vector<1x1x256x4xbf16> to vector<256x4xbf16>
    %c7_129 = arith.constant 7 : index
    %c0_130 = arith.constant 0 : index
    %c0_131 = arith.constant 0 : index
    %113 = vector.load %arg2[%c7_129, %c0_130, %c0_131] : memref<9x4x4xbf16, #tpu.memory_space<vmem>>, vector<1x4x4xbf16>
    %114 = vector.shape_cast %113 : vector<1x4x4xbf16> to vector<4x4xbf16>
    %cst_132 = arith.constant dense<0.000000e+00> : vector<256x4xf32>
    %115 = tpu.matmul %112, %114, %cst_132 {dimension_numbers = #tpu.dot_dimension_numbers<[1], [0], [0], [1], [0, 0, 1, 1], [], []>} : vector<256x4xbf16>, vector<4x4xbf16>, vector<256x4xf32> -> vector<256x4xf32>
    %116 = arith.addf %110, %115 : vector<256x4xf32>
    %c2_133 = arith.constant 2 : index
    %c1_134 = arith.constant 1 : index
    %c32_135 = arith.constant 32 : index
    %c0_136 = arith.constant 0 : index
    %117 = vector.load %arg1[%c2_133, %c1_134, %c32_135, %c0_136] : memref<3x2x288x4xbf16, #tpu.memory_space<vmem>>, vector<1x1x256x4xbf16>
    %118 = vector.shape_cast %117 : vector<1x1x256x4xbf16> to vector<256x4xbf16>
    %c8_137 = arith.constant 8 : index
    %c0_138 = arith.constant 0 : index
    %c0_139 = arith.constant 0 : index
    %119 = vector.load %arg2[%c8_137, %c0_138, %c0_139] : memref<9x4x4xbf16, #tpu.memory_space<vmem>>, vector<1x4x4xbf16>
    %120 = vector.shape_cast %119 : vector<1x4x4xbf16> to vector<4x4xbf16>
    %cst_140 = arith.constant dense<0.000000e+00> : vector<256x4xf32>
    %121 = tpu.matmul %118, %120, %cst_140 {dimension_numbers = #tpu.dot_dimension_numbers<[1], [0], [0], [1], [0, 0, 1, 1], [], []>} : vector<256x4xbf16>, vector<4x4xbf16>, vector<256x4xf32> -> vector<256x4xf32>
    %122 = arith.addf %116, %121 : vector<256x4xf32>
    %123 = arith.truncf %122 : vector<256x4xf32> to vector<256x4xbf16>
    %c1_141 = arith.constant 1 : index
    %c0_142 = arith.constant 0 : index
    %c0_143 = arith.constant 0 : index
    %124 = vector.load %arg3[%c1_141, %c0_142, %c0_143] : memref<2x256x4xbf16, #tpu.memory_space<vmem>>, vector<1x256x4xbf16>
    %125 = vector.shape_cast %124 : vector<1x256x4xbf16> to vector<256x4xbf16>
    %126 = vector.shape_cast %123 : vector<256x4xbf16> to vector<1x256x4xbf16>
    tpu.vector_store %arg3[%c1_141, %c0_142, %c0_143], %126 {strides = array<i32>} : memref<2x256x4xbf16, #tpu.memory_space<vmem>>, vector<1x256x4xbf16>,
    %cst_144 = arith.constant dense<0.000000e+00> : vector<4xf32>
    %127 = vector.multi_reduction <add>, %122, %cst_144 [0] : vector<256x4xf32> to vector<4xf32>
    %128 = vector.shape_cast %127 : vector<4xf32> to vector<1x4xf32>
    %129 = arith.addf %63, %128 : vector<1x4xf32>
    %130 = arith.mulf %122, %122 : vector<256x4xf32>
    %cst_145 = arith.constant dense<0.000000e+00> : vector<4xf32>
    %131 = vector.multi_reduction <add>, %130, %cst_145 [0] : vector<256x4xf32> to vector<4xf32>
    %132 = vector.shape_cast %131 : vector<4xf32> to vector<1x4xf32>
    %133 = arith.addf %67, %132 : vector<1x4xf32>
    %c0_146 = arith.constant 0 : index
    %c0_147 = arith.constant 0 : index
    %c0_148 = arith.constant 0 : index
    %134 = vector.load %arg4[%c0_146, %c0_147, %c0_148] : memref<1x1x4xf32, #tpu.memory_space<vmem>>, vector<1x1x4xf32>
    %135 = vector.shape_cast %134 : vector<1x1x4xf32> to vector<1x4xf32>
    %136 = vector.shape_cast %129 : vector<1x4xf32> to vector<1x1x4xf32>
    tpu.vector_store %arg4[%c0_146, %c0_147, %c0_148], %136 {strides = array<i32>} : memref<1x1x4xf32, #tpu.memory_space<vmem>>, vector<1x1x4xf32>,
    %c0_149 = arith.constant 0 : index
    %c0_150 = arith.constant 0 : index
    %c0_151 = arith.constant 0 : index
    %137 = vector.load %arg5[%c0_149, %c0_150, %c0_151] : memref<1x1x4xf32, #tpu.memory_space<vmem>>, vector<1x1x4xf32>
    %138 = vector.shape_cast %137 : vector<1x1x4xf32> to vector<1x4xf32>
    %139 = vector.shape_cast %133 : vector<1x4xf32> to vector<1x1x4xf32>
    tpu.vector_store %arg5[%c0_149, %c0_150, %c0_151], %139 {strides = array<i32>} : memref<1x1x4xf32, #tpu.memory_space<vmem>>, vector<1x1x4xf32>,
    return
  }
  func.func @transform_0(%arg0: i32) -> (i32, i32, i32, i32) {
    %c0_i32 = arith.constant 0 : i32
    %c0_i32_0 = arith.constant 0 : i32
    %c0_i32_1 = arith.constant 0 : i32
    %c0_i32_2 = arith.constant 0 : i32
    return %c0_i32, %arg0, %c0_i32_0, %c0_i32_1 : i32, i32, i32, i32
  }
  func.func @transform_1(%arg0: i32) -> (i32, i32, i32) {
    %c0_i32 = arith.constant 0 : i32
    %c0_i32_0 = arith.constant 0 : i32
    %c0_i32_1 = arith.constant 0 : i32
    %c0_i32_2 = arith.constant 0 : i32
    return %c0_i32, %c0_i32_0, %c0_i32_1 : i32, i32, i32
  }
  func.func @transform_2(%arg0: i32) -> (i32, i32, i32) {
    %c0_i32 = arith.constant 0 : i32
    %c0_i32_0 = arith.constant 0 : i32
    %c0_i32_1 = arith.constant 0 : i32
    return %arg0, %c0_i32, %c0_i32_0 : i32, i32, i32
  }
  func.func @transform_3(%arg0: i32) -> (i32, i32, i32) {
    %c0_i32 = arith.constant 0 : i32
    %c0_i32_0 = arith.constant 0 : i32
    %c0_i32_1 = arith.constant 0 : i32
    return %arg0, %c0_i32, %c0_i32_0 : i32, i32, i32
  }
  func.func @transform_4(%arg0: i32) -> (i32, i32, i32) {
    %c0_i32 = arith.constant 0 : i32
    %c0_i32_0 = arith.constant 0 : i32
    %c0_i32_1 = arith.constant 0 : i32
    return %arg0, %c0_i32, %c0_i32_0 : i32, i32, i32
  }
}

</mosaic_0001>

<llo_original>
// kernel: tpu_custom_call.1
$region0: #{tpu_custom_call.1}
  #allocation0 [shape = 'u32[]', space=smem, size = 0x4, offset = 0x4, fixed_abs, tag = 'smem constant byte address 0x4 - core index']
  #allocation1 [shape = 'u32[144,128]{1,0:T(1,128)}', space=vmem, size = 0x12000, scoped, tag = 'internal scratch']
  %s0 = inlined_call_operand.vmem [shape: bf16[3,2,288,4], index: 0, kind: input, shape index: {}]
  %s1 = inlined_call_operand.vmem [shape: bf16[9,4,4], index: 1, kind: input, shape index: {}]
  %s2 = inlined_call_operand.vmem [shape: bf16[2,256,4], index: 2, kind: output, shape index: {0}]
  %s3 = inlined_call_operand.hbm [shape: f32[1,1,4], index: 3, kind: output, shape index: {1}]
  %s4 = inlined_call_operand.hbm [shape: f32[1,1,4], index: 4, kind: output, shape index: {2}]
  %5 = xla_tuple %s2, %s3, %s4
  %s6 = sld [smem:[#allocation0]]
  $region34: #{tpu_custom_call.1} parent=0
    _
  %s8 = ssub.s32 1, %s6
  %s9 = scalar_select 0, %s8, %s6
  $region1: #{tpu_custom_call.1} parent=0
    #allocation2 [shape = 'u8[512]{0}', space=vmem, size = 0x400, scoped, tag = 'output window, operand 1, single buffered']
    #allocation3 [shape = 's32[1]{0}', space=sflag, size = 0x4, scoped, tag = 'scoped memory for tpu_custom_call.1']
    #allocation4 [shape = 'u8[512]{0}', space=vmem, size = 0x400, scoped, tag = 'output window, operand 2, single buffered']
    #allocation5 [shape = 's32[1]{0}', space=sflag, size = 0x4, scoped, tag = 'scoped memory for tpu_custom_call.1']
    %10 = vsyncpa [#allocation3], 0
    %11 = vsyncpa [#allocation5], 0
    // Predicated region
    $region2: #{tpu_custom_call.1} parent=1 // pred_check
      _
    $region3: #{tpu_custom_call.1} parent=1 // pred_check_branch
      %13 = sbr.rel (0) target = $region5
    $region4: #{tpu_custom_call.1} parent=1 // pred_region
      _
    $region5: #{tpu_custom_call.1} parent=1 // pred_fallthru
      _
    // Predicated region
    $region6: #{tpu_custom_call.1} parent=1 // pred_check
      _
    $region7: #{tpu_custom_call.1} parent=1 // pred_check_branch
      %15 = sbr.rel (0) target = $region9
    $region8: #{tpu_custom_call.1} parent=1 // pred_region
      _
    $region9: #{tpu_custom_call.1} parent=1 // pred_fallthru
      _
    %v17 = vld [vmem:[%s0] sm:$0xf]
    %v18 = vld [vmem:[%s0 + $0x4] sm:$0xf]
    %v19 = vld [vmem:[%s0 + $0x8] sm:$0xf]
    %v20 = vld [vmem:[%s0 + $0xc] sm:$0xf]
    %v21 = vld [vmem:[%s0 + $0x10] sm:$0xf]
    %v22 = vld [vmem:[%s0 + $0x14] sm:$0xf]
    %v23 = vld [vmem:[%s0 + $0x18] sm:$0xf]
    %v24 = vld [vmem:[%s0 + $0x1c] sm:$0xf]
    %v25 = vld [vmem:[%s0 + $0x20] sm:$0xf]
    %v26 = vld [vmem:[%s0 + $0x24] sm:$0xf]
    %v27 = vld [vmem:[%s0 + $0x28] sm:$0xf]
    %v28 = vld [vmem:[%s0 + $0x2c] sm:$0xf]
    %v29 = vld [vmem:[%s0 + $0x30] sm:$0xf]
    %v30 = vld [vmem:[%s0 + $0x34] sm:$0xf]
    %v31 = vld [vmem:[%s0 + $0x38] sm:$0xf]
    %v32 = vld [vmem:[%s0 + $0x3c] sm:$0xf]
    %v33 = vld [vmem:[%s0 + $0x40] sm:$0xf]
    %v34 = vld [vmem:[%s0 + $0x44] sm:$0xf]
    %v35 = vld [vmem:[%s0 + $0x48] sm:$0xf]
    %v36 = vld [vmem:[%s0 + $0x4c] sm:$0xf]
    %v37 = vld [vmem:[%s0 + $0x50] sm:$0xf]
    %v38 = vld [vmem:[%s0 + $0x54] sm:$0xf]
    %v39 = vld [vmem:[%s0 + $0x58] sm:$0xf]
    %v40 = vld [vmem:[%s0 + $0x5c] sm:$0xf]
    %v41 = vld [vmem:[%s0 + $0x60] sm:$0xf]
    %v42 = vld [vmem:[%s0 + $0x64] sm:$0xf]
    %v43 = vld [vmem:[%s0 + $0x68] sm:$0xf]
    %v44 = vld [vmem:[%s0 + $0x6c] sm:$0xf]
    %v45 = vld [vmem:[%s0 + $0x70] sm:$0xf]
    %v46 = vld [vmem:[%s0 + $0x74] sm:$0xf]
    %v47 = vld [vmem:[%s0 + $0x78] sm:$0xf]
    %v48 = vld [vmem:[%s0 + $0x7c] sm:$0xf]
    %v49 = vld [vmem:[%s1] sm:$0x3]
    %s50 = scalar_lea.vmem %s0, 288
    %v51 = vld [vmem:[%s50] sm:$0xf]
    %v52 = vld [vmem:[%s50 + $0x4] sm:$0xf]
    %v53 = vld [vmem:[%s50 + $0x8] sm:$0xf]
    %v54 = vld [vmem:[%s50 + $0xc] sm:$0xf]
    %v55 = vld [vmem:[%s50 + $0x10] sm:$0xf]
    %v56 = vld [vmem:[%s50 + $0x14] sm:$0xf]
    %v57 = vld [vmem:[%s50 + $0x18] sm:$0xf]
    %v58 = vld [vmem:[%s50 + $0x1c] sm:$0xf]
    %v59 = vld [vmem:[%s50 + $0x20] sm:$0xf]
    %v60 = vld [vmem:[%s50 + $0x24] sm:$0xf]
    %v61 = vld [vmem:[%s50 + $0x28] sm:$0xf]
    %v62 = vld [vmem:[%s50 + $0x2c] sm:$0xf]
    %v63 = vld [vmem:[%s50 + $0x30] sm:$0xf]
    %v64 = vld [vmem:[%s50 + $0x34] sm:$0xf]
    %v65 = vld [vmem:[%s50 + $0x38] sm:$0xf]
    %v66 = vld [vmem:[%s50 + $0x3c] sm:$0xf]
    %v67 = vld [vmem:[%s50 + $0x40] sm:$0xf]
    %v68 = vld [vmem:[%s50 + $0x44] sm:$0xf]
    %v69 = vld [vmem:[%s50 + $0x48] sm:$0xf]
    %v70 = vld [vmem:[%s50 + $0x4c] sm:$0xf]
    %v71 = vld [vmem:[%s50 + $0x50] sm:$0xf]
    %v72 = vld [vmem:[%s50 + $0x54] sm:$0xf]
    %v73 = vld [vmem:[%s50 + $0x58] sm:$0xf]
    %v74 = vld [vmem:[%s50 + $0x5c] sm:$0xf]
    %v75 = vld [vmem:[%s50 + $0x60] sm:$0xf]
    %v76 = vld [vmem:[%s50 + $0x64] sm:$0xf]
    %v77 = vld [vmem:[%s50 + $0x68] sm:$0xf]
    %v78 = vld [vmem:[%s50 + $0x6c] sm:$0xf]
    %v79 = vld [vmem:[%s50 + $0x70] sm:$0xf]
    %v80 = vld [vmem:[%s50 + $0x74] sm:$0xf]
    %v81 = vld [vmem:[%s50 + $0x78] sm:$0xf]
    %v82 = vld [vmem:[%s50 + $0x7c] sm:$0xf]
    %s83 = scalar_lea.vmem %s1, 2
    %v84 = vld [vmem:[%s83] sm:$0x3]
    %v117 = vunpack.c.l.b16 %v51
    %v118 = vunpack.c.l.b16 %v52
    %v119 = vunpack.c.l.b16 %v53
    %v120 = vunpack.c.l.b16 %v54
    %v121 = vunpack.c.l.b16 %v55
    %v122 = vunpack.c.l.b16 %v56
    %v123 = vunpack.c.l.b16 %v57
    %v124 = vunpack.c.l.b16 %v58
    %v125 = vunpack.c.l.b16 %v59
    %v126 = vunpack.c.l.b16 %v60
    %v127 = vunpack.c.l.b16 %v61
    %v128 = vunpack.c.l.b16 %v62
    %v129 = vunpack.c.l.b16 %v63
    %v130 = vunpack.c.l.b16 %v64
    %v131 = vunpack.c.l.b16 %v65
    %v132 = vunpack.c.l.b16 %v66
    %v133 = vunpack.c.l.b16 %v67
    %v134 = vunpack.c.l.b16 %v68
    %v135 = vunpack.c.l.b16 %v69
    %v136 = vunpack.c.l.b16 %v70
    %v137 = vunpack.c.l.b16 %v71
    %v138 = vunpack.c.l.b16 %v72
    %v139 = vunpack.c.l.b16 %v73
    %v140 = vunpack.c.l.b16 %v74
    %v141 = vunpack.c.l.b16 %v75
    %v142 = vunpack.c.l.b16 %v76
    %v143 = vunpack.c.l.b16 %v77
    %v144 = vunpack.c.l.b16 %v78
    %v145 = vunpack.c.l.b16 %v79
    %v146 = vunpack.c.l.b16 %v80
    %v147 = vunpack.c.l.b16 %v81
    %v148 = vunpack.c.l.b16 %v82
    %v149 = vpack.c.b16 %v118, %v117
    %v150 = vpack.c.b16 %v120, %v119
    %v151 = vpack.c.b16 %v122, %v121
    %v152 = vpack.c.b16 %v124, %v123
    %v153 = vpack.c.b16 %v126, %v125
    %v154 = vpack.c.b16 %v128, %v127
    %v155 = vpack.c.b16 %v130, %v129
    %v156 = vpack.c.b16 %v132, %v131
    %v157 = vpack.c.b16 %v134, %v133
    %v158 = vpack.c.b16 %v136, %v135
    %v159 = vpack.c.b16 %v138, %v137
    %v160 = vpack.c.b16 %v140, %v139
    %v161 = vpack.c.b16 %v142, %v141
    %v162 = vpack.c.b16 %v144, %v143
    %v163 = vpack.c.b16 %v146, %v145
    %v164 = vpack.c.b16 %v148, %v147
    %vm165 = vcmask 31744
    %v167 = vsel %vm165, %v149, 0
    %v170 = vsel %vm165, %v150, 0
    %v173 = vsel %vm165, %v151, 0
    %v176 = vsel %vm165, %v152, 0
    %v179 = vsel %vm165, %v153, 0
    %v182 = vsel %vm165, %v154, 0
    %v185 = vsel %vm165, %v155, 0
    %v188 = vsel %vm165, %v156, 0
    %v191 = vsel %vm165, %v157, 0
    %v194 = vsel %vm165, %v158, 0
    %v197 = vsel %vm165, %v159, 0
    %v200 = vsel %vm165, %v160, 0
    %v203 = vsel %vm165, %v161, 0
    %v206 = vsel %vm165, %v162, 0
    %v209 = vsel %vm165, %v163, 0
    %v212 = vsel %vm165, %v164, 0
    %vm214 = vcmask 1041408
    %v216 = vsel %vm214, %v84, 0
    %218 = vmatprep.subr.bf16.mxu0 0
    %219 = vmatpush1.bf16.msra.mxu0 %v216
    %220 = vmatprep.subr.bf16.mxu0 0
    %221 = vmatpush1.bf16.msra.mxu0 0
    %222 = vmatprep.subr.bf16.mxu0 0
    %223 = vmatpush1.bf16.msra.mxu0 0
    %224 = vmatprep.subr.bf16.mxu0 0
    %225 = vmatpush1.bf16.msra.mxu0 0
    %226 = vmatprep.subr.bf16.mxu0 0
    %227 = vmatpush1.bf16.msra.mxu0 0
    %228 = vmatprep.subr.bf16.mxu0 0
    %229 = vmatpush1.bf16.msra.mxu0 0
    %230 = vmatprep.subr.bf16.mxu0 0
    %231 = vmatpush1.bf16.msra.mxu0 0
    %232 = vmatprep.subr.bf16.mxu0 0
    %233 = vmatpush1.bf16.msra.mxu0 0
    %234 = vmatprep.subr.bf16.mxu0 0
    %235 = vmatpush1.bf16.msra.mxu0 0
    %236 = vmatprep.subr.bf16.mxu0 0
    %237 = vmatpush1.bf16.msra.mxu0 0
    %238 = vmatprep.subr.bf16.mxu0 0
    %239 = vmatpush1.bf16.msra.mxu0 0
    %240 = vmatprep.subr.bf16.mxu0 0
    %241 = vmatpush1.bf16.msra.mxu0 0
    %242 = vmatprep.subr.bf16.mxu0 0
    %243 = vmatpush1.bf16.msra.mxu0 0
    %244 = vmatprep.subr.bf16.mxu0 0
    %245 = vmatpush1.bf16.msra.mxu0 0
    %246 = vmatprep.subr.bf16.mxu0 0
    %247 = vmatpush1.bf16.msra.mxu0 0
    %248 = vmatprep.subr.bf16.mxu0 0
    %249 = vmatpush1.bf16.msra.mxu0 0
    %250 = vmatprep.mubr.bf16.mxu0 0
    %251 = vmatmul.mubr.bf16.gmra.mrb[0].mxu0 %v167
    %v252 = vpop.f32.mrb[0].mxu0
    %v253 = vadd.f32 0.0, %v252
    %v254 = vpop.f32.mrb[0].mxu0
    %v255 = vpop.f32.mrb[0].mxu0
    %v256 = vadd.f32 0.0, %v255
    %v257 = vpop.f32.mrb[0].mxu0
    %258 = vmatprep.mubr.bf16.mxu0 0
    %259 = vmatmul.mubr.bf16.gmra.mrb[0].mxu0 %v170
    %v260 = vpop.f32.mrb[0].mxu0
    %v261 = vadd.f32 0.0, %v260
    %v262 = vpop.f32.mrb[0].mxu0
    %v263 = vpop.f32.mrb[0].mxu0
    %v264 = vadd.f32 0.0, %v263
    %v265 = vpop.f32.mrb[0].mxu0
    %266 = vmatprep.mubr.bf16.mxu0 0
    %267 = vmatmul.mubr.bf16.gmra.mrb[0].mxu0 %v173
    %v268 = vpop.f32.mrb[0].mxu0
    %v269 = vadd.f32 0.0, %v268
    %v270 = vpop.f32.mrb[0].mxu0
    %v271 = vpop.f32.mrb[0].mxu0
    %v272 = vadd.f32 0.0, %v271
    %v273 = vpop.f32.mrb[0].mxu0
    %274 = vmatprep.mubr.bf16.mxu0 0
    %275 = vmatmul.mubr.bf16.gmra.mrb[0].mxu0 %v176
    %v276 = vpop.f32.mrb[0].mxu0
    %v277 = vadd.f32 0.0, %v276
    %v278 = vpop.f32.mrb[0].mxu0
    %v279 = vpop.f32.mrb[0].mxu0
    %v280 = vadd.f32 0.0, %v279
    %v281 = vpop.f32.mrb[0].mxu0
    %282 = vmatprep.mubr.bf16.mxu0 0
    %283 = vmatmul.mubr.bf16.gmra.mrb[0].mxu0 %v179
    %v284 = vpop.f32.mrb[0].mxu0
    %v285 = vadd.f32 0.0, %v284
    %v286 = vpop.f32.mrb[0].mxu0
    %v287 = vpop.f32.mrb[0].mxu0
    %v288 = vadd.f32 0.0, %v287
    %v289 = vpop.f32.mrb[0].mxu0
    %290 = vmatprep.mubr.bf16.mxu0 0
    %291 = vmatmul.mubr.bf16.gmra.mrb[0].mxu0 %v182
    %v292 = vpop.f32.mrb[0].mxu0
    %v293 = vadd.f32 0.0, %v292
    %v294 = vpop.f32.mrb[0].mxu0
    %v295 = vpop.f32.mrb[0].mxu0
    %v296 = vadd.f32 0.0, %v295
    %v297 = vpop.f32.mrb[0].mxu0
    %298 = vmatprep.mubr.bf16.mxu0 0
    %299 = vmatmul.mubr.bf16.gmra.mrb[0].mxu0 %v185
    %v300 = vpop.f32.mrb[0].mxu0
    %v301 = vadd.f32 0.0, %v300
    %v302 = vpop.f32.mrb[0].mxu0
    %v303 = vpop.f32.mrb[0].mxu0
    %v304 = vadd.f32 0.0, %v303
    %v305 = vpop.f32.mrb[0].mxu0
    %306 = vmatprep.mubr.bf16.mxu0 0
    %307 = vmatmul.mubr.bf16.gmra.mrb[0].mxu0 %v188
    %v308 = vpop.f32.mrb[0].mxu0
    %v309 = vadd.f32 0.0, %v308
    %v310 = vpop.f32.mrb[0].mxu0
    %v311 = vpop.f32.mrb[0].mxu0
    %v312 = vadd.f32 0.0, %v311
    %v313 = vpop.f32.mrb[0].mxu0
    %314 = vmatprep.mubr.bf16.mxu0 0
    %315 = vmatmul.mubr.bf16.gmra.mrb[0].mxu0 %v191
    %v316 = vpop.f32.mrb[0].mxu0
    %v317 = vadd.f32 0.0, %v316
    %v318 = vpop.f32.mrb[0].mxu0
    %v319 = vpop.f32.mrb[0].mxu0
    %v320 = vadd.f32 0.0, %v319
    %v321 = vpop.f32.mrb[0].mxu0
    %322 = vmatprep.mubr.bf16.mxu0 0
    %323 = vmatmul.mubr.bf16.gmra.mrb[0].mxu0 %v194
    %v324 = vpop.f32.mrb[0].mxu0
    %v325 = vadd.f32 0.0, %v324
    %v326 = vpop.f32.mrb[0].mxu0
    %v327 = vpop.f32.mrb[0].mxu0
    %v328 = vadd.f32 0.0, %v327
    %v329 = vpop.f32.mrb[0].mxu0
    %330 = vmatprep.mubr.bf16.mxu0 0
    %331 = vmatmul.mubr.bf16.gmra.mrb[0].mxu0 %v197
    %v332 = vpop.f32.mrb[0].mxu0
    %v333 = vadd.f32 0.0, %v332
    %v334 = vpop.f32.mrb[0].mxu0
    %v335 = vpop.f32.mrb[0].mxu0
    %v336 = vadd.f32 0.0, %v335
    %v337 = vpop.f32.mrb[0].mxu0
    %338 = vmatprep.mubr.bf16.mxu0 0
    %339 = vmatmul.mubr.bf16.gmra.mrb[0].mxu0 %v200
    %v340 = vpop.f32.mrb[0].mxu0
    %v341 = vadd.f32 0.0, %v340
    %v342 = vpop.f32.mrb[0].mxu0
    %v343 = vpop.f32.mrb[0].mxu0
    %v344 = vadd.f32 0.0, %v343
    %v345 = vpop.f32.mrb[0].mxu0
    %346 = vmatprep.mubr.bf16.mxu0 0
    %347 = vmatmul.mubr.bf16.gmra.mrb[0].mxu0 %v203
    %v348 = vpop.f32.mrb[0].mxu0
    %v349 = vadd.f32 0.0, %v348
    %v350 = vpop.f32.mrb[0].mxu0
    %v351 = vpop.f32.mrb[0].mxu0
    %v352 = vadd.f32 0.0, %v351
    %v353 = vpop.f32.mrb[0].mxu0
    %354 = vmatprep.mubr.bf16.mxu0 0
    %355 = vmatmul.mubr.bf16.gmra.mrb[0].mxu0 %v206
    %v356 = vpop.f32.mrb[0].mxu0
    %v357 = vadd.f32 0.0, %v356
    %v358 = vpop.f32.mrb[0].mxu0
    %v359 = vpop.f32.mrb[0].mxu0
    %v360 = vadd.f32 0.0, %v359
    %v361 = vpop.f32.mrb[0].mxu0
    %362 = vmatprep.mubr.bf16.mxu0 0
    %363 = vmatmul.mubr.bf16.gmra.mrb[0].mxu0 %v209
    %v364 = vpop.f32.mrb[0].mxu0
    %v365 = vadd.f32 0.0, %v364
    %v366 = vpop.f32.mrb[0].mxu0
    %v367 = vpop.f32.mrb[0].mxu0
    %v368 = vadd.f32 0.0, %v367
    %v369 = vpop.f32.mrb[0].mxu0
    %370 = vmatprep.mubr.bf16.mxu0 0
    %371 = vmatmul.mubr.bf16.gmra.mrb[0].mxu0 %v212
    %v372 = vpop.f32.mrb[0].mxu0
    %v373 = vadd.f32 0.0, %v372
    %v374 = vpop.f32.mrb[0].mxu0
    %v375 = vpop.f32.mrb[0].mxu0
    %v376 = vadd.f32 0.0, %v375
    %v377 = vpop.f32.mrb[0].mxu0
    %378 = vdwg.mxu0
    %v411 = vunpack.c.l.b16 %v17
    %v412 = vunpack.c.l.b16 %v18
    %v413 = vunpack.c.l.b16 %v19
    %v414 = vunpack.c.l.b16 %v20
    %v415 = vunpack.c.l.b16 %v21
    %v416 = vunpack.c.l.b16 %v22
    %v417 = vunpack.c.l.b16 %v23
    %v418 = vunpack.c.l.b16 %v24
    %v419 = vunpack.c.l.b16 %v25
    %v420 = vunpack.c.l.b16 %v26
    %v421 = vunpack.c.l.b16 %v27
    %v422 = vunpack.c.l.b16 %v28
    %v423 = vunpack.c.l.b16 %v29
    %v424 = vunpack.c.l.b16 %v30
    %v425 = vunpack.c.l.b16 %v31
    %v426 = vunpack.c.l.b16 %v32
    %v427 = vunpack.c.l.b16 %v33
    %v428 = vunpack.c.l.b16 %v34
    %v429 = vunpack.c.l.b16 %v35
    %v430 = vunpack.c.l.b16 %v36
    %v431 = vunpack.c.l.b16 %v37
    %v432 = vunpack.c.l.b16 %v38
    %v433 = vunpack.c.l.b16 %v39
    %v434 = vunpack.c.l.b16 %v40
    %v435 = vunpack.c.l.b16 %v41
    %v436 = vunpack.c.l.b16 %v42
    %v437 = vunpack.c.l.b16 %v43
    %v438 = vunpack.c.l.b16 %v44
    %v439 = vunpack.c.l.b16 %v45
    %v440 = vunpack.c.l.b16 %v46
    %v441 = vunpack.c.l.b16 %v47
    %v442 = vunpack.c.l.b16 %v48
    %v443 = vpack.c.b16 %v412, %v411
    %v444 = vpack.c.b16 %v414, %v413
    %v445 = vpack.c.b16 %v416, %v415
    %v446 = vpack.c.b16 %v418, %v417
    %v447 = vpack.c.b16 %v420, %v419
    %v448 = vpack.c.b16 %v422, %v421
    %v449 = vpack.c.b16 %v424, %v423
    %v450 = vpack.c.b16 %v426, %v425
    %v451 = vpack.c.b16 %v428, %v427
    %v452 = vpack.c.b16 %v430, %v429
    %v453 = vpack.c.b16 %v432, %v431
    %v454 = vpack.c.b16 %v434, %v433
    %v455 = vpack.c.b16 %v436, %v435
    %v456 = vpack.c.b16 %v438, %v437
    %v457 = vpack.c.b16 %v440, %v439
    %v458 = vpack.c.b16 %v442, %v441
    %v460 = vsel %vm165, %v443, 0
    %v463 = vsel %vm165, %v444, 0
    %v466 = vsel %vm165, %v445, 0
    %v469 = vsel %vm165, %v446, 0
    %v472 = vsel %vm165, %v447, 0
    %v475 = vsel %vm165, %v448, 0
    %v478 = vsel %vm165, %v449, 0
    %v481 = vsel %vm165, %v450, 0
    %v484 = vsel %vm165, %v451, 0
    %v487 = vsel %vm165, %v452, 0
    %v490 = vsel %vm165, %v453, 0
    %v493 = vsel %vm165, %v454, 0
    %v496 = vsel %vm165, %v455, 0
    %v499 = vsel %vm165, %v456, 0
    %v502 = vsel %vm165, %v457, 0
    %v505 = vsel %vm165, %v458, 0
    %v508 = vsel %vm214, %v49, 0
    %510 = vmatprep.subr.bf16.mxu0 0
    %511 = vmatpush1.bf16.msra.mxu0 %v508
    %512 = vmatprep.subr.bf16.mxu0 0
    %513 = vmatpush1.bf16.msra.mxu0 0
    %514 = vmatprep.subr.bf16.mxu0 0
    %515 = vmatpush1.bf16.msra.mxu0 0
    %516 = vmatprep.subr.bf16.mxu0 0
    %517 = vmatpush1.bf16.msra.mxu0 0
    %518 = vmatprep.subr.bf16.mxu0 0
    %519 = vmatpush1.bf16.msra.mxu0 0
    %520 = vmatprep.subr.bf16.mxu0 0
    %521 = vmatpush1.bf16.msra.mxu0 0
    %522 = vmatprep.subr.bf16.mxu0 0
    %523 = vmatpush1.bf16.msra.mxu0 0
    %524 = vmatprep.subr.bf16.mxu0 0
    %525 = vmatpush1.bf16.msra.mxu0 0
    %526 = vmatprep.subr.bf16.mxu0 0
    %527 = vmatpush1.bf16.msra.mxu0 0
    %528 = vmatprep.subr.bf16.mxu0 0
    %529 = vmatpush1.bf16.msra.mxu0 0
    %530 = vmatprep.subr.bf16.mxu0 0
    %531 = vmatpush1.bf16.msra.mxu0 0
    %532 = vmatprep.subr.bf16.mxu0 0
    %533 = vmatpush1.bf16.msra.mxu0 0
    %534 = vmatprep.subr.bf16.mxu0 0
    %535 = vmatpush1.bf16.msra.mxu0 0
    %536 = vmatprep.subr.bf16.mxu0 0
    %537 = vmatpush1.bf16.msra.mxu0 0
    %538 = vmatprep.subr.bf16.mxu0 0
    %539 = vmatpush1.bf16.msra.mxu0 0
    %540 = vmatprep.subr.bf16.mxu0 0
    %541 = vmatpush1.bf16.msra.mxu0 0
    %542 = vmatprep.mubr.bf16.mxu0 0
    %543 = vmatmul.mubr.bf16.gmra.mrb[0].mxu0 %v460
    %v544 = vpop.f32.mrb[0].mxu0
    %v545 = vadd.f32 %v253, %v544
    %v546 = vpop.f32.mrb[0].mxu0
    %v547 = vpop.f32.mrb[0].mxu0
    %v548 = vadd.f32 %v256, %v547
    %v549 = vpop.f32.mrb[0].mxu0
    %550 = vmatprep.mubr.bf16.mxu0 0
    %551 = vmatmul.mubr.bf16.gmra.mrb[0].mxu0 %v463
    %v552 = vpop.f32.mrb[0].mxu0
    %v553 = vadd.f32 %v261, %v552
    %v554 = vpop.f32.mrb[0].mxu0
    %v555 = vpop.f32.mrb[0].mxu0
    %v556 = vadd.f32 %v264, %v555
    %v557 = vpop.f32.mrb[0].mxu0
    %558 = vmatprep.mubr.bf16.mxu0 0
    %559 = vmatmul.mubr.bf16.gmra.mrb[0].mxu0 %v466
    %v560 = vpop.f32.mrb[0].mxu0
    %v561 = vadd.f32 %v269, %v560
    %v562 = vpop.f32.mrb[0].mxu0
    %v563 = vpop.f32.mrb[0].mxu0
    %v564 = vadd.f32 %v272, %v563
    %v565 = vpop.f32.mrb[0].mxu0
    %566 = vmatprep.mubr.bf16.mxu0 0
    %567 = vmatmul.mubr.bf16.gmra.mrb[0].mxu0 %v469
    %v568 = vpop.f32.mrb[0].mxu0
    %v569 = vadd.f32 %v277, %v568
    %v570 = vpop.f32.mrb[0].mxu0
    %v571 = vpop.f32.mrb[0].mxu0
    %v572 = vadd.f32 %v280, %v571
    %v573 = vpop.f32.mrb[0].mxu0
    %574 = vmatprep.mubr.bf16.mxu0 0
    %575 = vmatmul.mubr.bf16.gmra.mrb[0].mxu0 %v472
    %v576 = vpop.f32.mrb[0].mxu0
    %v577 = vadd.f32 %v285, %v576
    %v578 = vpop.f32.mrb[0].mxu0
    %v579 = vpop.f32.mrb[0].mxu0
    %v580 = vadd.f32 %v288, %v579
    %v581 = vpop.f32.mrb[0].mxu0
    %582 = vmatprep.mubr.bf16.mxu0 0
    %583 = vmatmul.mubr.bf16.gmra.mrb[0].mxu0 %v475
    %v584 = vpop.f32.mrb[0].mxu0
    %v585 = vadd.f32 %v293, %v584
    %v586 = vpop.f32.mrb[0].mxu0
    %v587 = vpop.f32.mrb[0].mxu0
    %v588 = vadd.f32 %v296, %v587
    %v589 = vpop.f32.mrb[0].mxu0
    %590 = vmatprep.mubr.bf16.mxu0 0
    %591 = vmatmul.mubr.bf16.gmra.mrb[0].mxu0 %v478
    %v592 = vpop.f32.mrb[0].mxu0
    %v593 = vadd.f32 %v301, %v592
    %v594 = vpop.f32.mrb[0].mxu0
    %v595 = vpop.f32.mrb[0].mxu0
    %v596 = vadd.f32 %v304, %v595
    %v597 = vpop.f32.mrb[0].mxu0
    %598 = vmatprep.mubr.bf16.mxu0 0
    %599 = vmatmul.mubr.bf16.gmra.mrb[0].mxu0 %v481
    %v600 = vpop.f32.mrb[0].mxu0
    %v601 = vadd.f32 %v309, %v600
    %v602 = vpop.f32.mrb[0].mxu0
    %v603 = vpop.f32.mrb[0].mxu0
    %v604 = vadd.f32 %v312, %v603
    %v605 = vpop.f32.mrb[0].mxu0
    %606 = vmatprep.mubr.bf16.mxu0 0
    %607 = vmatmul.mubr.bf16.gmra.mrb[0].mxu0 %v484
    %v608 = vpop.f32.mrb[0].mxu0
    %v609 = vadd.f32 %v317, %v608
    %v610 = vpop.f32.mrb[0].mxu0
    %v611 = vpop.f32.mrb[0].mxu0
    %v612 = vadd.f32 %v320, %v611
    %v613 = vpop.f32.mrb[0].mxu0
    %614 = vmatprep.mubr.bf16.mxu0 0
    %615 = vmatmul.mubr.bf16.gmra.mrb[0].mxu0 %v487
    %v616 = vpop.f32.mrb[0].mxu0
    %v617 = vadd.f32 %v325, %v616
    %v618 = vpop.f32.mrb[0].mxu0
    %v619 = vpop.f32.mrb[0].mxu0
    %v620 = vadd.f32 %v328, %v619
    %v621 = vpop.f32.mrb[0].mxu0
    %622 = vmatprep.mubr.bf16.mxu0 0
    %623 = vmatmul.mubr.bf16.gmra.mrb[0].mxu0 %v490
    %v624 = vpop.f32.mrb[0].mxu0
    %v625 = vadd.f32 %v333, %v624
    %v626 = vpop.f32.mrb[0].mxu0
    %v627 = vpop.f32.mrb[0].mxu0
    %v628 = vadd.f32 %v336, %v627
    %v629 = vpop.f32.mrb[0].mxu0
    %630 = vmatprep.mubr.bf16.mxu0 0
    %631 = vmatmul.mubr.bf16.gmra.mrb[0].mxu0 %v493
    %v632 = vpop.f32.mrb[0].mxu0
    %v633 = vadd.f32 %v341, %v632
    %v634 = vpop.f32.mrb[0].mxu0
    %v635 = vpop.f32.mrb[0].mxu0
    %v636 = vadd.f32 %v344, %v635
    %v637 = vpop.f32.mrb[0].mxu0
    %638 = vmatprep.mubr.bf16.mxu0 0
    %639 = vmatmul.mubr.bf16.gmra.mrb[0].mxu0 %v496
    %v640 = vpop.f32.mrb[0].mxu0
    %v641 = vadd.f32 %v349, %v640
    %v642 = vpop.f32.mrb[0].mxu0
    %v643 = vpop.f32.mrb[0].mxu0
    %v644 = vadd.f32 %v352, %v643
    %v645 = vpop.f32.mrb[0].mxu0
    %646 = vmatprep.mubr.bf16.mxu0 0
    %647 = vmatmul.mubr.bf16.gmra.mrb[0].mxu0 %v499
    %v648 = vpop.f32.mrb[0].mxu0
    %v649 = vadd.f32 %v357, %v648
    %v650 = vpop.f32.mrb[0].mxu0
    %v651 = vpop.f32.mrb[0].mxu0
    %v652 = vadd.f32 %v360, %v651
    %v653 = vpop.f32.mrb[0].mxu0
    %654 = vmatprep.mubr.bf16.mxu0 0
    %655 = vmatmul.mubr.bf16.gmra.mrb[0].mxu0 %v502
    %v656 = vpop.f32.mrb[0].mxu0
    %v657 = vadd.f32 %v365, %v656
    %v658 = vpop.f32.mrb[0].mxu0
    %v659 = vpop.f32.mrb[0].mxu0
    %v660 = vadd.f32 %v368, %v659
    %v661 = vpop.f32.mrb[0].mxu0
    %662 = vmatprep.mubr.bf16.mxu0 0
    %663 = vmatmul.mubr.bf16.gmra.mrb[0].mxu0 %v505
    %v664 = vpop.f32.mrb[0].mxu0
    %v665 = vadd.f32 %v373, %v664
    %v666 = vpop.f32.mrb[0].mxu0
    %v667 = vpop.f32.mrb[0].mxu0
    %v668 = vadd.f32 %v376, %v667
    %v669 = vpop.f32.mrb[0].mxu0
    %670 = vdwg.mxu0
    %s671 = scalar_lea.vmem %s0, 576
    %v672 = vld [vmem:[%s671] sm:$0xf]
    %v673 = vld [vmem:[%s671 + $0x4] sm:$0xf]
    %v674 = vld [vmem:[%s671 + $0x8] sm:$0xf]
    %v675 = vld [vmem:[%s671 + $0xc] sm:$0xf]
    %v676 = vld [vmem:[%s671 + $0x10] sm:$0xf]
    %v677 = vld [vmem:[%s671 + $0x14] sm:$0xf]
    %v678 = vld [vmem:[%s671 + $0x18] sm:$0xf]
    %v679 = vld [vmem:[%s671 + $0x1c] sm:$0xf]
    %v680 = vld [vmem:[%s671 + $0x20] sm:$0xf]
    %v681 = vld [vmem:[%s671 + $0x24] sm:$0xf]
    %v682 = vld [vmem:[%s671 + $0x28] sm:$0xf]
    %v683 = vld [vmem:[%s671 + $0x2c] sm:$0xf]
    %v684 = vld [vmem:[%s671 + $0x30] sm:$0xf]
    %v685 = vld [vmem:[%s671 + $0x34] sm:$0xf]
    %v686 = vld [vmem:[%s671 + $0x38] sm:$0xf]
    %v687 = vld [vmem:[%s671 + $0x3c] sm:$0xf]
    %v688 = vld [vmem:[%s671 + $0x40] sm:$0xf]
    %v689 = vld [vmem:[%s671 + $0x44] sm:$0xf]
    %v690 = vld [vmem:[%s671 + $0x48] sm:$0xf]
    %v691 = vld [vmem:[%s671 + $0x4c] sm:$0xf]
    %v692 = vld [vmem:[%s671 + $0x50] sm:$0xf]
    %v693 = vld [vmem:[%s671 + $0x54] sm:$0xf]
    %v694 = vld [vmem:[%s671 + $0x58] sm:$0xf]
    %v695 = vld [vmem:[%s671 + $0x5c] sm:$0xf]
    %v696 = vld [vmem:[%s671 + $0x60] sm:$0xf]
    %v697 = vld [vmem:[%s671 + $0x64] sm:$0xf]
    %v698 = vld [vmem:[%s671 + $0x68] sm:$0xf]
    %v699 = vld [vmem:[%s671 + $0x6c] sm:$0xf]
    %v700 = vld [vmem:[%s671 + $0x70] sm:$0xf]
    %v701 = vld [vmem:[%s671 + $0x74] sm:$0xf]
    %v702 = vld [vmem:[%s671 + $0x78] sm:$0xf]
    %v703 = vld [vmem:[%s671 + $0x7c] sm:$0xf]
    %s704 = scalar_lea.vmem %s1, 4
    %v705 = vld [vmem:[%s704] sm:$0x3]
    %v738 = vunpack.c.l.b16 %v672
    %v739 = vunpack.c.l.b16 %v673
    %v740 = vunpack.c.l.b16 %v674
    %v741 = vunpack.c.l.b16 %v675
    %v742 = vunpack.c.l.b16 %v676
    %v743 = vunpack.c.l.b16 %v677
    %v744 = vunpack.c.l.b16 %v678
    %v745 = vunpack.c.l.b16 %v679
    %v746 = vunpack.c.l.b16 %v680
    %v747 = vunpack.c.l.b16 %v681
    %v748 = vunpack.c.l.b16 %v682
    %v749 = vunpack.c.l.b16 %v683
    %v750 = vunpack.c.l.b16 %v684
    %v751 = vunpack.c.l.b16 %v685
    %v752 = vunpack.c.l.b16 %v686
    %v753 = vunpack.c.l.b16 %v687
    %v754 = vunpack.c.l.b16 %v688
    %v755 = vunpack.c.l.b16 %v689
    %v756 = vunpack.c.l.b16 %v690
    %v757 = vunpack.c.l.b16 %v691
    %v758 = vunpack.c.l.b16 %v692
    %v759 = vunpack.c.l.b16 %v693
    %v760 = vunpack.c.l.b16 %v694
    %v761 = vunpack.c.l.b16 %v695
    %v762 = vunpack.c.l.b16 %v696
    %v763 = vunpack.c.l.b16 %v697
    %v764 = vunpack.c.l.b16 %v698
    %v765 = vunpack.c.l.b16 %v699
    %v766 = vunpack.c.l.b16 %v700
    %v767 = vunpack.c.l.b16 %v701
    %v768 = vunpack.c.l.b16 %v702
    %v769 = vunpack.c.l.b16 %v703
    %v770 = vpack.c.b16 %v739, %v738
    %v771 = vpack.c.b16 %v741, %v740
    %v772 = vpack.c.b16 %v743, %v742
    %v773 = vpack.c.b16 %v745, %v744
    %v774 = vpack.c.b16 %v747, %v746
    %v775 = vpack.c.b16 %v749, %v748
    %v776 = vpack.c.b16 %v751, %v750
    %v777 = vpack.c.b16 %v753, %v752
    %v778 = vpack.c.b16 %v755, %v754
    %v779 = vpack.c.b16 %v757, %v756
    %v780 = vpack.c.b16 %v759, %v758
    %v781 = vpack.c.b16 %v761, %v760
    %v782 = vpack.c.b16 %v763, %v762
    %v783 = vpack.c.b16 %v765, %v764
    %v784 = vpack.c.b16 %v767, %v766
    %v785 = vpack.c.b16 %v769, %v768
    %v787 = vsel %vm165, %v770, 0
    %v790 = vsel %vm165, %v771, 0
    %v793 = vsel %vm165, %v772, 0
    %v796 = vsel %vm165, %v773, 0
    %v799 = vsel %vm165, %v774, 0
    %v802 = vsel %vm165, %v775, 0
    %v805 = vsel %vm165, %v776, 0
    %v808 = vsel %vm165, %v777, 0
    %v811 = vsel %vm165, %v778, 0
    %v814 = vsel %vm165, %v779, 0
    %v817 = vsel %vm165, %v780, 0
    %v820 = vsel %vm165, %v781, 0
    %v823 = vsel %vm165, %v782, 0
    %v826 = vsel %vm165, %v783, 0
    %v829 = vsel %vm165, %v784, 0
    %v832 = vsel %vm165, %v785, 0
    %v835 = vsel %vm214, %v705, 0
    %837 = vmatprep.subr.bf16.mxu0 0
    %838 = vmatpush1.bf16.msra.mxu0 %v835
    %839 = vmatprep.subr.bf16.mxu0 0
    %840 = vmatpush1.bf16.msra.mxu0 0
    %841 = vmatprep.subr.bf16.mxu0 0
    %842 = vmatpush1.bf16.msra.mxu0 0
    %843 = vmatprep.subr.bf16.mxu0 0
    %844 = vmatpush1.bf16.msra.mxu0 0
    %845 = vmatprep.subr.bf16.mxu0 0
    %846 = vmatpush1.bf16.msra.mxu0 0
    %847 = vmatprep.subr.bf16.mxu0 0
    %848 = vmatpush1.bf16.msra.mxu0 0
    %849 = vmatprep.subr.bf16.mxu0 0
    %850 = vmatpush1.bf16.msra.mxu0 0
    %851 = vmatprep.subr.bf16.mxu0 0
    %852 = vmatpush1.bf16.msra.mxu0 0
    %853 = vmatprep.subr.bf16.mxu0 0
    %854 = vmatpush1.bf16.msra.mxu0 0
    %855 = vmatprep.subr.bf16.mxu0 0
    %856 = vmatpush1.bf16.msra.mxu0 0
    %857 = vmatprep.subr.bf16.mxu0 0
    %858 = vmatpush1.bf16.msra.mxu0 0
    %859 = vmatprep.subr.bf16.mxu0 0
    %860 = vmatpush1.bf16.msra.mxu0 0
    %861 = vmatprep.subr.bf16.mxu0 0
    %862 = vmatpush1.bf16.msra.mxu0 0
    %863 = vmatprep.subr.bf16.mxu0 0
    %864 = vmatpush1.bf16.msra.mxu0 0
    %865 = vmatprep.subr.bf16.mxu0 0
    %866 = vmatpush1.bf16.msra.mxu0 0
    %867 = vmatprep.subr.bf16.mxu0 0
    %868 = vmatpush1.bf16.msra.mxu0 0
    %869 = vmatprep.mubr.bf16.mxu0 0
    %870 = vmatmul.mubr.bf16.gmra.mrb[0].mxu0 %v787
    %v871 = vpop.f32.mrb[0].mxu0
    %v872 = vadd.f32 0.0, %v871
    %v873 = vpop.f32.mrb[0].mxu0
    %v874 = vpop.f32.mrb[0].mxu0
    %v875 = vadd.f32 0.0, %v874
    %v876 = vpop.f32.mrb[0].mxu0
    %877 = vmatprep.mubr.bf16.mxu0 0
    %878 = vmatmul.mubr.bf16.gmra.mrb[0].mxu0 %v790
    %v879 = vpop.f32.mrb[0].mxu0
    %v880 = vadd.f32 0.0, %v879
    %v881 = vpop.f32.mrb[0].mxu0
    %v882 = vpop.f32.mrb[0].mxu0
    %v883 = vadd.f32 0.0, %v882
    %v884 = vpop.f32.mrb[0].mxu0
    %885 = vmatprep.mubr.bf16.mxu0 0
    %886 = vmatmul.mubr.bf16.gmra.mrb[0].mxu0 %v793
    %v887 = vpop.f32.mrb[0].mxu0
    %v888 = vadd.f32 0.0, %v887
    %v889 = vpop.f32.mrb[0].mxu0
    %v890 = vpop.f32.mrb[0].mxu0
    %v891 = vadd.f32 0.0, %v890
    %v892 = vpop.f32.mrb[0].mxu0
    %893 = vmatprep.mubr.bf16.mxu0 0
    %894 = vmatmul.mubr.bf16.gmra.mrb[0].mxu0 %v796
    %v895 = vpop.f32.mrb[0].mxu0
    %v896 = vadd.f32 0.0, %v895
    %v897 = vpop.f32.mrb[0].mxu0
    %v898 = vpop.f32.mrb[0].mxu0
    %v899 = vadd.f32 0.0, %v898
    %v900 = vpop.f32.mrb[0].mxu0
    %901 = vmatprep.mubr.bf16.mxu0 0
    %902 = vmatmul.mubr.bf16.gmra.mrb[0].mxu0 %v799
    %v903 = vpop.f32.mrb[0].mxu0
    %v904 = vadd.f32 0.0, %v903
    %v905 = vpop.f32.mrb[0].mxu0
    %v906 = vpop.f32.mrb[0].mxu0
    %v907 = vadd.f32 0.0, %v906
    %v908 = vpop.f32.mrb[0].mxu0
    %909 = vmatprep.mubr.bf16.mxu0 0
    %910 = vmatmul.mubr.bf16.gmra.mrb[0].mxu0 %v802
    %v911 = vpop.f32.mrb[0].mxu0
    %v912 = vadd.f32 0.0, %v911
    %v913 = vpop.f32.mrb[0].mxu0
    %v914 = vpop.f32.mrb[0].mxu0
    %v915 = vadd.f32 0.0, %v914
    %v916 = vpop.f32.mrb[0].mxu0
    %917 = vmatprep.mubr.bf16.mxu0 0
    %918 = vmatmul.mubr.bf16.gmra.mrb[0].mxu0 %v805
    %v919 = vpop.f32.mrb[0].mxu0
    %v920 = vadd.f32 0.0, %v919
    %v921 = vpop.f32.mrb[0].mxu0
    %v922 = vpop.f32.mrb[0].mxu0
    %v923 = vadd.f32 0.0, %v922
    %v924 = vpop.f32.mrb[0].mxu0
    %925 = vmatprep.mubr.bf16.mxu0 0
    %926 = vmatmul.mubr.bf16.gmra.mrb[0].mxu0 %v808
    %v927 = vpop.f32.mrb[0].mxu0
    %v928 = vadd.f32 0.0, %v927
    %v929 = vpop.f32.mrb[0].mxu0
    %v930 = vpop.f32.mrb[0].mxu0
    %v931 = vadd.f32 0.0, %v930
    %v932 = vpop.f32.mrb[0].mxu0
    %933 = vmatprep.mubr.bf16.mxu0 0
    %934 = vmatmul.mubr.bf16.gmra.mrb[0].mxu0 %v811
    %v935 = vpop.f32.mrb[0].mxu0
    %v936 = vadd.f32 0.0, %v935
    %v937 = vpop.f32.mrb[0].mxu0
    %v938 = vpop.f32.mrb[0].mxu0
    %v939 = vadd.f32 0.0, %v938
    %v940 = vpop.f32.mrb[0].mxu0
    %941 = vmatprep.mubr.bf16.mxu0 0
    %942 = vmatmul.mubr.bf16.gmra.mrb[0].mxu0 %v814
    %v943 = vpop.f32.mrb[0].mxu0
    %v944 = vadd.f32 0.0, %v943
    %v945 = vpop.f32.mrb[0].mxu0
    %v946 = vpop.f32.mrb[0].mxu0
    %v947 = vadd.f32 0.0, %v946
    %v948 = vpop.f32.mrb[0].mxu0
    %949 = vmatprep.mubr.bf16.mxu0 0
    %950 = vmatmul.mubr.bf16.gmra.mrb[0].mxu0 %v817
    %v951 = vpop.f32.mrb[0].mxu0
    %v952 = vadd.f32 0.0, %v951
    %v953 = vpop.f32.mrb[0].mxu0
    %v954 = vpop.f32.mrb[0].mxu0
    %v955 = vadd.f32 0.0, %v954
    %v956 = vpop.f32.mrb[0].mxu0
    %957 = vmatprep.mubr.bf16.mxu0 0
    %958 = vmatmul.mubr.bf16.gmra.mrb[0].mxu0 %v820
    %v959 = vpop.f32.mrb[0].mxu0
    %v960 = vadd.f32 0.0, %v959
    %v961 = vpop.f32.mrb[0].mxu0
    %v962 = vpop.f32.mrb[0].mxu0
    %v963 = vadd.f32 0.0, %v962
    %v964 = vpop.f32.mrb[0].mxu0
    %965 = vmatprep.mubr.bf16.mxu0 0
    %966 = vmatmul.mubr.bf16.gmra.mrb[0].mxu0 %v823
    %v967 = vpop.f32.mrb[0].mxu0
    %v968 = vadd.f32 0.0, %v967
    %v969 = vpop.f32.mrb[0].mxu0
    %v970 = vpop.f32.mrb[0].mxu0
    %v971 = vadd.f32 0.0, %v970
    %v972 = vpop.f32.mrb[0].mxu0
    %973 = vmatprep.mubr.bf16.mxu0 0
    %974 = vmatmul.mubr.bf16.gmra.mrb[0].mxu0 %v826
    %v975 = vpop.f32.mrb[0].mxu0
    %v976 = vadd.f32 0.0, %v975
    %v977 = vpop.f32.mrb[0].mxu0
    %v978 = vpop.f32.mrb[0].mxu0
    %v979 = vadd.f32 0.0, %v978
    %v980 = vpop.f32.mrb[0].mxu0
    %981 = vmatprep.mubr.bf16.mxu0 0
    %982 = vmatmul.mubr.bf16.gmra.mrb[0].mxu0 %v829
    %v983 = vpop.f32.mrb[0].mxu0
    %v984 = vadd.f32 0.0, %v983
    %v985 = vpop.f32.mrb[0].mxu0
    %v986 = vpop.f32.mrb[0].mxu0
    %v987 = vadd.f32 0.0, %v986
    %v988 = vpop.f32.mrb[0].mxu0
    %989 = vmatprep.mubr.bf16.mxu0 0
    %990 = vmatmul.mubr.bf16.gmra.mrb[0].mxu0 %v832
    %v991 = vpop.f32.mrb[0].mxu0
    %v992 = vadd.f32 0.0, %v991
    %v993 = vpop.f32.mrb[0].mxu0
    %v994 = vpop.f32.mrb[0].mxu0
    %v995 = vadd.f32 0.0, %v994
    %v996 = vpop.f32.mrb[0].mxu0
    %997 = vdwg.mxu0
    %v998 = vadd.f32 %v545, %v872
    %v999 = vadd.f32 %v548, %v875
    %v1000 = vadd.f32 %v553, %v880
    %v1001 = vadd.f32 %v556, %v883
    %v1002 = vadd.f32 %v561, %v888
    %v1003 = vadd.f32 %v564, %v891
    %v1004 = vadd.f32 %v569, %v896
    %v1005 = vadd.f32 %v572, %v899
    %v1006 = vadd.f32 %v577, %v904
    %v1007 = vadd.f32 %v580, %v907
    %v1008 = vadd.f32 %v585, %v912
    %v1009 = vadd.f32 %v588, %v915
    %v1010 = vadd.f32 %v593, %v920
    %v1011 = vadd.f32 %v596, %v923
    %v1012 = vadd.f32 %v601, %v928
    %v1013 = vadd.f32 %v604, %v931
    %v1014 = vadd.f32 %v609, %v936
    %v1015 = vadd.f32 %v612, %v939
    %v1016 = vadd.f32 %v617, %v944
    %v1017 = vadd.f32 %v620, %v947
    %v1018 = vadd.f32 %v625, %v952
    %v1019 = vadd.f32 %v628, %v955
    %v1020 = vadd.f32 %v633, %v960
    %v1021 = vadd.f32 %v636, %v963
    %v1022 = vadd.f32 %v641, %v968
    %v1023 = vadd.f32 %v644, %v971
    %v1024 = vadd.f32 %v649, %v976
    %v1025 = vadd.f32 %v652, %v979
    %v1026 = vadd.f32 %v657, %v984
    %v1027 = vadd.f32 %v660, %v987
    %v1028 = vadd.f32 %v665, %v992
    %v1029 = vadd.f32 %v668, %v995
    %v1030 = vld [vmem:[%s0 + $0x8] sm:$0xf]
    %v1031 = vld [vmem:[%s0 + $0xc] sm:$0xf]
    %v1032 = vld [vmem:[%s0 + $0x10] sm:$0xf]
    %v1033 = vld [vmem:[%s0 + $0x14] sm:$0xf]
    %v1034 = vld [vmem:[%s0 + $0x18] sm:$0xf]
    %v1035 = vld [vmem:[%s0 + $0x1c] sm:$0xf]
    %v1036 = vld [vmem:[%s0 + $0x20] sm:$0xf]
    %v1037 = vld [vmem:[%s0 + $0x24] sm:$0xf]
    %v1038 = vld [vmem:[%s0 + $0x28] sm:$0xf]
    %v1039 = vld [vmem:[%s0 + $0x2c] sm:$0xf]
    %v1040 = vld [vmem:[%s0 + $0x30] sm:$0xf]
    %v1041 = vld [vmem:[%s0 + $0x34] sm:$0xf]
    %v1042 = vld [vmem:[%s0 + $0x38] sm:$0xf]
    %v1043 = vld [vmem:[%s0 + $0x3c] sm:$0xf]
    %v1044 = vld [vmem:[%s0 + $0x40] sm:$0xf]
    %v1045 = vld [vmem:[%s0 + $0x44] sm:$0xf]
    %v1046 = vld [vmem:[%s0 + $0x48] sm:$0xf]
    %v1047 = vld [vmem:[%s0 + $0x4c] sm:$0xf]
    %v1048 = vld [vmem:[%s0 + $0x50] sm:$0xf]
    %v1049 = vld [vmem:[%s0 + $0x54] sm:$0xf]
    %v1050 = vld [vmem:[%s0 + $0x58] sm:$0xf]
    %v1051 = vld [vmem:[%s0 + $0x5c] sm:$0xf]
    %v1052 = vld [vmem:[%s0 + $0x60] sm:$0xf]
    %v1053 = vld [vmem:[%s0 + $0x64] sm:$0xf]
    %v1054 = vld [vmem:[%s0 + $0x68] sm:$0xf]
    %v1055 = vld [vmem:[%s0 + $0x6c] sm:$0xf]
    %v1056 = vld [vmem:[%s0 + $0x70] sm:$0xf]
    %v1057 = vld [vmem:[%s0 + $0x74] sm:$0xf]
    %v1058 = vld [vmem:[%s0 + $0x78] sm:$0xf]
    %v1059 = vld [vmem:[%s0 + $0x7c] sm:$0xf]
    %v1060 = vld [vmem:[%s0 + $0x80] sm:$0xf]
    %v1061 = vld [vmem:[%s0 + $0x84] sm:$0xf]
    %s1062 = scalar_lea.vmem %s1, 6
    %v1063 = vld [vmem:[%s1062] sm:$0x3]
    %v1096 = vunpack.c.l.b16 %v1030
    %v1097 = vunpack.c.l.b16 %v1031
    %v1098 = vunpack.c.l.b16 %v1032
    %v1099 = vunpack.c.l.b16 %v1033
    %v1100 = vunpack.c.l.b16 %v1034
    %v1101 = vunpack.c.l.b16 %v1035
    %v1102 = vunpack.c.l.b16 %v1036
    %v1103 = vunpack.c.l.b16 %v1037
    %v1104 = vunpack.c.l.b16 %v1038
    %v1105 = vunpack.c.l.b16 %v1039
    %v1106 = vunpack.c.l.b16 %v1040
    %v1107 = vunpack.c.l.b16 %v1041
    %v1108 = vunpack.c.l.b16 %v1042
    %v1109 = vunpack.c.l.b16 %v1043
    %v1110 = vunpack.c.l.b16 %v1044
    %v1111 = vunpack.c.l.b16 %v1045
    %v1112 = vunpack.c.l.b16 %v1046
    %v1113 = vunpack.c.l.b16 %v1047
    %v1114 = vunpack.c.l.b16 %v1048
    %v1115 = vunpack.c.l.b16 %v1049
    %v1116 = vunpack.c.l.b16 %v1050
    %v1117 = vunpack.c.l.b16 %v1051
    %v1118 = vunpack.c.l.b16 %v1052
    %v1119 = vunpack.c.l.b16 %v1053
    %v1120 = vunpack.c.l.b16 %v1054
    %v1121 = vunpack.c.l.b16 %v1055
    %v1122 = vunpack.c.l.b16 %v1056
    %v1123 = vunpack.c.l.b16 %v1057
    %v1124 = vunpack.c.l.b16 %v1058
    %v1125 = vunpack.c.l.b16 %v1059
    %v1126 = vunpack.c.l.b16 %v1060
    %v1127 = vunpack.c.l.b16 %v1061
    %v1128 = vpack.c.b16 %v1097, %v1096
    %v1129 = vpack.c.b16 %v1099, %v1098
    %v1130 = vpack.c.b16 %v1101, %v1100
    %v1131 = vpack.c.b16 %v1103, %v1102
    %v1132 = vpack.c.b16 %v1105, %v1104
    %v1133 = vpack.c.b16 %v1107, %v1106
    %v1134 = vpack.c.b16 %v1109, %v1108
    %v1135 = vpack.c.b16 %v1111, %v1110
    %v1136 = vpack.c.b16 %v1113, %v1112
    %v1137 = vpack.c.b16 %v1115, %v1114
    %v1138 = vpack.c.b16 %v1117, %v1116
    %v1139 = vpack.c.b16 %v1119, %v1118
    %v1140 = vpack.c.b16 %v1121, %v1120
    %v1141 = vpack.c.b16 %v1123, %v1122
    %v1142 = vpack.c.b16 %v1125, %v1124
    %v1143 = vpack.c.b16 %v1127, %v1126
    %v1145 = vsel %vm165, %v1128, 0
    %v1148 = vsel %vm165, %v1129, 0
    %v1151 = vsel %vm165, %v1130, 0
    %v1154 = vsel %vm165, %v1131, 0
    %v1157 = vsel %vm165, %v1132, 0
    %v1160 = vsel %vm165, %v1133, 0
    %v1163 = vsel %vm165, %v1134, 0
    %v1166 = vsel %vm165, %v1135, 0
    %v1169 = vsel %vm165, %v1136, 0
    %v1172 = vsel %vm165, %v1137, 0
    %v1175 = vsel %vm165, %v1138, 0
    %v1178 = vsel %vm165, %v1139, 0
    %v1181 = vsel %vm165, %v1140, 0
    %v1184 = vsel %vm165, %v1141, 0
    %v1187 = vsel %vm165, %v1142, 0
    %v1190 = vsel %vm165, %v1143, 0
    %v1193 = vsel %vm214, %v1063, 0
    %1195 = vmatprep.subr.bf16.mxu0 0
    %1196 = vmatpush1.bf16.msra.mxu0 %v1193
    %1197 = vmatprep.subr.bf16.mxu0 0
    %1198 = vmatpush1.bf16.msra.mxu0 0
    %1199 = vmatprep.subr.bf16.mxu0 0
    %1200 = vmatpush1.bf16.msra.mxu0 0
    %1201 = vmatprep.subr.bf16.mxu0 0
    %1202 = vmatpush1.bf16.msra.mxu0 0
    %1203 = vmatprep.subr.bf16.mxu0 0
    %1204 = vmatpush1.bf16.msra.mxu0 0
    %1205 = vmatprep.subr.bf16.mxu0 0
    %1206 = vmatpush1.bf16.msra.mxu0 0
    %1207 = vmatprep.subr.bf16.mxu0 0
    %1208 = vmatpush1.bf16.msra.mxu0 0
    %1209 = vmatprep.subr.bf16.mxu0 0
    %1210 = vmatpush1.bf16.msra.mxu0 0
    %1211 = vmatprep.subr.bf16.mxu0 0
    %1212 = vmatpush1.bf16.msra.mxu0 0
    %1213 = vmatprep.subr.bf16.mxu0 0
    %1214 = vmatpush1.bf16.msra.mxu0 0
    %1215 = vmatprep.subr.bf16.mxu0 0
    %1216 = vmatpush1.bf16.msra.mxu0 0
    %1217 = vmatprep.subr.bf16.mxu0 0
    %1218 = vmatpush1.bf16.msra.mxu0 0
    %1219 = vmatprep.subr.bf16.mxu0 0
    %1220 = vmatpush1.bf16.msra.mxu0 0
    %1221 = vmatprep.subr.bf16.mxu0 0
    %1222 = vmatpush1.bf16.msra.mxu0 0
    %1223 = vmatprep.subr.bf16.mxu0 0
    %1224 = vmatpush1.bf16.msra.mxu0 0
    %1225 = vmatprep.subr.bf16.mxu0 0
    %1226 = vmatpush1.bf16.msra.mxu0 0
    %1227 = vmatprep.mubr.bf16.mxu0 0
    %1228 = vmatmul.mubr.bf16.gmra.mrb[0].mxu0 %v1145
    %v1229 = vpop.f32.mrb[0].mxu0
    %v1230 = vadd.f32 0.0, %v1229
    %v1231 = vpop.f32.mrb[0].mxu0
    %v1232 = vpop.f32.mrb[0].mxu0
    %v1233 = vadd.f32 0.0, %v1232
    %v1234 = vpop.f32.mrb[0].mxu0
    %1235 = vmatprep.mubr.bf16.mxu0 0
    %1236 = vmatmul.mubr.bf16.gmra.mrb[0].mxu0 %v1148
    %v1237 = vpop.f32.mrb[0].mxu0
    %v1238 = vadd.f32 0.0, %v1237
    %v1239 = vpop.f32.mrb[0].mxu0
    %v1240 = vpop.f32.mrb[0].mxu0
    %v1241 = vadd.f32 0.0, %v1240
    %v1242 = vpop.f32.mrb[0].mxu0
    %1243 = vmatprep.mubr.bf16.mxu0 0
    %1244 = vmatmul.mubr.bf16.gmra.mrb[0].mxu0 %v1151
    %v1245 = vpop.f32.mrb[0].mxu0
    %v1246 = vadd.f32 0.0, %v1245
    %v1247 = vpop.f32.mrb[0].mxu0
    %v1248 = vpop.f32.mrb[0].mxu0
    %v1249 = vadd.f32 0.0, %v1248
    %v1250 = vpop.f32.mrb[0].mxu0
    %1251 = vmatprep.mubr.bf16.mxu0 0
    %1252 = vmatmul.mubr.bf16.gmra.mrb[0].mxu0 %v1154
    %v1253 = vpop.f32.mrb[0].mxu0
    %v1254 = vadd.f32 0.0, %v1253
    %v1255 = vpop.f32.mrb[0].mxu0
    %v1256 = vpop.f32.mrb[0].mxu0
    %v1257 = vadd.f32 0.0, %v1256
    %v1258 = vpop.f32.mrb[0].mxu0
    %1259 = vmatprep.mubr.bf16.mxu0 0
    %1260 = vmatmul.mubr.bf16.gmra.mrb[0].mxu0 %v1157
    %v1261 = vpop.f32.mrb[0].mxu0
    %v1262 = vadd.f32 0.0, %v1261
    %v1263 = vpop.f32.mrb[0].mxu0
    %v1264 = vpop.f32.mrb[0].mxu0
    %v1265 = vadd.f32 0.0, %v1264
    %v1266 = vpop.f32.mrb[0].mxu0
    %1267 = vmatprep.mubr.bf16.mxu0 0
    %1268 = vmatmul.mubr.bf16.gmra.mrb[0].mxu0 %v1160
    %v1269 = vpop.f32.mrb[0].mxu0
    %v1270 = vadd.f32 0.0, %v1269
    %v1271 = vpop.f32.mrb[0].mxu0
    %v1272 = vpop.f32.mrb[0].mxu0
    %v1273 = vadd.f32 0.0, %v1272
    %v1274 = vpop.f32.mrb[0].mxu0
    %1275 = vmatprep.mubr.bf16.mxu0 0
    %1276 = vmatmul.mubr.bf16.gmra.mrb[0].mxu0 %v1163
    %v1277 = vpop.f32.mrb[0].mxu0
    %v1278 = vadd.f32 0.0, %v1277
    %v1279 = vpop.f32.mrb[0].mxu0
    %v1280 = vpop.f32.mrb[0].mxu0
    %v1281 = vadd.f32 0.0, %v1280
    %v1282 = vpop.f32.mrb[0].mxu0
    %1283 = vmatprep.mubr.bf16.mxu0 0
    %1284 = vmatmul.mubr.bf16.gmra.mrb[0].mxu0 %v1166
    %v1285 = vpop.f32.mrb[0].mxu0
    %v1286 = vadd.f32 0.0, %v1285
    %v1287 = vpop.f32.mrb[0].mxu0
    %v1288 = vpop.f32.mrb[0].mxu0
    %v1289 = vadd.f32 0.0, %v1288
    %v1290 = vpop.f32.mrb[0].mxu0
    %1291 = vmatprep.mubr.bf16.mxu0 0
    %1292 = vmatmul.mubr.bf16.gmra.mrb[0].mxu0 %v1169
    %v1293 = vpop.f32.mrb[0].mxu0
    %v1294 = vadd.f32 0.0, %v1293
    %v1295 = vpop.f32.mrb[0].mxu0
    %v1296 = vpop.f32.mrb[0].mxu0
    %v1297 = vadd.f32 0.0, %v1296
    %v1298 = vpop.f32.mrb[0].mxu0
    %1299 = vmatprep.mubr.bf16.mxu0 0
    %1300 = vmatmul.mubr.bf16.gmra.mrb[0].mxu0 %v1172
    %v1301 = vpop.f32.mrb[0].mxu0
    %v1302 = vadd.f32 0.0, %v1301
    %v1303 = vpop.f32.mrb[0].mxu0
    %v1304 = vpop.f32.mrb[0].mxu0
    %v1305 = vadd.f32 0.0, %v1304
    %v1306 = vpop.f32.mrb[0].mxu0
    %1307 = vmatprep.mubr.bf16.mxu0 0
    %1308 = vmatmul.mubr.bf16.gmra.mrb[0].mxu0 %v1175
    %v1309 = vpop.f32.mrb[0].mxu0
    %v1310 = vadd.f32 0.0, %v1309
    %v1311 = vpop.f32.mrb[0].mxu0
    %v1312 = vpop.f32.mrb[0].mxu0
    %v1313 = vadd.f32 0.0, %v1312
    %v1314 = vpop.f32.mrb[0].mxu0
    %1315 = vmatprep.mubr.bf16.mxu0 0
    %1316 = vmatmul.mubr.bf16.gmra.mrb[0].mxu0 %v1178
    %v1317 = vpop.f32.mrb[0].mxu0
    %v1318 = vadd.f32 0.0, %v1317
    %v1319 = vpop.f32.mrb[0].mxu0
    %v1320 = vpop.f32.mrb[0].mxu0
    %v1321 = vadd.f32 0.0, %v1320
    %v1322 = vpop.f32.mrb[0].mxu0
    %1323 = vmatprep.mubr.bf16.mxu0 0
    %1324 = vmatmul.mubr.bf16.gmra.mrb[0].mxu0 %v1181
    %v1325 = vpop.f32.mrb[0].mxu0
    %v1326 = vadd.f32 0.0, %v1325
    %v1327 = vpop.f32.mrb[0].mxu0
    %v1328 = vpop.f32.mrb[0].mxu0
    %v1329 = vadd.f32 0.0, %v1328
    %v1330 = vpop.f32.mrb[0].mxu0
    %1331 = vmatprep.mubr.bf16.mxu0 0
    %1332 = vmatmul.mubr.bf16.gmra.mrb[0].mxu0 %v1184
    %v1333 = vpop.f32.mrb[0].mxu0
    %v1334 = vadd.f32 0.0, %v1333
    %v1335 = vpop.f32.mrb[0].mxu0
    %v1336 = vpop.f32.mrb[0].mxu0
    %v1337 = vadd.f32 0.0, %v1336
    %v1338 = vpop.f32.mrb[0].mxu0
    %1339 = vmatprep.mubr.bf16.mxu0 0
    %1340 = vmatmul.mubr.bf16.gmra.mrb[0].mxu0 %v1187
    %v1341 = vpop.f32.mrb[0].mxu0
    %v1342 = vadd.f32 0.0, %v1341
    %v1343 = vpop.f32.mrb[0].mxu0
    %v1344 = vpop.f32.mrb[0].mxu0
    %v1345 = vadd.f32 0.0, %v1344
    %v1346 = vpop.f32.mrb[0].mxu0
    %1347 = vmatprep.mubr.bf16.mxu0 0
    %1348 = vmatmul.mubr.bf16.gmra.mrb[0].mxu0 %v1190
    %v1349 = vpop.f32.mrb[0].mxu0
    %v1350 = vadd.f32 0.0, %v1349
    %v1351 = vpop.f32.mrb[0].mxu0
    %v1352 = vpop.f32.mrb[0].mxu0
    %v1353 = vadd.f32 0.0, %v1352
    %v1354 = vpop.f32.mrb[0].mxu0
    %1355 = vdwg.mxu0
    %v1356 = vadd.f32 %v998, %v1230
    %v1357 = vadd.f32 %v999, %v1233
    %v1358 = vadd.f32 %v1000, %v1238
    %v1359 = vadd.f32 %v1001, %v1241
    %v1360 = vadd.f32 %v1002, %v1246
    %v1361 = vadd.f32 %v1003, %v1249
    %v1362 = vadd.f32 %v1004, %v1254
    %v1363 = vadd.f32 %v1005, %v1257
    %v1364 = vadd.f32 %v1006, %v1262
    %v1365 = vadd.f32 %v1007, %v1265
    %v1366 = vadd.f32 %v1008, %v1270
    %v1367 = vadd.f32 %v1009, %v1273
    %v1368 = vadd.f32 %v1010, %v1278
    %v1369 = vadd.f32 %v1011, %v1281
    %v1370 = vadd.f32 %v1012, %v1286
    %v1371 = vadd.f32 %v1013, %v1289
    %v1372 = vadd.f32 %v1014, %v1294
    %v1373 = vadd.f32 %v1015, %v1297
    %v1374 = vadd.f32 %v1016, %v1302
    %v1375 = vadd.f32 %v1017, %v1305
    %v1376 = vadd.f32 %v1018, %v1310
    %v1377 = vadd.f32 %v1019, %v1313
    %v1378 = vadd.f32 %v1020, %v1318
    %v1379 = vadd.f32 %v1021, %v1321
    %v1380 = vadd.f32 %v1022, %v1326
    %v1381 = vadd.f32 %v1023, %v1329
    %v1382 = vadd.f32 %v1024, %v1334
    %v1383 = vadd.f32 %v1025, %v1337
    %v1384 = vadd.f32 %v1026, %v1342
    %v1385 = vadd.f32 %v1027, %v1345
    %v1386 = vadd.f32 %v1028, %v1350
    %v1387 = vadd.f32 %v1029, %v1353
    %v1388 = vld [vmem:[%s50 + $0x8] sm:$0xf]
    %v1389 = vld [vmem:[%s50 + $0xc] sm:$0xf]
    %v1390 = vld [vmem:[%s50 + $0x10] sm:$0xf]
    %v1391 = vld [vmem:[%s50 + $0x14] sm:$0xf]
    %v1392 = vld [vmem:[%s50 + $0x18] sm:$0xf]
    %v1393 = vld [vmem:[%s50 + $0x1c] sm:$0xf]
    %v1394 = vld [vmem:[%s50 + $0x20] sm:$0xf]
    %v1395 = vld [vmem:[%s50 + $0x24] sm:$0xf]
    %v1396 = vld [vmem:[%s50 + $0x28] sm:$0xf]
    %v1397 = vld [vmem:[%s50 + $0x2c] sm:$0xf]
    %v1398 = vld [vmem:[%s50 + $0x30] sm:$0xf]
    %v1399 = vld [vmem:[%s50 + $0x34] sm:$0xf]
    %v1400 = vld [vmem:[%s50 + $0x38] sm:$0xf]
    %v1401 = vld [vmem:[%s50 + $0x3c] sm:$0xf]
    %v1402 = vld [vmem:[%s50 + $0x40] sm:$0xf]
    %v1403 = vld [vmem:[%s50 + $0x44] sm:$0xf]
    %v1404 = vld [vmem:[%s50 + $0x48] sm:$0xf]
    %v1405 = vld [vmem:[%s50 + $0x4c] sm:$0xf]
    %v1406 = vld [vmem:[%s50 + $0x50] sm:$0xf]
    %v1407 = vld [vmem:[%s50 + $0x54] sm:$0xf]
    %v1408 = vld [vmem:[%s50 + $0x58] sm:$0xf]
    %v1409 = vld [vmem:[%s50 + $0x5c] sm:$0xf]
    %v1410 = vld [vmem:[%s50 + $0x60] sm:$0xf]
    %v1411 = vld [vmem:[%s50 + $0x64] sm:$0xf]
    %v1412 = vld [vmem:[%s50 + $0x68] sm:$0xf]
    %v1413 = vld [vmem:[%s50 + $0x6c] sm:$0xf]
    %v1414 = vld [vmem:[%s50 + $0x70] sm:$0xf]
    %v1415 = vld [vmem:[%s50 + $0x74] sm:$0xf]
    %v1416 = vld [vmem:[%s50 + $0x78] sm:$0xf]
    %v1417 = vld [vmem:[%s50 + $0x7c] sm:$0xf]
    %v1418 = vld [vmem:[%s50 + $0x80] sm:$0xf]
    %v1419 = vld [vmem:[%s50 + $0x84] sm:$0xf]
    %s1420 = scalar_lea.vmem %s1, 8
    %v1421 = vld [vmem:[%s1420] sm:$0x3]
    %v1454 = vunpack.c.l.b16 %v1388
    %v1455 = vunpack.c.l.b16 %v1389
    %v1456 = vunpack.c.l.b16 %v1390
    %v1457 = vunpack.c.l.b16 %v1391
    %v1458 = vunpack.c.l.b16 %v1392
    %v1459 = vunpack.c.l.b16 %v1393
    %v1460 = vunpack.c.l.b16 %v1394
    %v1461 = vunpack.c.l.b16 %v1395
    %v1462 = vunpack.c.l.b16 %v1396
    %v1463 = vunpack.c.l.b16 %v1397
    %v1464 = vunpack.c.l.b16 %v1398
    %v1465 = vunpack.c.l.b16 %v1399
    %v1466 = vunpack.c.l.b16 %v1400
    %v1467 = vunpack.c.l.b16 %v1401
    %v1468 = vunpack.c.l.b16 %v1402
    %v1469 = vunpack.c.l.b16 %v1403
    %v1470 = vunpack.c.l.b16 %v1404
    %v1471 = vunpack.c.l.b16 %v1405
    %v1472 = vunpack.c.l.b16 %v1406
    %v1473 = vunpack.c.l.b16 %v1407
    %v1474 = vunpack.c.l.b16 %v1408
    %v1475 = vunpack.c.l.b16 %v1409
    %v1476 = vunpack.c.l.b16 %v1410
    %v1477 = vunpack.c.l.b16 %v1411
    %v1478 = vunpack.c.l.b16 %v1412
    %v1479 = vunpack.c.l.b16 %v1413
    %v1480 = vunpack.c.l.b16 %v1414
    %v1481 = vunpack.c.l.b16 %v1415
    %v1482 = vunpack.c.l.b16 %v1416
    %v1483 = vunpack.c.l.b16 %v1417
    %v1484 = vunpack.c.l.b16 %v1418
    %v1485 = vunpack.c.l.b16 %v1419
    %v1486 = vpack.c.b16 %v1455, %v1454
    %v1487 = vpack.c.b16 %v1457, %v1456
    %v1488 = vpack.c.b16 %v1459, %v1458
    %v1489 = vpack.c.b16 %v1461, %v1460
    %v1490 = vpack.c.b16 %v1463, %v1462
    %v1491 = vpack.c.b16 %v1465, %v1464
    %v1492 = vpack.c.b16 %v1467, %v1466
    %v1493 = vpack.c.b16 %v1469, %v1468
    %v1494 = vpack.c.b16 %v1471, %v1470
    %v1495 = vpack.c.b16 %v1473, %v1472
    %v1496 = vpack.c.b16 %v1475, %v1474
    %v1497 = vpack.c.b16 %v1477, %v1476
    %v1498 = vpack.c.b16 %v1479, %v1478
    %v1499 = vpack.c.b16 %v1481, %v1480
    %v1500 = vpack.c.b16 %v1483, %v1482
    %v1501 = vpack.c.b16 %v1485, %v1484
    %v1503 = vsel %vm165, %v1486, 0
    %v1506 = vsel %vm165, %v1487, 0
    %v1509 = vsel %vm165, %v1488, 0
    %v1512 = vsel %vm165, %v1489, 0
    %v1515 = vsel %vm165, %v1490, 0
    %v1518 = vsel %vm165, %v1491, 0
    %v1521 = vsel %vm165, %v1492, 0
    %v1524 = vsel %vm165, %v1493, 0
    %v1527 = vsel %vm165, %v1494, 0
    %v1530 = vsel %vm165, %v1495, 0
    %v1533 = vsel %vm165, %v1496, 0
    %v1536 = vsel %vm165, %v1497, 0
    %v1539 = vsel %vm165, %v1498, 0
    %v1542 = vsel %vm165, %v1499, 0
    %v1545 = vsel %vm165, %v1500, 0
    %v1548 = vsel %vm165, %v1501, 0
    %v1551 = vsel %vm214, %v1421, 0
    %1553 = vmatprep.subr.bf16.mxu0 0
    %1554 = vmatpush1.bf16.msra.mxu0 %v1551
    %1555 = vmatprep.subr.bf16.mxu0 0
    %1556 = vmatpush1.bf16.msra.mxu0 0
    %1557 = vmatprep.subr.bf16.mxu0 0
    %1558 = vmatpush1.bf16.msra.mxu0 0
    %1559 = vmatprep.subr.bf16.mxu0 0
    %1560 = vmatpush1.bf16.msra.mxu0 0
    %1561 = vmatprep.subr.bf16.mxu0 0
    %1562 = vmatpush1.bf16.msra.mxu0 0
    %1563 = vmatprep.subr.bf16.mxu0 0
    %1564 = vmatpush1.bf16.msra.mxu0 0
    %1565 = vmatprep.subr.bf16.mxu0 0
    %1566 = vmatpush1.bf16.msra.mxu0 0
    %1567 = vmatprep.subr.bf16.mxu0 0
    %1568 = vmatpush1.bf16.msra.mxu0 0
    %1569 = vmatprep.subr.bf16.mxu0 0
    %1570 = vmatpush1.bf16.msra.mxu0 0
    %1571 = vmatprep.subr.bf16.mxu0 0
    %1572 = vmatpush1.bf16.msra.mxu0 0
    %1573 = vmatprep.subr.bf16.mxu0 0
    %1574 = vmatpush1.bf16.msra.mxu0 0
    %1575 = vmatprep.subr.bf16.mxu0 0
    %1576 = vmatpush1.bf16.msra.mxu0 0
    %1577 = vmatprep.subr.bf16.mxu0 0
    %1578 = vmatpush1.bf16.msra.mxu0 0
    %1579 = vmatprep.subr.bf16.mxu0 0
    %1580 = vmatpush1.bf16.msra.mxu0 0
    %1581 = vmatprep.subr.bf16.mxu0 0
    %1582 = vmatpush1.bf16.msra.mxu0 0
    %1583 = vmatprep.subr.bf16.mxu0 0
    %1584 = vmatpush1.bf16.msra.mxu0 0
    %1585 = vmatprep.mubr.bf16.mxu0 0
    %1586 = vmatmul.mubr.bf16.gmra.mrb[0].mxu0 %v1503
    %v1587 = vpop.f32.mrb[0].mxu0
    %v1588 = vadd.f32 0.0, %v1587
    %v1589 = vpop.f32.mrb[0].mxu0
    %v1590 = vpop.f32.mrb[0].mxu0
    %v1591 = vadd.f32 0.0, %v1590
    %v1592 = vpop.f32.mrb[0].mxu0
    %1593 = vmatprep.mubr.bf16.mxu0 0
    %1594 = vmatmul.mubr.bf16.gmra.mrb[0].mxu0 %v1506
    %v1595 = vpop.f32.mrb[0].mxu0
    %v1596 = vadd.f32 0.0, %v1595
    %v1597 = vpop.f32.mrb[0].mxu0
    %v1598 = vpop.f32.mrb[0].mxu0
    %v1599 = vadd.f32 0.0, %v1598
    %v1600 = vpop.f32.mrb[0].mxu0
    %1601 = vmatprep.mubr.bf16.mxu0 0
    %1602 = vmatmul.mubr.bf16.gmra.mrb[0].mxu0 %v1509
    %v1603 = vpop.f32.mrb[0].mxu0
    %v1604 = vadd.f32 0.0, %v1603
    %v1605 = vpop.f32.mrb[0].mxu0
    %v1606 = vpop.f32.mrb[0].mxu0
    %v1607 = vadd.f32 0.0, %v1606
    %v1608 = vpop.f32.mrb[0].mxu0
    %1609 = vmatprep.mubr.bf16.mxu0 0
    %1610 = vmatmul.mubr.bf16.gmra.mrb[0].mxu0 %v1512
    %v1611 = vpop.f32.mrb[0].mxu0
    %v1612 = vadd.f32 0.0, %v1611
    %v1613 = vpop.f32.mrb[0].mxu0
    %v1614 = vpop.f32.mrb[0].mxu0
    %v1615 = vadd.f32 0.0, %v1614
    %v1616 = vpop.f32.mrb[0].mxu0
    %1617 = vmatprep.mubr.bf16.mxu0 0
    %1618 = vmatmul.mubr.bf16.gmra.mrb[0].mxu0 %v1515
    %v1619 = vpop.f32.mrb[0].mxu0
    %v1620 = vadd.f32 0.0, %v1619
    %v1621 = vpop.f32.mrb[0].mxu0
    %v1622 = vpop.f32.mrb[0].mxu0
    %v1623 = vadd.f32 0.0, %v1622
    %v1624 = vpop.f32.mrb[0].mxu0
    %1625 = vmatprep.mubr.bf16.mxu0 0
    %1626 = vmatmul.mubr.bf16.gmra.mrb[0].mxu0 %v1518
    %v1627 = vpop.f32.mrb[0].mxu0
    %v1628 = vadd.f32 0.0, %v1627
    %v1629 = vpop.f32.mrb[0].mxu0
    %v1630 = vpop.f32.mrb[0].mxu0
    %v1631 = vadd.f32 0.0, %v1630
    %v1632 = vpop.f32.mrb[0].mxu0
    %1633 = vmatprep.mubr.bf16.mxu0 0
    %1634 = vmatmul.mubr.bf16.gmra.mrb[0].mxu0 %v1521
    %v1635 = vpop.f32.mrb[0].mxu0
    %v1636 = vadd.f32 0.0, %v1635
    %v1637 = vpop.f32.mrb[0].mxu0
    %v1638 = vpop.f32.mrb[0].mxu0
    %v1639 = vadd.f32 0.0, %v1638
    %v1640 = vpop.f32.mrb[0].mxu0
    %1641 = vmatprep.mubr.bf16.mxu0 0
    %1642 = vmatmul.mubr.bf16.gmra.mrb[0].mxu0 %v1524
    %v1643 = vpop.f32.mrb[0].mxu0
    %v1644 = vadd.f32 0.0, %v1643
    %v1645 = vpop.f32.mrb[0].mxu0
    %v1646 = vpop.f32.mrb[0].mxu0
    %v1647 = vadd.f32 0.0, %v1646
    %v1648 = vpop.f32.mrb[0].mxu0
    %1649 = vmatprep.mubr.bf16.mxu0 0
    %1650 = vmatmul.mubr.bf16.gmra.mrb[0].mxu0 %v1527
    %v1651 = vpop.f32.mrb[0].mxu0
    %v1652 = vadd.f32 0.0, %v1651
    %v1653 = vpop.f32.mrb[0].mxu0
    %v1654 = vpop.f32.mrb[0].mxu0
    %v1655 = vadd.f32 0.0, %v1654
    %v1656 = vpop.f32.mrb[0].mxu0
    %1657 = vmatprep.mubr.bf16.mxu0 0
    %1658 = vmatmul.mubr.bf16.gmra.mrb[0].mxu0 %v1530
    %v1659 = vpop.f32.mrb[0].mxu0
    %v1660 = vadd.f32 0.0, %v1659
    %v1661 = vpop.f32.mrb[0].mxu0
    %v1662 = vpop.f32.mrb[0].mxu0
    %v1663 = vadd.f32 0.0, %v1662
    %v1664 = vpop.f32.mrb[0].mxu0
    %1665 = vmatprep.mubr.bf16.mxu0 0
    %1666 = vmatmul.mubr.bf16.gmra.mrb[0].mxu0 %v1533
    %v1667 = vpop.f32.mrb[0].mxu0
    %v1668 = vadd.f32 0.0, %v1667
    %v1669 = vpop.f32.mrb[0].mxu0
    %v1670 = vpop.f32.mrb[0].mxu0
    %v1671 = vadd.f32 0.0, %v1670
    %v1672 = vpop.f32.mrb[0].mxu0
    %1673 = vmatprep.mubr.bf16.mxu0 0
    %1674 = vmatmul.mubr.bf16.gmra.mrb[0].mxu0 %v1536
    %v1675 = vpop.f32.mrb[0].mxu0
    %v1676 = vadd.f32 0.0, %v1675
    %v1677 = vpop.f32.mrb[0].mxu0
    %v1678 = vpop.f32.mrb[0].mxu0
    %v1679 = vadd.f32 0.0, %v1678
    %v1680 = vpop.f32.mrb[0].mxu0
    %1681 = vmatprep.mubr.bf16.mxu0 0
    %1682 = vmatmul.mubr.bf16.gmra.mrb[0].mxu0 %v1539
    %v1683 = vpop.f32.mrb[0].mxu0
    %v1684 = vadd.f32 0.0, %v1683
    %v1685 = vpop.f32.mrb[0].mxu0
    %v1686 = vpop.f32.mrb[0].mxu0
    %v1687 = vadd.f32 0.0, %v1686
    %v1688 = vpop.f32.mrb[0].mxu0
    %1689 = vmatprep.mubr.bf16.mxu0 0
    %1690 = vmatmul.mubr.bf16.gmra.mrb[0].mxu0 %v1542
    %v1691 = vpop.f32.mrb[0].mxu0
    %v1692 = vadd.f32 0.0, %v1691
    %v1693 = vpop.f32.mrb[0].mxu0
    %v1694 = vpop.f32.mrb[0].mxu0
    %v1695 = vadd.f32 0.0, %v1694
    %v1696 = vpop.f32.mrb[0].mxu0
    %1697 = vmatprep.mubr.bf16.mxu0 0
    %1698 = vmatmul.mubr.bf16.gmra.mrb[0].mxu0 %v1545
    %v1699 = vpop.f32.mrb[0].mxu0
    %v1700 = vadd.f32 0.0, %v1699
    %v1701 = vpop.f32.mrb[0].mxu0
    %v1702 = vpop.f32.mrb[0].mxu0
    %v1703 = vadd.f32 0.0, %v1702
    %v1704 = vpop.f32.mrb[0].mxu0
    %1705 = vmatprep.mubr.bf16.mxu0 0
    %1706 = vmatmul.mubr.bf16.gmra.mrb[0].mxu0 %v1548
    %v1707 = vpop.f32.mrb[0].mxu0
    %v1708 = vadd.f32 0.0, %v1707
    %v1709 = vpop.f32.mrb[0].mxu0
    %v1710 = vpop.f32.mrb[0].mxu0
    %v1711 = vadd.f32 0.0, %v1710
    %v1712 = vpop.f32.mrb[0].mxu0
    %1713 = vdwg.mxu0
    %v1714 = vadd.f32 %v1356, %v1588
    %v1715 = vadd.f32 %v1357, %v1591
    %v1716 = vadd.f32 %v1358, %v1596
    %v1717 = vadd.f32 %v1359, %v1599
    %v1718 = vadd.f32 %v1360, %v1604
    %v1719 = vadd.f32 %v1361, %v1607
    %v1720 = vadd.f32 %v1362, %v1612
    %v1721 = vadd.f32 %v1363, %v1615
    %v1722 = vadd.f32 %v1364, %v1620
    %v1723 = vadd.f32 %v1365, %v1623
    %v1724 = vadd.f32 %v1366, %v1628
    %v1725 = vadd.f32 %v1367, %v1631
    %v1726 = vadd.f32 %v1368, %v1636
    %v1727 = vadd.f32 %v1369, %v1639
    %v1728 = vadd.f32 %v1370, %v1644
    %v1729 = vadd.f32 %v1371, %v1647
    %v1730 = vadd.f32 %v1372, %v1652
    %v1731 = vadd.f32 %v1373, %v1655
    %v1732 = vadd.f32 %v1374, %v1660
    %v1733 = vadd.f32 %v1375, %v1663
    %v1734 = vadd.f32 %v1376, %v1668
    %v1735 = vadd.f32 %v1377, %v1671
    %v1736 = vadd.f32 %v1378, %v1676
    %v1737 = vadd.f32 %v1379, %v1679
    %v1738 = vadd.f32 %v1380, %v1684
    %v1739 = vadd.f32 %v1381, %v1687
    %v1740 = vadd.f32 %v1382, %v1692
    %v1741 = vadd.f32 %v1383, %v1695
    %v1742 = vadd.f32 %v1384, %v1700
    %v1743 = vadd.f32 %v1385, %v1703
    %v1744 = vadd.f32 %v1386, %v1708
    %v1745 = vadd.f32 %v1387, %v1711
    %v1746 = vld [vmem:[%s671 + $0x8] sm:$0xf]
    %v1747 = vld [vmem:[%s671 + $0xc] sm:$0xf]
    %v1748 = vld [vmem:[%s671 + $0x10] sm:$0xf]
    %v1749 = vld [vmem:[%s671 + $0x14] sm:$0xf]
    %v1750 = vld [vmem:[%s671 + $0x18] sm:$0xf]
    %v1751 = vld [vmem:[%s671 + $0x1c] sm:$0xf]
    %v1752 = vld [vmem:[%s671 + $0x20] sm:$0xf]
    %v1753 = vld [vmem:[%s671 + $0x24] sm:$0xf]
    %v1754 = vld [vmem:[%s671 + $0x28] sm:$0xf]
    %v1755 = vld [vmem:[%s671 + $0x2c] sm:$0xf]
    %v1756 = vld [vmem:[%s671 + $0x30] sm:$0xf]
    %v1757 = vld [vmem:[%s671 + $0x34] sm:$0xf]
    %v1758 = vld [vmem:[%s671 + $0x38] sm:$0xf]
    %v1759 = vld [vmem:[%s671 + $0x3c] sm:$0xf]
    %v1760 = vld [vmem:[%s671 + $0x40] sm:$0xf]
    %v1761 = vld [vmem:[%s671 + $0x44] sm:$0xf]
    %v1762 = vld [vmem:[%s671 + $0x48] sm:$0xf]
    %v1763 = vld [vmem:[%s671 + $0x4c] sm:$0xf]
    %v1764 = vld [vmem:[%s671 + $0x50] sm:$0xf]
    %v1765 = vld [vmem:[%s671 + $0x54] sm:$0xf]
    %v1766 = vld [vmem:[%s671 + $0x58] sm:$0xf]
    %v1767 = vld [vmem:[%s671 + $0x5c] sm:$0xf]
    %v1768 = vld [vmem:[%s671 + $0x60] sm:$0xf]
    %v1769 = vld [vmem:[%s671 + $0x64] sm:$0xf]
    %v1770 = vld [vmem:[%s671 + $0x68] sm:$0xf]
    %v1771 = vld [vmem:[%s671 + $0x6c] sm:$0xf]
    %v1772 = vld [vmem:[%s671 + $0x70] sm:$0xf]
    %v1773 = vld [vmem:[%s671 + $0x74] sm:$0xf]
    %v1774 = vld [vmem:[%s671 + $0x78] sm:$0xf]
    %v1775 = vld [vmem:[%s671 + $0x7c] sm:$0xf]
    %v1776 = vld [vmem:[%s671 + $0x80] sm:$0xf]
    %v1777 = vld [vmem:[%s671 + $0x84] sm:$0xf]
    %s1778 = scalar_lea.vmem %s1, 10
    %v1779 = vld [vmem:[%s1778] sm:$0x3]
    %v1812 = vunpack.c.l.b16 %v1746
    %v1813 = vunpack.c.l.b16 %v1747
    %v1814 = vunpack.c.l.b16 %v1748
    %v1815 = vunpack.c.l.b16 %v1749
    %v1816 = vunpack.c.l.b16 %v1750
    %v1817 = vunpack.c.l.b16 %v1751
    %v1818 = vunpack.c.l.b16 %v1752
    %v1819 = vunpack.c.l.b16 %v1753
    %v1820 = vunpack.c.l.b16 %v1754
    %v1821 = vunpack.c.l.b16 %v1755
    %v1822 = vunpack.c.l.b16 %v1756
    %v1823 = vunpack.c.l.b16 %v1757
    %v1824 = vunpack.c.l.b16 %v1758
    %v1825 = vunpack.c.l.b16 %v1759
    %v1826 = vunpack.c.l.b16 %v1760
    %v1827 = vunpack.c.l.b16 %v1761
    %v1828 = vunpack.c.l.b16 %v1762
    %v1829 = vunpack.c.l.b16 %v1763
    %v1830 = vunpack.c.l.b16 %v1764
    %v1831 = vunpack.c.l.b16 %v1765
    %v1832 = vunpack.c.l.b16 %v1766
    %v1833 = vunpack.c.l.b16 %v1767
    %v1834 = vunpack.c.l.b16 %v1768
    %v1835 = vunpack.c.l.b16 %v1769
    %v1836 = vunpack.c.l.b16 %v1770
    %v1837 = vunpack.c.l.b16 %v1771
    %v1838 = vunpack.c.l.b16 %v1772
    %v1839 = vunpack.c.l.b16 %v1773
    %v1840 = vunpack.c.l.b16 %v1774
    %v1841 = vunpack.c.l.b16 %v1775
    %v1842 = vunpack.c.l.b16 %v1776
    %v1843 = vunpack.c.l.b16 %v1777
    %v1844 = vpack.c.b16 %v1813, %v1812
    %v1845 = vpack.c.b16 %v1815, %v1814
    %v1846 = vpack.c.b16 %v1817, %v1816
    %v1847 = vpack.c.b16 %v1819, %v1818
    %v1848 = vpack.c.b16 %v1821, %v1820
    %v1849 = vpack.c.b16 %v1823, %v1822
    %v1850 = vpack.c.b16 %v1825, %v1824
    %v1851 = vpack.c.b16 %v1827, %v1826
    %v1852 = vpack.c.b16 %v1829, %v1828
    %v1853 = vpack.c.b16 %v1831, %v1830
    %v1854 = vpack.c.b16 %v1833, %v1832
    %v1855 = vpack.c.b16 %v1835, %v1834
    %v1856 = vpack.c.b16 %v1837, %v1836
    %v1857 = vpack.c.b16 %v1839, %v1838
    %v1858 = vpack.c.b16 %v1841, %v1840
    %v1859 = vpack.c.b16 %v1843, %v1842
    %v1861 = vsel %vm165, %v1844, 0
    %v1864 = vsel %vm165, %v1845, 0
    %v1867 = vsel %vm165, %v1846, 0
    %v1870 = vsel %vm165, %v1847, 0
    %v1873 = vsel %vm165, %v1848, 0
    %v1876 = vsel %vm165, %v1849, 0
    %v1879 = vsel %vm165, %v1850, 0
    %v1882 = vsel %vm165, %v1851, 0
    %v1885 = vsel %vm165, %v1852, 0
    %v1888 = vsel %vm165, %v1853, 0
    %v1891 = vsel %vm165, %v1854, 0
    %v1894 = vsel %vm165, %v1855, 0
    %v1897 = vsel %vm165, %v1856, 0
    %v1900 = vsel %vm165, %v1857, 0
    %v1903 = vsel %vm165, %v1858, 0
    %v1906 = vsel %vm165, %v1859, 0
    %v1909 = vsel %vm214, %v1779, 0
    %1911 = vmatprep.subr.bf16.mxu0 0
    %1912 = vmatpush1.bf16.msra.mxu0 %v1909
    %1913 = vmatprep.subr.bf16.mxu0 0
    %1914 = vmatpush1.bf16.msra.mxu0 0
    %1915 = vmatprep.subr.bf16.mxu0 0
    %1916 = vmatpush1.bf16.msra.mxu0 0
    %1917 = vmatprep.subr.bf16.mxu0 0
    %1918 = vmatpush1.bf16.msra.mxu0 0
    %1919 = vmatprep.subr.bf16.mxu0 0
    %1920 = vmatpush1.bf16.msra.mxu0 0
    %1921 = vmatprep.subr.bf16.mxu0 0
    %1922 = vmatpush1.bf16.msra.mxu0 0
    %1923 = vmatprep.subr.bf16.mxu0 0
    %1924 = vmatpush1.bf16.msra.mxu0 0
    %1925 = vmatprep.subr.bf16.mxu0 0
    %1926 = vmatpush1.bf16.msra.mxu0 0
    %1927 = vmatprep.subr.bf16.mxu0 0
    %1928 = vmatpush1.bf16.msra.mxu0 0
    %1929 = vmatprep.subr.bf16.mxu0 0
    %1930 = vmatpush1.bf16.msra.mxu0 0
    %1931 = vmatprep.subr.bf16.mxu0 0
    %1932 = vmatpush1.bf16.msra.mxu0 0
    %1933 = vmatprep.subr.bf16.mxu0 0
    %1934 = vmatpush1.bf16.msra.mxu0 0
    %1935 = vmatprep.subr.bf16.mxu0 0
    %1936 = vmatpush1.bf16.msra.mxu0 0
    %1937 = vmatprep.subr.bf16.mxu0 0
    %1938 = vmatpush1.bf16.msra.mxu0 0
    %1939 = vmatprep.subr.bf16.mxu0 0
    %1940 = vmatpush1.bf16.msra.mxu0 0
    %1941 = vmatprep.subr.bf16.mxu0 0
    %1942 = vmatpush1.bf16.msra.mxu0 0
    %1943 = vmatprep.mubr.bf16.mxu0 0
    %1944 = vmatmul.mubr.bf16.gmra.mrb[0].mxu0 %v1861
    %v1945 = vpop.f32.mrb[0].mxu0
    %v1946 = vadd.f32 0.0, %v1945
    %v1947 = vpop.f32.mrb[0].mxu0
    %v1948 = vpop.f32.mrb[0].mxu0
    %v1949 = vadd.f32 0.0, %v1948
    %v1950 = vpop.f32.mrb[0].mxu0
    %1951 = vmatprep.mubr.bf16.mxu0 0
    %1952 = vmatmul.mubr.bf16.gmra.mrb[0].mxu0 %v1864
    %v1953 = vpop.f32.mrb[0].mxu0
    %v1954 = vadd.f32 0.0, %v1953
    %v1955 = vpop.f32.mrb[0].mxu0
    %v1956 = vpop.f32.mrb[0].mxu0
    %v1957 = vadd.f32 0.0, %v1956
    %v1958 = vpop.f32.mrb[0].mxu0
    %1959 = vmatprep.mubr.bf16.mxu0 0
    %1960 = vmatmul.mubr.bf16.gmra.mrb[0].mxu0 %v1867
    %v1961 = vpop.f32.mrb[0].mxu0
    %v1962 = vadd.f32 0.0, %v1961
    %v1963 = vpop.f32.mrb[0].mxu0
    %v1964 = vpop.f32.mrb[0].mxu0
    %v1965 = vadd.f32 0.0, %v1964
    %v1966 = vpop.f32.mrb[0].mxu0
    %1967 = vmatprep.mubr.bf16.mxu0 0
    %1968 = vmatmul.mubr.bf16.gmra.mrb[0].mxu0 %v1870
    %v1969 = vpop.f32.mrb[0].mxu0
    %v1970 = vadd.f32 0.0, %v1969
    %v1971 = vpop.f32.mrb[0].mxu0
    %v1972 = vpop.f32.mrb[0].mxu0
    %v1973 = vadd.f32 0.0, %v1972
    %v1974 = vpop.f32.mrb[0].mxu0
    %1975 = vmatprep.mubr.bf16.mxu0 0
    %1976 = vmatmul.mubr.bf16.gmra.mrb[0].mxu0 %v1873
    %v1977 = vpop.f32.mrb[0].mxu0
    %v1978 = vadd.f32 0.0, %v1977
    %v1979 = vpop.f32.mrb[0].mxu0
    %v1980 = vpop.f32.mrb[0].mxu0
    %v1981 = vadd.f32 0.0, %v1980
    %v1982 = vpop.f32.mrb[0].mxu0
    %1983 = vmatprep.mubr.bf16.mxu0 0
    %1984 = vmatmul.mubr.bf16.gmra.mrb[0].mxu0 %v1876
    %v1985 = vpop.f32.mrb[0].mxu0
    %v1986 = vadd.f32 0.0, %v1985
    %v1987 = vpop.f32.mrb[0].mxu0
    %v1988 = vpop.f32.mrb[0].mxu0
    %v1989 = vadd.f32 0.0, %v1988
    %v1990 = vpop.f32.mrb[0].mxu0
    %1991 = vmatprep.mubr.bf16.mxu0 0
    %1992 = vmatmul.mubr.bf16.gmra.mrb[0].mxu0 %v1879
    %v1993 = vpop.f32.mrb[0].mxu0
    %v1994 = vadd.f32 0.0, %v1993
    %v1995 = vpop.f32.mrb[0].mxu0
    %v1996 = vpop.f32.mrb[0].mxu0
    %v1997 = vadd.f32 0.0, %v1996
    %v1998 = vpop.f32.mrb[0].mxu0
    %1999 = vmatprep.mubr.bf16.mxu0 0
    %2000 = vmatmul.mubr.bf16.gmra.mrb[0].mxu0 %v1882
    %v2001 = vpop.f32.mrb[0].mxu0
    %v2002 = vadd.f32 0.0, %v2001
    %v2003 = vpop.f32.mrb[0].mxu0
    %v2004 = vpop.f32.mrb[0].mxu0
    %v2005 = vadd.f32 0.0, %v2004
    %v2006 = vpop.f32.mrb[0].mxu0
    %2007 = vmatprep.mubr.bf16.mxu0 0
    %2008 = vmatmul.mubr.bf16.gmra.mrb[0].mxu0 %v1885
    %v2009 = vpop.f32.mrb[0].mxu0
    %v2010 = vadd.f32 0.0, %v2009
    %v2011 = vpop.f32.mrb[0].mxu0
    %v2012 = vpop.f32.mrb[0].mxu0
    %v2013 = vadd.f32 0.0, %v2012
    %v2014 = vpop.f32.mrb[0].mxu0
    %2015 = vmatprep.mubr.bf16.mxu0 0
    %2016 = vmatmul.mubr.bf16.gmra.mrb[0].mxu0 %v1888
    %v2017 = vpop.f32.mrb[0].mxu0
    %v2018 = vadd.f32 0.0, %v2017
    %v2019 = vpop.f32.mrb[0].mxu0
    %v2020 = vpop.f32.mrb[0].mxu0
    %v2021 = vadd.f32 0.0, %v2020
    %v2022 = vpop.f32.mrb[0].mxu0
    %2023 = vmatprep.mubr.bf16.mxu0 0
    %2024 = vmatmul.mubr.bf16.gmra.mrb[0].mxu0 %v1891
    %v2025 = vpop.f32.mrb[0].mxu0
    %v2026 = vadd.f32 0.0, %v2025
    %v2027 = vpop.f32.mrb[0].mxu0
    %v2028 = vpop.f32.mrb[0].mxu0
    %v2029 = vadd.f32 0.0, %v2028
    %v2030 = vpop.f32.mrb[0].mxu0
    %2031 = vmatprep.mubr.bf16.mxu0 0
    %2032 = vmatmul.mubr.bf16.gmra.mrb[0].mxu0 %v1894
    %v2033 = vpop.f32.mrb[0].mxu0
    %v2034 = vadd.f32 0.0, %v2033
    %v2035 = vpop.f32.mrb[0].mxu0
    %v2036 = vpop.f32.mrb[0].mxu0
    %v2037 = vadd.f32 0.0, %v2036
    %v2038 = vpop.f32.mrb[0].mxu0
    %2039 = vmatprep.mubr.bf16.mxu0 0
    %2040 = vmatmul.mubr.bf16.gmra.mrb[0].mxu0 %v1897
    %v2041 = vpop.f32.mrb[0].mxu0
    %v2042 = vadd.f32 0.0, %v2041
    %v2043 = vpop.f32.mrb[0].mxu0
    %v2044 = vpop.f32.mrb[0].mxu0
    %v2045 = vadd.f32 0.0, %v2044
    %v2046 = vpop.f32.mrb[0].mxu0
    %2047 = vmatprep.mubr.bf16.mxu0 0
    %2048 = vmatmul.mubr.bf16.gmra.mrb[0].mxu0 %v1900
    %v2049 = vpop.f32.mrb[0].mxu0
    %v2050 = vadd.f32 0.0, %v2049
    %v2051 = vpop.f32.mrb[0].mxu0
    %v2052 = vpop.f32.mrb[0].mxu0
    %v2053 = vadd.f32 0.0, %v2052
    %v2054 = vpop.f32.mrb[0].mxu0
    %2055 = vmatprep.mubr.bf16.mxu0 0
    %2056 = vmatmul.mubr.bf16.gmra.mrb[0].mxu0 %v1903
    %v2057 = vpop.f32.mrb[0].mxu0
    %v2058 = vadd.f32 0.0, %v2057
    %v2059 = vpop.f32.mrb[0].mxu0
    %v2060 = vpop.f32.mrb[0].mxu0
    %v2061 = vadd.f32 0.0, %v2060
    %v2062 = vpop.f32.mrb[0].mxu0
    %2063 = vmatprep.mubr.bf16.mxu0 0
    %2064 = vmatmul.mubr.bf16.gmra.mrb[0].mxu0 %v1906
    %v2065 = vpop.f32.mrb[0].mxu0
    %v2066 = vadd.f32 0.0, %v2065
    %v2067 = vpop.f32.mrb[0].mxu0
    %v2068 = vpop.f32.mrb[0].mxu0
    %v2069 = vadd.f32 0.0, %v2068
    %v2070 = vpop.f32.mrb[0].mxu0
    %2071 = vdwg.mxu0
    %v2072 = vadd.f32 %v1714, %v1946
    %v2073 = vadd.f32 %v1715, %v1949
    %v2074 = vadd.f32 %v1716, %v1954
    %v2075 = vadd.f32 %v1717, %v1957
    %v2076 = vadd.f32 %v1718, %v1962
    %v2077 = vadd.f32 %v1719, %v1965
    %v2078 = vadd.f32 %v1720, %v1970
    %v2079 = vadd.f32 %v1721, %v1973
    %v2080 = vadd.f32 %v1722, %v1978
    %v2081 = vadd.f32 %v1723, %v1981
    %v2082 = vadd.f32 %v1724, %v1986
    %v2083 = vadd.f32 %v1725, %v1989
    %v2084 = vadd.f32 %v1726, %v1994
    %v2085 = vadd.f32 %v1727, %v1997
    %v2086 = vadd.f32 %v1728, %v2002
    %v2087 = vadd.f32 %v1729, %v2005
    %v2088 = vadd.f32 %v1730, %v2010
    %v2089 = vadd.f32 %v1731, %v2013
    %v2090 = vadd.f32 %v1732, %v2018
    %v2091 = vadd.f32 %v1733, %v2021
    %v2092 = vadd.f32 %v1734, %v2026
    %v2093 = vadd.f32 %v1735, %v2029
    %v2094 = vadd.f32 %v1736, %v2034
    %v2095 = vadd.f32 %v1737, %v2037
    %v2096 = vadd.f32 %v1738, %v2042
    %v2097 = vadd.f32 %v1739, %v2045
    %v2098 = vadd.f32 %v1740, %v2050
    %v2099 = vadd.f32 %v1741, %v2053
    %v2100 = vadd.f32 %v1742, %v2058
    %v2101 = vadd.f32 %v1743, %v2061
    %v2102 = vadd.f32 %v1744, %v2066
    %v2103 = vadd.f32 %v1745, %v2069
    %v2104 = vld [vmem:[%s0 + $0x10] sm:$0xf]
    %v2105 = vld [vmem:[%s0 + $0x14] sm:$0xf]
    %v2106 = vld [vmem:[%s0 + $0x18] sm:$0xf]
    %v2107 = vld [vmem:[%s0 + $0x1c] sm:$0xf]
    %v2108 = vld [vmem:[%s0 + $0x20] sm:$0xf]
    %v2109 = vld [vmem:[%s0 + $0x24] sm:$0xf]
    %v2110 = vld [vmem:[%s0 + $0x28] sm:$0xf]
    %v2111 = vld [vmem:[%s0 + $0x2c] sm:$0xf]
    %v2112 = vld [vmem:[%s0 + $0x30] sm:$0xf]
    %v2113 = vld [vmem:[%s0 + $0x34] sm:$0xf]
    %v2114 = vld [vmem:[%s0 + $0x38] sm:$0xf]
    %v2115 = vld [vmem:[%s0 + $0x3c] sm:$0xf]
    %v2116 = vld [vmem:[%s0 + $0x40] sm:$0xf]
    %v2117 = vld [vmem:[%s0 + $0x44] sm:$0xf]
    %v2118 = vld [vmem:[%s0 + $0x48] sm:$0xf]
    %v2119 = vld [vmem:[%s0 + $0x4c] sm:$0xf]
    %v2120 = vld [vmem:[%s0 + $0x50] sm:$0xf]
    %v2121 = vld [vmem:[%s0 + $0x54] sm:$0xf]
    %v2122 = vld [vmem:[%s0 + $0x58] sm:$0xf]
    %v2123 = vld [vmem:[%s0 + $0x5c] sm:$0xf]
    %v2124 = vld [vmem:[%s0 + $0x60] sm:$0xf]
    %v2125 = vld [vmem:[%s0 + $0x64] sm:$0xf]
    %v2126 = vld [vmem:[%s0 + $0x68] sm:$0xf]
    %v2127 = vld [vmem:[%s0 + $0x6c] sm:$0xf]
    %v2128 = vld [vmem:[%s0 + $0x70] sm:$0xf]
    %v2129 = vld [vmem:[%s0 + $0x74] sm:$0xf]
    %v2130 = vld [vmem:[%s0 + $0x78] sm:$0xf]
    %v2131 = vld [vmem:[%s0 + $0x7c] sm:$0xf]
    %v2132 = vld [vmem:[%s0 + $0x80] sm:$0xf]
    %v2133 = vld [vmem:[%s0 + $0x84] sm:$0xf]
    %v2134 = vld [vmem:[%s0 + $0x88] sm:$0xf]
    %v2135 = vld [vmem:[%s0 + $0x8c] sm:$0xf]
    %s2136 = scalar_lea.vmem %s1, 12
    %v2137 = vld [vmem:[%s2136] sm:$0x3]
    %v2170 = vunpack.c.l.b16 %v2104
    %v2171 = vunpack.c.l.b16 %v2105
    %v2172 = vunpack.c.l.b16 %v2106
    %v2173 = vunpack.c.l.b16 %v2107
    %v2174 = vunpack.c.l.b16 %v2108
    %v2175 = vunpack.c.l.b16 %v2109
    %v2176 = vunpack.c.l.b16 %v2110
    %v2177 = vunpack.c.l.b16 %v2111
    %v2178 = vunpack.c.l.b16 %v2112
    %v2179 = vunpack.c.l.b16 %v2113
    %v2180 = vunpack.c.l.b16 %v2114
    %v2181 = vunpack.c.l.b16 %v2115
    %v2182 = vunpack.c.l.b16 %v2116
    %v2183 = vunpack.c.l.b16 %v2117
    %v2184 = vunpack.c.l.b16 %v2118
    %v2185 = vunpack.c.l.b16 %v2119
    %v2186 = vunpack.c.l.b16 %v2120
    %v2187 = vunpack.c.l.b16 %v2121
    %v2188 = vunpack.c.l.b16 %v2122
    %v2189 = vunpack.c.l.b16 %v2123
    %v2190 = vunpack.c.l.b16 %v2124
    %v2191 = vunpack.c.l.b16 %v2125
    %v2192 = vunpack.c.l.b16 %v2126
    %v2193 = vunpack.c.l.b16 %v2127
    %v2194 = vunpack.c.l.b16 %v2128
    %v2195 = vunpack.c.l.b16 %v2129
    %v2196 = vunpack.c.l.b16 %v2130
    %v2197 = vunpack.c.l.b16 %v2131
    %v2198 = vunpack.c.l.b16 %v2132
    %v2199 = vunpack.c.l.b16 %v2133
    %v2200 = vunpack.c.l.b16 %v2134
    %v2201 = vunpack.c.l.b16 %v2135
    %v2202 = vpack.c.b16 %v2171, %v2170
    %v2203 = vpack.c.b16 %v2173, %v2172
    %v2204 = vpack.c.b16 %v2175, %v2174
    %v2205 = vpack.c.b16 %v2177, %v2176
    %v2206 = vpack.c.b16 %v2179, %v2178
    %v2207 = vpack.c.b16 %v2181, %v2180
    %v2208 = vpack.c.b16 %v2183, %v2182
    %v2209 = vpack.c.b16 %v2185, %v2184
    %v2210 = vpack.c.b16 %v2187, %v2186
    %v2211 = vpack.c.b16 %v2189, %v2188
    %v2212 = vpack.c.b16 %v2191, %v2190
    %v2213 = vpack.c.b16 %v2193, %v2192
    %v2214 = vpack.c.b16 %v2195, %v2194
    %v2215 = vpack.c.b16 %v2197, %v2196
    %v2216 = vpack.c.b16 %v2199, %v2198
    %v2217 = vpack.c.b16 %v2201, %v2200
    %v2219 = vsel %vm165, %v2202, 0
    %v2222 = vsel %vm165, %v2203, 0
    %v2225 = vsel %vm165, %v2204, 0
    %v2228 = vsel %vm165, %v2205, 0
    %v2231 = vsel %vm165, %v2206, 0
    %v2234 = vsel %vm165, %v2207, 0
    %v2237 = vsel %vm165, %v2208, 0
    %v2240 = vsel %vm165, %v2209, 0
    %v2243 = vsel %vm165, %v2210, 0
    %v2246 = vsel %vm165, %v2211, 0
    %v2249 = vsel %vm165, %v2212, 0
    %v2252 = vsel %vm165, %v2213, 0
    %v2255 = vsel %vm165, %v2214, 0
    %v2258 = vsel %vm165, %v2215, 0
    %v2261 = vsel %vm165, %v2216, 0
    %v2264 = vsel %vm165, %v2217, 0
    %v2267 = vsel %vm214, %v2137, 0
    %2269 = vmatprep.subr.bf16.mxu0 0
    %2270 = vmatpush1.bf16.msra.mxu0 %v2267
    %2271 = vmatprep.subr.bf16.mxu0 0
    %2272 = vmatpush1.bf16.msra.mxu0 0
    %2273 = vmatprep.subr.bf16.mxu0 0
    %2274 = vmatpush1.bf16.msra.mxu0 0
    %2275 = vmatprep.subr.bf16.mxu0 0
    %2276 = vmatpush1.bf16.msra.mxu0 0
    %2277 = vmatprep.subr.bf16.mxu0 0
    %2278 = vmatpush1.bf16.msra.mxu0 0
    %2279 = vmatprep.subr.bf16.mxu0 0
    %2280 = vmatpush1.bf16.msra.mxu0 0
    %2281 = vmatprep.subr.bf16.mxu0 0
    %2282 = vmatpush1.bf16.msra.mxu0 0
    %2283 = vmatprep.subr.bf16.mxu0 0
    %2284 = vmatpush1.bf16.msra.mxu0 0
    %2285 = vmatprep.subr.bf16.mxu0 0
    %2286 = vmatpush1.bf16.msra.mxu0 0
    %2287 = vmatprep.subr.bf16.mxu0 0
    %2288 = vmatpush1.bf16.msra.mxu0 0
    %2289 = vmatprep.subr.bf16.mxu0 0
    %2290 = vmatpush1.bf16.msra.mxu0 0
    %2291 = vmatprep.subr.bf16.mxu0 0
    %2292 = vmatpush1.bf16.msra.mxu0 0
    %2293 = vmatprep.subr.bf16.mxu0 0
    %2294 = vmatpush1.bf16.msra.mxu0 0
    %2295 = vmatprep.subr.bf16.mxu0 0
    %2296 = vmatpush1.bf16.msra.mxu0 0
    %2297 = vmatprep.subr.bf16.mxu0 0
    %2298 = vmatpush1.bf16.msra.mxu0 0
    %2299 = vmatprep.subr.bf16.mxu0 0
    %2300 = vmatpush1.bf16.msra.mxu0 0
    %2301 = vmatprep.mubr.bf16.mxu0 0
    %2302 = vmatmul.mubr.bf16.gmra.mrb[0].mxu0 %v2219
    %v2303 = vpop.f32.mrb[0].mxu0
    %v2304 = vadd.f32 0.0, %v2303
    %v2305 = vpop.f32.mrb[0].mxu0
    %v2306 = vpop.f32.mrb[0].mxu0
    %v2307 = vadd.f32 0.0, %v2306
    %v2308 = vpop.f32.mrb[0].mxu0
    %2309 = vmatprep.mubr.bf16.mxu0 0
    %2310 = vmatmul.mubr.bf16.gmra.mrb[0].mxu0 %v2222
    %v2311 = vpop.f32.mrb[0].mxu0
    %v2312 = vadd.f32 0.0, %v2311
    %v2313 = vpop.f32.mrb[0].mxu0
    %v2314 = vpop.f32.mrb[0].mxu0
    %v2315 = vadd.f32 0.0, %v2314
    %v2316 = vpop.f32.mrb[0].mxu0
    %2317 = vmatprep.mubr.bf16.mxu0 0
    %2318 = vmatmul.mubr.bf16.gmra.mrb[0].mxu0 %v2225
    %v2319 = vpop.f32.mrb[0].mxu0
    %v2320 = vadd.f32 0.0, %v2319
    %v2321 = vpop.f32.mrb[0].mxu0
    %v2322 = vpop.f32.mrb[0].mxu0
    %v2323 = vadd.f32 0.0, %v2322
    %v2324 = vpop.f32.mrb[0].mxu0
    %2325 = vmatprep.mubr.bf16.mxu0 0
    %2326 = vmatmul.mubr.bf16.gmra.mrb[0].mxu0 %v2228
    %v2327 = vpop.f32.mrb[0].mxu0
    %v2328 = vadd.f32 0.0, %v2327
    %v2329 = vpop.f32.mrb[0].mxu0
    %v2330 = vpop.f32.mrb[0].mxu0
    %v2331 = vadd.f32 0.0, %v2330
    %v2332 = vpop.f32.mrb[0].mxu0
    %2333 = vmatprep.mubr.bf16.mxu0 0
    %2334 = vmatmul.mubr.bf16.gmra.mrb[0].mxu0 %v2231
    %v2335 = vpop.f32.mrb[0].mxu0
    %v2336 = vadd.f32 0.0, %v2335
    %v2337 = vpop.f32.mrb[0].mxu0
    %v2338 = vpop.f32.mrb[0].mxu0
    %v2339 = vadd.f32 0.0, %v2338
    %v2340 = vpop.f32.mrb[0].mxu0
    %2341 = vmatprep.mubr.bf16.mxu0 0
    %2342 = vmatmul.mubr.bf16.gmra.mrb[0].mxu0 %v2234
    %v2343 = vpop.f32.mrb[0].mxu0
    %v2344 = vadd.f32 0.0, %v2343
    %v2345 = vpop.f32.mrb[0].mxu0
    %v2346 = vpop.f32.mrb[0].mxu0
    %v2347 = vadd.f32 0.0, %v2346
    %v2348 = vpop.f32.mrb[0].mxu0
    %2349 = vmatprep.mubr.bf16.mxu0 0
    %2350 = vmatmul.mubr.bf16.gmra.mrb[0].mxu0 %v2237
    %v2351 = vpop.f32.mrb[0].mxu0
    %v2352 = vadd.f32 0.0, %v2351
    %v2353 = vpop.f32.mrb[0].mxu0
    %v2354 = vpop.f32.mrb[0].mxu0
    %v2355 = vadd.f32 0.0, %v2354
    %v2356 = vpop.f32.mrb[0].mxu0
    %2357 = vmatprep.mubr.bf16.mxu0 0
    %2358 = vmatmul.mubr.bf16.gmra.mrb[0].mxu0 %v2240
    %v2359 = vpop.f32.mrb[0].mxu0
    %v2360 = vadd.f32 0.0, %v2359
    %v2361 = vpop.f32.mrb[0].mxu0
    %v2362 = vpop.f32.mrb[0].mxu0
    %v2363 = vadd.f32 0.0, %v2362
    %v2364 = vpop.f32.mrb[0].mxu0
    %2365 = vmatprep.mubr.bf16.mxu0 0
    %2366 = vmatmul.mubr.bf16.gmra.mrb[0].mxu0 %v2243
    %v2367 = vpop.f32.mrb[0].mxu0
    %v2368 = vadd.f32 0.0, %v2367
    %v2369 = vpop.f32.mrb[0].mxu0
    %v2370 = vpop.f32.mrb[0].mxu0
    %v2371 = vadd.f32 0.0, %v2370
    %v2372 = vpop.f32.mrb[0].mxu0
    %2373 = vmatprep.mubr.bf16.mxu0 0
    %2374 = vmatmul.mubr.bf16.gmra.mrb[0].mxu0 %v2246
    %v2375 = vpop.f32.mrb[0].mxu0
    %v2376 = vadd.f32 0.0, %v2375
    %v2377 = vpop.f32.mrb[0].mxu0
    %v2378 = vpop.f32.mrb[0].mxu0
    %v2379 = vadd.f32 0.0, %v2378
    %v2380 = vpop.f32.mrb[0].mxu0
    %2381 = vmatprep.mubr.bf16.mxu0 0
    %2382 = vmatmul.mubr.bf16.gmra.mrb[0].mxu0 %v2249
    %v2383 = vpop.f32.mrb[0].mxu0
    %v2384 = vadd.f32 0.0, %v2383
    %v2385 = vpop.f32.mrb[0].mxu0
    %v2386 = vpop.f32.mrb[0].mxu0
    %v2387 = vadd.f32 0.0, %v2386
    %v2388 = vpop.f32.mrb[0].mxu0
    %2389 = vmatprep.mubr.bf16.mxu0 0
    %2390 = vmatmul.mubr.bf16.gmra.mrb[0].mxu0 %v2252
    %v2391 = vpop.f32.mrb[0].mxu0
    %v2392 = vadd.f32 0.0, %v2391
    %v2393 = vpop.f32.mrb[0].mxu0
    %v2394 = vpop.f32.mrb[0].mxu0
    %v2395 = vadd.f32 0.0, %v2394
    %v2396 = vpop.f32.mrb[0].mxu0
    %2397 = vmatprep.mubr.bf16.mxu0 0
    %2398 = vmatmul.mubr.bf16.gmra.mrb[0].mxu0 %v2255
    %v2399 = vpop.f32.mrb[0].mxu0
    %v2400 = vadd.f32 0.0, %v2399
    %v2401 = vpop.f32.mrb[0].mxu0
    %v2402 = vpop.f32.mrb[0].mxu0
    %v2403 = vadd.f32 0.0, %v2402
    %v2404 = vpop.f32.mrb[0].mxu0
    %2405 = vmatprep.mubr.bf16.mxu0 0
    %2406 = vmatmul.mubr.bf16.gmra.mrb[0].mxu0 %v2258
    %v2407 = vpop.f32.mrb[0].mxu0
    %v2408 = vadd.f32 0.0, %v2407
    %v2409 = vpop.f32.mrb[0].mxu0
    %v2410 = vpop.f32.mrb[0].mxu0
    %v2411 = vadd.f32 0.0, %v2410
    %v2412 = vpop.f32.mrb[0].mxu0
    %2413 = vmatprep.mubr.bf16.mxu0 0
    %2414 = vmatmul.mubr.bf16.gmra.mrb[0].mxu0 %v2261
    %v2415 = vpop.f32.mrb[0].mxu0
    %v2416 = vadd.f32 0.0, %v2415
    %v2417 = vpop.f32.mrb[0].mxu0
    %v2418 = vpop.f32.mrb[0].mxu0
    %v2419 = vadd.f32 0.0, %v2418
    %v2420 = vpop.f32.mrb[0].mxu0
    %2421 = vmatprep.mubr.bf16.mxu0 0
    %2422 = vmatmul.mubr.bf16.gmra.mrb[0].mxu0 %v2264
    %v2423 = vpop.f32.mrb[0].mxu0
    %v2424 = vadd.f32 0.0, %v2423
    %v2425 = vpop.f32.mrb[0].mxu0
    %v2426 = vpop.f32.mrb[0].mxu0
    %v2427 = vadd.f32 0.0, %v2426
    %v2428 = vpop.f32.mrb[0].mxu0
    %2429 = vdwg.mxu0
    %v2430 = vadd.f32 %v2072, %v2304
    %v2431 = vadd.f32 %v2073, %v2307
    %v2432 = vadd.f32 %v2074, %v2312
    %v2433 = vadd.f32 %v2075, %v2315
    %v2434 = vadd.f32 %v2076, %v2320
    %v2435 = vadd.f32 %v2077, %v2323
    %v2436 = vadd.f32 %v2078, %v2328
    %v2437 = vadd.f32 %v2079, %v2331
    %v2438 = vadd.f32 %v2080, %v2336
    %v2439 = vadd.f32 %v2081, %v2339
    %v2440 = vadd.f32 %v2082, %v2344
    %v2441 = vadd.f32 %v2083, %v2347
    %v2442 = vadd.f32 %v2084, %v2352
    %v2443 = vadd.f32 %v2085, %v2355
    %v2444 = vadd.f32 %v2086, %v2360
    %v2445 = vadd.f32 %v2087, %v2363
    %v2446 = vadd.f32 %v2088, %v2368
    %v2447 = vadd.f32 %v2089, %v2371
    %v2448 = vadd.f32 %v2090, %v2376
    %v2449 = vadd.f32 %v2091, %v2379
    %v2450 = vadd.f32 %v2092, %v2384
    %v2451 = vadd.f32 %v2093, %v2387
    %v2452 = vadd.f32 %v2094, %v2392
    %v2453 = vadd.f32 %v2095, %v2395
    %v2454 = vadd.f32 %v2096, %v2400
    %v2455 = vadd.f32 %v2097, %v2403
    %v2456 = vadd.f32 %v2098, %v2408
    %v2457 = vadd.f32 %v2099, %v2411
    %v2458 = vadd.f32 %v2100, %v2416
    %v2459 = vadd.f32 %v2101, %v2419
    %v2460 = vadd.f32 %v2102, %v2424
    %v2461 = vadd.f32 %v2103, %v2427
    %v2462 = vld [vmem:[%s50 + $0x10] sm:$0xf]
    %v2463 = vld [vmem:[%s50 + $0x14] sm:$0xf]
    %v2464 = vld [vmem:[%s50 + $0x18] sm:$0xf]
    %v2465 = vld [vmem:[%s50 + $0x1c] sm:$0xf]
    %v2466 = vld [vmem:[%s50 + $0x20] sm:$0xf]
    %v2467 = vld [vmem:[%s50 + $0x24] sm:$0xf]
    %v2468 = vld [vmem:[%s50 + $0x28] sm:$0xf]
    %v2469 = vld [vmem:[%s50 + $0x2c] sm:$0xf]
    %v2470 = vld [vmem:[%s50 + $0x30] sm:$0xf]
    %v2471 = vld [vmem:[%s50 + $0x34] sm:$0xf]
    %v2472 = vld [vmem:[%s50 + $0x38] sm:$0xf]
    %v2473 = vld [vmem:[%s50 + $0x3c] sm:$0xf]
    %v2474 = vld [vmem:[%s50 + $0x40] sm:$0xf]
    %v2475 = vld [vmem:[%s50 + $0x44] sm:$0xf]
    %v2476 = vld [vmem:[%s50 + $0x48] sm:$0xf]
    %v2477 = vld [vmem:[%s50 + $0x4c] sm:$0xf]
    %v2478 = vld [vmem:[%s50 + $0x50] sm:$0xf]
    %v2479 = vld [vmem:[%s50 + $0x54] sm:$0xf]
    %v2480 = vld [vmem:[%s50 + $0x58] sm:$0xf]
    %v2481 = vld [vmem:[%s50 + $0x5c] sm:$0xf]
    %v2482 = vld [vmem:[%s50 + $0x60] sm:$0xf]
    %v2483 = vld [vmem:[%s50 + $0x64] sm:$0xf]
    %v2484 = vld [vmem:[%s50 + $0x68] sm:$0xf]
    %v2485 = vld [vmem:[%s50 + $0x6c] sm:$0xf]
    %v2486 = vld [vmem:[%s50 + $0x70] sm:$0xf]
    %v2487 = vld [vmem:[%s50 + $0x74] sm:$0xf]
    %v2488 = vld [vmem:[%s50 + $0x78] sm:$0xf]
    %v2489 = vld [vmem:[%s50 + $0x7c] sm:$0xf]
    %v2490 = vld [vmem:[%s50 + $0x80] sm:$0xf]
    %v2491 = vld [vmem:[%s50 + $0x84] sm:$0xf]
    %v2492 = vld [vmem:[%s50 + $0x88] sm:$0xf]
    %v2493 = vld [vmem:[%s50 + $0x8c] sm:$0xf]
    %s2494 = scalar_lea.vmem %s1, 14
    %v2495 = vld [vmem:[%s2494] sm:$0x3]
    %v2528 = vunpack.c.l.b16 %v2462
    %v2529 = vunpack.c.l.b16 %v2463
    %v2530 = vunpack.c.l.b16 %v2464
    %v2531 = vunpack.c.l.b16 %v2465
    %v2532 = vunpack.c.l.b16 %v2466
    %v2533 = vunpack.c.l.b16 %v2467
    %v2534 = vunpack.c.l.b16 %v2468
    %v2535 = vunpack.c.l.b16 %v2469
    %v2536 = vunpack.c.l.b16 %v2470
    %v2537 = vunpack.c.l.b16 %v2471
    %v2538 = vunpack.c.l.b16 %v2472
    %v2539 = vunpack.c.l.b16 %v2473
    %v2540 = vunpack.c.l.b16 %v2474
    %v2541 = vunpack.c.l.b16 %v2475
    %v2542 = vunpack.c.l.b16 %v2476
    %v2543 = vunpack.c.l.b16 %v2477
    %v2544 = vunpack.c.l.b16 %v2478
    %v2545 = vunpack.c.l.b16 %v2479
    %v2546 = vunpack.c.l.b16 %v2480
    %v2547 = vunpack.c.l.b16 %v2481
    %v2548 = vunpack.c.l.b16 %v2482
    %v2549 = vunpack.c.l.b16 %v2483
    %v2550 = vunpack.c.l.b16 %v2484
    %v2551 = vunpack.c.l.b16 %v2485
    %v2552 = vunpack.c.l.b16 %v2486
    %v2553 = vunpack.c.l.b16 %v2487
    %v2554 = vunpack.c.l.b16 %v2488
    %v2555 = vunpack.c.l.b16 %v2489
    %v2556 = vunpack.c.l.b16 %v2490
    %v2557 = vunpack.c.l.b16 %v2491
    %v2558 = vunpack.c.l.b16 %v2492
    %v2559 = vunpack.c.l.b16 %v2493
    %v2560 = vpack.c.b16 %v2529, %v2528
    %v2561 = vpack.c.b16 %v2531, %v2530
    %v2562 = vpack.c.b16 %v2533, %v2532
    %v2563 = vpack.c.b16 %v2535, %v2534
    %v2564 = vpack.c.b16 %v2537, %v2536
    %v2565 = vpack.c.b16 %v2539, %v2538
    %v2566 = vpack.c.b16 %v2541, %v2540
    %v2567 = vpack.c.b16 %v2543, %v2542
    %v2568 = vpack.c.b16 %v2545, %v2544
    %v2569 = vpack.c.b16 %v2547, %v2546
    %v2570 = vpack.c.b16 %v2549, %v2548
    %v2571 = vpack.c.b16 %v2551, %v2550
    %v2572 = vpack.c.b16 %v2553, %v2552
    %v2573 = vpack.c.b16 %v2555, %v2554
    %v2574 = vpack.c.b16 %v2557, %v2556
    %v2575 = vpack.c.b16 %v2559, %v2558
    %v2577 = vsel %vm165, %v2560, 0
    %v2580 = vsel %vm165, %v2561, 0
    %v2583 = vsel %vm165, %v2562, 0
    %v2586 = vsel %vm165, %v2563, 0
    %v2589 = vsel %vm165, %v2564, 0
    %v2592 = vsel %vm165, %v2565, 0
    %v2595 = vsel %vm165, %v2566, 0
    %v2598 = vsel %vm165, %v2567, 0
    %v2601 = vsel %vm165, %v2568, 0
    %v2604 = vsel %vm165, %v2569, 0
    %v2607 = vsel %vm165, %v2570, 0
    %v2610 = vsel %vm165, %v2571, 0
    %v2613 = vsel %vm165, %v2572, 0
    %v2616 = vsel %vm165, %v2573, 0
    %v2619 = vsel %vm165, %v2574, 0
    %v2622 = vsel %vm165, %v2575, 0
    %v2625 = vsel %vm214, %v2495, 0
    %2627 = vmatprep.subr.bf16.mxu0 0
    %2628 = vmatpush1.bf16.msra.mxu0 %v2625
    %2629 = vmatprep.subr.bf16.mxu0 0
    %2630 = vmatpush1.bf16.msra.mxu0 0
    %2631 = vmatprep.subr.bf16.mxu0 0
    %2632 = vmatpush1.bf16.msra.mxu0 0
    %2633 = vmatprep.subr.bf16.mxu0 0
    %2634 = vmatpush1.bf16.msra.mxu0 0
    %2635 = vmatprep.subr.bf16.mxu0 0
    %2636 = vmatpush1.bf16.msra.mxu0 0
    %2637 = vmatprep.subr.bf16.mxu0 0
    %2638 = vmatpush1.bf16.msra.mxu0 0
    %2639 = vmatprep.subr.bf16.mxu0 0
    %2640 = vmatpush1.bf16.msra.mxu0 0
    %2641 = vmatprep.subr.bf16.mxu0 0
    %2642 = vmatpush1.bf16.msra.mxu0 0
    %2643 = vmatprep.subr.bf16.mxu0 0
    %2644 = vmatpush1.bf16.msra.mxu0 0
    %2645 = vmatprep.subr.bf16.mxu0 0
    %2646 = vmatpush1.bf16.msra.mxu0 0
    %2647 = vmatprep.subr.bf16.mxu0 0
    %2648 = vmatpush1.bf16.msra.mxu0 0
    %2649 = vmatprep.subr.bf16.mxu0 0
    %2650 = vmatpush1.bf16.msra.mxu0 0
    %2651 = vmatprep.subr.bf16.mxu0 0
    %2652 = vmatpush1.bf16.msra.mxu0 0
    %2653 = vmatprep.subr.bf16.mxu0 0
    %2654 = vmatpush1.bf16.msra.mxu0 0
    %2655 = vmatprep.subr.bf16.mxu0 0
    %2656 = vmatpush1.bf16.msra.mxu0 0
    %2657 = vmatprep.subr.bf16.mxu0 0
    %2658 = vmatpush1.bf16.msra.mxu0 0
    %2659 = vmatprep.mubr.bf16.mxu0 0
    %2660 = vmatmul.mubr.bf16.gmra.mrb[0].mxu0 %v2577
    %v2661 = vpop.f32.mrb[0].mxu0
    %v2662 = vadd.f32 0.0, %v2661
    %v2663 = vpop.f32.mrb[0].mxu0
    %v2664 = vpop.f32.mrb[0].mxu0
    %v2665 = vadd.f32 0.0, %v2664
    %v2666 = vpop.f32.mrb[0].mxu0
    %2667 = vmatprep.mubr.bf16.mxu0 0
    %2668 = vmatmul.mubr.bf16.gmra.mrb[0].mxu0 %v2580
    %v2669 = vpop.f32.mrb[0].mxu0
    %v2670 = vadd.f32 0.0, %v2669
    %v2671 = vpop.f32.mrb[0].mxu0
    %v2672 = vpop.f32.mrb[0].mxu0
    %v2673 = vadd.f32 0.0, %v2672
    %v2674 = vpop.f32.mrb[0].mxu0
    %2675 = vmatprep.mubr.bf16.mxu0 0
    %2676 = vmatmul.mubr.bf16.gmra.mrb[0].mxu0 %v2583
    %v2677 = vpop.f32.mrb[0].mxu0
    %v2678 = vadd.f32 0.0, %v2677
    %v2679 = vpop.f32.mrb[0].mxu0
    %v2680 = vpop.f32.mrb[0].mxu0
    %v2681 = vadd.f32 0.0, %v2680
    %v2682 = vpop.f32.mrb[0].mxu0
    %2683 = vmatprep.mubr.bf16.mxu0 0
    %2684 = vmatmul.mubr.bf16.gmra.mrb[0].mxu0 %v2586
    %v2685 = vpop.f32.mrb[0].mxu0
    %v2686 = vadd.f32 0.0, %v2685
    %v2687 = vpop.f32.mrb[0].mxu0
    %v2688 = vpop.f32.mrb[0].mxu0
    %v2689 = vadd.f32 0.0, %v2688
    %v2690 = vpop.f32.mrb[0].mxu0
    %2691 = vmatprep.mubr.bf16.mxu0 0
    %2692 = vmatmul.mubr.bf16.gmra.mrb[0].mxu0 %v2589
    %v2693 = vpop.f32.mrb[0].mxu0
    %v2694 = vadd.f32 0.0, %v2693
    %v2695 = vpop.f32.mrb[0].mxu0
    %v2696 = vpop.f32.mrb[0].mxu0
    %v2697 = vadd.f32 0.0, %v2696
    %v2698 = vpop.f32.mrb[0].mxu0
    %2699 = vmatprep.mubr.bf16.mxu0 0
    %2700 = vmatmul.mubr.bf16.gmra.mrb[0].mxu0 %v2592
    %v2701 = vpop.f32.mrb[0].mxu0
    %v2702 = vadd.f32 0.0, %v2701
    %v2703 = vpop.f32.mrb[0].mxu0
    %v2704 = vpop.f32.mrb[0].mxu0
    %v2705 = vadd.f32 0.0, %v2704
    %v2706 = vpop.f32.mrb[0].mxu0
    %2707 = vmatprep.mubr.bf16.mxu0 0
    %2708 = vmatmul.mubr.bf16.gmra.mrb[0].mxu0 %v2595
    %v2709 = vpop.f32.mrb[0].mxu0
    %v2710 = vadd.f32 0.0, %v2709
    %v2711 = vpop.f32.mrb[0].mxu0
    %v2712 = vpop.f32.mrb[0].mxu0
    %v2713 = vadd.f32 0.0, %v2712
    %v2714 = vpop.f32.mrb[0].mxu0
    %2715 = vmatprep.mubr.bf16.mxu0 0
    %2716 = vmatmul.mubr.bf16.gmra.mrb[0].mxu0 %v2598
    %v2717 = vpop.f32.mrb[0].mxu0
    %v2718 = vadd.f32 0.0, %v2717
    %v2719 = vpop.f32.mrb[0].mxu0
    %v2720 = vpop.f32.mrb[0].mxu0
    %v2721 = vadd.f32 0.0, %v2720
    %v2722 = vpop.f32.mrb[0].mxu0
    %2723 = vmatprep.mubr.bf16.mxu0 0
    %2724 = vmatmul.mubr.bf16.gmra.mrb[0].mxu0 %v2601
    %v2725 = vpop.f32.mrb[0].mxu0
    %v2726 = vadd.f32 0.0, %v2725
    %v2727 = vpop.f32.mrb[0].mxu0
    %v2728 = vpop.f32.mrb[0].mxu0
    %v2729 = vadd.f32 0.0, %v2728
    %v2730 = vpop.f32.mrb[0].mxu0
    %2731 = vmatprep.mubr.bf16.mxu0 0
    %2732 = vmatmul.mubr.bf16.gmra.mrb[0].mxu0 %v2604
    %v2733 = vpop.f32.mrb[0].mxu0
    %v2734 = vadd.f32 0.0, %v2733
    %v2735 = vpop.f32.mrb[0].mxu0
    %v2736 = vpop.f32.mrb[0].mxu0
    %v2737 = vadd.f32 0.0, %v2736
    %v2738 = vpop.f32.mrb[0].mxu0
    %2739 = vmatprep.mubr.bf16.mxu0 0
    %2740 = vmatmul.mubr.bf16.gmra.mrb[0].mxu0 %v2607
    %v2741 = vpop.f32.mrb[0].mxu0
    %v2742 = vadd.f32 0.0, %v2741
    %v2743 = vpop.f32.mrb[0].mxu0
    %v2744 = vpop.f32.mrb[0].mxu0
    %v2745 = vadd.f32 0.0, %v2744
    %v2746 = vpop.f32.mrb[0].mxu0
    %2747 = vmatprep.mubr.bf16.mxu0 0
    %2748 = vmatmul.mubr.bf16.gmra.mrb[0].mxu0 %v2610
    %v2749 = vpop.f32.mrb[0].mxu0
    %v2750 = vadd.f32 0.0, %v2749
    %v2751 = vpop.f32.mrb[0].mxu0
    %v2752 = vpop.f32.mrb[0].mxu0
    %v2753 = vadd.f32 0.0, %v2752
    %v2754 = vpop.f32.mrb[0].mxu0
    %2755 = vmatprep.mubr.bf16.mxu0 0
    %2756 = vmatmul.mubr.bf16.gmra.mrb[0].mxu0 %v2613
    %v2757 = vpop.f32.mrb[0].mxu0
    %v2758 = vadd.f32 0.0, %v2757
    %v2759 = vpop.f32.mrb[0].mxu0
    %v2760 = vpop.f32.mrb[0].mxu0
    %v2761 = vadd.f32 0.0, %v2760
    %v2762 = vpop.f32.mrb[0].mxu0
    %2763 = vmatprep.mubr.bf16.mxu0 0
    %2764 = vmatmul.mubr.bf16.gmra.mrb[0].mxu0 %v2616
    %v2765 = vpop.f32.mrb[0].mxu0
    %v2766 = vadd.f32 0.0, %v2765
    %v2767 = vpop.f32.mrb[0].mxu0
    %v2768 = vpop.f32.mrb[0].mxu0
    %v2769 = vadd.f32 0.0, %v2768
    %v2770 = vpop.f32.mrb[0].mxu0
    %2771 = vmatprep.mubr.bf16.mxu0 0
    %2772 = vmatmul.mubr.bf16.gmra.mrb[0].mxu0 %v2619
    %v2773 = vpop.f32.mrb[0].mxu0
    %v2774 = vadd.f32 0.0, %v2773
    %v2775 = vpop.f32.mrb[0].mxu0
    %v2776 = vpop.f32.mrb[0].mxu0
    %v2777 = vadd.f32 0.0, %v2776
    %v2778 = vpop.f32.mrb[0].mxu0
    %2779 = vmatprep.mubr.bf16.mxu0 0
    %2780 = vmatmul.mubr.bf16.gmra.mrb[0].mxu0 %v2622
    %v2781 = vpop.f32.mrb[0].mxu0
    %v2782 = vadd.f32 0.0, %v2781
    %v2783 = vpop.f32.mrb[0].mxu0
    %v2784 = vpop.f32.mrb[0].mxu0
    %v2785 = vadd.f32 0.0, %v2784
    %v2786 = vpop.f32.mrb[0].mxu0
    %2787 = vdwg.mxu0
    %v2788 = vadd.f32 %v2430, %v2662
    %v2789 = vadd.f32 %v2431, %v2665
    %v2790 = vadd.f32 %v2432, %v2670
    %v2791 = vadd.f32 %v2433, %v2673
    %v2792 = vadd.f32 %v2434, %v2678
    %v2793 = vadd.f32 %v2435, %v2681
    %v2794 = vadd.f32 %v2436, %v2686
    %v2795 = vadd.f32 %v2437, %v2689
    %v2796 = vadd.f32 %v2438, %v2694
    %v2797 = vadd.f32 %v2439, %v2697
    %v2798 = vadd.f32 %v2440, %v2702
    %v2799 = vadd.f32 %v2441, %v2705
    %v2800 = vadd.f32 %v2442, %v2710
    %v2801 = vadd.f32 %v2443, %v2713
    %v2802 = vadd.f32 %v2444, %v2718
    %v2803 = vadd.f32 %v2445, %v2721
    %v2804 = vadd.f32 %v2446, %v2726
    %v2805 = vadd.f32 %v2447, %v2729
    %v2806 = vadd.f32 %v2448, %v2734
    %v2807 = vadd.f32 %v2449, %v2737
    %v2808 = vadd.f32 %v2450, %v2742
    %v2809 = vadd.f32 %v2451, %v2745
    %v2810 = vadd.f32 %v2452, %v2750
    %v2811 = vadd.f32 %v2453, %v2753
    %v2812 = vadd.f32 %v2454, %v2758
    %v2813 = vadd.f32 %v2455, %v2761
    %v2814 = vadd.f32 %v2456, %v2766
    %v2815 = vadd.f32 %v2457, %v2769
    %v2816 = vadd.f32 %v2458, %v2774
    %v2817 = vadd.f32 %v2459, %v2777
    %v2818 = vadd.f32 %v2460, %v2782
    %v2819 = vadd.f32 %v2461, %v2785
    %v2820 = vld [vmem:[%s671 + $0x10] sm:$0xf]
    %v2821 = vld [vmem:[%s671 + $0x14] sm:$0xf]
    %v2822 = vld [vmem:[%s671 + $0x18] sm:$0xf]
    %v2823 = vld [vmem:[%s671 + $0x1c] sm:$0xf]
    %v2824 = vld [vmem:[%s671 + $0x20] sm:$0xf]
    %v2825 = vld [vmem:[%s671 + $0x24] sm:$0xf]
    %v2826 = vld [vmem:[%s671 + $0x28] sm:$0xf]
    %v2827 = vld [vmem:[%s671 + $0x2c] sm:$0xf]
    %v2828 = vld [vmem:[%s671 + $0x30] sm:$0xf]
    %v2829 = vld [vmem:[%s671 + $0x34] sm:$0xf]
    %v2830 = vld [vmem:[%s671 + $0x38] sm:$0xf]
    %v2831 = vld [vmem:[%s671 + $0x3c] sm:$0xf]
    %v2832 = vld [vmem:[%s671 + $0x40] sm:$0xf]
    %v2833 = vld [vmem:[%s671 + $0x44] sm:$0xf]
    %v2834 = vld [vmem:[%s671 + $0x48] sm:$0xf]
    %v2835 = vld [vmem:[%s671 + $0x4c] sm:$0xf]
    %v2836 = vld [vmem:[%s671 + $0x50] sm:$0xf]
    %v2837 = vld [vmem:[%s671 + $0x54] sm:$0xf]
    %v2838 = vld [vmem:[%s671 + $0x58] sm:$0xf]
    %v2839 = vld [vmem:[%s671 + $0x5c] sm:$0xf]
    %v2840 = vld [vmem:[%s671 + $0x60] sm:$0xf]
    %v2841 = vld [vmem:[%s671 + $0x64] sm:$0xf]
    %v2842 = vld [vmem:[%s671 + $0x68] sm:$0xf]
    %v2843 = vld [vmem:[%s671 + $0x6c] sm:$0xf]
    %v2844 = vld [vmem:[%s671 + $0x70] sm:$0xf]
    %v2845 = vld [vmem:[%s671 + $0x74] sm:$0xf]
    %v2846 = vld [vmem:[%s671 + $0x78] sm:$0xf]
    %v2847 = vld [vmem:[%s671 + $0x7c] sm:$0xf]
    %v2848 = vld [vmem:[%s671 + $0x80] sm:$0xf]
    %v2849 = vld [vmem:[%s671 + $0x84] sm:$0xf]
    %v2850 = vld [vmem:[%s671 + $0x88] sm:$0xf]
    %v2851 = vld [vmem:[%s671 + $0x8c] sm:$0xf]
    %s2852 = scalar_lea.vmem %s1, 16
    %v2853 = vld [vmem:[%s2852] sm:$0x3]
    %v2886 = vunpack.c.l.b16 %v2820
    %v2887 = vunpack.c.l.b16 %v2821
    %v2888 = vunpack.c.l.b16 %v2822
    %v2889 = vunpack.c.l.b16 %v2823
    %v2890 = vunpack.c.l.b16 %v2824
    %v2891 = vunpack.c.l.b16 %v2825
    %v2892 = vunpack.c.l.b16 %v2826
    %v2893 = vunpack.c.l.b16 %v2827
    %v2894 = vunpack.c.l.b16 %v2828
    %v2895 = vunpack.c.l.b16 %v2829
    %v2896 = vunpack.c.l.b16 %v2830
    %v2897 = vunpack.c.l.b16 %v2831
    %v2898 = vunpack.c.l.b16 %v2832
    %v2899 = vunpack.c.l.b16 %v2833
    %v2900 = vunpack.c.l.b16 %v2834
    %v2901 = vunpack.c.l.b16 %v2835
    %v2902 = vunpack.c.l.b16 %v2836
    %v2903 = vunpack.c.l.b16 %v2837
    %v2904 = vunpack.c.l.b16 %v2838
    %v2905 = vunpack.c.l.b16 %v2839
    %v2906 = vunpack.c.l.b16 %v2840
    %v2907 = vunpack.c.l.b16 %v2841
    %v2908 = vunpack.c.l.b16 %v2842
    %v2909 = vunpack.c.l.b16 %v2843
    %v2910 = vunpack.c.l.b16 %v2844
    %v2911 = vunpack.c.l.b16 %v2845
    %v2912 = vunpack.c.l.b16 %v2846
    %v2913 = vunpack.c.l.b16 %v2847
    %v2914 = vunpack.c.l.b16 %v2848
    %v2915 = vunpack.c.l.b16 %v2849
    %v2916 = vunpack.c.l.b16 %v2850
    %v2917 = vunpack.c.l.b16 %v2851
    %v2918 = vpack.c.b16 %v2887, %v2886
    %v2919 = vpack.c.b16 %v2889, %v2888
    %v2920 = vpack.c.b16 %v2891, %v2890
    %v2921 = vpack.c.b16 %v2893, %v2892
    %v2922 = vpack.c.b16 %v2895, %v2894
    %v2923 = vpack.c.b16 %v2897, %v2896
    %v2924 = vpack.c.b16 %v2899, %v2898
    %v2925 = vpack.c.b16 %v2901, %v2900
    %v2926 = vpack.c.b16 %v2903, %v2902
    %v2927 = vpack.c.b16 %v2905, %v2904
    %v2928 = vpack.c.b16 %v2907, %v2906
    %v2929 = vpack.c.b16 %v2909, %v2908
    %v2930 = vpack.c.b16 %v2911, %v2910
    %v2931 = vpack.c.b16 %v2913, %v2912
    %v2932 = vpack.c.b16 %v2915, %v2914
    %v2933 = vpack.c.b16 %v2917, %v2916
    %v2935 = vsel %vm165, %v2918, 0
    %v2938 = vsel %vm165, %v2919, 0
    %v2941 = vsel %vm165, %v2920, 0
    %v2944 = vsel %vm165, %v2921, 0
    %v2947 = vsel %vm165, %v2922, 0
    %v2950 = vsel %vm165, %v2923, 0
    %v2953 = vsel %vm165, %v2924, 0
    %v2956 = vsel %vm165, %v2925, 0
    %v2959 = vsel %vm165, %v2926, 0
    %v2962 = vsel %vm165, %v2927, 0
    %v2965 = vsel %vm165, %v2928, 0
    %v2968 = vsel %vm165, %v2929, 0
    %v2971 = vsel %vm165, %v2930, 0
    %v2974 = vsel %vm165, %v2931, 0
    %v2977 = vsel %vm165, %v2932, 0
    %v2980 = vsel %vm165, %v2933, 0
    %v2983 = vsel %vm214, %v2853, 0
    %2985 = vmatprep.subr.bf16.mxu0 0
    %2986 = vmatpush1.bf16.msra.mxu0 %v2983
    %2987 = vmatprep.subr.bf16.mxu0 0
    %2988 = vmatpush1.bf16.msra.mxu0 0
    %2989 = vmatprep.subr.bf16.mxu0 0
    %2990 = vmatpush1.bf16.msra.mxu0 0
    %2991 = vmatprep.subr.bf16.mxu0 0
    %2992 = vmatpush1.bf16.msra.mxu0 0
    %2993 = vmatprep.subr.bf16.mxu0 0
    %2994 = vmatpush1.bf16.msra.mxu0 0
    %2995 = vmatprep.subr.bf16.mxu0 0
    %2996 = vmatpush1.bf16.msra.mxu0 0
    %2997 = vmatprep.subr.bf16.mxu0 0
    %2998 = vmatpush1.bf16.msra.mxu0 0
    %2999 = vmatprep.subr.bf16.mxu0 0
    %3000 = vmatpush1.bf16.msra.mxu0 0
    %3001 = vmatprep.subr.bf16.mxu0 0
    %3002 = vmatpush1.bf16.msra.mxu0 0
    %3003 = vmatprep.subr.bf16.mxu0 0
    %3004 = vmatpush1.bf16.msra.mxu0 0
    %3005 = vmatprep.subr.bf16.mxu0 0
    %3006 = vmatpush1.bf16.msra.mxu0 0
    %3007 = vmatprep.subr.bf16.mxu0 0
    %3008 = vmatpush1.bf16.msra.mxu0 0
    %3009 = vmatprep.subr.bf16.mxu0 0
    %3010 = vmatpush1.bf16.msra.mxu0 0
    %3011 = vmatprep.subr.bf16.mxu0 0
    %3012 = vmatpush1.bf16.msra.mxu0 0
    %3013 = vmatprep.subr.bf16.mxu0 0
    %3014 = vmatpush1.bf16.msra.mxu0 0
    %3015 = vmatprep.subr.bf16.mxu0 0
    %3016 = vmatpush1.bf16.msra.mxu0 0
    %3017 = vmatprep.mubr.bf16.mxu0 0
    %3018 = vmatmul.mubr.bf16.gmra.mrb[0].mxu0 %v2935
    %v3019 = vpop.f32.mrb[0].mxu0
    %v3020 = vadd.f32 0.0, %v3019
    %v3021 = vpop.f32.mrb[0].mxu0
    %v3022 = vpop.f32.mrb[0].mxu0
    %v3023 = vadd.f32 0.0, %v3022
    %v3024 = vpop.f32.mrb[0].mxu0
    %3025 = vmatprep.mubr.bf16.mxu0 0
    %3026 = vmatmul.mubr.bf16.gmra.mrb[0].mxu0 %v2938
    %v3027 = vpop.f32.mrb[0].mxu0
    %v3028 = vadd.f32 0.0, %v3027
    %v3029 = vpop.f32.mrb[0].mxu0
    %v3030 = vpop.f32.mrb[0].mxu0
    %v3031 = vadd.f32 0.0, %v3030
    %v3032 = vpop.f32.mrb[0].mxu0
    %3033 = vmatprep.mubr.bf16.mxu0 0
    %3034 = vmatmul.mubr.bf16.gmra.mrb[0].mxu0 %v2941
    %v3035 = vpop.f32.mrb[0].mxu0
    %v3036 = vadd.f32 0.0, %v3035
    %v3037 = vpop.f32.mrb[0].mxu0
    %v3038 = vpop.f32.mrb[0].mxu0
    %v3039 = vadd.f32 0.0, %v3038
    %v3040 = vpop.f32.mrb[0].mxu0
    %3041 = vmatprep.mubr.bf16.mxu0 0
    %3042 = vmatmul.mubr.bf16.gmra.mrb[0].mxu0 %v2944
    %v3043 = vpop.f32.mrb[0].mxu0
    %v3044 = vadd.f32 0.0, %v3043
    %v3045 = vpop.f32.mrb[0].mxu0
    %v3046 = vpop.f32.mrb[0].mxu0
    %v3047 = vadd.f32 0.0, %v3046
    %v3048 = vpop.f32.mrb[0].mxu0
    %3049 = vmatprep.mubr.bf16.mxu0 0
    %3050 = vmatmul.mubr.bf16.gmra.mrb[0].mxu0 %v2947
    %v3051 = vpop.f32.mrb[0].mxu0
    %v3052 = vadd.f32 0.0, %v3051
    %v3053 = vpop.f32.mrb[0].mxu0
    %v3054 = vpop.f32.mrb[0].mxu0
    %v3055 = vadd.f32 0.0, %v3054
    %v3056 = vpop.f32.mrb[0].mxu0
    %3057 = vmatprep.mubr.bf16.mxu0 0
    %3058 = vmatmul.mubr.bf16.gmra.mrb[0].mxu0 %v2950
    %v3059 = vpop.f32.mrb[0].mxu0
    %v3060 = vadd.f32 0.0, %v3059
    %v3061 = vpop.f32.mrb[0].mxu0
    %v3062 = vpop.f32.mrb[0].mxu0
    %v3063 = vadd.f32 0.0, %v3062
    %v3064 = vpop.f32.mrb[0].mxu0
    %3065 = vmatprep.mubr.bf16.mxu0 0
    %3066 = vmatmul.mubr.bf16.gmra.mrb[0].mxu0 %v2953
    %v3067 = vpop.f32.mrb[0].mxu0
    %v3068 = vadd.f32 0.0, %v3067
    %v3069 = vpop.f32.mrb[0].mxu0
    %v3070 = vpop.f32.mrb[0].mxu0
    %v3071 = vadd.f32 0.0, %v3070
    %v3072 = vpop.f32.mrb[0].mxu0
    %3073 = vmatprep.mubr.bf16.mxu0 0
    %3074 = vmatmul.mubr.bf16.gmra.mrb[0].mxu0 %v2956
    %v3075 = vpop.f32.mrb[0].mxu0
    %v3076 = vadd.f32 0.0, %v3075
    %v3077 = vpop.f32.mrb[0].mxu0
    %v3078 = vpop.f32.mrb[0].mxu0
    %v3079 = vadd.f32 0.0, %v3078
    %v3080 = vpop.f32.mrb[0].mxu0
    %3081 = vmatprep.mubr.bf16.mxu0 0
    %3082 = vmatmul.mubr.bf16.gmra.mrb[0].mxu0 %v2959
    %v3083 = vpop.f32.mrb[0].mxu0
    %v3084 = vadd.f32 0.0, %v3083
    %v3085 = vpop.f32.mrb[0].mxu0
    %v3086 = vpop.f32.mrb[0].mxu0
    %v3087 = vadd.f32 0.0, %v3086
    %v3088 = vpop.f32.mrb[0].mxu0
    %3089 = vmatprep.mubr.bf16.mxu0 0
    %3090 = vmatmul.mubr.bf16.gmra.mrb[0].mxu0 %v2962
    %v3091 = vpop.f32.mrb[0].mxu0
    %v3092 = vadd.f32 0.0, %v3091
    %v3093 = vpop.f32.mrb[0].mxu0
    %v3094 = vpop.f32.mrb[0].mxu0
    %v3095 = vadd.f32 0.0, %v3094
    %v3096 = vpop.f32.mrb[0].mxu0
    %3097 = vmatprep.mubr.bf16.mxu0 0
    %3098 = vmatmul.mubr.bf16.gmra.mrb[0].mxu0 %v2965
    %v3099 = vpop.f32.mrb[0].mxu0
    %v3100 = vadd.f32 0.0, %v3099
    %v3101 = vpop.f32.mrb[0].mxu0
    %v3102 = vpop.f32.mrb[0].mxu0
    %v3103 = vadd.f32 0.0, %v3102
    %v3104 = vpop.f32.mrb[0].mxu0
    %3105 = vmatprep.mubr.bf16.mxu0 0
    %3106 = vmatmul.mubr.bf16.gmra.mrb[0].mxu0 %v2968
    %v3107 = vpop.f32.mrb[0].mxu0
    %v3108 = vadd.f32 0.0, %v3107
    %v3109 = vpop.f32.mrb[0].mxu0
    %v3110 = vpop.f32.mrb[0].mxu0
    %v3111 = vadd.f32 0.0, %v3110
    %v3112 = vpop.f32.mrb[0].mxu0
    %3113 = vmatprep.mubr.bf16.mxu0 0
    %3114 = vmatmul.mubr.bf16.gmra.mrb[0].mxu0 %v2971
    %v3115 = vpop.f32.mrb[0].mxu0
    %v3116 = vadd.f32 0.0, %v3115
    %v3117 = vpop.f32.mrb[0].mxu0
    %v3118 = vpop.f32.mrb[0].mxu0
    %v3119 = vadd.f32 0.0, %v3118
    %v3120 = vpop.f32.mrb[0].mxu0
    %3121 = vmatprep.mubr.bf16.mxu0 0
    %3122 = vmatmul.mubr.bf16.gmra.mrb[0].mxu0 %v2974
    %v3123 = vpop.f32.mrb[0].mxu0
    %v3124 = vadd.f32 0.0, %v3123
    %v3125 = vpop.f32.mrb[0].mxu0
    %v3126 = vpop.f32.mrb[0].mxu0
    %v3127 = vadd.f32 0.0, %v3126
    %v3128 = vpop.f32.mrb[0].mxu0
    %3129 = vmatprep.mubr.bf16.mxu0 0
    %3130 = vmatmul.mubr.bf16.gmra.mrb[0].mxu0 %v2977
    %v3131 = vpop.f32.mrb[0].mxu0
    %v3132 = vadd.f32 0.0, %v3131
    %v3133 = vpop.f32.mrb[0].mxu0
    %v3134 = vpop.f32.mrb[0].mxu0
    %v3135 = vadd.f32 0.0, %v3134
    %v3136 = vpop.f32.mrb[0].mxu0
    %3137 = vmatprep.mubr.bf16.mxu0 0
    %3138 = vmatmul.mubr.bf16.gmra.mrb[0].mxu0 %v2980
    %v3139 = vpop.f32.mrb[0].mxu0
    %v3140 = vadd.f32 0.0, %v3139
    %v3141 = vpop.f32.mrb[0].mxu0
    %v3142 = vpop.f32.mrb[0].mxu0
    %v3143 = vadd.f32 0.0, %v3142
    %v3144 = vpop.f32.mrb[0].mxu0
    %3145 = vdwg.mxu0
    %v3146 = vadd.f32 %v2788, %v3020
    %v3147 = vadd.f32 %v2789, %v3023
    %v3148 = vadd.f32 %v2790, %v3028
    %v3149 = vadd.f32 %v2791, %v3031
    %v3150 = vadd.f32 %v2792, %v3036
    %v3151 = vadd.f32 %v2793, %v3039
    %v3152 = vadd.f32 %v2794, %v3044
    %v3153 = vadd.f32 %v2795, %v3047
    %v3154 = vadd.f32 %v2796, %v3052
    %v3155 = vadd.f32 %v2797, %v3055
    %v3156 = vadd.f32 %v2798, %v3060
    %v3157 = vadd.f32 %v2799, %v3063
    %v3158 = vadd.f32 %v2800, %v3068
    %v3159 = vadd.f32 %v2801, %v3071
    %v3160 = vadd.f32 %v2802, %v3076
    %v3161 = vadd.f32 %v2803, %v3079
    %v3162 = vadd.f32 %v2804, %v3084
    %v3163 = vadd.f32 %v2805, %v3087
    %v3164 = vadd.f32 %v2806, %v3092
    %v3165 = vadd.f32 %v2807, %v3095
    %v3166 = vadd.f32 %v2808, %v3100
    %v3167 = vadd.f32 %v2809, %v3103
    %v3168 = vadd.f32 %v2810, %v3108
    %v3169 = vadd.f32 %v2811, %v3111
    %v3170 = vadd.f32 %v2812, %v3116
    %v3171 = vadd.f32 %v2813, %v3119
    %v3172 = vadd.f32 %v2814, %v3124
    %v3173 = vadd.f32 %v2815, %v3127
    %v3174 = vadd.f32 %v2816, %v3132
    %v3175 = vadd.f32 %v2817, %v3135
    %v3176 = vadd.f32 %v2818, %v3140
    %v3177 = vadd.f32 %v2819, %v3143
    %v3178 = vpack.c.bf16 %v3147, %v3146
    %v3179 = vpack.c.bf16 %v3149, %v3148
    %v3180 = vpack.c.bf16 %v3151, %v3150
    %v3181 = vpack.c.bf16 %v3153, %v3152
    %v3182 = vpack.c.bf16 %v3155, %v3154
    %v3183 = vpack.c.bf16 %v3157, %v3156
    %v3184 = vpack.c.bf16 %v3159, %v3158
    %v3185 = vpack.c.bf16 %v3161, %v3160
    %v3186 = vpack.c.bf16 %v3163, %v3162
    %v3187 = vpack.c.bf16 %v3165, %v3164
    %v3188 = vpack.c.bf16 %v3167, %v3166
    %v3189 = vpack.c.bf16 %v3169, %v3168
    %v3190 = vpack.c.bf16 %v3171, %v3170
    %v3191 = vpack.c.bf16 %v3173, %v3172
    %v3192 = vpack.c.bf16 %v3175, %v3174
    %v3193 = vpack.c.bf16 %v3177, %v3176
    %v3210 = vunpack.c.l.b16 %v3178
    %v3211 = vunpack.c.h.b16 %v3178
    %v3212 = vunpack.c.l.b16 %v3179
    %v3213 = vunpack.c.h.b16 %v3179
    %v3214 = vunpack.c.l.b16 %v3180
    %v3215 = vunpack.c.h.b16 %v3180
    %v3216 = vunpack.c.l.b16 %v3181
    %v3217 = vunpack.c.h.b16 %v3181
    %v3218 = vunpack.c.l.b16 %v3182
    %v3219 = vunpack.c.h.b16 %v3182
    %v3220 = vunpack.c.l.b16 %v3183
    %v3221 = vunpack.c.h.b16 %v3183
    %v3222 = vunpack.c.l.b16 %v3184
    %v3223 = vunpack.c.h.b16 %v3184
    %v3224 = vunpack.c.l.b16 %v3185
    %v3225 = vunpack.c.h.b16 %v3185
    %v3226 = vunpack.c.l.b16 %v3186
    %v3227 = vunpack.c.h.b16 %v3186
    %v3228 = vunpack.c.l.b16 %v3187
    %v3229 = vunpack.c.h.b16 %v3187
    %v3230 = vunpack.c.l.b16 %v3188
    %v3231 = vunpack.c.h.b16 %v3188
    %v3232 = vunpack.c.l.b16 %v3189
    %v3233 = vunpack.c.h.b16 %v3189
    %v3234 = vunpack.c.l.b16 %v3190
    %v3235 = vunpack.c.h.b16 %v3190
    %v3236 = vunpack.c.l.b16 %v3191
    %v3237 = vunpack.c.h.b16 %v3191
    %v3238 = vunpack.c.l.b16 %v3192
    %v3239 = vunpack.c.h.b16 %v3192
    %v3240 = vunpack.c.l.b16 %v3193
    %v3241 = vunpack.c.h.b16 %v3193
    %v3242 = vpack.c.b16 %v3210, %v3210
    %v3243 = vpack.c.b16 %v3211, %v3211
    %v3244 = vpack.c.b16 %v3212, %v3212
    %v3245 = vpack.c.b16 %v3213, %v3213
    %v3246 = vpack.c.b16 %v3214, %v3214
    %v3247 = vpack.c.b16 %v3215, %v3215
    %v3248 = vpack.c.b16 %v3216, %v3216
    %v3249 = vpack.c.b16 %v3217, %v3217
    %v3250 = vpack.c.b16 %v3218, %v3218
    %v3251 = vpack.c.b16 %v3219, %v3219
    %v3252 = vpack.c.b16 %v3220, %v3220
    %v3253 = vpack.c.b16 %v3221, %v3221
    %v3254 = vpack.c.b16 %v3222, %v3222
    %v3255 = vpack.c.b16 %v3223, %v3223
    %v3256 = vpack.c.b16 %v3224, %v3224
    %v3257 = vpack.c.b16 %v3225, %v3225
    %v3258 = vpack.c.b16 %v3226, %v3226
    %v3259 = vpack.c.b16 %v3227, %v3227
    %v3260 = vpack.c.b16 %v3228, %v3228
    %v3261 = vpack.c.b16 %v3229, %v3229
    %v3262 = vpack.c.b16 %v3230, %v3230
    %v3263 = vpack.c.b16 %v3231, %v3231
    %v3264 = vpack.c.b16 %v3232, %v3232
    %v3265 = vpack.c.b16 %v3233, %v3233
    %v3266 = vpack.c.b16 %v3234, %v3234
    %v3267 = vpack.c.b16 %v3235, %v3235
    %v3268 = vpack.c.b16 %v3236, %v3236
    %v3269 = vpack.c.b16 %v3237, %v3237
    %v3270 = vpack.c.b16 %v3238, %v3238
    %v3271 = vpack.c.b16 %v3239, %v3239
    %v3272 = vpack.c.b16 %v3240, %v3240
    %v3273 = vpack.c.b16 %v3241, %v3241
    %vm3306 = vcmask 27648
    %3307 = vst.msk [vmem:[%s2] sm:$0xf] %vm3306, %v3242
    %3308 = vst.msk [vmem:[%s2 + $0x4] sm:$0xf] %vm3306, %v3243
    %3309 = vst.msk [vmem:[%s2 + $0x8] sm:$0xf] %vm3306, %v3244
    %3310 = vst.msk [vmem:[%s2 + $0xc] sm:$0xf] %vm3306, %v3245
    %3311 = vst.msk [vmem:[%s2 + $0x10] sm:$0xf] %vm3306, %v3246
    %3312 = vst.msk [vmem:[%s2 + $0x14] sm:$0xf] %vm3306, %v3247
    %3313 = vst.msk [vmem:[%s2 + $0x18] sm:$0xf] %vm3306, %v3248
    %3314 = vst.msk [vmem:[%s2 + $0x1c] sm:$0xf] %vm3306, %v3249
    %3315 = vst.msk [vmem:[%s2 + $0x20] sm:$0xf] %vm3306, %v3250
    %3316 = vst.msk [vmem:[%s2 + $0x24] sm:$0xf] %vm3306, %v3251
    %3317 = vst.msk [vmem:[%s2 + $0x28] sm:$0xf] %vm3306, %v3252
    %3318 = vst.msk [vmem:[%s2 + $0x2c] sm:$0xf] %vm3306, %v3253
    %3319 = vst.msk [vmem:[%s2 + $0x30] sm:$0xf] %vm3306, %v3254
    %3320 = vst.msk [vmem:[%s2 + $0x34] sm:$0xf] %vm3306, %v3255
    %3321 = vst.msk [vmem:[%s2 + $0x38] sm:$0xf] %vm3306, %v3256
    %3322 = vst.msk [vmem:[%s2 + $0x3c] sm:$0xf] %vm3306, %v3257
    %3323 = vst.msk [vmem:[%s2 + $0x40] sm:$0xf] %vm3306, %v3258
    %3324 = vst.msk [vmem:[%s2 + $0x44] sm:$0xf] %vm3306, %v3259
    %3325 = vst.msk [vmem:[%s2 + $0x48] sm:$0xf] %vm3306, %v3260
    %3326 = vst.msk [vmem:[%s2 + $0x4c] sm:$0xf] %vm3306, %v3261
    %3327 = vst.msk [vmem:[%s2 + $0x50] sm:$0xf] %vm3306, %v3262
    %3328 = vst.msk [vmem:[%s2 + $0x54] sm:$0xf] %vm3306, %v3263
    %3329 = vst.msk [vmem:[%s2 + $0x58] sm:$0xf] %vm3306, %v3264
    %3330 = vst.msk [vmem:[%s2 + $0x5c] sm:$0xf] %vm3306, %v3265
    %3331 = vst.msk [vmem:[%s2 + $0x60] sm:$0xf] %vm3306, %v3266
    %3332 = vst.msk [vmem:[%s2 + $0x64] sm:$0xf] %vm3306, %v3267
    %3333 = vst.msk [vmem:[%s2 + $0x68] sm:$0xf] %vm3306, %v3268
    %3334 = vst.msk [vmem:[%s2 + $0x6c] sm:$0xf] %vm3306, %v3269
    %3335 = vst.msk [vmem:[%s2 + $0x70] sm:$0xf] %vm3306, %v3270
    %3336 = vst.msk [vmem:[%s2 + $0x74] sm:$0xf] %vm3306, %v3271
    %3337 = vst.msk [vmem:[%s2 + $0x78] sm:$0xf] %vm3306, %v3272
    %3338 = vst.msk [vmem:[%s2 + $0x7c] sm:$0xf] %vm3306, %v3273
    %v3339 = vsel %vm165, %v3146, 0.0
    %v3340 = vsel %vm165, %v3147, 0.0
    %v3341 = vadd.f32 %v3339, %v3340
    %v3342 = vsel %vm165, %v3148, 0.0
    %v3343 = vadd.f32 %v3341, %v3342
    %v3344 = vsel %vm165, %v3149, 0.0
    %v3345 = vadd.f32 %v3343, %v3344
    %v3346 = vsel %vm165, %v3150, 0.0
    %v3347 = vadd.f32 %v3345, %v3346
    %v3348 = vsel %vm165, %v3151, 0.0
    %v3349 = vadd.f32 %v3347, %v3348
    %v3350 = vsel %vm165, %v3152, 0.0
    %v3351 = vadd.f32 %v3349, %v3350
    %v3352 = vsel %vm165, %v3153, 0.0
    %v3353 = vadd.f32 %v3351, %v3352
    %v3354 = vsel %vm165, %v3154, 0.0
    %v3355 = vadd.f32 %v3353, %v3354
    %v3356 = vsel %vm165, %v3155, 0.0
    %v3357 = vadd.f32 %v3355, %v3356
    %v3358 = vsel %vm165, %v3156, 0.0
    %v3359 = vadd.f32 %v3357, %v3358
    %v3360 = vsel %vm165, %v3157, 0.0
    %v3361 = vadd.f32 %v3359, %v3360
    %v3362 = vsel %vm165, %v3158, 0.0
    %v3363 = vadd.f32 %v3361, %v3362
    %v3364 = vsel %vm165, %v3159, 0.0
    %v3365 = vadd.f32 %v3363, %v3364
    %v3366 = vsel %vm165, %v3160, 0.0
    %v3367 = vadd.f32 %v3365, %v3366
    %v3368 = vsel %vm165, %v3161, 0.0
    %v3369 = vadd.f32 %v3367, %v3368
    %v3370 = vsel %vm165, %v3162, 0.0
    %v3371 = vadd.f32 %v3369, %v3370
    %v3372 = vsel %vm165, %v3163, 0.0
    %v3373 = vadd.f32 %v3371, %v3372
    %v3374 = vsel %vm165, %v3164, 0.0
    %v3375 = vadd.f32 %v3373, %v3374
    %v3376 = vsel %vm165, %v3165, 0.0
    %v3377 = vadd.f32 %v3375, %v3376
    %v3378 = vsel %vm165, %v3166, 0.0
    %v3379 = vadd.f32 %v3377, %v3378
    %v3380 = vsel %vm165, %v3167, 0.0
    %v3381 = vadd.f32 %v3379, %v3380
    %v3382 = vsel %vm165, %v3168, 0.0
    %v3383 = vadd.f32 %v3381, %v3382
    %v3384 = vsel %vm165, %v3169, 0.0
    %v3385 = vadd.f32 %v3383, %v3384
    %v3386 = vsel %vm165, %v3170, 0.0
    %v3387 = vadd.f32 %v3385, %v3386
    %v3388 = vsel %vm165, %v3171, 0.0
    %v3389 = vadd.f32 %v3387, %v3388
    %v3390 = vsel %vm165, %v3172, 0.0
    %v3391 = vadd.f32 %v3389, %v3390
    %v3392 = vsel %vm165, %v3173, 0.0
    %v3393 = vadd.f32 %v3391, %v3392
    %v3394 = vsel %vm165, %v3174, 0.0
    %v3395 = vadd.f32 %v3393, %v3394
    %v3396 = vsel %vm165, %v3175, 0.0
    %v3397 = vadd.f32 %v3395, %v3396
    %v3398 = vsel %vm165, %v3176, 0.0
    %v3399 = vadd.f32 %v3397, %v3398
    %v3400 = vsel %vm165, %v3177, 0.0
    %v3401 = vadd.f32 %v3399, %v3400
    %v3402 = vrot.slane %v3401, 4
    %v3403 = vadd.f32 %v3401, %v3402
    %v3404 = vrot.slane %v3403, 2
    %v3405 = vadd.f32 %v3403, %v3404
    %v3406 = vrot.slane %v3405, 1
    %v3407 = vadd.f32 %v3405, %v3406
    %v3408 = vadd.f32 %v3407, 0.0
    %v3409 = vmul.f32 %v3146, %v3146
    %v3410 = vmul.f32 %v3147, %v3147
    %v3411 = vmul.f32 %v3148, %v3148
    %v3412 = vmul.f32 %v3149, %v3149
    %v3413 = vmul.f32 %v3150, %v3150
    %v3414 = vmul.f32 %v3151, %v3151
    %v3415 = vmul.f32 %v3152, %v3152
    %v3416 = vmul.f32 %v3153, %v3153
    %v3417 = vmul.f32 %v3154, %v3154
    %v3418 = vmul.f32 %v3155, %v3155
    %v3419 = vmul.f32 %v3156, %v3156
    %v3420 = vmul.f32 %v3157, %v3157
    %v3421 = vmul.f32 %v3158, %v3158
    %v3422 = vmul.f32 %v3159, %v3159
    %v3423 = vmul.f32 %v3160, %v3160
    %v3424 = vmul.f32 %v3161, %v3161
    %v3425 = vmul.f32 %v3162, %v3162
    %v3426 = vmul.f32 %v3163, %v3163
    %v3427 = vmul.f32 %v3164, %v3164
    %v3428 = vmul.f32 %v3165, %v3165
    %v3429 = vmul.f32 %v3166, %v3166
    %v3430 = vmul.f32 %v3167, %v3167
    %v3431 = vmul.f32 %v3168, %v3168
    %v3432 = vmul.f32 %v3169, %v3169
    %v3433 = vmul.f32 %v3170, %v3170
    %v3434 = vmul.f32 %v3171, %v3171
    %v3435 = vmul.f32 %v3172, %v3172
    %v3436 = vmul.f32 %v3173, %v3173
    %v3437 = vmul.f32 %v3174, %v3174
    %v3438 = vmul.f32 %v3175, %v3175
    %v3439 = vmul.f32 %v3176, %v3176
    %v3440 = vmul.f32 %v3177, %v3177
    %v3441 = vsel %vm165, %v3409, 0.0
    %v3442 = vsel %vm165, %v3410, 0.0
    %v3443 = vadd.f32 %v3441, %v3442
    %v3444 = vsel %vm165, %v3411, 0.0
    %v3445 = vadd.f32 %v3443, %v3444
    %v3446 = vsel %vm165, %v3412, 0.0
    %v3447 = vadd.f32 %v3445, %v3446
    %v3448 = vsel %vm165, %v3413, 0.0
    %v3449 = vadd.f32 %v3447, %v3448
    %v3450 = vsel %vm165, %v3414, 0.0
    %v3451 = vadd.f32 %v3449, %v3450
    %v3452 = vsel %vm165, %v3415, 0.0
    %v3453 = vadd.f32 %v3451, %v3452
    %v3454 = vsel %vm165, %v3416, 0.0
    %v3455 = vadd.f32 %v3453, %v3454
    %v3456 = vsel %vm165, %v3417, 0.0
    %v3457 = vadd.f32 %v3455, %v3456
    %v3458 = vsel %vm165, %v3418, 0.0
    %v3459 = vadd.f32 %v3457, %v3458
    %v3460 = vsel %vm165, %v3419, 0.0
    %v3461 = vadd.f32 %v3459, %v3460
    %v3462 = vsel %vm165, %v3420, 0.0
    %v3463 = vadd.f32 %v3461, %v3462
    %v3464 = vsel %vm165, %v3421, 0.0
    %v3465 = vadd.f32 %v3463, %v3464
    %v3466 = vsel %vm165, %v3422, 0.0
    %v3467 = vadd.f32 %v3465, %v3466
    %v3468 = vsel %vm165, %v3423, 0.0
    %v3469 = vadd.f32 %v3467, %v3468
    %v3470 = vsel %vm165, %v3424, 0.0
    %v3471 = vadd.f32 %v3469, %v3470
    %v3472 = vsel %vm165, %v3425, 0.0
    %v3473 = vadd.f32 %v3471, %v3472
    %v3474 = vsel %vm165, %v3426, 0.0
    %v3475 = vadd.f32 %v3473, %v3474
    %v3476 = vsel %vm165, %v3427, 0.0
    %v3477 = vadd.f32 %v3475, %v3476
    %v3478 = vsel %vm165, %v3428, 0.0
    %v3479 = vadd.f32 %v3477, %v3478
    %v3480 = vsel %vm165, %v3429, 0.0
    %v3481 = vadd.f32 %v3479, %v3480
    %v3482 = vsel %vm165, %v3430, 0.0
    %v3483 = vadd.f32 %v3481, %v3482
    %v3484 = vsel %vm165, %v3431, 0.0
    %v3485 = vadd.f32 %v3483, %v3484
    %v3486 = vsel %vm165, %v3432, 0.0
    %v3487 = vadd.f32 %v3485, %v3486
    %v3488 = vsel %vm165, %v3433, 0.0
    %v3489 = vadd.f32 %v3487, %v3488
    %v3490 = vsel %vm165, %v3434, 0.0
    %v3491 = vadd.f32 %v3489, %v3490
    %v3492 = vsel %vm165, %v3435, 0.0
    %v3493 = vadd.f32 %v3491, %v3492
    %v3494 = vsel %vm165, %v3436, 0.0
    %v3495 = vadd.f32 %v3493, %v3494
    %v3496 = vsel %vm165, %v3437, 0.0
    %v3497 = vadd.f32 %v3495, %v3496
    %v3498 = vsel %vm165, %v3438, 0.0
    %v3499 = vadd.f32 %v3497, %v3498
    %v3500 = vsel %vm165, %v3439, 0.0
    %v3501 = vadd.f32 %v3499, %v3500
    %v3502 = vsel %vm165, %v3440, 0.0
    %v3503 = vadd.f32 %v3501, %v3502
    %v3504 = vrot.slane %v3503, 4
    %v3505 = vadd.f32 %v3503, %v3504
    %v3506 = vrot.slane %v3505, 2
    %v3507 = vadd.f32 %v3505, %v3506
    %v3508 = vrot.slane %v3507, 1
    %v3509 = vadd.f32 %v3507, %v3508
    %v3510 = vadd.f32 %v3509, 0.0
    %s3511 = scalar_lea.vmem %s0, 144
    %v3512 = vld [vmem:[%s3511] sm:$0xf]
    %v3513 = vld [vmem:[%s3511 + $0x4] sm:$0xf]
    %v3514 = vld [vmem:[%s3511 + $0x8] sm:$0xf]
    %v3515 = vld [vmem:[%s3511 + $0xc] sm:$0xf]
    %v3516 = vld [vmem:[%s3511 + $0x10] sm:$0xf]
    %v3517 = vld [vmem:[%s3511 + $0x14] sm:$0xf]
    %v3518 = vld [vmem:[%s3511 + $0x18] sm:$0xf]
    %v3519 = vld [vmem:[%s3511 + $0x1c] sm:$0xf]
    %v3520 = vld [vmem:[%s3511 + $0x20] sm:$0xf]
    %v3521 = vld [vmem:[%s3511 + $0x24] sm:$0xf]
    %v3522 = vld [vmem:[%s3511 + $0x28] sm:$0xf]
    %v3523 = vld [vmem:[%s3511 + $0x2c] sm:$0xf]
    %v3524 = vld [vmem:[%s3511 + $0x30] sm:$0xf]
    %v3525 = vld [vmem:[%s3511 + $0x34] sm:$0xf]
    %v3526 = vld [vmem:[%s3511 + $0x38] sm:$0xf]
    %v3527 = vld [vmem:[%s3511 + $0x3c] sm:$0xf]
    %v3528 = vld [vmem:[%s3511 + $0x40] sm:$0xf]
    %v3529 = vld [vmem:[%s3511 + $0x44] sm:$0xf]
    %v3530 = vld [vmem:[%s3511 + $0x48] sm:$0xf]
    %v3531 = vld [vmem:[%s3511 + $0x4c] sm:$0xf]
    %v3532 = vld [vmem:[%s3511 + $0x50] sm:$0xf]
    %v3533 = vld [vmem:[%s3511 + $0x54] sm:$0xf]
    %v3534 = vld [vmem:[%s3511 + $0x58] sm:$0xf]
    %v3535 = vld [vmem:[%s3511 + $0x5c] sm:$0xf]
    %v3536 = vld [vmem:[%s3511 + $0x60] sm:$0xf]
    %v3537 = vld [vmem:[%s3511 + $0x64] sm:$0xf]
    %v3538 = vld [vmem:[%s3511 + $0x68] sm:$0xf]
    %v3539 = vld [vmem:[%s3511 + $0x6c] sm:$0xf]
    %v3540 = vld [vmem:[%s3511 + $0x70] sm:$0xf]
    %v3541 = vld [vmem:[%s3511 + $0x74] sm:$0xf]
    %v3542 = vld [vmem:[%s3511 + $0x78] sm:$0xf]
    %v3543 = vld [vmem:[%s3511 + $0x7c] sm:$0xf]
    %v3544 = vld [vmem:[%s1] sm:$0x3]
    %s3545 = scalar_lea.vmem %s0, 432
    %v3546 = vld [vmem:[%s3545] sm:$0xf]
    %v3547 = vld [vmem:[%s3545 + $0x4] sm:$0xf]
    %v3548 = vld [vmem:[%s3545 + $0x8] sm:$0xf]
    %v3549 = vld [vmem:[%s3545 + $0xc] sm:$0xf]
    %v3550 = vld [vmem:[%s3545 + $0x10] sm:$0xf]
    %v3551 = vld [vmem:[%s3545 + $0x14] sm:$0xf]
    %v3552 = vld [vmem:[%s3545 + $0x18] sm:$0xf]
    %v3553 = vld [vmem:[%s3545 + $0x1c] sm:$0xf]
    %v3554 = vld [vmem:[%s3545 + $0x20] sm:$0xf]
    %v3555 = vld [vmem:[%s3545 + $0x24] sm:$0xf]
    %v3556 = vld [vmem:[%s3545 + $0x28] sm:$0xf]
    %v3557 = vld [vmem:[%s3545 + $0x2c] sm:$0xf]
    %v3558 = vld [vmem:[%s3545 + $0x30] sm:$0xf]
    %v3559 = vld [vmem:[%s3545 + $0x34] sm:$0xf]
    %v3560 = vld [vmem:[%s3545 + $0x38] sm:$0xf]
    %v3561 = vld [vmem:[%s3545 + $0x3c] sm:$0xf]
    %v3562 = vld [vmem:[%s3545 + $0x40] sm:$0xf]
    %v3563 = vld [vmem:[%s3545 + $0x44] sm:$0xf]
    %v3564 = vld [vmem:[%s3545 + $0x48] sm:$0xf]
    %v3565 = vld [vmem:[%s3545 + $0x4c] sm:$0xf]
    %v3566 = vld [vmem:[%s3545 + $0x50] sm:$0xf]
    %v3567 = vld [vmem:[%s3545 + $0x54] sm:$0xf]
    %v3568 = vld [vmem:[%s3545 + $0x58] sm:$0xf]
    %v3569 = vld [vmem:[%s3545 + $0x5c] sm:$0xf]
    %v3570 = vld [vmem:[%s3545 + $0x60] sm:$0xf]
    %v3571 = vld [vmem:[%s3545 + $0x64] sm:$0xf]
    %v3572 = vld [vmem:[%s3545 + $0x68] sm:$0xf]
    %v3573 = vld [vmem:[%s3545 + $0x6c] sm:$0xf]
    %v3574 = vld [vmem:[%s3545 + $0x70] sm:$0xf]
    %v3575 = vld [vmem:[%s3545 + $0x74] sm:$0xf]
    %v3576 = vld [vmem:[%s3545 + $0x78] sm:$0xf]
    %v3577 = vld [vmem:[%s3545 + $0x7c] sm:$0xf]
    %v3578 = vld [vmem:[%s83] sm:$0x3]
    %v3611 = vunpack.c.l.b16 %v3546
    %v3612 = vunpack.c.l.b16 %v3547
    %v3613 = vunpack.c.l.b16 %v3548
    %v3614 = vunpack.c.l.b16 %v3549
    %v3615 = vunpack.c.l.b16 %v3550
    %v3616 = vunpack.c.l.b16 %v3551
    %v3617 = vunpack.c.l.b16 %v3552
    %v3618 = vunpack.c.l.b16 %v3553
    %v3619 = vunpack.c.l.b16 %v3554
    %v3620 = vunpack.c.l.b16 %v3555
    %v3621 = vunpack.c.l.b16 %v3556
    %v3622 = vunpack.c.l.b16 %v3557
    %v3623 = vunpack.c.l.b16 %v3558
    %v3624 = vunpack.c.l.b16 %v3559
    %v3625 = vunpack.c.l.b16 %v3560
    %v3626 = vunpack.c.l.b16 %v3561
    %v3627 = vunpack.c.l.b16 %v3562
    %v3628 = vunpack.c.l.b16 %v3563
    %v3629 = vunpack.c.l.b16 %v3564
    %v3630 = vunpack.c.l.b16 %v3565
    %v3631 = vunpack.c.l.b16 %v3566
    %v3632 = vunpack.c.l.b16 %v3567
    %v3633 = vunpack.c.l.b16 %v3568
    %v3634 = vunpack.c.l.b16 %v3569
    %v3635 = vunpack.c.l.b16 %v3570
    %v3636 = vunpack.c.l.b16 %v3571
    %v3637 = vunpack.c.l.b16 %v3572
    %v3638 = vunpack.c.l.b16 %v3573
    %v3639 = vunpack.c.l.b16 %v3574
    %v3640 = vunpack.c.l.b16 %v3575
    %v3641 = vunpack.c.l.b16 %v3576
    %v3642 = vunpack.c.l.b16 %v3577
    %v3643 = vpack.c.b16 %v3612, %v3611
    %v3644 = vpack.c.b16 %v3614, %v3613
    %v3645 = vpack.c.b16 %v3616, %v3615
    %v3646 = vpack.c.b16 %v3618, %v3617
    %v3647 = vpack.c.b16 %v3620, %v3619
    %v3648 = vpack.c.b16 %v3622, %v3621
    %v3649 = vpack.c.b16 %v3624, %v3623
    %v3650 = vpack.c.b16 %v3626, %v3625
    %v3651 = vpack.c.b16 %v3628, %v3627
    %v3652 = vpack.c.b16 %v3630, %v3629
    %v3653 = vpack.c.b16 %v3632, %v3631
    %v3654 = vpack.c.b16 %v3634, %v3633
    %v3655 = vpack.c.b16 %v3636, %v3635
    %v3656 = vpack.c.b16 %v3638, %v3637
    %v3657 = vpack.c.b16 %v3640, %v3639
    %v3658 = vpack.c.b16 %v3642, %v3641
    %v3660 = vsel %vm165, %v3643, 0
    %v3663 = vsel %vm165, %v3644, 0
    %v3666 = vsel %vm165, %v3645, 0
    %v3669 = vsel %vm165, %v3646, 0
    %v3672 = vsel %vm165, %v3647, 0
    %v3675 = vsel %vm165, %v3648, 0
    %v3678 = vsel %vm165, %v3649, 0
    %v3681 = vsel %vm165, %v3650, 0
    %v3684 = vsel %vm165, %v3651, 0
    %v3687 = vsel %vm165, %v3652, 0
    %v3690 = vsel %vm165, %v3653, 0
    %v3693 = vsel %vm165, %v3654, 0
    %v3696 = vsel %vm165, %v3655, 0
    %v3699 = vsel %vm165, %v3656, 0
    %v3702 = vsel %vm165, %v3657, 0
    %v3705 = vsel %vm165, %v3658, 0
    %v3708 = vsel %vm214, %v3578, 0
    %3710 = vmatprep.subr.bf16.mxu0 0
    %3711 = vmatpush1.bf16.msra.mxu0 %v3708
    %3712 = vmatprep.subr.bf16.mxu0 0
    %3713 = vmatpush1.bf16.msra.mxu0 0
    %3714 = vmatprep.subr.bf16.mxu0 0
    %3715 = vmatpush1.bf16.msra.mxu0 0
    %3716 = vmatprep.subr.bf16.mxu0 0
    %3717 = vmatpush1.bf16.msra.mxu0 0
    %3718 = vmatprep.subr.bf16.mxu0 0
    %3719 = vmatpush1.bf16.msra.mxu0 0
    %3720 = vmatprep.subr.bf16.mxu0 0
    %3721 = vmatpush1.bf16.msra.mxu0 0
    %3722 = vmatprep.subr.bf16.mxu0 0
    %3723 = vmatpush1.bf16.msra.mxu0 0
    %3724 = vmatprep.subr.bf16.mxu0 0
    %3725 = vmatpush1.bf16.msra.mxu0 0
    %3726 = vmatprep.subr.bf16.mxu0 0
    %3727 = vmatpush1.bf16.msra.mxu0 0
    %3728 = vmatprep.subr.bf16.mxu0 0
    %3729 = vmatpush1.bf16.msra.mxu0 0
    %3730 = vmatprep.subr.bf16.mxu0 0
    %3731 = vmatpush1.bf16.msra.mxu0 0
    %3732 = vmatprep.subr.bf16.mxu0 0
    %3733 = vmatpush1.bf16.msra.mxu0 0
    %3734 = vmatprep.subr.bf16.mxu0 0
    %3735 = vmatpush1.bf16.msra.mxu0 0
    %3736 = vmatprep.subr.bf16.mxu0 0
    %3737 = vmatpush1.bf16.msra.mxu0 0
    %3738 = vmatprep.subr.bf16.mxu0 0
    %3739 = vmatpush1.bf16.msra.mxu0 0
    %3740 = vmatprep.subr.bf16.mxu0 0
    %3741 = vmatpush1.bf16.msra.mxu0 0
    %3742 = vmatprep.mubr.bf16.mxu0 0
    %3743 = vmatmul.mubr.bf16.gmra.mrb[0].mxu0 %v3660
    %v3744 = vpop.f32.mrb[0].mxu0
    %v3745 = vadd.f32 0.0, %v3744
    %v3746 = vpop.f32.mrb[0].mxu0
    %v3747 = vpop.f32.mrb[0].mxu0
    %v3748 = vadd.f32 0.0, %v3747
    %v3749 = vpop.f32.mrb[0].mxu0
    %3750 = vmatprep.mubr.bf16.mxu0 0
    %3751 = vmatmul.mubr.bf16.gmra.mrb[0].mxu0 %v3663
    %v3752 = vpop.f32.mrb[0].mxu0
    %v3753 = vadd.f32 0.0, %v3752
    %v3754 = vpop.f32.mrb[0].mxu0
    %v3755 = vpop.f32.mrb[0].mxu0
    %v3756 = vadd.f32 0.0, %v3755
    %v3757 = vpop.f32.mrb[0].mxu0
    %3758 = vmatprep.mubr.bf16.mxu0 0
    %3759 = vmatmul.mubr.bf16.gmra.mrb[0].mxu0 %v3666
    %v3760 = vpop.f32.mrb[0].mxu0
    %v3761 = vadd.f32 0.0, %v3760
    %v3762 = vpop.f32.mrb[0].mxu0
    %v3763 = vpop.f32.mrb[0].mxu0
    %v3764 = vadd.f32 0.0, %v3763
    %v3765 = vpop.f32.mrb[0].mxu0
    %3766 = vmatprep.mubr.bf16.mxu0 0
    %3767 = vmatmul.mubr.bf16.gmra.mrb[0].mxu0 %v3669
    %v3768 = vpop.f32.mrb[0].mxu0
    %v3769 = vadd.f32 0.0, %v3768
    %v3770 = vpop.f32.mrb[0].mxu0
    %v3771 = vpop.f32.mrb[0].mxu0
    %v3772 = vadd.f32 0.0, %v3771
    %v3773 = vpop.f32.mrb[0].mxu0
    %3774 = vmatprep.mubr.bf16.mxu0 0
    %3775 = vmatmul.mubr.bf16.gmra.mrb[0].mxu0 %v3672
    %v3776 = vpop.f32.mrb[0].mxu0
    %v3777 = vadd.f32 0.0, %v3776
    %v3778 = vpop.f32.mrb[0].mxu0
    %v3779 = vpop.f32.mrb[0].mxu0
    %v3780 = vadd.f32 0.0, %v3779
    %v3781 = vpop.f32.mrb[0].mxu0
    %3782 = vmatprep.mubr.bf16.mxu0 0
    %3783 = vmatmul.mubr.bf16.gmra.mrb[0].mxu0 %v3675
    %v3784 = vpop.f32.mrb[0].mxu0
    %v3785 = vadd.f32 0.0, %v3784
    %v3786 = vpop.f32.mrb[0].mxu0
    %v3787 = vpop.f32.mrb[0].mxu0
    %v3788 = vadd.f32 0.0, %v3787
    %v3789 = vpop.f32.mrb[0].mxu0
    %3790 = vmatprep.mubr.bf16.mxu0 0
    %3791 = vmatmul.mubr.bf16.gmra.mrb[0].mxu0 %v3678
    %v3792 = vpop.f32.mrb[0].mxu0
    %v3793 = vadd.f32 0.0, %v3792
    %v3794 = vpop.f32.mrb[0].mxu0
    %v3795 = vpop.f32.mrb[0].mxu0
    %v3796 = vadd.f32 0.0, %v3795
    %v3797 = vpop.f32.mrb[0].mxu0
    %3798 = vmatprep.mubr.bf16.mxu0 0
    %3799 = vmatmul.mubr.bf16.gmra.mrb[0].mxu0 %v3681
    %v3800 = vpop.f32.mrb[0].mxu0
    %v3801 = vadd.f32 0.0, %v3800
    %v3802 = vpop.f32.mrb[0].mxu0
    %v3803 = vpop.f32.mrb[0].mxu0
    %v3804 = vadd.f32 0.0, %v3803
    %v3805 = vpop.f32.mrb[0].mxu0
    %3806 = vmatprep.mubr.bf16.mxu0 0
    %3807 = vmatmul.mubr.bf16.gmra.mrb[0].mxu0 %v3684
    %v3808 = vpop.f32.mrb[0].mxu0
    %v3809 = vadd.f32 0.0, %v3808
    %v3810 = vpop.f32.mrb[0].mxu0
    %v3811 = vpop.f32.mrb[0].mxu0
    %v3812 = vadd.f32 0.0, %v3811
    %v3813 = vpop.f32.mrb[0].mxu0
    %3814 = vmatprep.mubr.bf16.mxu0 0
    %3815 = vmatmul.mubr.bf16.gmra.mrb[0].mxu0 %v3687
    %v3816 = vpop.f32.mrb[0].mxu0
    %v3817 = vadd.f32 0.0, %v3816
    %v3818 = vpop.f32.mrb[0].mxu0
    %v3819 = vpop.f32.mrb[0].mxu0
    %v3820 = vadd.f32 0.0, %v3819
    %v3821 = vpop.f32.mrb[0].mxu0
    %3822 = vmatprep.mubr.bf16.mxu0 0
    %3823 = vmatmul.mubr.bf16.gmra.mrb[0].mxu0 %v3690
    %v3824 = vpop.f32.mrb[0].mxu0
    %v3825 = vadd.f32 0.0, %v3824
    %v3826 = vpop.f32.mrb[0].mxu0
    %v3827 = vpop.f32.mrb[0].mxu0
    %v3828 = vadd.f32 0.0, %v3827
    %v3829 = vpop.f32.mrb[0].mxu0
    %3830 = vmatprep.mubr.bf16.mxu0 0
    %3831 = vmatmul.mubr.bf16.gmra.mrb[0].mxu0 %v3693
    %v3832 = vpop.f32.mrb[0].mxu0
    %v3833 = vadd.f32 0.0, %v3832
    %v3834 = vpop.f32.mrb[0].mxu0
    %v3835 = vpop.f32.mrb[0].mxu0
    %v3836 = vadd.f32 0.0, %v3835
    %v3837 = vpop.f32.mrb[0].mxu0
    %3838 = vmatprep.mubr.bf16.mxu0 0
    %3839 = vmatmul.mubr.bf16.gmra.mrb[0].mxu0 %v3696
    %v3840 = vpop.f32.mrb[0].mxu0
    %v3841 = vadd.f32 0.0, %v3840
    %v3842 = vpop.f32.mrb[0].mxu0
    %v3843 = vpop.f32.mrb[0].mxu0
    %v3844 = vadd.f32 0.0, %v3843
    %v3845 = vpop.f32.mrb[0].mxu0
    %3846 = vmatprep.mubr.bf16.mxu0 0
    %3847 = vmatmul.mubr.bf16.gmra.mrb[0].mxu0 %v3699
    %v3848 = vpop.f32.mrb[0].mxu0
    %v3849 = vadd.f32 0.0, %v3848
    %v3850 = vpop.f32.mrb[0].mxu0
    %v3851 = vpop.f32.mrb[0].mxu0
    %v3852 = vadd.f32 0.0, %v3851
    %v3853 = vpop.f32.mrb[0].mxu0
    %3854 = vmatprep.mubr.bf16.mxu0 0
    %3855 = vmatmul.mubr.bf16.gmra.mrb[0].mxu0 %v3702
    %v3856 = vpop.f32.mrb[0].mxu0
    %v3857 = vadd.f32 0.0, %v3856
    %v3858 = vpop.f32.mrb[0].mxu0
    %v3859 = vpop.f32.mrb[0].mxu0
    %v3860 = vadd.f32 0.0, %v3859
    %v3861 = vpop.f32.mrb[0].mxu0
    %3862 = vmatprep.mubr.bf16.mxu0 0
    %3863 = vmatmul.mubr.bf16.gmra.mrb[0].mxu0 %v3705
    %v3864 = vpop.f32.mrb[0].mxu0
    %v3865 = vadd.f32 0.0, %v3864
    %v3866 = vpop.f32.mrb[0].mxu0
    %v3867 = vpop.f32.mrb[0].mxu0
    %v3868 = vadd.f32 0.0, %v3867
    %v3869 = vpop.f32.mrb[0].mxu0
    %3870 = vdwg.mxu0
    %v3903 = vunpack.c.l.b16 %v3512
    %v3904 = vunpack.c.l.b16 %v3513
    %v3905 = vunpack.c.l.b16 %v3514
    %v3906 = vunpack.c.l.b16 %v3515
    %v3907 = vunpack.c.l.b16 %v3516
    %v3908 = vunpack.c.l.b16 %v3517
    %v3909 = vunpack.c.l.b16 %v3518
    %v3910 = vunpack.c.l.b16 %v3519
    %v3911 = vunpack.c.l.b16 %v3520
    %v3912 = vunpack.c.l.b16 %v3521
    %v3913 = vunpack.c.l.b16 %v3522
    %v3914 = vunpack.c.l.b16 %v3523
    %v3915 = vunpack.c.l.b16 %v3524
    %v3916 = vunpack.c.l.b16 %v3525
    %v3917 = vunpack.c.l.b16 %v3526
    %v3918 = vunpack.c.l.b16 %v3527
    %v3919 = vunpack.c.l.b16 %v3528
    %v3920 = vunpack.c.l.b16 %v3529
    %v3921 = vunpack.c.l.b16 %v3530
    %v3922 = vunpack.c.l.b16 %v3531
    %v3923 = vunpack.c.l.b16 %v3532
    %v3924 = vunpack.c.l.b16 %v3533
    %v3925 = vunpack.c.l.b16 %v3534
    %v3926 = vunpack.c.l.b16 %v3535
    %v3927 = vunpack.c.l.b16 %v3536
    %v3928 = vunpack.c.l.b16 %v3537
    %v3929 = vunpack.c.l.b16 %v3538
    %v3930 = vunpack.c.l.b16 %v3539
    %v3931 = vunpack.c.l.b16 %v3540
    %v3932 = vunpack.c.l.b16 %v3541
    %v3933 = vunpack.c.l.b16 %v3542
    %v3934 = vunpack.c.l.b16 %v3543
    %v3935 = vpack.c.b16 %v3904, %v3903
    %v3936 = vpack.c.b16 %v3906, %v3905
    %v3937 = vpack.c.b16 %v3908, %v3907
    %v3938 = vpack.c.b16 %v3910, %v3909
    %v3939 = vpack.c.b16 %v3912, %v3911
    %v3940 = vpack.c.b16 %v3914, %v3913
    %v3941 = vpack.c.b16 %v3916, %v3915
    %v3942 = vpack.c.b16 %v3918, %v3917
    %v3943 = vpack.c.b16 %v3920, %v3919
    %v3944 = vpack.c.b16 %v3922, %v3921
    %v3945 = vpack.c.b16 %v3924, %v3923
    %v3946 = vpack.c.b16 %v3926, %v3925
    %v3947 = vpack.c.b16 %v3928, %v3927
    %v3948 = vpack.c.b16 %v3930, %v3929
    %v3949 = vpack.c.b16 %v3932, %v3931
    %v3950 = vpack.c.b16 %v3934, %v3933
    %v3952 = vsel %vm165, %v3935, 0
    %v3955 = vsel %vm165, %v3936, 0
    %v3958 = vsel %vm165, %v3937, 0
    %v3961 = vsel %vm165, %v3938, 0
    %v3964 = vsel %vm165, %v3939, 0
    %v3967 = vsel %vm165, %v3940, 0
    %v3970 = vsel %vm165, %v3941, 0
    %v3973 = vsel %vm165, %v3942, 0
    %v3976 = vsel %vm165, %v3943, 0
    %v3979 = vsel %vm165, %v3944, 0
    %v3982 = vsel %vm165, %v3945, 0
    %v3985 = vsel %vm165, %v3946, 0
    %v3988 = vsel %vm165, %v3947, 0
    %v3991 = vsel %vm165, %v3948, 0
    %v3994 = vsel %vm165, %v3949, 0
    %v3997 = vsel %vm165, %v3950, 0
    %v4000 = vsel %vm214, %v3544, 0
    %4002 = vmatprep.subr.bf16.mxu0 0
    %4003 = vmatpush1.bf16.msra.mxu0 %v4000
    %4004 = vmatprep.subr.bf16.mxu0 0
    %4005 = vmatpush1.bf16.msra.mxu0 0
    %4006 = vmatprep.subr.bf16.mxu0 0
    %4007 = vmatpush1.bf16.msra.mxu0 0
    %4008 = vmatprep.subr.bf16.mxu0 0
    %4009 = vmatpush1.bf16.msra.mxu0 0
    %4010 = vmatprep.subr.bf16.mxu0 0
    %4011 = vmatpush1.bf16.msra.mxu0 0
    %4012 = vmatprep.subr.bf16.mxu0 0
    %4013 = vmatpush1.bf16.msra.mxu0 0
    %4014 = vmatprep.subr.bf16.mxu0 0
    %4015 = vmatpush1.bf16.msra.mxu0 0
    %4016 = vmatprep.subr.bf16.mxu0 0
    %4017 = vmatpush1.bf16.msra.mxu0 0
    %4018 = vmatprep.subr.bf16.mxu0 0
    %4019 = vmatpush1.bf16.msra.mxu0 0
    %4020 = vmatprep.subr.bf16.mxu0 0
    %4021 = vmatpush1.bf16.msra.mxu0 0
    %4022 = vmatprep.subr.bf16.mxu0 0
    %4023 = vmatpush1.bf16.msra.mxu0 0
    %4024 = vmatprep.subr.bf16.mxu0 0
    %4025 = vmatpush1.bf16.msra.mxu0 0
    %4026 = vmatprep.subr.bf16.mxu0 0
    %4027 = vmatpush1.bf16.msra.mxu0 0
    %4028 = vmatprep.subr.bf16.mxu0 0
    %4029 = vmatpush1.bf16.msra.mxu0 0
    %4030 = vmatprep.subr.bf16.mxu0 0
    %4031 = vmatpush1.bf16.msra.mxu0 0
    %4032 = vmatprep.subr.bf16.mxu0 0
    %4033 = vmatpush1.bf16.msra.mxu0 0
    %4034 = vmatprep.mubr.bf16.mxu0 0
    %4035 = vmatmul.mubr.bf16.gmra.mrb[0].mxu0 %v3952
    %v4036 = vpop.f32.mrb[0].mxu0
    %v4037 = vadd.f32 %v3745, %v4036
    %v4038 = vpop.f32.mrb[0].mxu0
    %v4039 = vpop.f32.mrb[0].mxu0
    %v4040 = vadd.f32 %v3748, %v4039
    %v4041 = vpop.f32.mrb[0].mxu0
    %4042 = vmatprep.mubr.bf16.mxu0 0
    %4043 = vmatmul.mubr.bf16.gmra.mrb[0].mxu0 %v3955
    %v4044 = vpop.f32.mrb[0].mxu0
    %v4045 = vadd.f32 %v3753, %v4044
    %v4046 = vpop.f32.mrb[0].mxu0
    %v4047 = vpop.f32.mrb[0].mxu0
    %v4048 = vadd.f32 %v3756, %v4047
    %v4049 = vpop.f32.mrb[0].mxu0
    %4050 = vmatprep.mubr.bf16.mxu0 0
    %4051 = vmatmul.mubr.bf16.gmra.mrb[0].mxu0 %v3958
    %v4052 = vpop.f32.mrb[0].mxu0
    %v4053 = vadd.f32 %v3761, %v4052
    %v4054 = vpop.f32.mrb[0].mxu0
    %v4055 = vpop.f32.mrb[0].mxu0
    %v4056 = vadd.f32 %v3764, %v4055
    %v4057 = vpop.f32.mrb[0].mxu0
    %4058 = vmatprep.mubr.bf16.mxu0 0
    %4059 = vmatmul.mubr.bf16.gmra.mrb[0].mxu0 %v3961
    %v4060 = vpop.f32.mrb[0].mxu0
    %v4061 = vadd.f32 %v3769, %v4060
    %v4062 = vpop.f32.mrb[0].mxu0
    %v4063 = vpop.f32.mrb[0].mxu0
    %v4064 = vadd.f32 %v3772, %v4063
    %v4065 = vpop.f32.mrb[0].mxu0
    %4066 = vmatprep.mubr.bf16.mxu0 0
    %4067 = vmatmul.mubr.bf16.gmra.mrb[0].mxu0 %v3964
    %v4068 = vpop.f32.mrb[0].mxu0
    %v4069 = vadd.f32 %v3777, %v4068
    %v4070 = vpop.f32.mrb[0].mxu0
    %v4071 = vpop.f32.mrb[0].mxu0
    %v4072 = vadd.f32 %v3780, %v4071
    %v4073 = vpop.f32.mrb[0].mxu0
    %4074 = vmatprep.mubr.bf16.mxu0 0
    %4075 = vmatmul.mubr.bf16.gmra.mrb[0].mxu0 %v3967
    %v4076 = vpop.f32.mrb[0].mxu0
    %v4077 = vadd.f32 %v3785, %v4076
    %v4078 = vpop.f32.mrb[0].mxu0
    %v4079 = vpop.f32.mrb[0].mxu0
    %v4080 = vadd.f32 %v3788, %v4079
    %v4081 = vpop.f32.mrb[0].mxu0
    %4082 = vmatprep.mubr.bf16.mxu0 0
    %4083 = vmatmul.mubr.bf16.gmra.mrb[0].mxu0 %v3970
    %v4084 = vpop.f32.mrb[0].mxu0
    %v4085 = vadd.f32 %v3793, %v4084
    %v4086 = vpop.f32.mrb[0].mxu0
    %v4087 = vpop.f32.mrb[0].mxu0
    %v4088 = vadd.f32 %v3796, %v4087
    %v4089 = vpop.f32.mrb[0].mxu0
    %4090 = vmatprep.mubr.bf16.mxu0 0
    %4091 = vmatmul.mubr.bf16.gmra.mrb[0].mxu0 %v3973
    %v4092 = vpop.f32.mrb[0].mxu0
    %v4093 = vadd.f32 %v3801, %v4092
    %v4094 = vpop.f32.mrb[0].mxu0
    %v4095 = vpop.f32.mrb[0].mxu0
    %v4096 = vadd.f32 %v3804, %v4095
    %v4097 = vpop.f32.mrb[0].mxu0
    %4098 = vmatprep.mubr.bf16.mxu0 0
    %4099 = vmatmul.mubr.bf16.gmra.mrb[0].mxu0 %v3976
    %v4100 = vpop.f32.mrb[0].mxu0
    %v4101 = vadd.f32 %v3809, %v4100
    %v4102 = vpop.f32.mrb[0].mxu0
    %v4103 = vpop.f32.mrb[0].mxu0
    %v4104 = vadd.f32 %v3812, %v4103
    %v4105 = vpop.f32.mrb[0].mxu0
    %4106 = vmatprep.mubr.bf16.mxu0 0
    %4107 = vmatmul.mubr.bf16.gmra.mrb[0].mxu0 %v3979
    %v4108 = vpop.f32.mrb[0].mxu0
    %v4109 = vadd.f32 %v3817, %v4108
    %v4110 = vpop.f32.mrb[0].mxu0
    %v4111 = vpop.f32.mrb[0].mxu0
    %v4112 = vadd.f32 %v3820, %v4111
    %v4113 = vpop.f32.mrb[0].mxu0
    %4114 = vmatprep.mubr.bf16.mxu0 0
    %4115 = vmatmul.mubr.bf16.gmra.mrb[0].mxu0 %v3982
    %v4116 = vpop.f32.mrb[0].mxu0
    %v4117 = vadd.f32 %v3825, %v4116
    %v4118 = vpop.f32.mrb[0].mxu0
    %v4119 = vpop.f32.mrb[0].mxu0
    %v4120 = vadd.f32 %v3828, %v4119
    %v4121 = vpop.f32.mrb[0].mxu0
    %4122 = vmatprep.mubr.bf16.mxu0 0
    %4123 = vmatmul.mubr.bf16.gmra.mrb[0].mxu0 %v3985
    %v4124 = vpop.f32.mrb[0].mxu0
    %v4125 = vadd.f32 %v3833, %v4124
    %v4126 = vpop.f32.mrb[0].mxu0
    %v4127 = vpop.f32.mrb[0].mxu0
    %v4128 = vadd.f32 %v3836, %v4127
    %v4129 = vpop.f32.mrb[0].mxu0
    %4130 = vmatprep.mubr.bf16.mxu0 0
    %4131 = vmatmul.mubr.bf16.gmra.mrb[0].mxu0 %v3988
    %v4132 = vpop.f32.mrb[0].mxu0
    %v4133 = vadd.f32 %v3841, %v4132
    %v4134 = vpop.f32.mrb[0].mxu0
    %v4135 = vpop.f32.mrb[0].mxu0
    %v4136 = vadd.f32 %v3844, %v4135
    %v4137 = vpop.f32.mrb[0].mxu0
    %4138 = vmatprep.mubr.bf16.mxu0 0
    %4139 = vmatmul.mubr.bf16.gmra.mrb[0].mxu0 %v3991
    %v4140 = vpop.f32.mrb[0].mxu0
    %v4141 = vadd.f32 %v3849, %v4140
    %v4142 = vpop.f32.mrb[0].mxu0
    %v4143 = vpop.f32.mrb[0].mxu0
    %v4144 = vadd.f32 %v3852, %v4143
    %v4145 = vpop.f32.mrb[0].mxu0
    %4146 = vmatprep.mubr.bf16.mxu0 0
    %4147 = vmatmul.mubr.bf16.gmra.mrb[0].mxu0 %v3994
    %v4148 = vpop.f32.mrb[0].mxu0
    %v4149 = vadd.f32 %v3857, %v4148
    %v4150 = vpop.f32.mrb[0].mxu0
    %v4151 = vpop.f32.mrb[0].mxu0
    %v4152 = vadd.f32 %v3860, %v4151
    %v4153 = vpop.f32.mrb[0].mxu0
    %4154 = vmatprep.mubr.bf16.mxu0 0
    %4155 = vmatmul.mubr.bf16.gmra.mrb[0].mxu0 %v3997
    %v4156 = vpop.f32.mrb[0].mxu0
    %v4157 = vadd.f32 %v3865, %v4156
    %v4158 = vpop.f32.mrb[0].mxu0
    %v4159 = vpop.f32.mrb[0].mxu0
    %v4160 = vadd.f32 %v3868, %v4159
    %v4161 = vpop.f32.mrb[0].mxu0
    %4162 = vdwg.mxu0
    %s4163 = scalar_lea.vmem %s0, 720
    %v4164 = vld [vmem:[%s4163] sm:$0xf]
    %v4165 = vld [vmem:[%s4163 + $0x4] sm:$0xf]
    %v4166 = vld [vmem:[%s4163 + $0x8] sm:$0xf]
    %v4167 = vld [vmem:[%s4163 + $0xc] sm:$0xf]
    %v4168 = vld [vmem:[%s4163 + $0x10] sm:$0xf]
    %v4169 = vld [vmem:[%s4163 + $0x14] sm:$0xf]
    %v4170 = vld [vmem:[%s4163 + $0x18] sm:$0xf]
    %v4171 = vld [vmem:[%s4163 + $0x1c] sm:$0xf]
    %v4172 = vld [vmem:[%s4163 + $0x20] sm:$0xf]
    %v4173 = vld [vmem:[%s4163 + $0x24] sm:$0xf]
    %v4174 = vld [vmem:[%s4163 + $0x28] sm:$0xf]
    %v4175 = vld [vmem:[%s4163 + $0x2c] sm:$0xf]
    %v4176 = vld [vmem:[%s4163 + $0x30] sm:$0xf]
    %v4177 = vld [vmem:[%s4163 + $0x34] sm:$0xf]
    %v4178 = vld [vmem:[%s4163 + $0x38] sm:$0xf]
    %v4179 = vld [vmem:[%s4163 + $0x3c] sm:$0xf]
    %v4180 = vld [vmem:[%s4163 + $0x40] sm:$0xf]
    %v4181 = vld [vmem:[%s4163 + $0x44] sm:$0xf]
    %v4182 = vld [vmem:[%s4163 + $0x48] sm:$0xf]
    %v4183 = vld [vmem:[%s4163 + $0x4c] sm:$0xf]
    %v4184 = vld [vmem:[%s4163 + $0x50] sm:$0xf]
    %v4185 = vld [vmem:[%s4163 + $0x54] sm:$0xf]
    %v4186 = vld [vmem:[%s4163 + $0x58] sm:$0xf]
    %v4187 = vld [vmem:[%s4163 + $0x5c] sm:$0xf]
    %v4188 = vld [vmem:[%s4163 + $0x60] sm:$0xf]
    %v4189 = vld [vmem:[%s4163 + $0x64] sm:$0xf]
    %v4190 = vld [vmem:[%s4163 + $0x68] sm:$0xf]
    %v4191 = vld [vmem:[%s4163 + $0x6c] sm:$0xf]
    %v4192 = vld [vmem:[%s4163 + $0x70] sm:$0xf]
    %v4193 = vld [vmem:[%s4163 + $0x74] sm:$0xf]
    %v4194 = vld [vmem:[%s4163 + $0x78] sm:$0xf]
    %v4195 = vld [vmem:[%s4163 + $0x7c] sm:$0xf]
    %v4196 = vld [vmem:[%s704] sm:$0x3]
    %v4229 = vunpack.c.l.b16 %v4164
    %v4230 = vunpack.c.l.b16 %v4165
    %v4231 = vunpack.c.l.b16 %v4166
    %v4232 = vunpack.c.l.b16 %v4167
    %v4233 = vunpack.c.l.b16 %v4168
    %v4234 = vunpack.c.l.b16 %v4169
    %v4235 = vunpack.c.l.b16 %v4170
    %v4236 = vunpack.c.l.b16 %v4171
    %v4237 = vunpack.c.l.b16 %v4172
    %v4238 = vunpack.c.l.b16 %v4173
    %v4239 = vunpack.c.l.b16 %v4174
    %v4240 = vunpack.c.l.b16 %v4175
    %v4241 = vunpack.c.l.b16 %v4176
    %v4242 = vunpack.c.l.b16 %v4177
    %v4243 = vunpack.c.l.b16 %v4178
    %v4244 = vunpack.c.l.b16 %v4179
    %v4245 = vunpack.c.l.b16 %v4180
    %v4246 = vunpack.c.l.b16 %v4181
    %v4247 = vunpack.c.l.b16 %v4182
    %v4248 = vunpack.c.l.b16 %v4183
    %v4249 = vunpack.c.l.b16 %v4184
    %v4250 = vunpack.c.l.b16 %v4185
    %v4251 = vunpack.c.l.b16 %v4186
    %v4252 = vunpack.c.l.b16 %v4187
    %v4253 = vunpack.c.l.b16 %v4188
    %v4254 = vunpack.c.l.b16 %v4189
    %v4255 = vunpack.c.l.b16 %v4190
    %v4256 = vunpack.c.l.b16 %v4191
    %v4257 = vunpack.c.l.b16 %v4192
    %v4258 = vunpack.c.l.b16 %v4193
    %v4259 = vunpack.c.l.b16 %v4194
    %v4260 = vunpack.c.l.b16 %v4195
    %v4261 = vpack.c.b16 %v4230, %v4229
    %v4262 = vpack.c.b16 %v4232, %v4231
    %v4263 = vpack.c.b16 %v4234, %v4233
    %v4264 = vpack.c.b16 %v4236, %v4235
    %v4265 = vpack.c.b16 %v4238, %v4237
    %v4266 = vpack.c.b16 %v4240, %v4239
    %v4267 = vpack.c.b16 %v4242, %v4241
    %v4268 = vpack.c.b16 %v4244, %v4243
    %v4269 = vpack.c.b16 %v4246, %v4245
    %v4270 = vpack.c.b16 %v4248, %v4247
    %v4271 = vpack.c.b16 %v4250, %v4249
    %v4272 = vpack.c.b16 %v4252, %v4251
    %v4273 = vpack.c.b16 %v4254, %v4253
    %v4274 = vpack.c.b16 %v4256, %v4255
    %v4275 = vpack.c.b16 %v4258, %v4257
    %v4276 = vpack.c.b16 %v4260, %v4259
    %v4278 = vsel %vm165, %v4261, 0
    %v4281 = vsel %vm165, %v4262, 0
    %v4284 = vsel %vm165, %v4263, 0
    %v4287 = vsel %vm165, %v4264, 0
    %v4290 = vsel %vm165, %v4265, 0
    %v4293 = vsel %vm165, %v4266, 0
    %v4296 = vsel %vm165, %v4267, 0
    %v4299 = vsel %vm165, %v4268, 0
    %v4302 = vsel %vm165, %v4269, 0
    %v4305 = vsel %vm165, %v4270, 0
    %v4308 = vsel %vm165, %v4271, 0
    %v4311 = vsel %vm165, %v4272, 0
    %v4314 = vsel %vm165, %v4273, 0
    %v4317 = vsel %vm165, %v4274, 0
    %v4320 = vsel %vm165, %v4275, 0
    %v4323 = vsel %vm165, %v4276, 0
    %v4326 = vsel %vm214, %v4196, 0
    %4328 = vmatprep.subr.bf16.mxu0 0
    %4329 = vmatpush1.bf16.msra.mxu0 %v4326
    %4330 = vmatprep.subr.bf16.mxu0 0
    %4331 = vmatpush1.bf16.msra.mxu0 0
    %4332 = vmatprep.subr.bf16.mxu0 0
    %4333 = vmatpush1.bf16.msra.mxu0 0
    %4334 = vmatprep.subr.bf16.mxu0 0
    %4335 = vmatpush1.bf16.msra.mxu0 0
    %4336 = vmatprep.subr.bf16.mxu0 0
    %4337 = vmatpush1.bf16.msra.mxu0 0
    %4338 = vmatprep.subr.bf16.mxu0 0
    %4339 = vmatpush1.bf16.msra.mxu0 0
    %4340 = vmatprep.subr.bf16.mxu0 0
    %4341 = vmatpush1.bf16.msra.mxu0 0
    %4342 = vmatprep.subr.bf16.mxu0 0
    %4343 = vmatpush1.bf16.msra.mxu0 0
    %4344 = vmatprep.subr.bf16.mxu0 0
    %4345 = vmatpush1.bf16.msra.mxu0 0
    %4346 = vmatprep.subr.bf16.mxu0 0
    %4347 = vmatpush1.bf16.msra.mxu0 0
    %4348 = vmatprep.subr.bf16.mxu0 0
    %4349 = vmatpush1.bf16.msra.mxu0 0
    %4350 = vmatprep.subr.bf16.mxu0 0
    %4351 = vmatpush1.bf16.msra.mxu0 0
    %4352 = vmatprep.subr.bf16.mxu0 0
    %4353 = vmatpush1.bf16.msra.mxu0 0
    %4354 = vmatprep.subr.bf16.mxu0 0
    %4355 = vmatpush1.bf16.msra.mxu0 0
    %4356 = vmatprep.subr.bf16.mxu0 0
    %4357 = vmatpush1.bf16.msra.mxu0 0
    %4358 = vmatprep.subr.bf16.mxu0 0
    %4359 = vmatpush1.bf16.msra.mxu0 0
    %4360 = vmatprep.mubr.bf16.mxu0 0
    %4361 = vmatmul.mubr.bf16.gmra.mrb[0].mxu0 %v4278
    %v4362 = vpop.f32.mrb[0].mxu0
    %v4363 = vadd.f32 0.0, %v4362
    %v4364 = vpop.f32.mrb[0].mxu0
    %v4365 = vpop.f32.mrb[0].mxu0
    %v4366 = vadd.f32 0.0, %v4365
    %v4367 = vpop.f32.mrb[0].mxu0
    %4368 = vmatprep.mubr.bf16.mxu0 0
    %4369 = vmatmul.mubr.bf16.gmra.mrb[0].mxu0 %v4281
    %v4370 = vpop.f32.mrb[0].mxu0
    %v4371 = vadd.f32 0.0, %v4370
    %v4372 = vpop.f32.mrb[0].mxu0
    %v4373 = vpop.f32.mrb[0].mxu0
    %v4374 = vadd.f32 0.0, %v4373
    %v4375 = vpop.f32.mrb[0].mxu0
    %4376 = vmatprep.mubr.bf16.mxu0 0
    %4377 = vmatmul.mubr.bf16.gmra.mrb[0].mxu0 %v4284
    %v4378 = vpop.f32.mrb[0].mxu0
    %v4379 = vadd.f32 0.0, %v4378
    %v4380 = vpop.f32.mrb[0].mxu0
    %v4381 = vpop.f32.mrb[0].mxu0
    %v4382 = vadd.f32 0.0, %v4381
    %v4383 = vpop.f32.mrb[0].mxu0
    %4384 = vmatprep.mubr.bf16.mxu0 0
    %4385 = vmatmul.mubr.bf16.gmra.mrb[0].mxu0 %v4287
    %v4386 = vpop.f32.mrb[0].mxu0
    %v4387 = vadd.f32 0.0, %v4386
    %v4388 = vpop.f32.mrb[0].mxu0
    %v4389 = vpop.f32.mrb[0].mxu0
    %v4390 = vadd.f32 0.0, %v4389
    %v4391 = vpop.f32.mrb[0].mxu0
    %4392 = vmatprep.mubr.bf16.mxu0 0
    %4393 = vmatmul.mubr.bf16.gmra.mrb[0].mxu0 %v4290
    %v4394 = vpop.f32.mrb[0].mxu0
    %v4395 = vadd.f32 0.0, %v4394
    %v4396 = vpop.f32.mrb[0].mxu0
    %v4397 = vpop.f32.mrb[0].mxu0
    %v4398 = vadd.f32 0.0, %v4397
    %v4399 = vpop.f32.mrb[0].mxu0
    %4400 = vmatprep.mubr.bf16.mxu0 0
    %4401 = vmatmul.mubr.bf16.gmra.mrb[0].mxu0 %v4293
    %v4402 = vpop.f32.mrb[0].mxu0
    %v4403 = vadd.f32 0.0, %v4402
    %v4404 = vpop.f32.mrb[0].mxu0
    %v4405 = vpop.f32.mrb[0].mxu0
    %v4406 = vadd.f32 0.0, %v4405
    %v4407 = vpop.f32.mrb[0].mxu0
    %4408 = vmatprep.mubr.bf16.mxu0 0
    %4409 = vmatmul.mubr.bf16.gmra.mrb[0].mxu0 %v4296
    %v4410 = vpop.f32.mrb[0].mxu0
    %v4411 = vadd.f32 0.0, %v4410
    %v4412 = vpop.f32.mrb[0].mxu0
    %v4413 = vpop.f32.mrb[0].mxu0
    %v4414 = vadd.f32 0.0, %v4413
    %v4415 = vpop.f32.mrb[0].mxu0
    %4416 = vmatprep.mubr.bf16.mxu0 0
    %4417 = vmatmul.mubr.bf16.gmra.mrb[0].mxu0 %v4299
    %v4418 = vpop.f32.mrb[0].mxu0
    %v4419 = vadd.f32 0.0, %v4418
    %v4420 = vpop.f32.mrb[0].mxu0
    %v4421 = vpop.f32.mrb[0].mxu0
    %v4422 = vadd.f32 0.0, %v4421
    %v4423 = vpop.f32.mrb[0].mxu0
    %4424 = vmatprep.mubr.bf16.mxu0 0
    %4425 = vmatmul.mubr.bf16.gmra.mrb[0].mxu0 %v4302
    %v4426 = vpop.f32.mrb[0].mxu0
    %v4427 = vadd.f32 0.0, %v4426
    %v4428 = vpop.f32.mrb[0].mxu0
    %v4429 = vpop.f32.mrb[0].mxu0
    %v4430 = vadd.f32 0.0, %v4429
    %v4431 = vpop.f32.mrb[0].mxu0
    %4432 = vmatprep.mubr.bf16.mxu0 0
    %4433 = vmatmul.mubr.bf16.gmra.mrb[0].mxu0 %v4305
    %v4434 = vpop.f32.mrb[0].mxu0
    %v4435 = vadd.f32 0.0, %v4434
    %v4436 = vpop.f32.mrb[0].mxu0
    %v4437 = vpop.f32.mrb[0].mxu0
    %v4438 = vadd.f32 0.0, %v4437
    %v4439 = vpop.f32.mrb[0].mxu0
    %4440 = vmatprep.mubr.bf16.mxu0 0
    %4441 = vmatmul.mubr.bf16.gmra.mrb[0].mxu0 %v4308
    %v4442 = vpop.f32.mrb[0].mxu0
    %v4443 = vadd.f32 0.0, %v4442
    %v4444 = vpop.f32.mrb[0].mxu0
    %v4445 = vpop.f32.mrb[0].mxu0
    %v4446 = vadd.f32 0.0, %v4445
    %v4447 = vpop.f32.mrb[0].mxu0
    %4448 = vmatprep.mubr.bf16.mxu0 0
    %4449 = vmatmul.mubr.bf16.gmra.mrb[0].mxu0 %v4311
    %v4450 = vpop.f32.mrb[0].mxu0
    %v4451 = vadd.f32 0.0, %v4450
    %v4452 = vpop.f32.mrb[0].mxu0
    %v4453 = vpop.f32.mrb[0].mxu0
    %v4454 = vadd.f32 0.0, %v4453
    %v4455 = vpop.f32.mrb[0].mxu0
    %4456 = vmatprep.mubr.bf16.mxu0 0
    %4457 = vmatmul.mubr.bf16.gmra.mrb[0].mxu0 %v4314
    %v4458 = vpop.f32.mrb[0].mxu0
    %v4459 = vadd.f32 0.0, %v4458
    %v4460 = vpop.f32.mrb[0].mxu0
    %v4461 = vpop.f32.mrb[0].mxu0
    %v4462 = vadd.f32 0.0, %v4461
    %v4463 = vpop.f32.mrb[0].mxu0
    %4464 = vmatprep.mubr.bf16.mxu0 0
    %4465 = vmatmul.mubr.bf16.gmra.mrb[0].mxu0 %v4317
    %v4466 = vpop.f32.mrb[0].mxu0
    %v4467 = vadd.f32 0.0, %v4466
    %v4468 = vpop.f32.mrb[0].mxu0
    %v4469 = vpop.f32.mrb[0].mxu0
    %v4470 = vadd.f32 0.0, %v4469
    %v4471 = vpop.f32.mrb[0].mxu0
    %4472 = vmatprep.mubr.bf16.mxu0 0
    %4473 = vmatmul.mubr.bf16.gmra.mrb[0].mxu0 %v4320
    %v4474 = vpop.f32.mrb[0].mxu0
    %v4475 = vadd.f32 0.0, %v4474
    %v4476 = vpop.f32.mrb[0].mxu0
    %v4477 = vpop.f32.mrb[0].mxu0
    %v4478 = vadd.f32 0.0, %v4477
    %v4479 = vpop.f32.mrb[0].mxu0
    %4480 = vmatprep.mubr.bf16.mxu0 0
    %4481 = vmatmul.mubr.bf16.gmra.mrb[0].mxu0 %v4323
    %v4482 = vpop.f32.mrb[0].mxu0
    %v4483 = vadd.f32 0.0, %v4482
    %v4484 = vpop.f32.mrb[0].mxu0
    %v4485 = vpop.f32.mrb[0].mxu0
    %v4486 = vadd.f32 0.0, %v4485
    %v4487 = vpop.f32.mrb[0].mxu0
    %4488 = vdwg.mxu0
    %v4489 = vadd.f32 %v4037, %v4363
    %v4490 = vadd.f32 %v4040, %v4366
    %v4491 = vadd.f32 %v4045, %v4371
    %v4492 = vadd.f32 %v4048, %v4374
    %v4493 = vadd.f32 %v4053, %v4379
    %v4494 = vadd.f32 %v4056, %v4382
    %v4495 = vadd.f32 %v4061, %v4387
    %v4496 = vadd.f32 %v4064, %v4390
    %v4497 = vadd.f32 %v4069, %v4395
    %v4498 = vadd.f32 %v4072, %v4398
    %v4499 = vadd.f32 %v4077, %v4403
    %v4500 = vadd.f32 %v4080, %v4406
    %v4501 = vadd.f32 %v4085, %v4411
    %v4502 = vadd.f32 %v4088, %v4414
    %v4503 = vadd.f32 %v4093, %v4419
    %v4504 = vadd.f32 %v4096, %v4422
    %v4505 = vadd.f32 %v4101, %v4427
    %v4506 = vadd.f32 %v4104, %v4430
    %v4507 = vadd.f32 %v4109, %v4435
    %v4508 = vadd.f32 %v4112, %v4438
    %v4509 = vadd.f32 %v4117, %v4443
    %v4510 = vadd.f32 %v4120, %v4446
    %v4511 = vadd.f32 %v4125, %v4451
    %v4512 = vadd.f32 %v4128, %v4454
    %v4513 = vadd.f32 %v4133, %v4459
    %v4514 = vadd.f32 %v4136, %v4462
    %v4515 = vadd.f32 %v4141, %v4467
    %v4516 = vadd.f32 %v4144, %v4470
    %v4517 = vadd.f32 %v4149, %v4475
    %v4518 = vadd.f32 %v4152, %v4478
    %v4519 = vadd.f32 %v4157, %v4483
    %v4520 = vadd.f32 %v4160, %v4486
    %v4521 = vld [vmem:[%s3511 + $0x8] sm:$0xf]
    %v4522 = vld [vmem:[%s3511 + $0xc] sm:$0xf]
    %v4523 = vld [vmem:[%s3511 + $0x10] sm:$0xf]
    %v4524 = vld [vmem:[%s3511 + $0x14] sm:$0xf]
    %v4525 = vld [vmem:[%s3511 + $0x18] sm:$0xf]
    %v4526 = vld [vmem:[%s3511 + $0x1c] sm:$0xf]
    %v4527 = vld [vmem:[%s3511 + $0x20] sm:$0xf]
    %v4528 = vld [vmem:[%s3511 + $0x24] sm:$0xf]
    %v4529 = vld [vmem:[%s3511 + $0x28] sm:$0xf]
    %v4530 = vld [vmem:[%s3511 + $0x2c] sm:$0xf]
    %v4531 = vld [vmem:[%s3511 + $0x30] sm:$0xf]
    %v4532 = vld [vmem:[%s3511 + $0x34] sm:$0xf]
    %v4533 = vld [vmem:[%s3511 + $0x38] sm:$0xf]
    %v4534 = vld [vmem:[%s3511 + $0x3c] sm:$0xf]
    %v4535 = vld [vmem:[%s3511 + $0x40] sm:$0xf]
    %v4536 = vld [vmem:[%s3511 + $0x44] sm:$0xf]
    %v4537 = vld [vmem:[%s3511 + $0x48] sm:$0xf]
    %v4538 = vld [vmem:[%s3511 + $0x4c] sm:$0xf]
    %v4539 = vld [vmem:[%s3511 + $0x50] sm:$0xf]
    %v4540 = vld [vmem:[%s3511 + $0x54] sm:$0xf]
    %v4541 = vld [vmem:[%s3511 + $0x58] sm:$0xf]
    %v4542 = vld [vmem:[%s3511 + $0x5c] sm:$0xf]
    %v4543 = vld [vmem:[%s3511 + $0x60] sm:$0xf]
    %v4544 = vld [vmem:[%s3511 + $0x64] sm:$0xf]
    %v4545 = vld [vmem:[%s3511 + $0x68] sm:$0xf]
    %v4546 = vld [vmem:[%s3511 + $0x6c] sm:$0xf]
    %v4547 = vld [vmem:[%s3511 + $0x70] sm:$0xf]
    %v4548 = vld [vmem:[%s3511 + $0x74] sm:$0xf]
    %v4549 = vld [vmem:[%s3511 + $0x78] sm:$0xf]
    %v4550 = vld [vmem:[%s3511 + $0x7c] sm:$0xf]
    %v4551 = vld [vmem:[%s3511 + $0x80] sm:$0xf]
    %v4552 = vld [vmem:[%s3511 + $0x84] sm:$0xf]
    %v4553 = vld [vmem:[%s1062] sm:$0x3]
    %v4586 = vunpack.c.l.b16 %v4521
    %v4587 = vunpack.c.l.b16 %v4522
    %v4588 = vunpack.c.l.b16 %v4523
    %v4589 = vunpack.c.l.b16 %v4524
    %v4590 = vunpack.c.l.b16 %v4525
    %v4591 = vunpack.c.l.b16 %v4526
    %v4592 = vunpack.c.l.b16 %v4527
    %v4593 = vunpack.c.l.b16 %v4528
    %v4594 = vunpack.c.l.b16 %v4529
    %v4595 = vunpack.c.l.b16 %v4530
    %v4596 = vunpack.c.l.b16 %v4531
    %v4597 = vunpack.c.l.b16 %v4532
    %v4598 = vunpack.c.l.b16 %v4533
    %v4599 = vunpack.c.l.b16 %v4534
    %v4600 = vunpack.c.l.b16 %v4535
    %v4601 = vunpack.c.l.b16 %v4536
    %v4602 = vunpack.c.l.b16 %v4537
    %v4603 = vunpack.c.l.b16 %v4538
    %v4604 = vunpack.c.l.b16 %v4539
    %v4605 = vunpack.c.l.b16 %v4540
    %v4606 = vunpack.c.l.b16 %v4541
    %v4607 = vunpack.c.l.b16 %v4542
    %v4608 = vunpack.c.l.b16 %v4543
    %v4609 = vunpack.c.l.b16 %v4544
    %v4610 = vunpack.c.l.b16 %v4545
    %v4611 = vunpack.c.l.b16 %v4546
    %v4612 = vunpack.c.l.b16 %v4547
    %v4613 = vunpack.c.l.b16 %v4548
    %v4614 = vunpack.c.l.b16 %v4549
    %v4615 = vunpack.c.l.b16 %v4550
    %v4616 = vunpack.c.l.b16 %v4551
    %v4617 = vunpack.c.l.b16 %v4552
    %v4618 = vpack.c.b16 %v4587, %v4586
    %v4619 = vpack.c.b16 %v4589, %v4588
    %v4620 = vpack.c.b16 %v4591, %v4590
    %v4621 = vpack.c.b16 %v4593, %v4592
    %v4622 = vpack.c.b16 %v4595, %v4594
    %v4623 = vpack.c.b16 %v4597, %v4596
    %v4624 = vpack.c.b16 %v4599, %v4598
    %v4625 = vpack.c.b16 %v4601, %v4600
    %v4626 = vpack.c.b16 %v4603, %v4602
    %v4627 = vpack.c.b16 %v4605, %v4604
    %v4628 = vpack.c.b16 %v4607, %v4606
    %v4629 = vpack.c.b16 %v4609, %v4608
    %v4630 = vpack.c.b16 %v4611, %v4610
    %v4631 = vpack.c.b16 %v4613, %v4612
    %v4632 = vpack.c.b16 %v4615, %v4614
    %v4633 = vpack.c.b16 %v4617, %v4616
    %v4635 = vsel %vm165, %v4618, 0
    %v4638 = vsel %vm165, %v4619, 0
    %v4641 = vsel %vm165, %v4620, 0
    %v4644 = vsel %vm165, %v4621, 0
    %v4647 = vsel %vm165, %v4622, 0
    %v4650 = vsel %vm165, %v4623, 0
    %v4653 = vsel %vm165, %v4624, 0
    %v4656 = vsel %vm165, %v4625, 0
    %v4659 = vsel %vm165, %v4626, 0
    %v4662 = vsel %vm165, %v4627, 0
    %v4665 = vsel %vm165, %v4628, 0
    %v4668 = vsel %vm165, %v4629, 0
    %v4671 = vsel %vm165, %v4630, 0
    %v4674 = vsel %vm165, %v4631, 0
    %v4677 = vsel %vm165, %v4632, 0
    %v4680 = vsel %vm165, %v4633, 0
    %v4683 = vsel %vm214, %v4553, 0
    %4685 = vmatprep.subr.bf16.mxu0 0
    %4686 = vmatpush1.bf16.msra.mxu0 %v4683
    %4687 = vmatprep.subr.bf16.mxu0 0
    %4688 = vmatpush1.bf16.msra.mxu0 0
    %4689 = vmatprep.subr.bf16.mxu0 0
    %4690 = vmatpush1.bf16.msra.mxu0 0
    %4691 = vmatprep.subr.bf16.mxu0 0
    %4692 = vmatpush1.bf16.msra.mxu0 0
    %4693 = vmatprep.subr.bf16.mxu0 0
    %4694 = vmatpush1.bf16.msra.mxu0 0
    %4695 = vmatprep.subr.bf16.mxu0 0
    %4696 = vmatpush1.bf16.msra.mxu0 0
    %4697 = vmatprep.subr.bf16.mxu0 0
    %4698 = vmatpush1.bf16.msra.mxu0 0
    %4699 = vmatprep.subr.bf16.mxu0 0
    %4700 = vmatpush1.bf16.msra.mxu0 0
    %4701 = vmatprep.subr.bf16.mxu0 0
    %4702 = vmatpush1.bf16.msra.mxu0 0
    %4703 = vmatprep.subr.bf16.mxu0 0
    %4704 = vmatpush1.bf16.msra.mxu0 0
    %4705 = vmatprep.subr.bf16.mxu0 0
    %4706 = vmatpush1.bf16.msra.mxu0 0
    %4707 = vmatprep.subr.bf16.mxu0 0
    %4708 = vmatpush1.bf16.msra.mxu0 0
    %4709 = vmatprep.subr.bf16.mxu0 0
    %4710 = vmatpush1.bf16.msra.mxu0 0
    %4711 = vmatprep.subr.bf16.mxu0 0
    %4712 = vmatpush1.bf16.msra.mxu0 0
    %4713 = vmatprep.subr.bf16.mxu0 0
    %4714 = vmatpush1.bf16.msra.mxu0 0
    %4715 = vmatprep.subr.bf16.mxu0 0
    %4716 = vmatpush1.bf16.msra.mxu0 0
    %4717 = vmatprep.mubr.bf16.mxu0 0
    %4718 = vmatmul.mubr.bf16.gmra.mrb[0].mxu0 %v4635
    %v4719 = vpop.f32.mrb[0].mxu0
    %v4720 = vadd.f32 0.0, %v4719
    %v4721 = vpop.f32.mrb[0].mxu0
    %v4722 = vpop.f32.mrb[0].mxu0
    %v4723 = vadd.f32 0.0, %v4722
    %v4724 = vpop.f32.mrb[0].mxu0
    %4725 = vmatprep.mubr.bf16.mxu0 0
    %4726 = vmatmul.mubr.bf16.gmra.mrb[0].mxu0 %v4638
    %v4727 = vpop.f32.mrb[0].mxu0
    %v4728 = vadd.f32 0.0, %v4727
    %v4729 = vpop.f32.mrb[0].mxu0
    %v4730 = vpop.f32.mrb[0].mxu0
    %v4731 = vadd.f32 0.0, %v4730
    %v4732 = vpop.f32.mrb[0].mxu0
    %4733 = vmatprep.mubr.bf16.mxu0 0
    %4734 = vmatmul.mubr.bf16.gmra.mrb[0].mxu0 %v4641
    %v4735 = vpop.f32.mrb[0].mxu0
    %v4736 = vadd.f32 0.0, %v4735
    %v4737 = vpop.f32.mrb[0].mxu0
    %v4738 = vpop.f32.mrb[0].mxu0
    %v4739 = vadd.f32 0.0, %v4738
    %v4740 = vpop.f32.mrb[0].mxu0
    %4741 = vmatprep.mubr.bf16.mxu0 0
    %4742 = vmatmul.mubr.bf16.gmra.mrb[0].mxu0 %v4644
    %v4743 = vpop.f32.mrb[0].mxu0
    %v4744 = vadd.f32 0.0, %v4743
    %v4745 = vpop.f32.mrb[0].mxu0
    %v4746 = vpop.f32.mrb[0].mxu0
    %v4747 = vadd.f32 0.0, %v4746
    %v4748 = vpop.f32.mrb[0].mxu0
    %4749 = vmatprep.mubr.bf16.mxu0 0
    %4750 = vmatmul.mubr.bf16.gmra.mrb[0].mxu0 %v4647
    %v4751 = vpop.f32.mrb[0].mxu0
    %v4752 = vadd.f32 0.0, %v4751
    %v4753 = vpop.f32.mrb[0].mxu0
    %v4754 = vpop.f32.mrb[0].mxu0
    %v4755 = vadd.f32 0.0, %v4754
    %v4756 = vpop.f32.mrb[0].mxu0
    %4757 = vmatprep.mubr.bf16.mxu0 0
    %4758 = vmatmul.mubr.bf16.gmra.mrb[0].mxu0 %v4650
    %v4759 = vpop.f32.mrb[0].mxu0
    %v4760 = vadd.f32 0.0, %v4759
    %v4761 = vpop.f32.mrb[0].mxu0
    %v4762 = vpop.f32.mrb[0].mxu0
    %v4763 = vadd.f32 0.0, %v4762
    %v4764 = vpop.f32.mrb[0].mxu0
    %4765 = vmatprep.mubr.bf16.mxu0 0
    %4766 = vmatmul.mubr.bf16.gmra.mrb[0].mxu0 %v4653
    %v4767 = vpop.f32.mrb[0].mxu0
    %v4768 = vadd.f32 0.0, %v4767
    %v4769 = vpop.f32.mrb[0].mxu0
    %v4770 = vpop.f32.mrb[0].mxu0
    %v4771 = vadd.f32 0.0, %v4770
    %v4772 = vpop.f32.mrb[0].mxu0
    %4773 = vmatprep.mubr.bf16.mxu0 0
    %4774 = vmatmul.mubr.bf16.gmra.mrb[0].mxu0 %v4656
    %v4775 = vpop.f32.mrb[0].mxu0
    %v4776 = vadd.f32 0.0, %v4775
    %v4777 = vpop.f32.mrb[0].mxu0
    %v4778 = vpop.f32.mrb[0].mxu0
    %v4779 = vadd.f32 0.0, %v4778
    %v4780 = vpop.f32.mrb[0].mxu0
    %4781 = vmatprep.mubr.bf16.mxu0 0
    %4782 = vmatmul.mubr.bf16.gmra.mrb[0].mxu0 %v4659
    %v4783 = vpop.f32.mrb[0].mxu0
    %v4784 = vadd.f32 0.0, %v4783
    %v4785 = vpop.f32.mrb[0].mxu0
    %v4786 = vpop.f32.mrb[0].mxu0
    %v4787 = vadd.f32 0.0, %v4786
    %v4788 = vpop.f32.mrb[0].mxu0
    %4789 = vmatprep.mubr.bf16.mxu0 0
    %4790 = vmatmul.mubr.bf16.gmra.mrb[0].mxu0 %v4662
    %v4791 = vpop.f32.mrb[0].mxu0
    %v4792 = vadd.f32 0.0, %v4791
    %v4793 = vpop.f32.mrb[0].mxu0
    %v4794 = vpop.f32.mrb[0].mxu0
    %v4795 = vadd.f32 0.0, %v4794
    %v4796 = vpop.f32.mrb[0].mxu0
    %4797 = vmatprep.mubr.bf16.mxu0 0
    %4798 = vmatmul.mubr.bf16.gmra.mrb[0].mxu0 %v4665
    %v4799 = vpop.f32.mrb[0].mxu0
    %v4800 = vadd.f32 0.0, %v4799
    %v4801 = vpop.f32.mrb[0].mxu0
    %v4802 = vpop.f32.mrb[0].mxu0
    %v4803 = vadd.f32 0.0, %v4802
    %v4804 = vpop.f32.mrb[0].mxu0
    %4805 = vmatprep.mubr.bf16.mxu0 0
    %4806 = vmatmul.mubr.bf16.gmra.mrb[0].mxu0 %v4668
    %v4807 = vpop.f32.mrb[0].mxu0
    %v4808 = vadd.f32 0.0, %v4807
    %v4809 = vpop.f32.mrb[0].mxu0
    %v4810 = vpop.f32.mrb[0].mxu0
    %v4811 = vadd.f32 0.0, %v4810
    %v4812 = vpop.f32.mrb[0].mxu0
    %4813 = vmatprep.mubr.bf16.mxu0 0
    %4814 = vmatmul.mubr.bf16.gmra.mrb[0].mxu0 %v4671
    %v4815 = vpop.f32.mrb[0].mxu0
    %v4816 = vadd.f32 0.0, %v4815
    %v4817 = vpop.f32.mrb[0].mxu0
    %v4818 = vpop.f32.mrb[0].mxu0
    %v4819 = vadd.f32 0.0, %v4818
    %v4820 = vpop.f32.mrb[0].mxu0
    %4821 = vmatprep.mubr.bf16.mxu0 0
    %4822 = vmatmul.mubr.bf16.gmra.mrb[0].mxu0 %v4674
    %v4823 = vpop.f32.mrb[0].mxu0
    %v4824 = vadd.f32 0.0, %v4823
    %v4825 = vpop.f32.mrb[0].mxu0
    %v4826 = vpop.f32.mrb[0].mxu0
    %v4827 = vadd.f32 0.0, %v4826
    %v4828 = vpop.f32.mrb[0].mxu0
    %4829 = vmatprep.mubr.bf16.mxu0 0
    %4830 = vmatmul.mubr.bf16.gmra.mrb[0].mxu0 %v4677
    %v4831 = vpop.f32.mrb[0].mxu0
    %v4832 = vadd.f32 0.0, %v4831
    %v4833 = vpop.f32.mrb[0].mxu0
    %v4834 = vpop.f32.mrb[0].mxu0
    %v4835 = vadd.f32 0.0, %v4834
    %v4836 = vpop.f32.mrb[0].mxu0
    %4837 = vmatprep.mubr.bf16.mxu0 0
    %4838 = vmatmul.mubr.bf16.gmra.mrb[0].mxu0 %v4680
    %v4839 = vpop.f32.mrb[0].mxu0
    %v4840 = vadd.f32 0.0, %v4839
    %v4841 = vpop.f32.mrb[0].mxu0
    %v4842 = vpop.f32.mrb[0].mxu0
    %v4843 = vadd.f32 0.0, %v4842
    %v4844 = vpop.f32.mrb[0].mxu0
    %4845 = vdwg.mxu0
    %v4846 = vadd.f32 %v4489, %v4720
    %v4847 = vadd.f32 %v4490, %v4723
    %v4848 = vadd.f32 %v4491, %v4728
    %v4849 = vadd.f32 %v4492, %v4731
    %v4850 = vadd.f32 %v4493, %v4736
    %v4851 = vadd.f32 %v4494, %v4739
    %v4852 = vadd.f32 %v4495, %v4744
    %v4853 = vadd.f32 %v4496, %v4747
    %v4854 = vadd.f32 %v4497, %v4752
    %v4855 = vadd.f32 %v4498, %v4755
    %v4856 = vadd.f32 %v4499, %v4760
    %v4857 = vadd.f32 %v4500, %v4763
    %v4858 = vadd.f32 %v4501, %v4768
    %v4859 = vadd.f32 %v4502, %v4771
    %v4860 = vadd.f32 %v4503, %v4776
    %v4861 = vadd.f32 %v4504, %v4779
    %v4862 = vadd.f32 %v4505, %v4784
    %v4863 = vadd.f32 %v4506, %v4787
    %v4864 = vadd.f32 %v4507, %v4792
    %v4865 = vadd.f32 %v4508, %v4795
    %v4866 = vadd.f32 %v4509, %v4800
    %v4867 = vadd.f32 %v4510, %v4803
    %v4868 = vadd.f32 %v4511, %v4808
    %v4869 = vadd.f32 %v4512, %v4811
    %v4870 = vadd.f32 %v4513, %v4816
    %v4871 = vadd.f32 %v4514, %v4819
    %v4872 = vadd.f32 %v4515, %v4824
    %v4873 = vadd.f32 %v4516, %v4827
    %v4874 = vadd.f32 %v4517, %v4832
    %v4875 = vadd.f32 %v4518, %v4835
    %v4876 = vadd.f32 %v4519, %v4840
    %v4877 = vadd.f32 %v4520, %v4843
    %v4878 = vld [vmem:[%s3545 + $0x8] sm:$0xf]
    %v4879 = vld [vmem:[%s3545 + $0xc] sm:$0xf]
    %v4880 = vld [vmem:[%s3545 + $0x10] sm:$0xf]
    %v4881 = vld [vmem:[%s3545 + $0x14] sm:$0xf]
    %v4882 = vld [vmem:[%s3545 + $0x18] sm:$0xf]
    %v4883 = vld [vmem:[%s3545 + $0x1c] sm:$0xf]
    %v4884 = vld [vmem:[%s3545 + $0x20] sm:$0xf]
    %v4885 = vld [vmem:[%s3545 + $0x24] sm:$0xf]
    %v4886 = vld [vmem:[%s3545 + $0x28] sm:$0xf]
    %v4887 = vld [vmem:[%s3545 + $0x2c] sm:$0xf]
    %v4888 = vld [vmem:[%s3545 + $0x30] sm:$0xf]
    %v4889 = vld [vmem:[%s3545 + $0x34] sm:$0xf]
    %v4890 = vld [vmem:[%s3545 + $0x38] sm:$0xf]
    %v4891 = vld [vmem:[%s3545 + $0x3c] sm:$0xf]
    %v4892 = vld [vmem:[%s3545 + $0x40] sm:$0xf]
    %v4893 = vld [vmem:[%s3545 + $0x44] sm:$0xf]
    %v4894 = vld [vmem:[%s3545 + $0x48] sm:$0xf]
    %v4895 = vld [vmem:[%s3545 + $0x4c] sm:$0xf]
    %v4896 = vld [vmem:[%s3545 + $0x50] sm:$0xf]
    %v4897 = vld [vmem:[%s3545 + $0x54] sm:$0xf]
    %v4898 = vld [vmem:[%s3545 + $0x58] sm:$0xf]
    %v4899 = vld [vmem:[%s3545 + $0x5c] sm:$0xf]
    %v4900 = vld [vmem:[%s3545 + $0x60] sm:$0xf]
    %v4901 = vld [vmem:[%s3545 + $0x64] sm:$0xf]
    %v4902 = vld [vmem:[%s3545 + $0x68] sm:$0xf]
    %v4903 = vld [vmem:[%s3545 + $0x6c] sm:$0xf]
    %v4904 = vld [vmem:[%s3545 + $0x70] sm:$0xf]
    %v4905 = vld [vmem:[%s3545 + $0x74] sm:$0xf]
    %v4906 = vld [vmem:[%s3545 + $0x78] sm:$0xf]
    %v4907 = vld [vmem:[%s3545 + $0x7c] sm:$0xf]
    %v4908 = vld [vmem:[%s3545 + $0x80] sm:$0xf]
    %v4909 = vld [vmem:[%s3545 + $0x84] sm:$0xf]
    %v4910 = vld [vmem:[%s1420] sm:$0x3]
    %v4943 = vunpack.c.l.b16 %v4878
    %v4944 = vunpack.c.l.b16 %v4879
    %v4945 = vunpack.c.l.b16 %v4880
    %v4946 = vunpack.c.l.b16 %v4881
    %v4947 = vunpack.c.l.b16 %v4882
    %v4948 = vunpack.c.l.b16 %v4883
    %v4949 = vunpack.c.l.b16 %v4884
    %v4950 = vunpack.c.l.b16 %v4885
    %v4951 = vunpack.c.l.b16 %v4886
    %v4952 = vunpack.c.l.b16 %v4887
    %v4953 = vunpack.c.l.b16 %v4888
    %v4954 = vunpack.c.l.b16 %v4889
    %v4955 = vunpack.c.l.b16 %v4890
    %v4956 = vunpack.c.l.b16 %v4891
    %v4957 = vunpack.c.l.b16 %v4892
    %v4958 = vunpack.c.l.b16 %v4893
    %v4959 = vunpack.c.l.b16 %v4894
    %v4960 = vunpack.c.l.b16 %v4895
    %v4961 = vunpack.c.l.b16 %v4896
    %v4962 = vunpack.c.l.b16 %v4897
    %v4963 = vunpack.c.l.b16 %v4898
    %v4964 = vunpack.c.l.b16 %v4899
    %v4965 = vunpack.c.l.b16 %v4900
    %v4966 = vunpack.c.l.b16 %v4901
    %v4967 = vunpack.c.l.b16 %v4902
    %v4968 = vunpack.c.l.b16 %v4903
    %v4969 = vunpack.c.l.b16 %v4904
    %v4970 = vunpack.c.l.b16 %v4905
    %v4971 = vunpack.c.l.b16 %v4906
    %v4972 = vunpack.c.l.b16 %v4907
    %v4973 = vunpack.c.l.b16 %v4908
    %v4974 = vunpack.c.l.b16 %v4909
    %v4975 = vpack.c.b16 %v4944, %v4943
    %v4976 = vpack.c.b16 %v4946, %v4945
    %v4977 = vpack.c.b16 %v4948, %v4947
    %v4978 = vpack.c.b16 %v4950, %v4949
    %v4979 = vpack.c.b16 %v4952, %v4951
    %v4980 = vpack.c.b16 %v4954, %v4953
    %v4981 = vpack.c.b16 %v4956, %v4955
    %v4982 = vpack.c.b16 %v4958, %v4957
    %v4983 = vpack.c.b16 %v4960, %v4959
    %v4984 = vpack.c.b16 %v4962, %v4961
    %v4985 = vpack.c.b16 %v4964, %v4963
    %v4986 = vpack.c.b16 %v4966, %v4965
    %v4987 = vpack.c.b16 %v4968, %v4967
    %v4988 = vpack.c.b16 %v4970, %v4969
    %v4989 = vpack.c.b16 %v4972, %v4971
    %v4990 = vpack.c.b16 %v4974, %v4973
    %v4992 = vsel %vm165, %v4975, 0
    %v4995 = vsel %vm165, %v4976, 0
    %v4998 = vsel %vm165, %v4977, 0
    %v5001 = vsel %vm165, %v4978, 0
    %v5004 = vsel %vm165, %v4979, 0
    %v5007 = vsel %vm165, %v4980, 0
    %v5010 = vsel %vm165, %v4981, 0
    %v5013 = vsel %vm165, %v4982, 0
    %v5016 = vsel %vm165, %v4983, 0
    %v5019 = vsel %vm165, %v4984, 0
    %v5022 = vsel %vm165, %v4985, 0
    %v5025 = vsel %vm165, %v4986, 0
    %v5028 = vsel %vm165, %v4987, 0
    %v5031 = vsel %vm165, %v4988, 0
    %v5034 = vsel %vm165, %v4989, 0
    %v5037 = vsel %vm165, %v4990, 0
    %v5040 = vsel %vm214, %v4910, 0
    %5042 = vmatprep.subr.bf16.mxu0 0
    %5043 = vmatpush1.bf16.msra.mxu0 %v5040
    %5044 = vmatprep.subr.bf16.mxu0 0
    %5045 = vmatpush1.bf16.msra.mxu0 0
    %5046 = vmatprep.subr.bf16.mxu0 0
    %5047 = vmatpush1.bf16.msra.mxu0 0
    %5048 = vmatprep.subr.bf16.mxu0 0
    %5049 = vmatpush1.bf16.msra.mxu0 0
    %5050 = vmatprep.subr.bf16.mxu0 0
    %5051 = vmatpush1.bf16.msra.mxu0 0
    %5052 = vmatprep.subr.bf16.mxu0 0
    %5053 = vmatpush1.bf16.msra.mxu0 0
    %5054 = vmatprep.subr.bf16.mxu0 0
    %5055 = vmatpush1.bf16.msra.mxu0 0
    %5056 = vmatprep.subr.bf16.mxu0 0
    %5057 = vmatpush1.bf16.msra.mxu0 0
    %5058 = vmatprep.subr.bf16.mxu0 0
    %5059 = vmatpush1.bf16.msra.mxu0 0
    %5060 = vmatprep.subr.bf16.mxu0 0
    %5061 = vmatpush1.bf16.msra.mxu0 0
    %5062 = vmatprep.subr.bf16.mxu0 0
    %5063 = vmatpush1.bf16.msra.mxu0 0
    %5064 = vmatprep.subr.bf16.mxu0 0
    %5065 = vmatpush1.bf16.msra.mxu0 0
    %5066 = vmatprep.subr.bf16.mxu0 0
    %5067 = vmatpush1.bf16.msra.mxu0 0
    %5068 = vmatprep.subr.bf16.mxu0 0
    %5069 = vmatpush1.bf16.msra.mxu0 0
    %5070 = vmatprep.subr.bf16.mxu0 0
    %5071 = vmatpush1.bf16.msra.mxu0 0
    %5072 = vmatprep.subr.bf16.mxu0 0
    %5073 = vmatpush1.bf16.msra.mxu0 0
    %5074 = vmatprep.mubr.bf16.mxu0 0
    %5075 = vmatmul.mubr.bf16.gmra.mrb[0].mxu0 %v4992
    %v5076 = vpop.f32.mrb[0].mxu0
    %v5077 = vadd.f32 0.0, %v5076
    %v5078 = vpop.f32.mrb[0].mxu0
    %v5079 = vpop.f32.mrb[0].mxu0
    %v5080 = vadd.f32 0.0, %v5079
    %v5081 = vpop.f32.mrb[0].mxu0
    %5082 = vmatprep.mubr.bf16.mxu0 0
    %5083 = vmatmul.mubr.bf16.gmra.mrb[0].mxu0 %v4995
    %v5084 = vpop.f32.mrb[0].mxu0
    %v5085 = vadd.f32 0.0, %v5084
    %v5086 = vpop.f32.mrb[0].mxu0
    %v5087 = vpop.f32.mrb[0].mxu0
    %v5088 = vadd.f32 0.0, %v5087
    %v5089 = vpop.f32.mrb[0].mxu0
    %5090 = vmatprep.mubr.bf16.mxu0 0
    %5091 = vmatmul.mubr.bf16.gmra.mrb[0].mxu0 %v4998
    %v5092 = vpop.f32.mrb[0].mxu0
    %v5093 = vadd.f32 0.0, %v5092
    %v5094 = vpop.f32.mrb[0].mxu0
    %v5095 = vpop.f32.mrb[0].mxu0
    %v5096 = vadd.f32 0.0, %v5095
    %v5097 = vpop.f32.mrb[0].mxu0
    %5098 = vmatprep.mubr.bf16.mxu0 0
    %5099 = vmatmul.mubr.bf16.gmra.mrb[0].mxu0 %v5001
    %v5100 = vpop.f32.mrb[0].mxu0
    %v5101 = vadd.f32 0.0, %v5100
    %v5102 = vpop.f32.mrb[0].mxu0
    %v5103 = vpop.f32.mrb[0].mxu0
    %v5104 = vadd.f32 0.0, %v5103
    %v5105 = vpop.f32.mrb[0].mxu0
    %5106 = vmatprep.mubr.bf16.mxu0 0
    %5107 = vmatmul.mubr.bf16.gmra.mrb[0].mxu0 %v5004
    %v5108 = vpop.f32.mrb[0].mxu0
    %v5109 = vadd.f32 0.0, %v5108
    %v5110 = vpop.f32.mrb[0].mxu0
    %v5111 = vpop.f32.mrb[0].mxu0
    %v5112 = vadd.f32 0.0, %v5111
    %v5113 = vpop.f32.mrb[0].mxu0
    %5114 = vmatprep.mubr.bf16.mxu0 0
    %5115 = vmatmul.mubr.bf16.gmra.mrb[0].mxu0 %v5007
    %v5116 = vpop.f32.mrb[0].mxu0
    %v5117 = vadd.f32 0.0, %v5116
    %v5118 = vpop.f32.mrb[0].mxu0
    %v5119 = vpop.f32.mrb[0].mxu0
    %v5120 = vadd.f32 0.0, %v5119
    %v5121 = vpop.f32.mrb[0].mxu0
    %5122 = vmatprep.mubr.bf16.mxu0 0
    %5123 = vmatmul.mubr.bf16.gmra.mrb[0].mxu0 %v5010
    %v5124 = vpop.f32.mrb[0].mxu0
    %v5125 = vadd.f32 0.0, %v5124
    %v5126 = vpop.f32.mrb[0].mxu0
    %v5127 = vpop.f32.mrb[0].mxu0
    %v5128 = vadd.f32 0.0, %v5127
    %v5129 = vpop.f32.mrb[0].mxu0
    %5130 = vmatprep.mubr.bf16.mxu0 0
    %5131 = vmatmul.mubr.bf16.gmra.mrb[0].mxu0 %v5013
    %v5132 = vpop.f32.mrb[0].mxu0
    %v5133 = vadd.f32 0.0, %v5132
    %v5134 = vpop.f32.mrb[0].mxu0
    %v5135 = vpop.f32.mrb[0].mxu0
    %v5136 = vadd.f32 0.0, %v5135
    %v5137 = vpop.f32.mrb[0].mxu0
    %5138 = vmatprep.mubr.bf16.mxu0 0
    %5139 = vmatmul.mubr.bf16.gmra.mrb[0].mxu0 %v5016
    %v5140 = vpop.f32.mrb[0].mxu0
    %v5141 = vadd.f32 0.0, %v5140
    %v5142 = vpop.f32.mrb[0].mxu0
    %v5143 = vpop.f32.mrb[0].mxu0
    %v5144 = vadd.f32 0.0, %v5143
    %v5145 = vpop.f32.mrb[0].mxu0
    %5146 = vmatprep.mubr.bf16.mxu0 0
    %5147 = vmatmul.mubr.bf16.gmra.mrb[0].mxu0 %v5019
    %v5148 = vpop.f32.mrb[0].mxu0
    %v5149 = vadd.f32 0.0, %v5148
    %v5150 = vpop.f32.mrb[0].mxu0
    %v5151 = vpop.f32.mrb[0].mxu0
    %v5152 = vadd.f32 0.0, %v5151
    %v5153 = vpop.f32.mrb[0].mxu0
    %5154 = vmatprep.mubr.bf16.mxu0 0
    %5155 = vmatmul.mubr.bf16.gmra.mrb[0].mxu0 %v5022
    %v5156 = vpop.f32.mrb[0].mxu0
    %v5157 = vadd.f32 0.0, %v5156
    %v5158 = vpop.f32.mrb[0].mxu0
    %v5159 = vpop.f32.mrb[0].mxu0
    %v5160 = vadd.f32 0.0, %v5159
    %v5161 = vpop.f32.mrb[0].mxu0
    %5162 = vmatprep.mubr.bf16.mxu0 0
    %5163 = vmatmul.mubr.bf16.gmra.mrb[0].mxu0 %v5025
    %v5164 = vpop.f32.mrb[0].mxu0
    %v5165 = vadd.f32 0.0, %v5164
    %v5166 = vpop.f32.mrb[0].mxu0
    %v5167 = vpop.f32.mrb[0].mxu0
    %v5168 = vadd.f32 0.0, %v5167
    %v5169 = vpop.f32.mrb[0].mxu0
    %5170 = vmatprep.mubr.bf16.mxu0 0
    %5171 = vmatmul.mubr.bf16.gmra.mrb[0].mxu0 %v5028
    %v5172 = vpop.f32.mrb[0].mxu0
    %v5173 = vadd.f32 0.0, %v5172
    %v5174 = vpop.f32.mrb[0].mxu0
    %v5175 = vpop.f32.mrb[0].mxu0
    %v5176 = vadd.f32 0.0, %v5175
    %v5177 = vpop.f32.mrb[0].mxu0
    %5178 = vmatprep.mubr.bf16.mxu0 0
    %5179 = vmatmul.mubr.bf16.gmra.mrb[0].mxu0 %v5031
    %v5180 = vpop.f32.mrb[0].mxu0
    %v5181 = vadd.f32 0.0, %v5180
    %v5182 = vpop.f32.mrb[0].mxu0
    %v5183 = vpop.f32.mrb[0].mxu0
    %v5184 = vadd.f32 0.0, %v5183
    %v5185 = vpop.f32.mrb[0].mxu0
    %5186 = vmatprep.mubr.bf16.mxu0 0
    %5187 = vmatmul.mubr.bf16.gmra.mrb[0].mxu0 %v5034
    %v5188 = vpop.f32.mrb[0].mxu0
    %v5189 = vadd.f32 0.0, %v5188
    %v5190 = vpop.f32.mrb[0].mxu0
    %v5191 = vpop.f32.mrb[0].mxu0
    %v5192 = vadd.f32 0.0, %v5191
    %v5193 = vpop.f32.mrb[0].mxu0
    %5194 = vmatprep.mubr.bf16.mxu0 0
    %5195 = vmatmul.mubr.bf16.gmra.mrb[0].mxu0 %v5037
    %v5196 = vpop.f32.mrb[0].mxu0
    %v5197 = vadd.f32 0.0, %v5196
    %v5198 = vpop.f32.mrb[0].mxu0
    %v5199 = vpop.f32.mrb[0].mxu0
    %v5200 = vadd.f32 0.0, %v5199
    %v5201 = vpop.f32.mrb[0].mxu0
    %5202 = vdwg.mxu0
    %v5203 = vadd.f32 %v4846, %v5077
    %v5204 = vadd.f32 %v4847, %v5080
    %v5205 = vadd.f32 %v4848, %v5085
    %v5206 = vadd.f32 %v4849, %v5088
    %v5207 = vadd.f32 %v4850, %v5093
    %v5208 = vadd.f32 %v4851, %v5096
    %v5209 = vadd.f32 %v4852, %v5101
    %v5210 = vadd.f32 %v4853, %v5104
    %v5211 = vadd.f32 %v4854, %v5109
    %v5212 = vadd.f32 %v4855, %v5112
    %v5213 = vadd.f32 %v4856, %v5117
    %v5214 = vadd.f32 %v4857, %v5120
    %v5215 = vadd.f32 %v4858, %v5125
    %v5216 = vadd.f32 %v4859, %v5128
    %v5217 = vadd.f32 %v4860, %v5133
    %v5218 = vadd.f32 %v4861, %v5136
    %v5219 = vadd.f32 %v4862, %v5141
    %v5220 = vadd.f32 %v4863, %v5144
    %v5221 = vadd.f32 %v4864, %v5149
    %v5222 = vadd.f32 %v4865, %v5152
    %v5223 = vadd.f32 %v4866, %v5157
    %v5224 = vadd.f32 %v4867, %v5160
    %v5225 = vadd.f32 %v4868, %v5165
    %v5226 = vadd.f32 %v4869, %v5168
    %v5227 = vadd.f32 %v4870, %v5173
    %v5228 = vadd.f32 %v4871, %v5176
    %v5229 = vadd.f32 %v4872, %v5181
    %v5230 = vadd.f32 %v4873, %v5184
    %v5231 = vadd.f32 %v4874, %v5189
    %v5232 = vadd.f32 %v4875, %v5192
    %v5233 = vadd.f32 %v4876, %v5197
    %v5234 = vadd.f32 %v4877, %v5200
    %v5235 = vld [vmem:[%s4163 + $0x8] sm:$0xf]
    %v5236 = vld [vmem:[%s4163 + $0xc] sm:$0xf]
    %v5237 = vld [vmem:[%s4163 + $0x10] sm:$0xf]
    %v5238 = vld [vmem:[%s4163 + $0x14] sm:$0xf]
    %v5239 = vld [vmem:[%s4163 + $0x18] sm:$0xf]
    %v5240 = vld [vmem:[%s4163 + $0x1c] sm:$0xf]
    %v5241 = vld [vmem:[%s4163 + $0x20] sm:$0xf]
    %v5242 = vld [vmem:[%s4163 + $0x24] sm:$0xf]
    %v5243 = vld [vmem:[%s4163 + $0x28] sm:$0xf]
    %v5244 = vld [vmem:[%s4163 + $0x2c] sm:$0xf]
    %v5245 = vld [vmem:[%s4163 + $0x30] sm:$0xf]
    %v5246 = vld [vmem:[%s4163 + $0x34] sm:$0xf]
    %v5247 = vld [vmem:[%s4163 + $0x38] sm:$0xf]
    %v5248 = vld [vmem:[%s4163 + $0x3c] sm:$0xf]
    %v5249 = vld [vmem:[%s4163 + $0x40] sm:$0xf]
    %v5250 = vld [vmem:[%s4163 + $0x44] sm:$0xf]
    %v5251 = vld [vmem:[%s4163 + $0x48] sm:$0xf]
    %v5252 = vld [vmem:[%s4163 + $0x4c] sm:$0xf]
    %v5253 = vld [vmem:[%s4163 + $0x50] sm:$0xf]
    %v5254 = vld [vmem:[%s4163 + $0x54] sm:$0xf]
    %v5255 = vld [vmem:[%s4163 + $0x58] sm:$0xf]
    %v5256 = vld [vmem:[%s4163 + $0x5c] sm:$0xf]
    %v5257 = vld [vmem:[%s4163 + $0x60] sm:$0xf]
    %v5258 = vld [vmem:[%s4163 + $0x64] sm:$0xf]
    %v5259 = vld [vmem:[%s4163 + $0x68] sm:$0xf]
    %v5260 = vld [vmem:[%s4163 + $0x6c] sm:$0xf]
    %v5261 = vld [vmem:[%s4163 + $0x70] sm:$0xf]
    %v5262 = vld [vmem:[%s4163 + $0x74] sm:$0xf]
    %v5263 = vld [vmem:[%s4163 + $0x78] sm:$0xf]
    %v5264 = vld [vmem:[%s4163 + $0x7c] sm:$0xf]
    %v5265 = vld [vmem:[%s4163 + $0x80] sm:$0xf]
    %v5266 = vld [vmem:[%s4163 + $0x84] sm:$0xf]
    %v5267 = vld [vmem:[%s1778] sm:$0x3]
    %v5300 = vunpack.c.l.b16 %v5235
    %v5301 = vunpack.c.l.b16 %v5236
    %v5302 = vunpack.c.l.b16 %v5237
    %v5303 = vunpack.c.l.b16 %v5238
    %v5304 = vunpack.c.l.b16 %v5239
    %v5305 = vunpack.c.l.b16 %v5240
    %v5306 = vunpack.c.l.b16 %v5241
    %v5307 = vunpack.c.l.b16 %v5242
    %v5308 = vunpack.c.l.b16 %v5243
    %v5309 = vunpack.c.l.b16 %v5244
    %v5310 = vunpack.c.l.b16 %v5245
    %v5311 = vunpack.c.l.b16 %v5246
    %v5312 = vunpack.c.l.b16 %v5247
    %v5313 = vunpack.c.l.b16 %v5248
    %v5314 = vunpack.c.l.b16 %v5249
    %v5315 = vunpack.c.l.b16 %v5250
    %v5316 = vunpack.c.l.b16 %v5251
    %v5317 = vunpack.c.l.b16 %v5252
    %v5318 = vunpack.c.l.b16 %v5253
    %v5319 = vunpack.c.l.b16 %v5254
    %v5320 = vunpack.c.l.b16 %v5255
    %v5321 = vunpack.c.l.b16 %v5256
    %v5322 = vunpack.c.l.b16 %v5257
    %v5323 = vunpack.c.l.b16 %v5258
    %v5324 = vunpack.c.l.b16 %v5259
    %v5325 = vunpack.c.l.b16 %v5260
    %v5326 = vunpack.c.l.b16 %v5261
    %v5327 = vunpack.c.l.b16 %v5262
    %v5328 = vunpack.c.l.b16 %v5263
    %v5329 = vunpack.c.l.b16 %v5264
    %v5330 = vunpack.c.l.b16 %v5265
    %v5331 = vunpack.c.l.b16 %v5266
    %v5332 = vpack.c.b16 %v5301, %v5300
    %v5333 = vpack.c.b16 %v5303, %v5302
    %v5334 = vpack.c.b16 %v5305, %v5304
    %v5335 = vpack.c.b16 %v5307, %v5306
    %v5336 = vpack.c.b16 %v5309, %v5308
    %v5337 = vpack.c.b16 %v5311, %v5310
    %v5338 = vpack.c.b16 %v5313, %v5312
    %v5339 = vpack.c.b16 %v5315, %v5314
    %v5340 = vpack.c.b16 %v5317, %v5316
    %v5341 = vpack.c.b16 %v5319, %v5318
    %v5342 = vpack.c.b16 %v5321, %v5320
    %v5343 = vpack.c.b16 %v5323, %v5322
    %v5344 = vpack.c.b16 %v5325, %v5324
    %v5345 = vpack.c.b16 %v5327, %v5326
    %v5346 = vpack.c.b16 %v5329, %v5328
    %v5347 = vpack.c.b16 %v5331, %v5330
    %v5349 = vsel %vm165, %v5332, 0
    %v5352 = vsel %vm165, %v5333, 0
    %v5355 = vsel %vm165, %v5334, 0
    %v5358 = vsel %vm165, %v5335, 0
    %v5361 = vsel %vm165, %v5336, 0
    %v5364 = vsel %vm165, %v5337, 0
    %v5367 = vsel %vm165, %v5338, 0
    %v5370 = vsel %vm165, %v5339, 0
    %v5373 = vsel %vm165, %v5340, 0
    %v5376 = vsel %vm165, %v5341, 0
    %v5379 = vsel %vm165, %v5342, 0
    %v5382 = vsel %vm165, %v5343, 0
    %v5385 = vsel %vm165, %v5344, 0
    %v5388 = vsel %vm165, %v5345, 0
    %v5391 = vsel %vm165, %v5346, 0
    %v5394 = vsel %vm165, %v5347, 0
    %v5397 = vsel %vm214, %v5267, 0
    %5399 = vmatprep.subr.bf16.mxu0 0
    %5400 = vmatpush1.bf16.msra.mxu0 %v5397
    %5401 = vmatprep.subr.bf16.mxu0 0
    %5402 = vmatpush1.bf16.msra.mxu0 0
    %5403 = vmatprep.subr.bf16.mxu0 0
    %5404 = vmatpush1.bf16.msra.mxu0 0
    %5405 = vmatprep.subr.bf16.mxu0 0
    %5406 = vmatpush1.bf16.msra.mxu0 0
    %5407 = vmatprep.subr.bf16.mxu0 0
    %5408 = vmatpush1.bf16.msra.mxu0 0
    %5409 = vmatprep.subr.bf16.mxu0 0
    %5410 = vmatpush1.bf16.msra.mxu0 0
    %5411 = vmatprep.subr.bf16.mxu0 0
    %5412 = vmatpush1.bf16.msra.mxu0 0
    %5413 = vmatprep.subr.bf16.mxu0 0
    %5414 = vmatpush1.bf16.msra.mxu0 0
    %5415 = vmatprep.subr.bf16.mxu0 0
    %5416 = vmatpush1.bf16.msra.mxu0 0
    %5417 = vmatprep.subr.bf16.mxu0 0
    %5418 = vmatpush1.bf16.msra.mxu0 0
    %5419 = vmatprep.subr.bf16.mxu0 0
    %5420 = vmatpush1.bf16.msra.mxu0 0
    %5421 = vmatprep.subr.bf16.mxu0 0
    %5422 = vmatpush1.bf16.msra.mxu0 0
    %5423 = vmatprep.subr.bf16.mxu0 0
    %5424 = vmatpush1.bf16.msra.mxu0 0
    %5425 = vmatprep.subr.bf16.mxu0 0
    %5426 = vmatpush1.bf16.msra.mxu0 0
    %5427 = vmatprep.subr.bf16.mxu0 0
    %5428 = vmatpush1.bf16.msra.mxu0 0
    %5429 = vmatprep.subr.bf16.mxu0 0
    %5430 = vmatpush1.bf16.msra.mxu0 0
    %5431 = vmatprep.mubr.bf16.mxu0 0
    %5432 = vmatmul.mubr.bf16.gmra.mrb[0].mxu0 %v5349
    %v5433 = vpop.f32.mrb[0].mxu0
    %v5434 = vadd.f32 0.0, %v5433
    %v5435 = vpop.f32.mrb[0].mxu0
    %v5436 = vpop.f32.mrb[0].mxu0
    %v5437 = vadd.f32 0.0, %v5436
    %v5438 = vpop.f32.mrb[0].mxu0
    %5439 = vmatprep.mubr.bf16.mxu0 0
    %5440 = vmatmul.mubr.bf16.gmra.mrb[0].mxu0 %v5352
    %v5441 = vpop.f32.mrb[0].mxu0
    %v5442 = vadd.f32 0.0, %v5441
    %v5443 = vpop.f32.mrb[0].mxu0
    %v5444 = vpop.f32.mrb[0].mxu0
    %v5445 = vadd.f32 0.0, %v5444
    %v5446 = vpop.f32.mrb[0].mxu0
    %5447 = vmatprep.mubr.bf16.mxu0 0
    %5448 = vmatmul.mubr.bf16.gmra.mrb[0].mxu0 %v5355
    %v5449 = vpop.f32.mrb[0].mxu0
    %v5450 = vadd.f32 0.0, %v5449
    %v5451 = vpop.f32.mrb[0].mxu0
    %v5452 = vpop.f32.mrb[0].mxu0
    %v5453 = vadd.f32 0.0, %v5452
    %v5454 = vpop.f32.mrb[0].mxu0
    %5455 = vmatprep.mubr.bf16.mxu0 0
    %5456 = vmatmul.mubr.bf16.gmra.mrb[0].mxu0 %v5358
    %v5457 = vpop.f32.mrb[0].mxu0
    %v5458 = vadd.f32 0.0, %v5457
    %v5459 = vpop.f32.mrb[0].mxu0
    %v5460 = vpop.f32.mrb[0].mxu0
    %v5461 = vadd.f32 0.0, %v5460
    %v5462 = vpop.f32.mrb[0].mxu0
    %5463 = vmatprep.mubr.bf16.mxu0 0
    %5464 = vmatmul.mubr.bf16.gmra.mrb[0].mxu0 %v5361
    %v5465 = vpop.f32.mrb[0].mxu0
    %v5466 = vadd.f32 0.0, %v5465
    %v5467 = vpop.f32.mrb[0].mxu0
    %v5468 = vpop.f32.mrb[0].mxu0
    %v5469 = vadd.f32 0.0, %v5468
    %v5470 = vpop.f32.mrb[0].mxu0
    %5471 = vmatprep.mubr.bf16.mxu0 0
    %5472 = vmatmul.mubr.bf16.gmra.mrb[0].mxu0 %v5364
    %v5473 = vpop.f32.mrb[0].mxu0
    %v5474 = vadd.f32 0.0, %v5473
    %v5475 = vpop.f32.mrb[0].mxu0
    %v5476 = vpop.f32.mrb[0].mxu0
    %v5477 = vadd.f32 0.0, %v5476
    %v5478 = vpop.f32.mrb[0].mxu0
    %5479 = vmatprep.mubr.bf16.mxu0 0
    %5480 = vmatmul.mubr.bf16.gmra.mrb[0].mxu0 %v5367
    %v5481 = vpop.f32.mrb[0].mxu0
    %v5482 = vadd.f32 0.0, %v5481
    %v5483 = vpop.f32.mrb[0].mxu0
    %v5484 = vpop.f32.mrb[0].mxu0
    %v5485 = vadd.f32 0.0, %v5484
    %v5486 = vpop.f32.mrb[0].mxu0
    %5487 = vmatprep.mubr.bf16.mxu0 0
    %5488 = vmatmul.mubr.bf16.gmra.mrb[0].mxu0 %v5370
    %v5489 = vpop.f32.mrb[0].mxu0
    %v5490 = vadd.f32 0.0, %v5489
    %v5491 = vpop.f32.mrb[0].mxu0
    %v5492 = vpop.f32.mrb[0].mxu0
    %v5493 = vadd.f32 0.0, %v5492
    %v5494 = vpop.f32.mrb[0].mxu0
    %5495 = vmatprep.mubr.bf16.mxu0 0
    %5496 = vmatmul.mubr.bf16.gmra.mrb[0].mxu0 %v5373
    %v5497 = vpop.f32.mrb[0].mxu0
    %v5498 = vadd.f32 0.0, %v5497
    %v5499 = vpop.f32.mrb[0].mxu0
    %v5500 = vpop.f32.mrb[0].mxu0
    %v5501 = vadd.f32 0.0, %v5500
    %v5502 = vpop.f32.mrb[0].mxu0
    %5503 = vmatprep.mubr.bf16.mxu0 0
    %5504 = vmatmul.mubr.bf16.gmra.mrb[0].mxu0 %v5376
    %v5505 = vpop.f32.mrb[0].mxu0
    %v5506 = vadd.f32 0.0, %v5505
    %v5507 = vpop.f32.mrb[0].mxu0
    %v5508 = vpop.f32.mrb[0].mxu0
    %v5509 = vadd.f32 0.0, %v5508
    %v5510 = vpop.f32.mrb[0].mxu0
    %5511 = vmatprep.mubr.bf16.mxu0 0
    %5512 = vmatmul.mubr.bf16.gmra.mrb[0].mxu0 %v5379
    %v5513 = vpop.f32.mrb[0].mxu0
    %v5514 = vadd.f32 0.0, %v5513
    %v5515 = vpop.f32.mrb[0].mxu0
    %v5516 = vpop.f32.mrb[0].mxu0
    %v5517 = vadd.f32 0.0, %v5516
    %v5518 = vpop.f32.mrb[0].mxu0
    %5519 = vmatprep.mubr.bf16.mxu0 0
    %5520 = vmatmul.mubr.bf16.gmra.mrb[0].mxu0 %v5382
    %v5521 = vpop.f32.mrb[0].mxu0
    %v5522 = vadd.f32 0.0, %v5521
    %v5523 = vpop.f32.mrb[0].mxu0
    %v5524 = vpop.f32.mrb[0].mxu0
    %v5525 = vadd.f32 0.0, %v5524
    %v5526 = vpop.f32.mrb[0].mxu0
    %5527 = vmatprep.mubr.bf16.mxu0 0
    %5528 = vmatmul.mubr.bf16.gmra.mrb[0].mxu0 %v5385
    %v5529 = vpop.f32.mrb[0].mxu0
    %v5530 = vadd.f32 0.0, %v5529
    %v5531 = vpop.f32.mrb[0].mxu0
    %v5532 = vpop.f32.mrb[0].mxu0
    %v5533 = vadd.f32 0.0, %v5532
    %v5534 = vpop.f32.mrb[0].mxu0
    %5535 = vmatprep.mubr.bf16.mxu0 0
    %5536 = vmatmul.mubr.bf16.gmra.mrb[0].mxu0 %v5388
    %v5537 = vpop.f32.mrb[0].mxu0
    %v5538 = vadd.f32 0.0, %v5537
    %v5539 = vpop.f32.mrb[0].mxu0
    %v5540 = vpop.f32.mrb[0].mxu0
    %v5541 = vadd.f32 0.0, %v5540
    %v5542 = vpop.f32.mrb[0].mxu0
    %5543 = vmatprep.mubr.bf16.mxu0 0
    %5544 = vmatmul.mubr.bf16.gmra.mrb[0].mxu0 %v5391
    %v5545 = vpop.f32.mrb[0].mxu0
    %v5546 = vadd.f32 0.0, %v5545
    %v5547 = vpop.f32.mrb[0].mxu0
    %v5548 = vpop.f32.mrb[0].mxu0
    %v5549 = vadd.f32 0.0, %v5548
    %v5550 = vpop.f32.mrb[0].mxu0
    %5551 = vmatprep.mubr.bf16.mxu0 0
    %5552 = vmatmul.mubr.bf16.gmra.mrb[0].mxu0 %v5394
    %v5553 = vpop.f32.mrb[0].mxu0
    %v5554 = vadd.f32 0.0, %v5553
    %v5555 = vpop.f32.mrb[0].mxu0
    %v5556 = vpop.f32.mrb[0].mxu0
    %v5557 = vadd.f32 0.0, %v5556
    %v5558 = vpop.f32.mrb[0].mxu0
    %5559 = vdwg.mxu0
    %v5560 = vadd.f32 %v5203, %v5434
    %v5561 = vadd.f32 %v5204, %v5437
    %v5562 = vadd.f32 %v5205, %v5442
    %v5563 = vadd.f32 %v5206, %v5445
    %v5564 = vadd.f32 %v5207, %v5450
    %v5565 = vadd.f32 %v5208, %v5453
    %v5566 = vadd.f32 %v5209, %v5458
    %v5567 = vadd.f32 %v5210, %v5461
    %v5568 = vadd.f32 %v5211, %v5466
    %v5569 = vadd.f32 %v5212, %v5469
    %v5570 = vadd.f32 %v5213, %v5474
    %v5571 = vadd.f32 %v5214, %v5477
    %v5572 = vadd.f32 %v5215, %v5482
    %v5573 = vadd.f32 %v5216, %v5485
    %v5574 = vadd.f32 %v5217, %v5490
    %v5575 = vadd.f32 %v5218, %v5493
    %v5576 = vadd.f32 %v5219, %v5498
    %v5577 = vadd.f32 %v5220, %v5501
    %v5578 = vadd.f32 %v5221, %v5506
    %v5579 = vadd.f32 %v5222, %v5509
    %v5580 = vadd.f32 %v5223, %v5514
    %v5581 = vadd.f32 %v5224, %v5517
    %v5582 = vadd.f32 %v5225, %v5522
    %v5583 = vadd.f32 %v5226, %v5525
    %v5584 = vadd.f32 %v5227, %v5530
    %v5585 = vadd.f32 %v5228, %v5533
    %v5586 = vadd.f32 %v5229, %v5538
    %v5587 = vadd.f32 %v5230, %v5541
    %v5588 = vadd.f32 %v5231, %v5546
    %v5589 = vadd.f32 %v5232, %v5549
    %v5590 = vadd.f32 %v5233, %v5554
    %v5591 = vadd.f32 %v5234, %v5557
    %v5592 = vld [vmem:[%s3511 + $0x10] sm:$0xf]
    %v5593 = vld [vmem:[%s3511 + $0x14] sm:$0xf]
    %v5594 = vld [vmem:[%s3511 + $0x18] sm:$0xf]
    %v5595 = vld [vmem:[%s3511 + $0x1c] sm:$0xf]
    %v5596 = vld [vmem:[%s3511 + $0x20] sm:$0xf]
    %v5597 = vld [vmem:[%s3511 + $0x24] sm:$0xf]
    %v5598 = vld [vmem:[%s3511 + $0x28] sm:$0xf]
    %v5599 = vld [vmem:[%s3511 + $0x2c] sm:$0xf]
    %v5600 = vld [vmem:[%s3511 + $0x30] sm:$0xf]
    %v5601 = vld [vmem:[%s3511 + $0x34] sm:$0xf]
    %v5602 = vld [vmem:[%s3511 + $0x38] sm:$0xf]
    %v5603 = vld [vmem:[%s3511 + $0x3c] sm:$0xf]
    %v5604 = vld [vmem:[%s3511 + $0x40] sm:$0xf]
    %v5605 = vld [vmem:[%s3511 + $0x44] sm:$0xf]
    %v5606 = vld [vmem:[%s3511 + $0x48] sm:$0xf]
    %v5607 = vld [vmem:[%s3511 + $0x4c] sm:$0xf]
    %v5608 = vld [vmem:[%s3511 + $0x50] sm:$0xf]
    %v5609 = vld [vmem:[%s3511 + $0x54] sm:$0xf]
    %v5610 = vld [vmem:[%s3511 + $0x58] sm:$0xf]
    %v5611 = vld [vmem:[%s3511 + $0x5c] sm:$0xf]
    %v5612 = vld [vmem:[%s3511 + $0x60] sm:$0xf]
    %v5613 = vld [vmem:[%s3511 + $0x64] sm:$0xf]
    %v5614 = vld [vmem:[%s3511 + $0x68] sm:$0xf]
    %v5615 = vld [vmem:[%s3511 + $0x6c] sm:$0xf]
    %v5616 = vld [vmem:[%s3511 + $0x70] sm:$0xf]
    %v5617 = vld [vmem:[%s3511 + $0x74] sm:$0xf]
    %v5618 = vld [vmem:[%s3511 + $0x78] sm:$0xf]
    %v5619 = vld [vmem:[%s3511 + $0x7c] sm:$0xf]
    %v5620 = vld [vmem:[%s3511 + $0x80] sm:$0xf]
    %v5621 = vld [vmem:[%s3511 + $0x84] sm:$0xf]
    %v5622 = vld [vmem:[%s3511 + $0x88] sm:$0xf]
    %v5623 = vld [vmem:[%s3511 + $0x8c] sm:$0xf]
    %v5624 = vld [vmem:[%s2136] sm:$0x3]
    %v5657 = vunpack.c.l.b16 %v5592
    %v5658 = vunpack.c.l.b16 %v5593
    %v5659 = vunpack.c.l.b16 %v5594
    %v5660 = vunpack.c.l.b16 %v5595
    %v5661 = vunpack.c.l.b16 %v5596
    %v5662 = vunpack.c.l.b16 %v5597
    %v5663 = vunpack.c.l.b16 %v5598
    %v5664 = vunpack.c.l.b16 %v5599
    %v5665 = vunpack.c.l.b16 %v5600
    %v5666 = vunpack.c.l.b16 %v5601
    %v5667 = vunpack.c.l.b16 %v5602
    %v5668 = vunpack.c.l.b16 %v5603
    %v5669 = vunpack.c.l.b16 %v5604
    %v5670 = vunpack.c.l.b16 %v5605
    %v5671 = vunpack.c.l.b16 %v5606
    %v5672 = vunpack.c.l.b16 %v5607
    %v5673 = vunpack.c.l.b16 %v5608
    %v5674 = vunpack.c.l.b16 %v5609
    %v5675 = vunpack.c.l.b16 %v5610
    %v5676 = vunpack.c.l.b16 %v5611
    %v5677 = vunpack.c.l.b16 %v5612
    %v5678 = vunpack.c.l.b16 %v5613
    %v5679 = vunpack.c.l.b16 %v5614
    %v5680 = vunpack.c.l.b16 %v5615
    %v5681 = vunpack.c.l.b16 %v5616
    %v5682 = vunpack.c.l.b16 %v5617
    %v5683 = vunpack.c.l.b16 %v5618
    %v5684 = vunpack.c.l.b16 %v5619
    %v5685 = vunpack.c.l.b16 %v5620
    %v5686 = vunpack.c.l.b16 %v5621
    %v5687 = vunpack.c.l.b16 %v5622
    %v5688 = vunpack.c.l.b16 %v5623
    %v5689 = vpack.c.b16 %v5658, %v5657
    %v5690 = vpack.c.b16 %v5660, %v5659
    %v5691 = vpack.c.b16 %v5662, %v5661
    %v5692 = vpack.c.b16 %v5664, %v5663
    %v5693 = vpack.c.b16 %v5666, %v5665
    %v5694 = vpack.c.b16 %v5668, %v5667
    %v5695 = vpack.c.b16 %v5670, %v5669
    %v5696 = vpack.c.b16 %v5672, %v5671
    %v5697 = vpack.c.b16 %v5674, %v5673
    %v5698 = vpack.c.b16 %v5676, %v5675
    %v5699 = vpack.c.b16 %v5678, %v5677
    %v5700 = vpack.c.b16 %v5680, %v5679
    %v5701 = vpack.c.b16 %v5682, %v5681
    %v5702 = vpack.c.b16 %v5684, %v5683
    %v5703 = vpack.c.b16 %v5686, %v5685
    %v5704 = vpack.c.b16 %v5688, %v5687
    %v5706 = vsel %vm165, %v5689, 0
    %v5709 = vsel %vm165, %v5690, 0
    %v5712 = vsel %vm165, %v5691, 0
    %v5715 = vsel %vm165, %v5692, 0
    %v5718 = vsel %vm165, %v5693, 0
    %v5721 = vsel %vm165, %v5694, 0
    %v5724 = vsel %vm165, %v5695, 0
    %v5727 = vsel %vm165, %v5696, 0
    %v5730 = vsel %vm165, %v5697, 0
    %v5733 = vsel %vm165, %v5698, 0
    %v5736 = vsel %vm165, %v5699, 0
    %v5739 = vsel %vm165, %v5700, 0
    %v5742 = vsel %vm165, %v5701, 0
    %v5745 = vsel %vm165, %v5702, 0
    %v5748 = vsel %vm165, %v5703, 0
    %v5751 = vsel %vm165, %v5704, 0
    %v5754 = vsel %vm214, %v5624, 0
    %5756 = vmatprep.subr.bf16.mxu0 0
    %5757 = vmatpush1.bf16.msra.mxu0 %v5754
    %5758 = vmatprep.subr.bf16.mxu0 0
    %5759 = vmatpush1.bf16.msra.mxu0 0
    %5760 = vmatprep.subr.bf16.mxu0 0
    %5761 = vmatpush1.bf16.msra.mxu0 0
    %5762 = vmatprep.subr.bf16.mxu0 0
    %5763 = vmatpush1.bf16.msra.mxu0 0
    %5764 = vmatprep.subr.bf16.mxu0 0
    %5765 = vmatpush1.bf16.msra.mxu0 0
    %5766 = vmatprep.subr.bf16.mxu0 0
    %5767 = vmatpush1.bf16.msra.mxu0 0
    %5768 = vmatprep.subr.bf16.mxu0 0
    %5769 = vmatpush1.bf16.msra.mxu0 0
    %5770 = vmatprep.subr.bf16.mxu0 0
    %5771 = vmatpush1.bf16.msra.mxu0 0
    %5772 = vmatprep.subr.bf16.mxu0 0
    %5773 = vmatpush1.bf16.msra.mxu0 0
    %5774 = vmatprep.subr.bf16.mxu0 0
    %5775 = vmatpush1.bf16.msra.mxu0 0
    %5776 = vmatprep.subr.bf16.mxu0 0
    %5777 = vmatpush1.bf16.msra.mxu0 0
    %5778 = vmatprep.subr.bf16.mxu0 0
    %5779 = vmatpush1.bf16.msra.mxu0 0
    %5780 = vmatprep.subr.bf16.mxu0 0
    %5781 = vmatpush1.bf16.msra.mxu0 0
    %5782 = vmatprep.subr.bf16.mxu0 0
    %5783 = vmatpush1.bf16.msra.mxu0 0
    %5784 = vmatprep.subr.bf16.mxu0 0
    %5785 = vmatpush1.bf16.msra.mxu0 0
    %5786 = vmatprep.subr.bf16.mxu0 0
    %5787 = vmatpush1.bf16.msra.mxu0 0
    %5788 = vmatprep.mubr.bf16.mxu0 0
    %5789 = vmatmul.mubr.bf16.gmra.mrb[0].mxu0 %v5706
    %v5790 = vpop.f32.mrb[0].mxu0
    %v5791 = vadd.f32 0.0, %v5790
    %v5792 = vpop.f32.mrb[0].mxu0
    %v5793 = vpop.f32.mrb[0].mxu0
    %v5794 = vadd.f32 0.0, %v5793
    %v5795 = vpop.f32.mrb[0].mxu0
    %5796 = vmatprep.mubr.bf16.mxu0 0
    %5797 = vmatmul.mubr.bf16.gmra.mrb[0].mxu0 %v5709
    %v5798 = vpop.f32.mrb[0].mxu0
    %v5799 = vadd.f32 0.0, %v5798
    %v5800 = vpop.f32.mrb[0].mxu0
    %v5801 = vpop.f32.mrb[0].mxu0
    %v5802 = vadd.f32 0.0, %v5801
    %v5803 = vpop.f32.mrb[0].mxu0
    %5804 = vmatprep.mubr.bf16.mxu0 0
    %5805 = vmatmul.mubr.bf16.gmra.mrb[0].mxu0 %v5712
    %v5806 = vpop.f32.mrb[0].mxu0
    %v5807 = vadd.f32 0.0, %v5806
    %v5808 = vpop.f32.mrb[0].mxu0
    %v5809 = vpop.f32.mrb[0].mxu0
    %v5810 = vadd.f32 0.0, %v5809
    %v5811 = vpop.f32.mrb[0].mxu0
    %5812 = vmatprep.mubr.bf16.mxu0 0
    %5813 = vmatmul.mubr.bf16.gmra.mrb[0].mxu0 %v5715
    %v5814 = vpop.f32.mrb[0].mxu0
    %v5815 = vadd.f32 0.0, %v5814
    %v5816 = vpop.f32.mrb[0].mxu0
    %v5817 = vpop.f32.mrb[0].mxu0
    %v5818 = vadd.f32 0.0, %v5817
    %v5819 = vpop.f32.mrb[0].mxu0
    %5820 = vmatprep.mubr.bf16.mxu0 0
    %5821 = vmatmul.mubr.bf16.gmra.mrb[0].mxu0 %v5718
    %v5822 = vpop.f32.mrb[0].mxu0
    %v5823 = vadd.f32 0.0, %v5822
    %v5824 = vpop.f32.mrb[0].mxu0
    %v5825 = vpop.f32.mrb[0].mxu0
    %v5826 = vadd.f32 0.0, %v5825
    %v5827 = vpop.f32.mrb[0].mxu0
    %5828 = vmatprep.mubr.bf16.mxu0 0
    %5829 = vmatmul.mubr.bf16.gmra.mrb[0].mxu0 %v5721
    %v5830 = vpop.f32.mrb[0].mxu0
    %v5831 = vadd.f32 0.0, %v5830
    %v5832 = vpop.f32.mrb[0].mxu0
    %v5833 = vpop.f32.mrb[0].mxu0
    %v5834 = vadd.f32 0.0, %v5833
    %v5835 = vpop.f32.mrb[0].mxu0
    %5836 = vmatprep.mubr.bf16.mxu0 0
    %5837 = vmatmul.mubr.bf16.gmra.mrb[0].mxu0 %v5724
    %v5838 = vpop.f32.mrb[0].mxu0
    %v5839 = vadd.f32 0.0, %v5838
    %v5840 = vpop.f32.mrb[0].mxu0
    %v5841 = vpop.f32.mrb[0].mxu0
    %v5842 = vadd.f32 0.0, %v5841
    %v5843 = vpop.f32.mrb[0].mxu0
    %5844 = vmatprep.mubr.bf16.mxu0 0
    %5845 = vmatmul.mubr.bf16.gmra.mrb[0].mxu0 %v5727
    %v5846 = vpop.f32.mrb[0].mxu0
    %v5847 = vadd.f32 0.0, %v5846
    %v5848 = vpop.f32.mrb[0].mxu0
    %v5849 = vpop.f32.mrb[0].mxu0
    %v5850 = vadd.f32 0.0, %v5849
    %v5851 = vpop.f32.mrb[0].mxu0
    %5852 = vmatprep.mubr.bf16.mxu0 0
    %5853 = vmatmul.mubr.bf16.gmra.mrb[0].mxu0 %v5730
    %v5854 = vpop.f32.mrb[0].mxu0
    %v5855 = vadd.f32 0.0, %v5854
    %v5856 = vpop.f32.mrb[0].mxu0
    %v5857 = vpop.f32.mrb[0].mxu0
    %v5858 = vadd.f32 0.0, %v5857
    %v5859 = vpop.f32.mrb[0].mxu0
    %5860 = vmatprep.mubr.bf16.mxu0 0
    %5861 = vmatmul.mubr.bf16.gmra.mrb[0].mxu0 %v5733
    %v5862 = vpop.f32.mrb[0].mxu0
    %v5863 = vadd.f32 0.0, %v5862
    %v5864 = vpop.f32.mrb[0].mxu0
    %v5865 = vpop.f32.mrb[0].mxu0
    %v5866 = vadd.f32 0.0, %v5865
    %v5867 = vpop.f32.mrb[0].mxu0
    %5868 = vmatprep.mubr.bf16.mxu0 0
    %5869 = vmatmul.mubr.bf16.gmra.mrb[0].mxu0 %v5736
    %v5870 = vpop.f32.mrb[0].mxu0
    %v5871 = vadd.f32 0.0, %v5870
    %v5872 = vpop.f32.mrb[0].mxu0
    %v5873 = vpop.f32.mrb[0].mxu0
    %v5874 = vadd.f32 0.0, %v5873
    %v5875 = vpop.f32.mrb[0].mxu0
    %5876 = vmatprep.mubr.bf16.mxu0 0
    %5877 = vmatmul.mubr.bf16.gmra.mrb[0].mxu0 %v5739
    %v5878 = vpop.f32.mrb[0].mxu0
    %v5879 = vadd.f32 0.0, %v5878
    %v5880 = vpop.f32.mrb[0].mxu0
    %v5881 = vpop.f32.mrb[0].mxu0
    %v5882 = vadd.f32 0.0, %v5881
    %v5883 = vpop.f32.mrb[0].mxu0
    %5884 = vmatprep.mubr.bf16.mxu0 0
    %5885 = vmatmul.mubr.bf16.gmra.mrb[0].mxu0 %v5742
    %v5886 = vpop.f32.mrb[0].mxu0
    %v5887 = vadd.f32 0.0, %v5886
    %v5888 = vpop.f32.mrb[0].mxu0
    %v5889 = vpop.f32.mrb[0].mxu0
    %v5890 = vadd.f32 0.0, %v5889
    %v5891 = vpop.f32.mrb[0].mxu0
    %5892 = vmatprep.mubr.bf16.mxu0 0
    %5893 = vmatmul.mubr.bf16.gmra.mrb[0].mxu0 %v5745
    %v5894 = vpop.f32.mrb[0].mxu0
    %v5895 = vadd.f32 0.0, %v5894
    %v5896 = vpop.f32.mrb[0].mxu0
    %v5897 = vpop.f32.mrb[0].mxu0
    %v5898 = vadd.f32 0.0, %v5897
    %v5899 = vpop.f32.mrb[0].mxu0
    %5900 = vmatprep.mubr.bf16.mxu0 0
    %5901 = vmatmul.mubr.bf16.gmra.mrb[0].mxu0 %v5748
    %v5902 = vpop.f32.mrb[0].mxu0
    %v5903 = vadd.f32 0.0, %v5902
    %v5904 = vpop.f32.mrb[0].mxu0
    %v5905 = vpop.f32.mrb[0].mxu0
    %v5906 = vadd.f32 0.0, %v5905
    %v5907 = vpop.f32.mrb[0].mxu0
    %5908 = vmatprep.mubr.bf16.mxu0 0
    %5909 = vmatmul.mubr.bf16.gmra.mrb[0].mxu0 %v5751
    %v5910 = vpop.f32.mrb[0].mxu0
    %v5911 = vadd.f32 0.0, %v5910
    %v5912 = vpop.f32.mrb[0].mxu0
    %v5913 = vpop.f32.mrb[0].mxu0
    %v5914 = vadd.f32 0.0, %v5913
    %v5915 = vpop.f32.mrb[0].mxu0
    %5916 = vdwg.mxu0
    %v5917 = vadd.f32 %v5560, %v5791
    %v5918 = vadd.f32 %v5561, %v5794
    %v5919 = vadd.f32 %v5562, %v5799
    %v5920 = vadd.f32 %v5563, %v5802
    %v5921 = vadd.f32 %v5564, %v5807
    %v5922 = vadd.f32 %v5565, %v5810
    %v5923 = vadd.f32 %v5566, %v5815
    %v5924 = vadd.f32 %v5567, %v5818
    %v5925 = vadd.f32 %v5568, %v5823
    %v5926 = vadd.f32 %v5569, %v5826
    %v5927 = vadd.f32 %v5570, %v5831
    %v5928 = vadd.f32 %v5571, %v5834
    %v5929 = vadd.f32 %v5572, %v5839
    %v5930 = vadd.f32 %v5573, %v5842
    %v5931 = vadd.f32 %v5574, %v5847
    %v5932 = vadd.f32 %v5575, %v5850
    %v5933 = vadd.f32 %v5576, %v5855
    %v5934 = vadd.f32 %v5577, %v5858
    %v5935 = vadd.f32 %v5578, %v5863
    %v5936 = vadd.f32 %v5579, %v5866
    %v5937 = vadd.f32 %v5580, %v5871
    %v5938 = vadd.f32 %v5581, %v5874
    %v5939 = vadd.f32 %v5582, %v5879
    %v5940 = vadd.f32 %v5583, %v5882
    %v5941 = vadd.f32 %v5584, %v5887
    %v5942 = vadd.f32 %v5585, %v5890
    %v5943 = vadd.f32 %v5586, %v5895
    %v5944 = vadd.f32 %v5587, %v5898
    %v5945 = vadd.f32 %v5588, %v5903
    %v5946 = vadd.f32 %v5589, %v5906
    %v5947 = vadd.f32 %v5590, %v5911
    %v5948 = vadd.f32 %v5591, %v5914
    %v5949 = vld [vmem:[%s3545 + $0x10] sm:$0xf]
    %v5950 = vld [vmem:[%s3545 + $0x14] sm:$0xf]
    %v5951 = vld [vmem:[%s3545 + $0x18] sm:$0xf]
    %v5952 = vld [vmem:[%s3545 + $0x1c] sm:$0xf]
    %v5953 = vld [vmem:[%s3545 + $0x20] sm:$0xf]
    %v5954 = vld [vmem:[%s3545 + $0x24] sm:$0xf]
    %v5955 = vld [vmem:[%s3545 + $0x28] sm:$0xf]
    %v5956 = vld [vmem:[%s3545 + $0x2c] sm:$0xf]
    %v5957 = vld [vmem:[%s3545 + $0x30] sm:$0xf]
    %v5958 = vld [vmem:[%s3545 + $0x34] sm:$0xf]
    %v5959 = vld [vmem:[%s3545 + $0x38] sm:$0xf]
    %v5960 = vld [vmem:[%s3545 + $0x3c] sm:$0xf]
    %v5961 = vld [vmem:[%s3545 + $0x40] sm:$0xf]
    %v5962 = vld [vmem:[%s3545 + $0x44] sm:$0xf]
    %v5963 = vld [vmem:[%s3545 + $0x48] sm:$0xf]
    %v5964 = vld [vmem:[%s3545 + $0x4c] sm:$0xf]
    %v5965 = vld [vmem:[%s3545 + $0x50] sm:$0xf]
    %v5966 = vld [vmem:[%s3545 + $0x54] sm:$0xf]
    %v5967 = vld [vmem:[%s3545 + $0x58] sm:$0xf]
    %v5968 = vld [vmem:[%s3545 + $0x5c] sm:$0xf]
    %v5969 = vld [vmem:[%s3545 + $0x60] sm:$0xf]
    %v5970 = vld [vmem:[%s3545 + $0x64] sm:$0xf]
    %v5971 = vld [vmem:[%s3545 + $0x68] sm:$0xf]
    %v5972 = vld [vmem:[%s3545 + $0x6c] sm:$0xf]
    %v5973 = vld [vmem:[%s3545 + $0x70] sm:$0xf]
    %v5974 = vld [vmem:[%s3545 + $0x74] sm:$0xf]
    %v5975 = vld [vmem:[%s3545 + $0x78] sm:$0xf]
    %v5976 = vld [vmem:[%s3545 + $0x7c] sm:$0xf]
    %v5977 = vld [vmem:[%s3545 + $0x80] sm:$0xf]
    %v5978 = vld [vmem:[%s3545 + $0x84] sm:$0xf]
    %v5979 = vld [vmem:[%s3545 + $0x88] sm:$0xf]
    %v5980 = vld [vmem:[%s3545 + $0x8c] sm:$0xf]
    %v5981 = vld [vmem:[%s2494] sm:$0x3]
    %v6014 = vunpack.c.l.b16 %v5949
    %v6015 = vunpack.c.l.b16 %v5950
    %v6016 = vunpack.c.l.b16 %v5951
    %v6017 = vunpack.c.l.b16 %v5952
    %v6018 = vunpack.c.l.b16 %v5953
    %v6019 = vunpack.c.l.b16 %v5954
    %v6020 = vunpack.c.l.b16 %v5955
    %v6021 = vunpack.c.l.b16 %v5956
    %v6022 = vunpack.c.l.b16 %v5957
    %v6023 = vunpack.c.l.b16 %v5958
    %v6024 = vunpack.c.l.b16 %v5959
    %v6025 = vunpack.c.l.b16 %v5960
    %v6026 = vunpack.c.l.b16 %v5961
    %v6027 = vunpack.c.l.b16 %v5962
    %v6028 = vunpack.c.l.b16 %v5963
    %v6029 = vunpack.c.l.b16 %v5964
    %v6030 = vunpack.c.l.b16 %v5965
    %v6031 = vunpack.c.l.b16 %v5966
    %v6032 = vunpack.c.l.b16 %v5967
    %v6033 = vunpack.c.l.b16 %v5968
    %v6034 = vunpack.c.l.b16 %v5969
    %v6035 = vunpack.c.l.b16 %v5970
    %v6036 = vunpack.c.l.b16 %v5971
    %v6037 = vunpack.c.l.b16 %v5972
    %v6038 = vunpack.c.l.b16 %v5973
    %v6039 = vunpack.c.l.b16 %v5974
    %v6040 = vunpack.c.l.b16 %v5975
    %v6041 = vunpack.c.l.b16 %v5976
    %v6042 = vunpack.c.l.b16 %v5977
    %v6043 = vunpack.c.l.b16 %v5978
    %v6044 = vunpack.c.l.b16 %v5979
    %v6045 = vunpack.c.l.b16 %v5980
    %v6046 = vpack.c.b16 %v6015, %v6014
    %v6047 = vpack.c.b16 %v6017, %v6016
    %v6048 = vpack.c.b16 %v6019, %v6018
    %v6049 = vpack.c.b16 %v6021, %v6020
    %v6050 = vpack.c.b16 %v6023, %v6022
    %v6051 = vpack.c.b16 %v6025, %v6024
    %v6052 = vpack.c.b16 %v6027, %v6026
    %v6053 = vpack.c.b16 %v6029, %v6028
    %v6054 = vpack.c.b16 %v6031, %v6030
    %v6055 = vpack.c.b16 %v6033, %v6032
    %v6056 = vpack.c.b16 %v6035, %v6034
    %v6057 = vpack.c.b16 %v6037, %v6036
    %v6058 = vpack.c.b16 %v6039, %v6038
    %v6059 = vpack.c.b16 %v6041, %v6040
    %v6060 = vpack.c.b16 %v6043, %v6042
    %v6061 = vpack.c.b16 %v6045, %v6044
    %v6063 = vsel %vm165, %v6046, 0
    %v6066 = vsel %vm165, %v6047, 0
    %v6069 = vsel %vm165, %v6048, 0
    %v6072 = vsel %vm165, %v6049, 0
    %v6075 = vsel %vm165, %v6050, 0
    %v6078 = vsel %vm165, %v6051, 0
    %v6081 = vsel %vm165, %v6052, 0
    %v6084 = vsel %vm165, %v6053, 0
    %v6087 = vsel %vm165, %v6054, 0
    %v6090 = vsel %vm165, %v6055, 0
    %v6093 = vsel %vm165, %v6056, 0
    %v6096 = vsel %vm165, %v6057, 0
    %v6099 = vsel %vm165, %v6058, 0
    %v6102 = vsel %vm165, %v6059, 0
    %v6105 = vsel %vm165, %v6060, 0
    %v6108 = vsel %vm165, %v6061, 0
    %v6111 = vsel %vm214, %v5981, 0
    %6113 = vmatprep.subr.bf16.mxu0 0
    %6114 = vmatpush1.bf16.msra.mxu0 %v6111
    %6115 = vmatprep.subr.bf16.mxu0 0
    %6116 = vmatpush1.bf16.msra.mxu0 0
    %6117 = vmatprep.subr.bf16.mxu0 0
    %6118 = vmatpush1.bf16.msra.mxu0 0
    %6119 = vmatprep.subr.bf16.mxu0 0
    %6120 = vmatpush1.bf16.msra.mxu0 0
    %6121 = vmatprep.subr.bf16.mxu0 0
    %6122 = vmatpush1.bf16.msra.mxu0 0
    %6123 = vmatprep.subr.bf16.mxu0 0
    %6124 = vmatpush1.bf16.msra.mxu0 0
    %6125 = vmatprep.subr.bf16.mxu0 0
    %6126 = vmatpush1.bf16.msra.mxu0 0
    %6127 = vmatprep.subr.bf16.mxu0 0
    %6128 = vmatpush1.bf16.msra.mxu0 0
    %6129 = vmatprep.subr.bf16.mxu0 0
    %6130 = vmatpush1.bf16.msra.mxu0 0
    %6131 = vmatprep.subr.bf16.mxu0 0
    %6132 = vmatpush1.bf16.msra.mxu0 0
    %6133 = vmatprep.subr.bf16.mxu0 0
    %6134 = vmatpush1.bf16.msra.mxu0 0
    %6135 = vmatprep.subr.bf16.mxu0 0
    %6136 = vmatpush1.bf16.msra.mxu0 0
    %6137 = vmatprep.subr.bf16.mxu0 0
    %6138 = vmatpush1.bf16.msra.mxu0 0
    %6139 = vmatprep.subr.bf16.mxu0 0
    %6140 = vmatpush1.bf16.msra.mxu0 0
    %6141 = vmatprep.subr.bf16.mxu0 0
    %6142 = vmatpush1.bf16.msra.mxu0 0
    %6143 = vmatprep.subr.bf16.mxu0 0
    %6144 = vmatpush1.bf16.msra.mxu0 0
    %6145 = vmatprep.mubr.bf16.mxu0 0
    %6146 = vmatmul.mubr.bf16.gmra.mrb[0].mxu0 %v6063
    %v6147 = vpop.f32.mrb[0].mxu0
    %v6148 = vadd.f32 0.0, %v6147
    %v6149 = vpop.f32.mrb[0].mxu0
    %v6150 = vpop.f32.mrb[0].mxu0
    %v6151 = vadd.f32 0.0, %v6150
    %v6152 = vpop.f32.mrb[0].mxu0
    %6153 = vmatprep.mubr.bf16.mxu0 0
    %6154 = vmatmul.mubr.bf16.gmra.mrb[0].mxu0 %v6066
    %v6155 = vpop.f32.mrb[0].mxu0
    %v6156 = vadd.f32 0.0, %v6155
    %v6157 = vpop.f32.mrb[0].mxu0
    %v6158 = vpop.f32.mrb[0].mxu0
    %v6159 = vadd.f32 0.0, %v6158
    %v6160 = vpop.f32.mrb[0].mxu0
    %6161 = vmatprep.mubr.bf16.mxu0 0
    %6162 = vmatmul.mubr.bf16.gmra.mrb[0].mxu0 %v6069
    %v6163 = vpop.f32.mrb[0].mxu0
    %v6164 = vadd.f32 0.0, %v6163
    %v6165 = vpop.f32.mrb[0].mxu0
    %v6166 = vpop.f32.mrb[0].mxu0
    %v6167 = vadd.f32 0.0, %v6166
    %v6168 = vpop.f32.mrb[0].mxu0
    %6169 = vmatprep.mubr.bf16.mxu0 0
    %6170 = vmatmul.mubr.bf16.gmra.mrb[0].mxu0 %v6072
    %v6171 = vpop.f32.mrb[0].mxu0
    %v6172 = vadd.f32 0.0, %v6171
    %v6173 = vpop.f32.mrb[0].mxu0
    %v6174 = vpop.f32.mrb[0].mxu0
    %v6175 = vadd.f32 0.0, %v6174
    %v6176 = vpop.f32.mrb[0].mxu0
    %6177 = vmatprep.mubr.bf16.mxu0 0
    %6178 = vmatmul.mubr.bf16.gmra.mrb[0].mxu0 %v6075
    %v6179 = vpop.f32.mrb[0].mxu0
    %v6180 = vadd.f32 0.0, %v6179
    %v6181 = vpop.f32.mrb[0].mxu0
    %v6182 = vpop.f32.mrb[0].mxu0
    %v6183 = vadd.f32 0.0, %v6182
    %v6184 = vpop.f32.mrb[0].mxu0
    %6185 = vmatprep.mubr.bf16.mxu0 0
    %6186 = vmatmul.mubr.bf16.gmra.mrb[0].mxu0 %v6078
    %v6187 = vpop.f32.mrb[0].mxu0
    %v6188 = vadd.f32 0.0, %v6187
    %v6189 = vpop.f32.mrb[0].mxu0
    %v6190 = vpop.f32.mrb[0].mxu0
    %v6191 = vadd.f32 0.0, %v6190
    %v6192 = vpop.f32.mrb[0].mxu0
    %6193 = vmatprep.mubr.bf16.mxu0 0
    %6194 = vmatmul.mubr.bf16.gmra.mrb[0].mxu0 %v6081
    %v6195 = vpop.f32.mrb[0].mxu0
    %v6196 = vadd.f32 0.0, %v6195
    %v6197 = vpop.f32.mrb[0].mxu0
    %v6198 = vpop.f32.mrb[0].mxu0
    %v6199 = vadd.f32 0.0, %v6198
    %v6200 = vpop.f32.mrb[0].mxu0
    %6201 = vmatprep.mubr.bf16.mxu0 0
    %6202 = vmatmul.mubr.bf16.gmra.mrb[0].mxu0 %v6084
    %v6203 = vpop.f32.mrb[0].mxu0
    %v6204 = vadd.f32 0.0, %v6203
    %v6205 = vpop.f32.mrb[0].mxu0
    %v6206 = vpop.f32.mrb[0].mxu0
    %v6207 = vadd.f32 0.0, %v6206
    %v6208 = vpop.f32.mrb[0].mxu0
    %6209 = vmatprep.mubr.bf16.mxu0 0
    %6210 = vmatmul.mubr.bf16.gmra.mrb[0].mxu0 %v6087
    %v6211 = vpop.f32.mrb[0].mxu0
    %v6212 = vadd.f32 0.0, %v6211
    %v6213 = vpop.f32.mrb[0].mxu0
    %v6214 = vpop.f32.mrb[0].mxu0
    %v6215 = vadd.f32 0.0, %v6214
    %v6216 = vpop.f32.mrb[0].mxu0
    %6217 = vmatprep.mubr.bf16.mxu0 0
    %6218 = vmatmul.mubr.bf16.gmra.mrb[0].mxu0 %v6090
    %v6219 = vpop.f32.mrb[0].mxu0
    %v6220 = vadd.f32 0.0, %v6219
    %v6221 = vpop.f32.mrb[0].mxu0
    %v6222 = vpop.f32.mrb[0].mxu0
    %v6223 = vadd.f32 0.0, %v6222
    %v6224 = vpop.f32.mrb[0].mxu0
    %6225 = vmatprep.mubr.bf16.mxu0 0
    %6226 = vmatmul.mubr.bf16.gmra.mrb[0].mxu0 %v6093
    %v6227 = vpop.f32.mrb[0].mxu0
    %v6228 = vadd.f32 0.0, %v6227
    %v6229 = vpop.f32.mrb[0].mxu0
    %v6230 = vpop.f32.mrb[0].mxu0
    %v6231 = vadd.f32 0.0, %v6230
    %v6232 = vpop.f32.mrb[0].mxu0
    %6233 = vmatprep.mubr.bf16.mxu0 0
    %6234 = vmatmul.mubr.bf16.gmra.mrb[0].mxu0 %v6096
    %v6235 = vpop.f32.mrb[0].mxu0
    %v6236 = vadd.f32 0.0, %v6235
    %v6237 = vpop.f32.mrb[0].mxu0
    %v6238 = vpop.f32.mrb[0].mxu0
    %v6239 = vadd.f32 0.0, %v6238
    %v6240 = vpop.f32.mrb[0].mxu0
    %6241 = vmatprep.mubr.bf16.mxu0 0
    %6242 = vmatmul.mubr.bf16.gmra.mrb[0].mxu0 %v6099
    %v6243 = vpop.f32.mrb[0].mxu0
    %v6244 = vadd.f32 0.0, %v6243
    %v6245 = vpop.f32.mrb[0].mxu0
    %v6246 = vpop.f32.mrb[0].mxu0
    %v6247 = vadd.f32 0.0, %v6246
    %v6248 = vpop.f32.mrb[0].mxu0
    %6249 = vmatprep.mubr.bf16.mxu0 0
    %6250 = vmatmul.mubr.bf16.gmra.mrb[0].mxu0 %v6102
    %v6251 = vpop.f32.mrb[0].mxu0
    %v6252 = vadd.f32 0.0, %v6251
    %v6253 = vpop.f32.mrb[0].mxu0
    %v6254 = vpop.f32.mrb[0].mxu0
    %v6255 = vadd.f32 0.0, %v6254
    %v6256 = vpop.f32.mrb[0].mxu0
    %6257 = vmatprep.mubr.bf16.mxu0 0
    %6258 = vmatmul.mubr.bf16.gmra.mrb[0].mxu0 %v6105
    %v6259 = vpop.f32.mrb[0].mxu0
    %v6260 = vadd.f32 0.0, %v6259
    %v6261 = vpop.f32.mrb[0].mxu0
    %v6262 = vpop.f32.mrb[0].mxu0
    %v6263 = vadd.f32 0.0, %v6262
    %v6264 = vpop.f32.mrb[0].mxu0
    %6265 = vmatprep.mubr.bf16.mxu0 0
    %6266 = vmatmul.mubr.bf16.gmra.mrb[0].mxu0 %v6108
    %v6267 = vpop.f32.mrb[0].mxu0
    %v6268 = vadd.f32 0.0, %v6267
    %v6269 = vpop.f32.mrb[0].mxu0
    %v6270 = vpop.f32.mrb[0].mxu0
    %v6271 = vadd.f32 0.0, %v6270
    %v6272 = vpop.f32.mrb[0].mxu0
    %6273 = vdwg.mxu0
    %v6274 = vadd.f32 %v5917, %v6148
    %v6275 = vadd.f32 %v5918, %v6151
    %v6276 = vadd.f32 %v5919, %v6156
    %v6277 = vadd.f32 %v5920, %v6159
    %v6278 = vadd.f32 %v5921, %v6164
    %v6279 = vadd.f32 %v5922, %v6167
    %v6280 = vadd.f32 %v5923, %v6172
    %v6281 = vadd.f32 %v5924, %v6175
    %v6282 = vadd.f32 %v5925, %v6180
    %v6283 = vadd.f32 %v5926, %v6183
    %v6284 = vadd.f32 %v5927, %v6188
    %v6285 = vadd.f32 %v5928, %v6191
    %v6286 = vadd.f32 %v5929, %v6196
    %v6287 = vadd.f32 %v5930, %v6199
    %v6288 = vadd.f32 %v5931, %v6204
    %v6289 = vadd.f32 %v5932, %v6207
    %v6290 = vadd.f32 %v5933, %v6212
    %v6291 = vadd.f32 %v5934, %v6215
    %v6292 = vadd.f32 %v5935, %v6220
    %v6293 = vadd.f32 %v5936, %v6223
    %v6294 = vadd.f32 %v5937, %v6228
    %v6295 = vadd.f32 %v5938, %v6231
    %v6296 = vadd.f32 %v5939, %v6236
    %v6297 = vadd.f32 %v5940, %v6239
    %v6298 = vadd.f32 %v5941, %v6244
    %v6299 = vadd.f32 %v5942, %v6247
    %v6300 = vadd.f32 %v5943, %v6252
    %v6301 = vadd.f32 %v5944, %v6255
    %v6302 = vadd.f32 %v5945, %v6260
    %v6303 = vadd.f32 %v5946, %v6263
    %v6304 = vadd.f32 %v5947, %v6268
    %v6305 = vadd.f32 %v5948, %v6271
    %v6306 = vld [vmem:[%s4163 + $0x10] sm:$0xf]
    %v6307 = vld [vmem:[%s4163 + $0x14] sm:$0xf]
    %v6308 = vld [vmem:[%s4163 + $0x18] sm:$0xf]
    %v6309 = vld [vmem:[%s4163 + $0x1c] sm:$0xf]
    %v6310 = vld [vmem:[%s4163 + $0x20] sm:$0xf]
    %v6311 = vld [vmem:[%s4163 + $0x24] sm:$0xf]
    %v6312 = vld [vmem:[%s4163 + $0x28] sm:$0xf]
    %v6313 = vld [vmem:[%s4163 + $0x2c] sm:$0xf]
    %v6314 = vld [vmem:[%s4163 + $0x30] sm:$0xf]
    %v6315 = vld [vmem:[%s4163 + $0x34] sm:$0xf]
    %v6316 = vld [vmem:[%s4163 + $0x38] sm:$0xf]
    %v6317 = vld [vmem:[%s4163 + $0x3c] sm:$0xf]
    %v6318 = vld [vmem:[%s4163 + $0x40] sm:$0xf]
    %v6319 = vld [vmem:[%s4163 + $0x44] sm:$0xf]
    %v6320 = vld [vmem:[%s4163 + $0x48] sm:$0xf]
    %v6321 = vld [vmem:[%s4163 + $0x4c] sm:$0xf]
    %v6322 = vld [vmem:[%s4163 + $0x50] sm:$0xf]
    %v6323 = vld [vmem:[%s4163 + $0x54] sm:$0xf]
    %v6324 = vld [vmem:[%s4163 + $0x58] sm:$0xf]
    %v6325 = vld [vmem:[%s4163 + $0x5c] sm:$0xf]
    %v6326 = vld [vmem:[%s4163 + $0x60] sm:$0xf]
    %v6327 = vld [vmem:[%s4163 + $0x64] sm:$0xf]
    %v6328 = vld [vmem:[%s4163 + $0x68] sm:$0xf]
    %v6329 = vld [vmem:[%s4163 + $0x6c] sm:$0xf]
    %v6330 = vld [vmem:[%s4163 + $0x70] sm:$0xf]
    %v6331 = vld [vmem:[%s4163 + $0x74] sm:$0xf]
    %v6332 = vld [vmem:[%s4163 + $0x78] sm:$0xf]
    %v6333 = vld [vmem:[%s4163 + $0x7c] sm:$0xf]
    %v6334 = vld [vmem:[%s4163 + $0x80] sm:$0xf]
    %v6335 = vld [vmem:[%s4163 + $0x84] sm:$0xf]
    %v6336 = vld [vmem:[%s4163 + $0x88] sm:$0xf]
    %v6337 = vld [vmem:[%s4163 + $0x8c] sm:$0xf]
    %v6338 = vld [vmem:[%s2852] sm:$0x3]
    %v6371 = vunpack.c.l.b16 %v6306
    %v6372 = vunpack.c.l.b16 %v6307
    %v6373 = vunpack.c.l.b16 %v6308
    %v6374 = vunpack.c.l.b16 %v6309
    %v6375 = vunpack.c.l.b16 %v6310
    %v6376 = vunpack.c.l.b16 %v6311
    %v6377 = vunpack.c.l.b16 %v6312
    %v6378 = vunpack.c.l.b16 %v6313
    %v6379 = vunpack.c.l.b16 %v6314
    %v6380 = vunpack.c.l.b16 %v6315
    %v6381 = vunpack.c.l.b16 %v6316
    %v6382 = vunpack.c.l.b16 %v6317
    %v6383 = vunpack.c.l.b16 %v6318
    %v6384 = vunpack.c.l.b16 %v6319
    %v6385 = vunpack.c.l.b16 %v6320
    %v6386 = vunpack.c.l.b16 %v6321
    %v6387 = vunpack.c.l.b16 %v6322
    %v6388 = vunpack.c.l.b16 %v6323
    %v6389 = vunpack.c.l.b16 %v6324
    %v6390 = vunpack.c.l.b16 %v6325
    %v6391 = vunpack.c.l.b16 %v6326
    %v6392 = vunpack.c.l.b16 %v6327
    %v6393 = vunpack.c.l.b16 %v6328
    %v6394 = vunpack.c.l.b16 %v6329
    %v6395 = vunpack.c.l.b16 %v6330
    %v6396 = vunpack.c.l.b16 %v6331
    %v6397 = vunpack.c.l.b16 %v6332
    %v6398 = vunpack.c.l.b16 %v6333
    %v6399 = vunpack.c.l.b16 %v6334
    %v6400 = vunpack.c.l.b16 %v6335
    %v6401 = vunpack.c.l.b16 %v6336
    %v6402 = vunpack.c.l.b16 %v6337
    %v6403 = vpack.c.b16 %v6372, %v6371
    %v6404 = vpack.c.b16 %v6374, %v6373
    %v6405 = vpack.c.b16 %v6376, %v6375
    %v6406 = vpack.c.b16 %v6378, %v6377
    %v6407 = vpack.c.b16 %v6380, %v6379
    %v6408 = vpack.c.b16 %v6382, %v6381
    %v6409 = vpack.c.b16 %v6384, %v6383
    %v6410 = vpack.c.b16 %v6386, %v6385
    %v6411 = vpack.c.b16 %v6388, %v6387
    %v6412 = vpack.c.b16 %v6390, %v6389
    %v6413 = vpack.c.b16 %v6392, %v6391
    %v6414 = vpack.c.b16 %v6394, %v6393
    %v6415 = vpack.c.b16 %v6396, %v6395
    %v6416 = vpack.c.b16 %v6398, %v6397
    %v6417 = vpack.c.b16 %v6400, %v6399
    %v6418 = vpack.c.b16 %v6402, %v6401
    %v6420 = vsel %vm165, %v6403, 0
    %v6423 = vsel %vm165, %v6404, 0
    %v6426 = vsel %vm165, %v6405, 0
    %v6429 = vsel %vm165, %v6406, 0
    %v6432 = vsel %vm165, %v6407, 0
    %v6435 = vsel %vm165, %v6408, 0
    %v6438 = vsel %vm165, %v6409, 0
    %v6441 = vsel %vm165, %v6410, 0
    %v6444 = vsel %vm165, %v6411, 0
    %v6447 = vsel %vm165, %v6412, 0
    %v6450 = vsel %vm165, %v6413, 0
    %v6453 = vsel %vm165, %v6414, 0
    %v6456 = vsel %vm165, %v6415, 0
    %v6459 = vsel %vm165, %v6416, 0
    %v6462 = vsel %vm165, %v6417, 0
    %v6465 = vsel %vm165, %v6418, 0
    %v6468 = vsel %vm214, %v6338, 0
    %6470 = vmatprep.subr.bf16.mxu0 0
    %6471 = vmatpush1.bf16.msra.mxu0 %v6468
    %6472 = vmatprep.subr.bf16.mxu0 0
    %6473 = vmatpush1.bf16.msra.mxu0 0
    %6474 = vmatprep.subr.bf16.mxu0 0
    %6475 = vmatpush1.bf16.msra.mxu0 0
    %6476 = vmatprep.subr.bf16.mxu0 0
    %6477 = vmatpush1.bf16.msra.mxu0 0
    %6478 = vmatprep.subr.bf16.mxu0 0
    %6479 = vmatpush1.bf16.msra.mxu0 0
    %6480 = vmatprep.subr.bf16.mxu0 0
    %6481 = vmatpush1.bf16.msra.mxu0 0
    %6482 = vmatprep.subr.bf16.mxu0 0
    %6483 = vmatpush1.bf16.msra.mxu0 0
    %6484 = vmatprep.subr.bf16.mxu0 0
    %6485 = vmatpush1.bf16.msra.mxu0 0
    %6486 = vmatprep.subr.bf16.mxu0 0
    %6487 = vmatpush1.bf16.msra.mxu0 0
    %6488 = vmatprep.subr.bf16.mxu0 0
    %6489 = vmatpush1.bf16.msra.mxu0 0
    %6490 = vmatprep.subr.bf16.mxu0 0
    %6491 = vmatpush1.bf16.msra.mxu0 0
    %6492 = vmatprep.subr.bf16.mxu0 0
    %6493 = vmatpush1.bf16.msra.mxu0 0
    %6494 = vmatprep.subr.bf16.mxu0 0
    %6495 = vmatpush1.bf16.msra.mxu0 0
    %6496 = vmatprep.subr.bf16.mxu0 0
    %6497 = vmatpush1.bf16.msra.mxu0 0
    %6498 = vmatprep.subr.bf16.mxu0 0
    %6499 = vmatpush1.bf16.msra.mxu0 0
    %6500 = vmatprep.subr.bf16.mxu0 0
    %6501 = vmatpush1.bf16.msra.mxu0 0
    %6502 = vmatprep.mubr.bf16.mxu0 0
    %6503 = vmatmul.mubr.bf16.gmra.mrb[0].mxu0 %v6420
    %v6504 = vpop.f32.mrb[0].mxu0
    %v6505 = vadd.f32 0.0, %v6504
    %v6506 = vpop.f32.mrb[0].mxu0
    %v6507 = vpop.f32.mrb[0].mxu0
    %v6508 = vadd.f32 0.0, %v6507
    %v6509 = vpop.f32.mrb[0].mxu0
    %6510 = vmatprep.mubr.bf16.mxu0 0
    %6511 = vmatmul.mubr.bf16.gmra.mrb[0].mxu0 %v6423
    %v6512 = vpop.f32.mrb[0].mxu0
    %v6513 = vadd.f32 0.0, %v6512
    %v6514 = vpop.f32.mrb[0].mxu0
    %v6515 = vpop.f32.mrb[0].mxu0
    %v6516 = vadd.f32 0.0, %v6515
    %v6517 = vpop.f32.mrb[0].mxu0
    %6518 = vmatprep.mubr.bf16.mxu0 0
    %6519 = vmatmul.mubr.bf16.gmra.mrb[0].mxu0 %v6426
    %v6520 = vpop.f32.mrb[0].mxu0
    %v6521 = vadd.f32 0.0, %v6520
    %v6522 = vpop.f32.mrb[0].mxu0
    %v6523 = vpop.f32.mrb[0].mxu0
    %v6524 = vadd.f32 0.0, %v6523
    %v6525 = vpop.f32.mrb[0].mxu0
    %6526 = vmatprep.mubr.bf16.mxu0 0
    %6527 = vmatmul.mubr.bf16.gmra.mrb[0].mxu0 %v6429
    %v6528 = vpop.f32.mrb[0].mxu0
    %v6529 = vadd.f32 0.0, %v6528
    %v6530 = vpop.f32.mrb[0].mxu0
    %v6531 = vpop.f32.mrb[0].mxu0
    %v6532 = vadd.f32 0.0, %v6531
    %v6533 = vpop.f32.mrb[0].mxu0
    %6534 = vmatprep.mubr.bf16.mxu0 0
    %6535 = vmatmul.mubr.bf16.gmra.mrb[0].mxu0 %v6432
    %v6536 = vpop.f32.mrb[0].mxu0
    %v6537 = vadd.f32 0.0, %v6536
    %v6538 = vpop.f32.mrb[0].mxu0
    %v6539 = vpop.f32.mrb[0].mxu0
    %v6540 = vadd.f32 0.0, %v6539
    %v6541 = vpop.f32.mrb[0].mxu0
    %6542 = vmatprep.mubr.bf16.mxu0 0
    %6543 = vmatmul.mubr.bf16.gmra.mrb[0].mxu0 %v6435
    %v6544 = vpop.f32.mrb[0].mxu0
    %v6545 = vadd.f32 0.0, %v6544
    %v6546 = vpop.f32.mrb[0].mxu0
    %v6547 = vpop.f32.mrb[0].mxu0
    %v6548 = vadd.f32 0.0, %v6547
    %v6549 = vpop.f32.mrb[0].mxu0
    %6550 = vmatprep.mubr.bf16.mxu0 0
    %6551 = vmatmul.mubr.bf16.gmra.mrb[0].mxu0 %v6438
    %v6552 = vpop.f32.mrb[0].mxu0
    %v6553 = vadd.f32 0.0, %v6552
    %v6554 = vpop.f32.mrb[0].mxu0
    %v6555 = vpop.f32.mrb[0].mxu0
    %v6556 = vadd.f32 0.0, %v6555
    %v6557 = vpop.f32.mrb[0].mxu0
    %6558 = vmatprep.mubr.bf16.mxu0 0
    %6559 = vmatmul.mubr.bf16.gmra.mrb[0].mxu0 %v6441
    %v6560 = vpop.f32.mrb[0].mxu0
    %v6561 = vadd.f32 0.0, %v6560
    %v6562 = vpop.f32.mrb[0].mxu0
    %v6563 = vpop.f32.mrb[0].mxu0
    %v6564 = vadd.f32 0.0, %v6563
    %v6565 = vpop.f32.mrb[0].mxu0
    %6566 = vmatprep.mubr.bf16.mxu0 0
    %6567 = vmatmul.mubr.bf16.gmra.mrb[0].mxu0 %v6444
    %v6568 = vpop.f32.mrb[0].mxu0
    %v6569 = vadd.f32 0.0, %v6568
    %v6570 = vpop.f32.mrb[0].mxu0
    %v6571 = vpop.f32.mrb[0].mxu0
    %v6572 = vadd.f32 0.0, %v6571
    %v6573 = vpop.f32.mrb[0].mxu0
    %6574 = vmatprep.mubr.bf16.mxu0 0
    %6575 = vmatmul.mubr.bf16.gmra.mrb[0].mxu0 %v6447
    %v6576 = vpop.f32.mrb[0].mxu0
    %v6577 = vadd.f32 0.0, %v6576
    %v6578 = vpop.f32.mrb[0].mxu0
    %v6579 = vpop.f32.mrb[0].mxu0
    %v6580 = vadd.f32 0.0, %v6579
    %v6581 = vpop.f32.mrb[0].mxu0
    %6582 = vmatprep.mubr.bf16.mxu0 0
    %6583 = vmatmul.mubr.bf16.gmra.mrb[0].mxu0 %v6450
    %v6584 = vpop.f32.mrb[0].mxu0
    %v6585 = vadd.f32 0.0, %v6584
    %v6586 = vpop.f32.mrb[0].mxu0
    %v6587 = vpop.f32.mrb[0].mxu0
    %v6588 = vadd.f32 0.0, %v6587
    %v6589 = vpop.f32.mrb[0].mxu0
    %6590 = vmatprep.mubr.bf16.mxu0 0
    %6591 = vmatmul.mubr.bf16.gmra.mrb[0].mxu0 %v6453
    %v6592 = vpop.f32.mrb[0].mxu0
    %v6593 = vadd.f32 0.0, %v6592
    %v6594 = vpop.f32.mrb[0].mxu0
    %v6595 = vpop.f32.mrb[0].mxu0
    %v6596 = vadd.f32 0.0, %v6595
    %v6597 = vpop.f32.mrb[0].mxu0
    %6598 = vmatprep.mubr.bf16.mxu0 0
    %6599 = vmatmul.mubr.bf16.gmra.mrb[0].mxu0 %v6456
    %v6600 = vpop.f32.mrb[0].mxu0
    %v6601 = vadd.f32 0.0, %v6600
    %v6602 = vpop.f32.mrb[0].mxu0
    %v6603 = vpop.f32.mrb[0].mxu0
    %v6604 = vadd.f32 0.0, %v6603
    %v6605 = vpop.f32.mrb[0].mxu0
    %6606 = vmatprep.mubr.bf16.mxu0 0
    %6607 = vmatmul.mubr.bf16.gmra.mrb[0].mxu0 %v6459
    %v6608 = vpop.f32.mrb[0].mxu0
    %v6609 = vadd.f32 0.0, %v6608
    %v6610 = vpop.f32.mrb[0].mxu0
    %v6611 = vpop.f32.mrb[0].mxu0
    %v6612 = vadd.f32 0.0, %v6611
    %v6613 = vpop.f32.mrb[0].mxu0
    %6614 = vmatprep.mubr.bf16.mxu0 0
    %6615 = vmatmul.mubr.bf16.gmra.mrb[0].mxu0 %v6462
    %v6616 = vpop.f32.mrb[0].mxu0
    %v6617 = vadd.f32 0.0, %v6616
    %v6618 = vpop.f32.mrb[0].mxu0
    %v6619 = vpop.f32.mrb[0].mxu0
    %v6620 = vadd.f32 0.0, %v6619
    %v6621 = vpop.f32.mrb[0].mxu0
    %6622 = vmatprep.mubr.bf16.mxu0 0
    %6623 = vmatmul.mubr.bf16.gmra.mrb[0].mxu0 %v6465
    %v6624 = vpop.f32.mrb[0].mxu0
    %v6625 = vadd.f32 0.0, %v6624
    %v6626 = vpop.f32.mrb[0].mxu0
    %v6627 = vpop.f32.mrb[0].mxu0
    %v6628 = vadd.f32 0.0, %v6627
    %v6629 = vpop.f32.mrb[0].mxu0
    %6630 = vdwg.mxu0
    %v6631 = vadd.f32 %v6274, %v6505
    %v6632 = vadd.f32 %v6275, %v6508
    %v6633 = vadd.f32 %v6276, %v6513
    %v6634 = vadd.f32 %v6277, %v6516
    %v6635 = vadd.f32 %v6278, %v6521
    %v6636 = vadd.f32 %v6279, %v6524
    %v6637 = vadd.f32 %v6280, %v6529
    %v6638 = vadd.f32 %v6281, %v6532
    %v6639 = vadd.f32 %v6282, %v6537
    %v6640 = vadd.f32 %v6283, %v6540
    %v6641 = vadd.f32 %v6284, %v6545
    %v6642 = vadd.f32 %v6285, %v6548
    %v6643 = vadd.f32 %v6286, %v6553
    %v6644 = vadd.f32 %v6287, %v6556
    %v6645 = vadd.f32 %v6288, %v6561
    %v6646 = vadd.f32 %v6289, %v6564
    %v6647 = vadd.f32 %v6290, %v6569
    %v6648 = vadd.f32 %v6291, %v6572
    %v6649 = vadd.f32 %v6292, %v6577
    %v6650 = vadd.f32 %v6293, %v6580
    %v6651 = vadd.f32 %v6294, %v6585
    %v6652 = vadd.f32 %v6295, %v6588
    %v6653 = vadd.f32 %v6296, %v6593
    %v6654 = vadd.f32 %v6297, %v6596
    %v6655 = vadd.f32 %v6298, %v6601
    %v6656 = vadd.f32 %v6299, %v6604
    %v6657 = vadd.f32 %v6300, %v6609
    %v6658 = vadd.f32 %v6301, %v6612
    %v6659 = vadd.f32 %v6302, %v6617
    %v6660 = vadd.f32 %v6303, %v6620
    %v6661 = vadd.f32 %v6304, %v6625
    %v6662 = vadd.f32 %v6305, %v6628
    %v6663 = vpack.c.bf16 %v6632, %v6631
    %v6664 = vpack.c.bf16 %v6634, %v6633
    %v6665 = vpack.c.bf16 %v6636, %v6635
    %v6666 = vpack.c.bf16 %v6638, %v6637
    %v6667 = vpack.c.bf16 %v6640, %v6639
    %v6668 = vpack.c.bf16 %v6642, %v6641
    %v6669 = vpack.c.bf16 %v6644, %v6643
    %v6670 = vpack.c.bf16 %v6646, %v6645
    %v6671 = vpack.c.bf16 %v6648, %v6647
    %v6672 = vpack.c.bf16 %v6650, %v6649
    %v6673 = vpack.c.bf16 %v6652, %v6651
    %v6674 = vpack.c.bf16 %v6654, %v6653
    %v6675 = vpack.c.bf16 %v6656, %v6655
    %v6676 = vpack.c.bf16 %v6658, %v6657
    %v6677 = vpack.c.bf16 %v6660, %v6659
    %v6678 = vpack.c.bf16 %v6662, %v6661
    %v6695 = vunpack.c.l.b16 %v6663
    %v6696 = vunpack.c.h.b16 %v6663
    %v6697 = vunpack.c.l.b16 %v6664
    %v6698 = vunpack.c.h.b16 %v6664
    %v6699 = vunpack.c.l.b16 %v6665
    %v6700 = vunpack.c.h.b16 %v6665
    %v6701 = vunpack.c.l.b16 %v6666
    %v6702 = vunpack.c.h.b16 %v6666
    %v6703 = vunpack.c.l.b16 %v6667
    %v6704 = vunpack.c.h.b16 %v6667
    %v6705 = vunpack.c.l.b16 %v6668
    %v6706 = vunpack.c.h.b16 %v6668
    %v6707 = vunpack.c.l.b16 %v6669
    %v6708 = vunpack.c.h.b16 %v6669
    %v6709 = vunpack.c.l.b16 %v6670
    %v6710 = vunpack.c.h.b16 %v6670
    %v6711 = vunpack.c.l.b16 %v6671
    %v6712 = vunpack.c.h.b16 %v6671
    %v6713 = vunpack.c.l.b16 %v6672
    %v6714 = vunpack.c.h.b16 %v6672
    %v6715 = vunpack.c.l.b16 %v6673
    %v6716 = vunpack.c.h.b16 %v6673
    %v6717 = vunpack.c.l.b16 %v6674
    %v6718 = vunpack.c.h.b16 %v6674
    %v6719 = vunpack.c.l.b16 %v6675
    %v6720 = vunpack.c.h.b16 %v6675
    %v6721 = vunpack.c.l.b16 %v6676
    %v6722 = vunpack.c.h.b16 %v6676
    %v6723 = vunpack.c.l.b16 %v6677
    %v6724 = vunpack.c.h.b16 %v6677
    %v6725 = vunpack.c.l.b16 %v6678
    %v6726 = vunpack.c.h.b16 %v6678
    %v6727 = vpack.c.b16 %v6695, %v6695
    %v6728 = vpack.c.b16 %v6696, %v6696
    %v6729 = vpack.c.b16 %v6697, %v6697
    %v6730 = vpack.c.b16 %v6698, %v6698
    %v6731 = vpack.c.b16 %v6699, %v6699
    %v6732 = vpack.c.b16 %v6700, %v6700
    %v6733 = vpack.c.b16 %v6701, %v6701
    %v6734 = vpack.c.b16 %v6702, %v6702
    %v6735 = vpack.c.b16 %v6703, %v6703
    %v6736 = vpack.c.b16 %v6704, %v6704
    %v6737 = vpack.c.b16 %v6705, %v6705
    %v6738 = vpack.c.b16 %v6706, %v6706
    %v6739 = vpack.c.b16 %v6707, %v6707
    %v6740 = vpack.c.b16 %v6708, %v6708
    %v6741 = vpack.c.b16 %v6709, %v6709
    %v6742 = vpack.c.b16 %v6710, %v6710
    %v6743 = vpack.c.b16 %v6711, %v6711
    %v6744 = vpack.c.b16 %v6712, %v6712
    %v6745 = vpack.c.b16 %v6713, %v6713
    %v6746 = vpack.c.b16 %v6714, %v6714
    %v6747 = vpack.c.b16 %v6715, %v6715
    %v6748 = vpack.c.b16 %v6716, %v6716
    %v6749 = vpack.c.b16 %v6717, %v6717
    %v6750 = vpack.c.b16 %v6718, %v6718
    %v6751 = vpack.c.b16 %v6719, %v6719
    %v6752 = vpack.c.b16 %v6720, %v6720
    %v6753 = vpack.c.b16 %v6721, %v6721
    %v6754 = vpack.c.b16 %v6722, %v6722
    %v6755 = vpack.c.b16 %v6723, %v6723
    %v6756 = vpack.c.b16 %v6724, %v6724
    %v6757 = vpack.c.b16 %v6725, %v6725
    %v6758 = vpack.c.b16 %v6726, %v6726
    %s6791 = scalar_lea.vmem %s2, 128
    %6792 = vst.msk [vmem:[%s6791] sm:$0xf] %vm3306, %v6727
    %6793 = vst.msk [vmem:[%s6791 + $0x4] sm:$0xf] %vm3306, %v6728
    %6794 = vst.msk [vmem:[%s6791 + $0x8] sm:$0xf] %vm3306, %v6729
    %6795 = vst.msk [vmem:[%s6791 + $0xc] sm:$0xf] %vm3306, %v6730
    %6796 = vst.msk [vmem:[%s6791 + $0x10] sm:$0xf] %vm3306, %v6731
    %6797 = vst.msk [vmem:[%s6791 + $0x14] sm:$0xf] %vm3306, %v6732
    %6798 = vst.msk [vmem:[%s6791 + $0x18] sm:$0xf] %vm3306, %v6733
    %6799 = vst.msk [vmem:[%s6791 + $0x1c] sm:$0xf] %vm3306, %v6734
    %6800 = vst.msk [vmem:[%s6791 + $0x20] sm:$0xf] %vm3306, %v6735
    %6801 = vst.msk [vmem:[%s6791 + $0x24] sm:$0xf] %vm3306, %v6736
    %6802 = vst.msk [vmem:[%s6791 + $0x28] sm:$0xf] %vm3306, %v6737
    %6803 = vst.msk [vmem:[%s6791 + $0x2c] sm:$0xf] %vm3306, %v6738
    %6804 = vst.msk [vmem:[%s6791 + $0x30] sm:$0xf] %vm3306, %v6739
    %6805 = vst.msk [vmem:[%s6791 + $0x34] sm:$0xf] %vm3306, %v6740
    %6806 = vst.msk [vmem:[%s6791 + $0x38] sm:$0xf] %vm3306, %v6741
    %6807 = vst.msk [vmem:[%s6791 + $0x3c] sm:$0xf] %vm3306, %v6742
    %6808 = vst.msk [vmem:[%s6791 + $0x40] sm:$0xf] %vm3306, %v6743
    %6809 = vst.msk [vmem:[%s6791 + $0x44] sm:$0xf] %vm3306, %v6744
    %6810 = vst.msk [vmem:[%s6791 + $0x48] sm:$0xf] %vm3306, %v6745
    %6811 = vst.msk [vmem:[%s6791 + $0x4c] sm:$0xf] %vm3306, %v6746
    %6812 = vst.msk [vmem:[%s6791 + $0x50] sm:$0xf] %vm3306, %v6747
    %6813 = vst.msk [vmem:[%s6791 + $0x54] sm:$0xf] %vm3306, %v6748
    %6814 = vst.msk [vmem:[%s6791 + $0x58] sm:$0xf] %vm3306, %v6749
    %6815 = vst.msk [vmem:[%s6791 + $0x5c] sm:$0xf] %vm3306, %v6750
    %6816 = vst.msk [vmem:[%s6791 + $0x60] sm:$0xf] %vm3306, %v6751
    %6817 = vst.msk [vmem:[%s6791 + $0x64] sm:$0xf] %vm3306, %v6752
    %6818 = vst.msk [vmem:[%s6791 + $0x68] sm:$0xf] %vm3306, %v6753
    %6819 = vst.msk [vmem:[%s6791 + $0x6c] sm:$0xf] %vm3306, %v6754
    %6820 = vst.msk [vmem:[%s6791 + $0x70] sm:$0xf] %vm3306, %v6755
    %6821 = vst.msk [vmem:[%s6791 + $0x74] sm:$0xf] %vm3306, %v6756
    %6822 = vst.msk [vmem:[%s6791 + $0x78] sm:$0xf] %vm3306, %v6757
    %6823 = vst.msk [vmem:[%s6791 + $0x7c] sm:$0xf] %vm3306, %v6758
    %v6824 = vsel %vm165, %v6631, 0.0
    %v6825 = vsel %vm165, %v6632, 0.0
    %v6826 = vadd.f32 %v6824, %v6825
    %v6827 = vsel %vm165, %v6633, 0.0
    %v6828 = vadd.f32 %v6826, %v6827
    %v6829 = vsel %vm165, %v6634, 0.0
    %v6830 = vadd.f32 %v6828, %v6829
    %v6831 = vsel %vm165, %v6635, 0.0
    %v6832 = vadd.f32 %v6830, %v6831
    %v6833 = vsel %vm165, %v6636, 0.0
    %v6834 = vadd.f32 %v6832, %v6833
    %v6835 = vsel %vm165, %v6637, 0.0
    %v6836 = vadd.f32 %v6834, %v6835
    %v6837 = vsel %vm165, %v6638, 0.0
    %v6838 = vadd.f32 %v6836, %v6837
    %v6839 = vsel %vm165, %v6639, 0.0
    %v6840 = vadd.f32 %v6838, %v6839
    %v6841 = vsel %vm165, %v6640, 0.0
    %v6842 = vadd.f32 %v6840, %v6841
    %v6843 = vsel %vm165, %v6641, 0.0
    %v6844 = vadd.f32 %v6842, %v6843
    %v6845 = vsel %vm165, %v6642, 0.0
    %v6846 = vadd.f32 %v6844, %v6845
    %v6847 = vsel %vm165, %v6643, 0.0
    %v6848 = vadd.f32 %v6846, %v6847
    %v6849 = vsel %vm165, %v6644, 0.0
    %v6850 = vadd.f32 %v6848, %v6849
    %v6851 = vsel %vm165, %v6645, 0.0
    %v6852 = vadd.f32 %v6850, %v6851
    %v6853 = vsel %vm165, %v6646, 0.0
    %v6854 = vadd.f32 %v6852, %v6853
    %v6855 = vsel %vm165, %v6647, 0.0
    %v6856 = vadd.f32 %v6854, %v6855
    %v6857 = vsel %vm165, %v6648, 0.0
    %v6858 = vadd.f32 %v6856, %v6857
    %v6859 = vsel %vm165, %v6649, 0.0
    %v6860 = vadd.f32 %v6858, %v6859
    %v6861 = vsel %vm165, %v6650, 0.0
    %v6862 = vadd.f32 %v6860, %v6861
    %v6863 = vsel %vm165, %v6651, 0.0
    %v6864 = vadd.f32 %v6862, %v6863
    %v6865 = vsel %vm165, %v6652, 0.0
    %v6866 = vadd.f32 %v6864, %v6865
    %v6867 = vsel %vm165, %v6653, 0.0
    %v6868 = vadd.f32 %v6866, %v6867
    %v6869 = vsel %vm165, %v6654, 0.0
    %v6870 = vadd.f32 %v6868, %v6869
    %v6871 = vsel %vm165, %v6655, 0.0
    %v6872 = vadd.f32 %v6870, %v6871
    %v6873 = vsel %vm165, %v6656, 0.0
    %v6874 = vadd.f32 %v6872, %v6873
    %v6875 = vsel %vm165, %v6657, 0.0
    %v6876 = vadd.f32 %v6874, %v6875
    %v6877 = vsel %vm165, %v6658, 0.0
    %v6878 = vadd.f32 %v6876, %v6877
    %v6879 = vsel %vm165, %v6659, 0.0
    %v6880 = vadd.f32 %v6878, %v6879
    %v6881 = vsel %vm165, %v6660, 0.0
    %v6882 = vadd.f32 %v6880, %v6881
    %v6883 = vsel %vm165, %v6661, 0.0
    %v6884 = vadd.f32 %v6882, %v6883
    %v6885 = vsel %vm165, %v6662, 0.0
    %v6886 = vadd.f32 %v6884, %v6885
    %v6887 = vrot.slane %v6886, 4
    %v6888 = vadd.f32 %v6886, %v6887
    %v6889 = vrot.slane %v6888, 2
    %v6890 = vadd.f32 %v6888, %v6889
    %v6891 = vrot.slane %v6890, 1
    %v6892 = vadd.f32 %v6890, %v6891
    %v6893 = vadd.f32 %v3408, %v6892
    %v6894 = vmul.f32 %v6631, %v6631
    %v6895 = vmul.f32 %v6632, %v6632
    %v6896 = vmul.f32 %v6633, %v6633
    %v6897 = vmul.f32 %v6634, %v6634
    %v6898 = vmul.f32 %v6635, %v6635
    %v6899 = vmul.f32 %v6636, %v6636
    %v6900 = vmul.f32 %v6637, %v6637
    %v6901 = vmul.f32 %v6638, %v6638
    %v6902 = vmul.f32 %v6639, %v6639
    %v6903 = vmul.f32 %v6640, %v6640
    %v6904 = vmul.f32 %v6641, %v6641
    %v6905 = vmul.f32 %v6642, %v6642
    %v6906 = vmul.f32 %v6643, %v6643
    %v6907 = vmul.f32 %v6644, %v6644
    %v6908 = vmul.f32 %v6645, %v6645
    %v6909 = vmul.f32 %v6646, %v6646
    %v6910 = vmul.f32 %v6647, %v6647
    %v6911 = vmul.f32 %v6648, %v6648
    %v6912 = vmul.f32 %v6649, %v6649
    %v6913 = vmul.f32 %v6650, %v6650
    %v6914 = vmul.f32 %v6651, %v6651
    %v6915 = vmul.f32 %v6652, %v6652
    %v6916 = vmul.f32 %v6653, %v6653
    %v6917 = vmul.f32 %v6654, %v6654
    %v6918 = vmul.f32 %v6655, %v6655
    %v6919 = vmul.f32 %v6656, %v6656
    %v6920 = vmul.f32 %v6657, %v6657
    %v6921 = vmul.f32 %v6658, %v6658
    %v6922 = vmul.f32 %v6659, %v6659
    %v6923 = vmul.f32 %v6660, %v6660
    %v6924 = vmul.f32 %v6661, %v6661
    %v6925 = vmul.f32 %v6662, %v6662
    %v6926 = vsel %vm165, %v6894, 0.0
    %v6927 = vsel %vm165, %v6895, 0.0
    %v6928 = vadd.f32 %v6926, %v6927
    %v6929 = vsel %vm165, %v6896, 0.0
    %v6930 = vadd.f32 %v6928, %v6929
    %v6931 = vsel %vm165, %v6897, 0.0
    %v6932 = vadd.f32 %v6930, %v6931
    %v6933 = vsel %vm165, %v6898, 0.0
    %v6934 = vadd.f32 %v6932, %v6933
    %v6935 = vsel %vm165, %v6899, 0.0
    %v6936 = vadd.f32 %v6934, %v6935
    %v6937 = vsel %vm165, %v6900, 0.0
    %v6938 = vadd.f32 %v6936, %v6937
    %v6939 = vsel %vm165, %v6901, 0.0
    %v6940 = vadd.f32 %v6938, %v6939
    %v6941 = vsel %vm165, %v6902, 0.0
    %v6942 = vadd.f32 %v6940, %v6941
    %v6943 = vsel %vm165, %v6903, 0.0
    %v6944 = vadd.f32 %v6942, %v6943
    %v6945 = vsel %vm165, %v6904, 0.0
    %v6946 = vadd.f32 %v6944, %v6945
    %v6947 = vsel %vm165, %v6905, 0.0
    %v6948 = vadd.f32 %v6946, %v6947
    %v6949 = vsel %vm165, %v6906, 0.0
    %v6950 = vadd.f32 %v6948, %v6949
    %v6951 = vsel %vm165, %v6907, 0.0
    %v6952 = vadd.f32 %v6950, %v6951
    %v6953 = vsel %vm165, %v6908, 0.0
    %v6954 = vadd.f32 %v6952, %v6953
    %v6955 = vsel %vm165, %v6909, 0.0
    %v6956 = vadd.f32 %v6954, %v6955
    %v6957 = vsel %vm165, %v6910, 0.0
    %v6958 = vadd.f32 %v6956, %v6957
    %v6959 = vsel %vm165, %v6911, 0.0
    %v6960 = vadd.f32 %v6958, %v6959
    %v6961 = vsel %vm165, %v6912, 0.0
    %v6962 = vadd.f32 %v6960, %v6961
    %v6963 = vsel %vm165, %v6913, 0.0
    %v6964 = vadd.f32 %v6962, %v6963
    %v6965 = vsel %vm165, %v6914, 0.0
    %v6966 = vadd.f32 %v6964, %v6965
    %v6967 = vsel %vm165, %v6915, 0.0
    %v6968 = vadd.f32 %v6966, %v6967
    %v6969 = vsel %vm165, %v6916, 0.0
    %v6970 = vadd.f32 %v6968, %v6969
    %v6971 = vsel %vm165, %v6917, 0.0
    %v6972 = vadd.f32 %v6970, %v6971
    %v6973 = vsel %vm165, %v6918, 0.0
    %v6974 = vadd.f32 %v6972, %v6973
    %v6975 = vsel %vm165, %v6919, 0.0
    %v6976 = vadd.f32 %v6974, %v6975
    %v6977 = vsel %vm165, %v6920, 0.0
    %v6978 = vadd.f32 %v6976, %v6977
    %v6979 = vsel %vm165, %v6921, 0.0
    %v6980 = vadd.f32 %v6978, %v6979
    %v6981 = vsel %vm165, %v6922, 0.0
    %v6982 = vadd.f32 %v6980, %v6981
    %v6983 = vsel %vm165, %v6923, 0.0
    %v6984 = vadd.f32 %v6982, %v6983
    %v6985 = vsel %vm165, %v6924, 0.0
    %v6986 = vadd.f32 %v6984, %v6985
    %v6987 = vsel %vm165, %v6925, 0.0
    %v6988 = vadd.f32 %v6986, %v6987
    %v6989 = vrot.slane %v6988, 4
    %v6990 = vadd.f32 %v6988, %v6989
    %v6991 = vrot.slane %v6990, 2
    %v6992 = vadd.f32 %v6990, %v6991
    %v6993 = vrot.slane %v6992, 1
    %v6994 = vadd.f32 %v6992, %v6993
    %v6995 = vadd.f32 %v3510, %v6994
    %vm6996 = vcmask 24576
    %6997 = vst.msk [vmem:[#allocation2] sm:$0x1] %vm6996, %v6893
    %6998 = vst.msk [vmem:[#allocation4] sm:$0x1] %vm6996, %v6995
    // Predicated region
    $region10: #{tpu_custom_call.1} parent=1 // pred_check
      _
    $region11: #{tpu_custom_call.1} parent=1 // pred_check_branch
      %7000 = sbr.rel (0) target = $region13
    $region12: #{tpu_custom_call.1} parent=1 // pred_region
      _
    $region13: #{tpu_custom_call.1} parent=1 // pred_fallthru
      _
    // Predicated region
    $region14: #{tpu_custom_call.1} parent=1 // pred_check
      _
    $region15: #{tpu_custom_call.1} parent=1 // pred_check_branch
      %7002 = sbr.rel (0) target = $region17
    $region16: #{tpu_custom_call.1} parent=1 // pred_region
      %s7004 = ssub.s32 16, 16
      %7005 = vsyncadd [#allocation3], %s7004
      %s7007 = sshll.u32 [#allocation2], 4
      %s7008 = int_to_ptr.vmem [resolvable:$true] %s7007
      %7010 = dma.vmem_to_hbm [thread:$0]  %s7008, 16, %s3, [#allocation3]
    $region17: #{tpu_custom_call.1} parent=1 // pred_fallthru
      _
    // Predicated region
    $region18: #{tpu_custom_call.1} parent=1 // pred_check
      _
    $region19: #{tpu_custom_call.1} parent=1 // pred_check_branch
      %7012 = sbr.rel (0) target = $region21
    $region20: #{tpu_custom_call.1} parent=1 // pred_region
      %s7014 = ssub.s32 16, 16
      %7015 = vsyncadd [#allocation5], %s7014
      %s7017 = sshll.u32 [#allocation4], 4
      %s7018 = int_to_ptr.vmem [resolvable:$true] %s7017
      %7020 = dma.vmem_to_hbm [thread:$0]  %s7018, 16, %s4, [#allocation5]
    $region21: #{tpu_custom_call.1} parent=1 // pred_fallthru
      _
    // Predicated region
    $region22: #{tpu_custom_call.1} parent=1 // pred_check
      _
    $region23: #{tpu_custom_call.1} parent=1 // pred_check_branch
      %7022 = sbr.rel (0) target = $region25
    $region24: #{tpu_custom_call.1} parent=1 // pred_region
      _
    $region25: #{tpu_custom_call.1} parent=1 // pred_fallthru
      _
    // Predicated region
    $region26: #{tpu_custom_call.1} parent=1 // pred_check
      _
    $region27: #{tpu_custom_call.1} parent=1 // pred_check_branch
      %7024 = sbr.rel (0) target = $region29
    $region28: #{tpu_custom_call.1} parent=1 // pred_region
      %7025 = dma.done [#allocation3], 16
    $region29: #{tpu_custom_call.1} parent=1 // pred_fallthru
      _
    // Predicated region
    $region30: #{tpu_custom_call.1} parent=1 // pred_check
      _
    $region31: #{tpu_custom_call.1} parent=1 // pred_check_branch
      %7027 = sbr.rel (0) target = $region33
    $region32: #{tpu_custom_call.1} parent=1 // pred_region
      %7028 = dma.done [#allocation5], 16
    $region33: #{tpu_custom_call.1} parent=1 // pred_fallthru
      _
    %7029 = vsyncpa [#allocation3], 1
    %7030 = vsyncpa [#allocation5], 1

</llo_original>
